<compile_context>
chip_gen: v7x
topology: tpu7x:2x2x1
jax: 0.10.0
libtpu: 0.0.40
codegen_flags: <defaults>
</compile_context>

<pallas_src>
import functools

import jax
import jax.numpy as jnp
from jax import lax
from jax.experimental import pallas as pl
from jax.experimental.pallas import tpu as pltpu

EPS = 1e-6        # VN nonlinearity epsilon (matches module)
BN_EPS = 1e-5     # nn.BatchNorm1d default eps

_VN_COUT = (64, 64, 64, 128, 512)

# Conservative per-point VMEM estimates (bytes) used to pick tile sizes.
#   backbone: all pd_i / h_i live in f32 (worst case) + double-buffered x (f32) and
#             pf (bf16) pipeline blocks.
_BB_PER_POINT = 3 * 4 * sum(3 * c for c in _VN_COUT) + 2 * 3 * 4 + 2 * 192 * 2
#   head: f32 intermediates + bf16 copies + double-buffered pf (bf16) / out (f32) blocks.
_HEAD_PER_POINT = 4 * (512 + 256 + 128 + 3) + 2 * (512 + 256 + 128) + 2 * 2 * 192 + 2 * 4 * 3
_FIXED_BYTES = 4 * 1024 * 1024   # weights (double-buffered) + Mosaic internal slack


# ----------------------------------------------------------------------------
# Generation-aware VMEM limit, elementwise dtype, and point-tile selection
# ----------------------------------------------------------------------------
def _device_kind():
    try:
        return jax.devices()[0].device_kind.lower()
    except Exception:
        return ""


def _vmem_limit_bytes():
    """Scoped-VMEM request sized to the chip (128 MiB v5e/v6e, 64 MiB v7x)."""
    cap = None
    try:
        info = pltpu.get_tpu_info()
        for name in ("vmem_capacity_bytes", "vmem_size_bytes", "vmem_bytes"):
            v = getattr(info, name, None)
            if v:
                cap = int(v)
                break
    except Exception:
        cap = None
    if cap is None:
        kind = _device_kind()
        cap = 64 * 1024 * 1024 if "v7" in kind else 128 * 1024 * 1024
    # leave headroom for Mosaic internal scratch
    return max(32 * 1024 * 1024, min(cap - 8 * 1024 * 1024, 100 * 1024 * 1024))


def _elementwise_dtype():
    """bf16 elementwise on parts with a bf16 VALU (v6e/v7x); f32 on v5e and older."""
    kind = _device_kind()
    for old in ("v2", "v3", "v4", "v5"):
        if old in kind:
            return jnp.float32
    return jnp.bfloat16 if kind else jnp.float32


def _pick_tile(n_pad, vmem_limit, per_point_bytes, prefs):
    """Largest preferred point-tile that divides n_pad and fits the VMEM estimate."""
    budget = max(vmem_limit - _FIXED_BYTES, 8 * 1024 * 1024)
    for t in prefs:
        if n_pad % t == 0 and t * per_point_bytes <= budget:
            return t
    return 128   # n_pad is always padded to a multiple of 128


# ----------------------------------------------------------------------------
# Kernel 1: fused VN backbone (conv1..conv5) + global max-pool of h5
# ----------------------------------------------------------------------------
def _vn_nonlinearity(pd, cout, negative_slope, elem_dtype, out_dtype):
    # pd: [3, T, 2*cout] = [p | d] (f32 MXU accumulator, or elem_dtype for conv1)
    # out = p - (1 - ns) * min(<p,d> / (|d|^2 + eps), 0) * d
    # (algebraically identical to the mask/select form in the PyTorch module)
    p = pd[:, :, :cout].astype(elem_dtype)
    d = pd[:, :, cout:].astype(elem_dtype)
    dot = jnp.sum(p * d, axis=0, keepdims=True).astype(jnp.float32)     # [1, T, cout]
    dsq = jnp.sum(d * d, axis=0, keepdims=True).astype(jnp.float32)
    coef = dot / (dsq + EPS)                                            # exact f32 divide
    neg = jnp.minimum(coef, 0.0)
    if negative_slope != 0.0:
        neg = (1.0 - negative_slope) * neg
    out = p - neg.astype(elem_dtype) * d                                # [3, T, cout]
    return out.astype(out_dtype)


def _fused_vn_kernel(x_ref, w1_ref, w2_ref, w3_ref, w4_ref, w5_ref,
                     pf_ref, gmax_ref, *, negative_slope, elem_dtype, n_real, npt):
    s_id = pl.program_id(1)
    n_id = pl.program_id(2)
    x3 = x_ref[0]                                            # [3, T] f32
    t = x3.shape[1]

    def vn_layer(h_bf16, w_ref, cout, out_dtype):
        # h_bf16: [3, T, Cin] bf16; w_ref: [Cin, 2*Cout] bf16 (map_to_feat | map_to_dir)
        cin = h_bf16.shape[-1]
        pd = jnp.dot(h_bf16.reshape(3 * t, cin), w_ref[...],
                     preferred_element_type=jnp.float32).reshape(3, t, 2 * cout)
        return _vn_nonlinearity(pd, cout, negative_slope, elem_dtype, out_dtype)

    # conv1: Cin == 1 -> pure VPU outer product (no MXU operand cast needed).
    pd1 = x3[:, :, None].astype(elem_dtype) * w1_ref[...][None].astype(elem_dtype)
    h = _vn_nonlinearity(pd1, _VN_COUT[0], negative_slope, elem_dtype, jnp.bfloat16)

    # conv2 -> point features: keep f32 for a safe transpose, store lane-dense bf16.
    h2 = vn_layer(h, w2_ref, _VN_COUT[1], jnp.float32)                   # [3, T, 64]
    pf_ref[0] = jnp.transpose(h2, (0, 2, 1)).reshape(3 * _VN_COUT[1], t).astype(pf_ref.dtype)

    h = h2.astype(jnp.bfloat16)
    h = vn_layer(h, w3_ref, _VN_COUT[2], jnp.bfloat16)                   # conv3
    h = vn_layer(h, w4_ref, _VN_COUT[3], jnp.bfloat16)                   # conv4 [3,T,128]
    h5 = vn_layer(h, w5_ref, _VN_COUT[4], jnp.float32)                   # conv5 [3,T,512]

    # MaxPool1d(num_pts) folded into the producer: running max over N tiles.
    if n_real % t != 0:   # static: padded points exist -> mask them out of the max
        start = (s_id * npt + n_id) * t
        idx = start + lax.broadcasted_iota(jnp.int32, (1, t, 1), 1)
        h5 = jnp.where(idx < n_real, h5, -jnp.inf)
    m = jnp.max(h5, axis=1)                                              # [3, 512]

    prev = jnp.where(n_id == 0, -jnp.inf, gmax_ref[0, 0])
    gmax_ref[0, 0] = jnp.maximum(m, prev)


def fused_vn_backbone(x, wcats, *, negative_slope, n_real):
    """x: [B, 3, Npad]; wcats[i]: [Cin_i, 2*Cout_i] (conv1 f32, rest bf16).
    Returns (pf [B, 192, Npad] bf16, gmax [B, S, 3, 512] f32 per-split partial maxes)."""
    B, _, n_pad = x.shape
    vmem = _vmem_limit_bytes()
    T = _pick_tile(n_pad, vmem, _BB_PER_POINT, prefs=(1024, 512, 256, 128))
    nt = n_pad // T
    # Leading point-axis split so v7x's 2 TensorCores can share the backbone even at B=1.
    S = 2 if (nt >= 2 and nt % 2 == 0) else 1
    npt = nt // S

    in_specs = [pl.BlockSpec((1, 3, T), lambda b, s, n: (b, 0, s * npt + n))]
    in_specs += [pl.BlockSpec(w.shape, lambda b, s, n: (0, 0)) for w in wcats]

    kern = functools.partial(_fused_vn_kernel, negative_slope=float(negative_slope),
                             elem_dtype=_elementwise_dtype(), n_real=int(n_real), npt=npt)
    return pl.pallas_call(
        kern,
        out_shape=(jax.ShapeDtypeStruct((B, 3 * _VN_COUT[1], n_pad), jnp.bfloat16),
                   jax.ShapeDtypeStruct((B, S, 3, _VN_COUT[4]), jnp.float32)),
        grid_spec=pltpu.PrefetchScalarGridSpec(
            num_scalar_prefetch=0,
            grid=(B, S, npt),
            in_specs=in_specs,
            out_specs=[
                pl.BlockSpec((1, 3 * _VN_COUT[1], T), lambda b, s, n: (b, 0, s * npt + n)),
                pl.BlockSpec((1, 1, 3, _VN_COUT[4]), lambda b, s, n: (b, s, 0, 0)),
            ],
        ),
        compiler_params=pltpu.CompilerParams(
            # n-axis carries the running-max accumulator -> "arbitrary"
            dimension_semantics=("parallel", "parallel", "arbitrary"),
            vmem_limit_bytes=vmem,
        ),
    )(x, *wcats)


# ----------------------------------------------------------------------------
# Kernel 2: head (conv6..conv9 with folded BN), channel-major, lane-dense output
# ----------------------------------------------------------------------------
def _head_kernel(pf_ref, bias6_ref, w6_ref, w7_ref, b7_ref,
                 w8_ref, b8_ref, w9_ref, b9_ref, o_ref):
    pf = pf_ref[0]                                                       # [192, T] bf16
    h = jnp.dot(w6_ref[...], pf, preferred_element_type=jnp.float32)     # conv6 (K=192 fused)
    h = jnp.maximum(h + bias6_ref[0], 0.0).astype(jnp.bfloat16)          # relu(bn6(conv6))
    h = jnp.dot(w7_ref[...], h, preferred_element_type=jnp.float32) + b7_ref[...]
    h = jnp.maximum(h, 0.0).astype(jnp.bfloat16)                         # relu(bn7(conv7))
    h = jnp.dot(w8_ref[...], h, preferred_element_type=jnp.float32) + b8_ref[...]
    h = jnp.maximum(h, 0.0).astype(jnp.bfloat16)                         # relu(bn8(conv8))
    out = jnp.dot(w9_ref[...], h, preferred_element_type=jnp.float32) + b9_ref[...]
    o_ref[0] = out.astype(o_ref.dtype)                                   # bn9(conv9), no relu


def head_mlp(pf, bias6, w6pf, w7, b7, w8, b8, w9, b9):
    B, _, n_pad = pf.shape
    vmem = _vmem_limit_bytes()
    # Head tile is decoupled from the backbone tile (footprint is much smaller).
    T = _pick_tile(n_pad, vmem, _HEAD_PER_POINT, prefs=(4096, 2048, 1024, 512, 256, 128))
    nt = n_pad // T

    def full(arr):
        nd = arr.ndim
        return pl.BlockSpec(arr.shape, lambda b, n, _nd=nd: (0,) * _nd)

    return pl.pallas_call(
        _head_kernel,
        out_shape=jax.ShapeDtypeStruct((B, 3, n_pad), jnp.float32),
        grid_spec=pltpu.PrefetchScalarGridSpec(
            num_scalar_prefetch=0,
            grid=(B, nt),
            in_specs=[
                pl.BlockSpec((1, 192, T), lambda b, n: (b, 0, n)),
                pl.BlockSpec((1, 512, 1), lambda b, n: (b, 0, 0)),
                full(w6pf), full(w7), full(b7), full(w8), full(b8), full(w9), full(b9),
            ],
            out_specs=pl.BlockSpec((1, 3, T), lambda b, n: (b, 0, n)),
        ),
        compiler_params=pltpu.CompilerParams(
            dimension_semantics=("parallel", "parallel"),
            vmem_limit_bytes=vmem,
        ),
    )(pf, bias6, w6pf, w7, b7, w8, b8, w9, b9)


# ----------------------------------------------------------------------------
# Parameter setup (deterministic, synthetic) + forward glue
# ----------------------------------------------------------------------------
def init_params(key):
    ks = iter(jax.random.split(key, 64))

    def lin_w(out_c, in_c):
        return jax.random.normal(next(ks), (out_c, in_c), jnp.float32) / jnp.sqrt(in_c)

    def bn_params(c):
        gamma = 1.0 + 0.1 * jax.random.normal(next(ks), (c,), jnp.float32)
        beta = 0.1 * jax.random.normal(next(ks), (c,), jnp.float32)
        rm = 0.1 * jax.random.normal(next(ks), (c,), jnp.float32)
        rv = jax.random.uniform(next(ks), (c,), jnp.float32, minval=0.5, maxval=1.5)
        return gamma, beta, rm, rv

    p = {}
    # VN layers: (in, out) = (1,64), (64,64), (64,64), (64,128), (128,512)
    for i, (ci, co) in enumerate([(1, 64), (64, 64), (64, 64), (64, 128), (128, 512)], 1):
        p[f"wf{i}"] = lin_w(co, ci)     # map_to_feat.weight  [out, in]
        p[f"wd{i}"] = lin_w(co, ci)     # map_to_dir.weight   [out, in]

    def conv1x1(out_c, in_c):
        w = lin_w(out_c, in_c)                                           # [out, in]
        b = 0.1 * jax.random.normal(next(ks), (out_c,), jnp.float32)
        return w, b

    w6, b6 = conv1x1(512, 3236); bn6 = bn_params(512)
    w7, b7 = conv1x1(256, 512);  bn7 = bn_params(256)
    w8, b8 = conv1x1(128, 256);  bn8 = bn_params(128)
    w9, b9 = conv1x1(3, 128);    bn9 = bn_params(3)

    def fold_bn(w, b, bnp):   # eval-mode BN folded into conv weight / bias
        gamma, beta, rm, rv = bnp
        s = gamma / jnp.sqrt(rv + BN_EPS)
        return w * s[:, None], b * s + beta - rm * s

    w6e, b6e = fold_bn(w6, b6, bn6)
    w7e, b7e = fold_bn(w7, b7, bn7)
    w8e, b8e = fold_bn(w8, b8, bn8)
    w9e, b9e = fold_bn(w9, b9, bn9)

    # Split / reorder conv6 weights to match the PyTorch concat + reshape.
    # Flattened VN channel index in the PyTorch [B, C*3, N] tensor is c*3 + k;
    # pf rows in this implementation are ordered k*64 + c (channel-major, lane-dense).
    p["head"] = dict(
        w6pf=w6e[:, 0:192].reshape(512, 64, 3).transpose(0, 2, 1).reshape(512, 192),
        w6g=w6e[:, 192:1728].T.reshape(512, 3, 512).transpose(1, 0, 2),  # [3, 512, 512]
        w6c=w6e[:, 1728:3236].T,                                         # [1508, 512]
        b6=b6e,                                                          # [512]
        w7=w7e, b7=b7e[:, None],                                         # [256,512], [256,1]
        w8=w8e, b8=b8e[:, None],                                         # [128,256], [128,1]
        w9=w9e, b9=b9e[:, None],                                         # [3,128],   [3,1]
    )
    return p


def mlp_rot_inv_for(params, x, other_input1, other_input2, other_input3):
    """x: [B, num_pts, 3]; other1: [B,1280]; other2: [B,199,1]; other3: [B,29,1]."""
    B, n_real, _ = x.shape
    x0 = jnp.transpose(x.astype(jnp.float32), (0, 2, 1))                 # [B, 3, N]

    # Pad the point axis to a multiple of 128 (lane-dense tiles for any N); padded
    # points are zeros and are masked out of the global max inside the kernel.
    n_pad = ((n_real + 127) // 128) * 128
    if n_pad != n_real:
        x0 = jnp.pad(x0, ((0, 0), (0, 0), (0, n_pad - n_real)))

    # Fuse map_to_feat / map_to_dir into one [Cin, 2*Cout] weight per VN layer.
    # conv1 (Cin=1) stays f32 (it is a VPU outer product, not an MXU operand).
    def wcat(i):
        return jnp.concatenate([params[f"wf{i}"].T, params[f"wd{i}"].T], axis=1)
    wcats = [wcat(1).astype(jnp.float32)] + [wcat(i).astype(jnp.bfloat16) for i in range(2, 6)]

    # All five VNLinearLeakyReLU layers in this module use negative_slope = 0.0.
    pf, gmax_s = fused_vn_backbone(x0, wcats, negative_slope=0.0, n_real=n_real)
    gmax = jnp.max(gmax_s, axis=1)                                       # combine split partials

    # Point-independent conv6 terms: tiny per-batch GEMVs done in plain XLA,
    # passed to the head as a [B, 512, 1] bias (g + codes + folded bn6 bias).
    hd = params["head"]
    codes = jnp.concatenate(
        [other_input1.astype(jnp.float32),
         other_input2[:, :, 0].astype(jnp.float32),
         other_input3[:, :, 0].astype(jnp.float32)], axis=1)             # [B, 1508]
    g = jnp.einsum("bkc,kco->bo", gmax, hd["w6g"])                       # global features
    c = jnp.dot(codes, hd["w6c"])                                        # avgpool/shape/expr
    bias6 = (g + c + hd["b6"])[:, :, None]                               # [B, 512, 1]

    out3n = head_mlp(pf, bias6,
                     hd["w6pf"].astype(jnp.bfloat16),
                     hd["w7"].astype(jnp.bfloat16), hd["b7"],
                     hd["w8"].astype(jnp.bfloat16), hd["b8"],
                     hd["w9"].astype(jnp.bfloat16), hd["b9"])            # [B, 3, Npad]
    return jnp.transpose(out3n[:, :, :n_real], (0, 2, 1))                # [B, N, 3]


if __name__ == "__main__":
    B, num_pts = 2, 8
    key = jax.random.PRNGKey(0)
    k_x, k_o1, k_o2, k_o3, k_params = jax.random.split(key, 5)

    x = jax.random.normal(k_x, (B, num_pts, 3), jnp.float32)
    other1 = jax.random.normal(k_o1, (B, 1280), jnp.float32)       # avgpool
    other2 = jax.random.normal(k_o2, (B, 199, 1), jnp.float32)     # shape code
    other3 = jax.random.normal(k_o3, (B, 29, 1), jnp.float32)      # expr code

    params = init_params(k_params)

    out = mlp_rot_inv_for(params, x, other1, other2, other3)
    out = jax.block_until_ready(out)

    assert out.shape == (B, num_pts, 3), out.shape
    assert bool(jnp.all(jnp.isfinite(out)))
    print("KERNEL_OK")
</pallas_src>

<mosaic_0001>
module attributes {stable_mosaic.version = 11 : i64} {
  func.func @_fused_vn_kernel(%arg0: i32, %arg1: i32, %arg2: i32, %arg3: memref<1x3x128xf32, #tpu.memory_space<vmem>>, %arg4: memref<1x128xf32, #tpu.memory_space<vmem>>, %arg5: memref<64x128xbf16, #tpu.memory_space<vmem>>, %arg6: memref<64x128xbf16, #tpu.memory_space<vmem>>, %arg7: memref<64x256xbf16, #tpu.memory_space<vmem>>, %arg8: memref<128x1024xbf16, #tpu.memory_space<vmem>>, %arg9: memref<1x192x128xbf16, #tpu.memory_space<vmem>>, %arg10: memref<1x1x3x512xf32, #tpu.memory_space<vmem>>) attributes {dimension_semantics = [#tpu.dimension_semantics<parallel>, #tpu.dimension_semantics<parallel>, #tpu.dimension_semantics<arbitrary>], iteration_bounds = array<i64: 2, 1, 1>, scalar_prefetch = 0 : i64, scratch_operands = 0 : i64, tpu.core_type = #tpu.core_type<tc>, window_params = [{transform_indices = @transform_0, window_bounds = array<i64: 1, 3, 128>}, {pipeline_mode = #tpu.pipeline_mode<synchronous>, transform_indices = @transform_1, window_bounds = array<i64: 1, 128>}, {pipeline_mode = #tpu.pipeline_mode<synchronous>, transform_indices = @transform_2, window_bounds = array<i64: 64, 128>}, {pipeline_mode = #tpu.pipeline_mode<synchronous>, transform_indices = @transform_3, window_bounds = array<i64: 64, 128>}, {pipeline_mode = #tpu.pipeline_mode<synchronous>, transform_indices = @transform_4, window_bounds = array<i64: 64, 256>}, {pipeline_mode = #tpu.pipeline_mode<synchronous>, transform_indices = @transform_5, window_bounds = array<i64: 128, 1024>}, {transform_indices = @transform_6, window_bounds = array<i64: 1, 192, 128>}, {transform_indices = @transform_7, window_bounds = array<i64: 1, 1, 3, 512>}]} {
    %c0 = arith.constant 0 : index
    %c0_0 = arith.constant 0 : index
    %c0_1 = arith.constant 0 : index
    %0 = vector.load %arg3[%c0, %c0_0, %c0_1] : memref<1x3x128xf32, #tpu.memory_space<vmem>>, vector<1x3x128xf32>
    %1 = vector.shape_cast %0 : vector<1x3x128xf32> to vector<3x128xf32>
    %2 = vector.shape_cast %1 : vector<3x128xf32> to vector<3x128x1xf32>
    %3 = arith.truncf %2 : vector<3x128x1xf32> to vector<3x128x1xbf16>
    %c0_2 = arith.constant 0 : index
    %c0_3 = arith.constant 0 : index
    %4 = vector.load %arg4[%c0_2, %c0_3] : memref<1x128xf32, #tpu.memory_space<vmem>>, vector<1x128xf32>
    %5 = vector.shape_cast %4 : vector<1x128xf32> to vector<1x1x128xf32>
    %6 = arith.truncf %5 : vector<1x1x128xf32> to vector<1x1x128xbf16>
    %7 = vector.broadcast %3 : vector<3x128x1xbf16> to vector<3x128x128xbf16>
    %8 = vector.broadcast %6 : vector<1x1x128xbf16> to vector<3x128x128xbf16>
    %9 = arith.mulf %7, %8 : vector<3x128x128xbf16>
    %10 = vector.extract_strided_slice %9 {offsets = [0, 0, 0], sizes = [3, 128, 64], strides = [1, 1, 1]} : vector<3x128x128xbf16> to vector<3x128x64xbf16>
    %11 = vector.extract_strided_slice %9 {offsets = [0, 0, 64], sizes = [3, 128, 64], strides = [1, 1, 1]} : vector<3x128x128xbf16> to vector<3x128x64xbf16>
    %12 = arith.mulf %10, %11 : vector<3x128x64xbf16>
    %13 = arith.extf %12 : vector<3x128x64xbf16> to vector<3x128x64xf32>
    %cst = arith.constant dense<0.000000e+00> : vector<128x64xf32>
    %14 = vector.multi_reduction <add>, %13, %cst [0] : vector<3x128x64xf32> to vector<128x64xf32>
    %15 = vector.shape_cast %14 : vector<128x64xf32> to vector<1x128x64xf32>
    %16 = arith.truncf %15 : vector<1x128x64xf32> to vector<1x128x64xbf16>
    %17 = arith.extf %16 : vector<1x128x64xbf16> to vector<1x128x64xf32>
    %18 = arith.mulf %11, %11 : vector<3x128x64xbf16>
    %19 = arith.extf %18 : vector<3x128x64xbf16> to vector<3x128x64xf32>
    %cst_4 = arith.constant dense<0.000000e+00> : vector<128x64xf32>
    %20 = vector.multi_reduction <add>, %19, %cst_4 [0] : vector<3x128x64xf32> to vector<128x64xf32>
    %21 = vector.shape_cast %20 : vector<128x64xf32> to vector<1x128x64xf32>
    %22 = arith.truncf %21 : vector<1x128x64xf32> to vector<1x128x64xbf16>
    %23 = arith.extf %22 : vector<1x128x64xbf16> to vector<1x128x64xf32>
    %cst_5 = arith.constant 9.99999997E-7 : f32
    %24 = vector.broadcast %cst_5 : f32 to vector<1x128x64xf32>
    %25 = arith.addf %23, %24 : vector<1x128x64xf32>
    %26 = arith.divf %17, %25 : vector<1x128x64xf32>
    %cst_6 = arith.constant 0.000000e+00 : f32
    %27 = vector.broadcast %cst_6 : f32 to vector<1x128x64xf32>
    %28 = arith.minimumf %26, %27 : vector<1x128x64xf32>
    %29 = arith.truncf %28 : vector<1x128x64xf32> to vector<1x128x64xbf16>
    %30 = vector.broadcast %29 : vector<1x128x64xbf16> to vector<3x128x64xbf16>
    %31 = arith.mulf %30, %11 : vector<3x128x64xbf16>
    %32 = arith.subf %10, %31 : vector<3x128x64xbf16>
    %33 = vector.shape_cast %32 : vector<3x128x64xbf16> to vector<384x64xbf16>
    %c0_7 = arith.constant 0 : index
    %c0_8 = arith.constant 0 : index
    %34 = vector.load %arg5[%c0_7, %c0_8] : memref<64x128xbf16, #tpu.memory_space<vmem>>, vector<64x128xbf16>
    %cst_9 = arith.constant dense<0.000000e+00> : vector<384x128xf32>
    %35 = tpu.matmul %33, %34, %cst_9 {dimension_numbers = #tpu.dot_dimension_numbers<[1], [0], [0], [1], [0, 0, 1, 1], [], []>} : vector<384x64xbf16>, vector<64x128xbf16>, vector<384x128xf32> -> vector<384x128xf32>
    %36 = vector.shape_cast %35 : vector<384x128xf32> to vector<3x128x128xf32>
    %37 = vector.extract_strided_slice %36 {offsets = [0, 0, 0], sizes = [3, 128, 64], strides = [1, 1, 1]} : vector<3x128x128xf32> to vector<3x128x64xf32>
    %38 = arith.truncf %37 : vector<3x128x64xf32> to vector<3x128x64xbf16>
    %39 = vector.extract_strided_slice %36 {offsets = [0, 0, 64], sizes = [3, 128, 64], strides = [1, 1, 1]} : vector<3x128x128xf32> to vector<3x128x64xf32>
    %40 = arith.truncf %39 : vector<3x128x64xf32> to vector<3x128x64xbf16>
    %41 = arith.mulf %38, %40 : vector<3x128x64xbf16>
    %42 = arith.extf %41 : vector<3x128x64xbf16> to vector<3x128x64xf32>
    %cst_10 = arith.constant dense<0.000000e+00> : vector<128x64xf32>
    %43 = vector.multi_reduction <add>, %42, %cst_10 [0] : vector<3x128x64xf32> to vector<128x64xf32>
    %44 = vector.shape_cast %43 : vector<128x64xf32> to vector<1x128x64xf32>
    %45 = arith.truncf %44 : vector<1x128x64xf32> to vector<1x128x64xbf16>
    %46 = arith.extf %45 : vector<1x128x64xbf16> to vector<1x128x64xf32>
    %47 = arith.mulf %40, %40 : vector<3x128x64xbf16>
    %48 = arith.extf %47 : vector<3x128x64xbf16> to vector<3x128x64xf32>
    %cst_11 = arith.constant dense<0.000000e+00> : vector<128x64xf32>
    %49 = vector.multi_reduction <add>, %48, %cst_11 [0] : vector<3x128x64xf32> to vector<128x64xf32>
    %50 = vector.shape_cast %49 : vector<128x64xf32> to vector<1x128x64xf32>
    %51 = arith.truncf %50 : vector<1x128x64xf32> to vector<1x128x64xbf16>
    %52 = arith.extf %51 : vector<1x128x64xbf16> to vector<1x128x64xf32>
    %cst_12 = arith.constant 9.99999997E-7 : f32
    %53 = vector.broadcast %cst_12 : f32 to vector<1x128x64xf32>
    %54 = arith.addf %52, %53 : vector<1x128x64xf32>
    %55 = arith.divf %46, %54 : vector<1x128x64xf32>
    %cst_13 = arith.constant 0.000000e+00 : f32
    %56 = vector.broadcast %cst_13 : f32 to vector<1x128x64xf32>
    %57 = arith.minimumf %55, %56 : vector<1x128x64xf32>
    %58 = arith.truncf %57 : vector<1x128x64xf32> to vector<1x128x64xbf16>
    %59 = vector.broadcast %58 : vector<1x128x64xbf16> to vector<3x128x64xbf16>
    %60 = arith.mulf %59, %40 : vector<3x128x64xbf16>
    %61 = arith.subf %38, %60 : vector<3x128x64xbf16>
    %62 = arith.extf %61 : vector<3x128x64xbf16> to vector<3x128x64xf32>
    %63 = tpu.transpose %62, [0, 2, 1] : vector<3x128x64xf32> -> vector<3x64x128xf32>
    %64 = vector.shape_cast %63 : vector<3x64x128xf32> to vector<192x128xf32>
    %65 = arith.truncf %64 : vector<192x128xf32> to vector<192x128xbf16>
    %c0_14 = arith.constant 0 : index
    %c0_15 = arith.constant 0 : index
    %c0_16 = arith.constant 0 : index
    %66 = vector.load %arg9[%c0_14, %c0_15, %c0_16] : memref<1x192x128xbf16, #tpu.memory_space<vmem>>, vector<1x192x128xbf16>
    %67 = vector.shape_cast %66 : vector<1x192x128xbf16> to vector<192x128xbf16>
    %68 = vector.shape_cast %65 : vector<192x128xbf16> to vector<1x192x128xbf16>
    tpu.vector_store %arg9[%c0_14, %c0_15, %c0_16], %68 {strides = array<i32>} : memref<1x192x128xbf16, #tpu.memory_space<vmem>>, vector<1x192x128xbf16>,
    %69 = arith.truncf %62 : vector<3x128x64xf32> to vector<3x128x64xbf16>
    %70 = vector.shape_cast %69 : vector<3x128x64xbf16> to vector<384x64xbf16>
    %c0_17 = arith.constant 0 : index
    %c0_18 = arith.constant 0 : index
    %71 = vector.load %arg6[%c0_17, %c0_18] : memref<64x128xbf16, #tpu.memory_space<vmem>>, vector<64x128xbf16>
    %cst_19 = arith.constant dense<0.000000e+00> : vector<384x128xf32>
    %72 = tpu.matmul %70, %71, %cst_19 {dimension_numbers = #tpu.dot_dimension_numbers<[1], [0], [0], [1], [0, 0, 1, 1], [], []>} : vector<384x64xbf16>, vector<64x128xbf16>, vector<384x128xf32> -> vector<384x128xf32>
    %73 = vector.shape_cast %72 : vector<384x128xf32> to vector<3x128x128xf32>
    %74 = vector.extract_strided_slice %73 {offsets = [0, 0, 0], sizes = [3, 128, 64], strides = [1, 1, 1]} : vector<3x128x128xf32> to vector<3x128x64xf32>
    %75 = arith.truncf %74 : vector<3x128x64xf32> to vector<3x128x64xbf16>
    %76 = vector.extract_strided_slice %73 {offsets = [0, 0, 64], sizes = [3, 128, 64], strides = [1, 1, 1]} : vector<3x128x128xf32> to vector<3x128x64xf32>
    %77 = arith.truncf %76 : vector<3x128x64xf32> to vector<3x128x64xbf16>
    %78 = arith.mulf %75, %77 : vector<3x128x64xbf16>
    %79 = arith.extf %78 : vector<3x128x64xbf16> to vector<3x128x64xf32>
    %cst_20 = arith.constant dense<0.000000e+00> : vector<128x64xf32>
    %80 = vector.multi_reduction <add>, %79, %cst_20 [0] : vector<3x128x64xf32> to vector<128x64xf32>
    %81 = vector.shape_cast %80 : vector<128x64xf32> to vector<1x128x64xf32>
    %82 = arith.truncf %81 : vector<1x128x64xf32> to vector<1x128x64xbf16>
    %83 = arith.extf %82 : vector<1x128x64xbf16> to vector<1x128x64xf32>
    %84 = arith.mulf %77, %77 : vector<3x128x64xbf16>
    %85 = arith.extf %84 : vector<3x128x64xbf16> to vector<3x128x64xf32>
    %cst_21 = arith.constant dense<0.000000e+00> : vector<128x64xf32>
    %86 = vector.multi_reduction <add>, %85, %cst_21 [0] : vector<3x128x64xf32> to vector<128x64xf32>
    %87 = vector.shape_cast %86 : vector<128x64xf32> to vector<1x128x64xf32>
    %88 = arith.truncf %87 : vector<1x128x64xf32> to vector<1x128x64xbf16>
    %89 = arith.extf %88 : vector<1x128x64xbf16> to vector<1x128x64xf32>
    %cst_22 = arith.constant 9.99999997E-7 : f32
    %90 = vector.broadcast %cst_22 : f32 to vector<1x128x64xf32>
    %91 = arith.addf %89, %90 : vector<1x128x64xf32>
    %92 = arith.divf %83, %91 : vector<1x128x64xf32>
    %cst_23 = arith.constant 0.000000e+00 : f32
    %93 = vector.broadcast %cst_23 : f32 to vector<1x128x64xf32>
    %94 = arith.minimumf %92, %93 : vector<1x128x64xf32>
    %95 = arith.truncf %94 : vector<1x128x64xf32> to vector<1x128x64xbf16>
    %96 = vector.broadcast %95 : vector<1x128x64xbf16> to vector<3x128x64xbf16>
    %97 = arith.mulf %96, %77 : vector<3x128x64xbf16>
    %98 = arith.subf %75, %97 : vector<3x128x64xbf16>
    %99 = vector.shape_cast %98 : vector<3x128x64xbf16> to vector<384x64xbf16>
    %c0_24 = arith.constant 0 : index
    %c0_25 = arith.constant 0 : index
    %100 = vector.load %arg7[%c0_24, %c0_25] : memref<64x256xbf16, #tpu.memory_space<vmem>>, vector<64x256xbf16>
    %cst_26 = arith.constant dense<0.000000e+00> : vector<384x256xf32>
    %101 = tpu.matmul %99, %100, %cst_26 {dimension_numbers = #tpu.dot_dimension_numbers<[1], [0], [0], [1], [0, 0, 1, 1], [], []>} : vector<384x64xbf16>, vector<64x256xbf16>, vector<384x256xf32> -> vector<384x256xf32>
    %102 = vector.shape_cast %101 : vector<384x256xf32> to vector<3x128x256xf32>
    %103 = vector.extract_strided_slice %102 {offsets = [0, 0, 0], sizes = [3, 128, 128], strides = [1, 1, 1]} : vector<3x128x256xf32> to vector<3x128x128xf32>
    %104 = arith.truncf %103 : vector<3x128x128xf32> to vector<3x128x128xbf16>
    %105 = vector.extract_strided_slice %102 {offsets = [0, 0, 128], sizes = [3, 128, 128], strides = [1, 1, 1]} : vector<3x128x256xf32> to vector<3x128x128xf32>
    %106 = arith.truncf %105 : vector<3x128x128xf32> to vector<3x128x128xbf16>
    %107 = arith.mulf %104, %106 : vector<3x128x128xbf16>
    %108 = arith.extf %107 : vector<3x128x128xbf16> to vector<3x128x128xf32>
    %cst_27 = arith.constant dense<0.000000e+00> : vector<128x128xf32>
    %109 = vector.multi_reduction <add>, %108, %cst_27 [0] : vector<3x128x128xf32> to vector<128x128xf32>
    %110 = vector.shape_cast %109 : vector<128x128xf32> to vector<1x128x128xf32>
    %111 = arith.truncf %110 : vector<1x128x128xf32> to vector<1x128x128xbf16>
    %112 = arith.extf %111 : vector<1x128x128xbf16> to vector<1x128x128xf32>
    %113 = arith.mulf %106, %106 : vector<3x128x128xbf16>
    %114 = arith.extf %113 : vector<3x128x128xbf16> to vector<3x128x128xf32>
    %cst_28 = arith.constant dense<0.000000e+00> : vector<128x128xf32>
    %115 = vector.multi_reduction <add>, %114, %cst_28 [0] : vector<3x128x128xf32> to vector<128x128xf32>
    %116 = vector.shape_cast %115 : vector<128x128xf32> to vector<1x128x128xf32>
    %117 = arith.truncf %116 : vector<1x128x128xf32> to vector<1x128x128xbf16>
    %118 = arith.extf %117 : vector<1x128x128xbf16> to vector<1x128x128xf32>
    %cst_29 = arith.constant 9.99999997E-7 : f32
    %119 = vector.broadcast %cst_29 : f32 to vector<1x128x128xf32>
    %120 = arith.addf %118, %119 : vector<1x128x128xf32>
    %121 = arith.divf %112, %120 : vector<1x128x128xf32>
    %cst_30 = arith.constant 0.000000e+00 : f32
    %122 = vector.broadcast %cst_30 : f32 to vector<1x128x128xf32>
    %123 = arith.minimumf %121, %122 : vector<1x128x128xf32>
    %124 = arith.truncf %123 : vector<1x128x128xf32> to vector<1x128x128xbf16>
    %125 = vector.broadcast %124 : vector<1x128x128xbf16> to vector<3x128x128xbf16>
    %126 = arith.mulf %125, %106 : vector<3x128x128xbf16>
    %127 = arith.subf %104, %126 : vector<3x128x128xbf16>
    %128 = vector.shape_cast %127 : vector<3x128x128xbf16> to vector<384x128xbf16>
    %c0_31 = arith.constant 0 : index
    %c0_32 = arith.constant 0 : index
    %129 = vector.load %arg8[%c0_31, %c0_32] : memref<128x1024xbf16, #tpu.memory_space<vmem>>, vector<128x1024xbf16>
    %cst_33 = arith.constant dense<0.000000e+00> : vector<384x1024xf32>
    %130 = tpu.matmul %128, %129, %cst_33 {dimension_numbers = #tpu.dot_dimension_numbers<[1], [0], [0], [1], [0, 0, 1, 1], [], []>} : vector<384x128xbf16>, vector<128x1024xbf16>, vector<384x1024xf32> -> vector<384x1024xf32>
    %131 = vector.shape_cast %130 : vector<384x1024xf32> to vector<3x128x1024xf32>
    %132 = vector.extract_strided_slice %131 {offsets = [0, 0, 0], sizes = [3, 128, 512], strides = [1, 1, 1]} : vector<3x128x1024xf32> to vector<3x128x512xf32>
    %133 = arith.truncf %132 : vector<3x128x512xf32> to vector<3x128x512xbf16>
    %134 = vector.extract_strided_slice %131 {offsets = [0, 0, 512], sizes = [3, 128, 512], strides = [1, 1, 1]} : vector<3x128x1024xf32> to vector<3x128x512xf32>
    %135 = arith.truncf %134 : vector<3x128x512xf32> to vector<3x128x512xbf16>
    %136 = arith.mulf %133, %135 : vector<3x128x512xbf16>
    %137 = arith.extf %136 : vector<3x128x512xbf16> to vector<3x128x512xf32>
    %cst_34 = arith.constant dense<0.000000e+00> : vector<128x512xf32>
    %138 = vector.multi_reduction <add>, %137, %cst_34 [0] : vector<3x128x512xf32> to vector<128x512xf32>
    %139 = vector.shape_cast %138 : vector<128x512xf32> to vector<1x128x512xf32>
    %140 = arith.truncf %139 : vector<1x128x512xf32> to vector<1x128x512xbf16>
    %141 = arith.extf %140 : vector<1x128x512xbf16> to vector<1x128x512xf32>
    %142 = arith.mulf %135, %135 : vector<3x128x512xbf16>
    %143 = arith.extf %142 : vector<3x128x512xbf16> to vector<3x128x512xf32>
    %cst_35 = arith.constant dense<0.000000e+00> : vector<128x512xf32>
    %144 = vector.multi_reduction <add>, %143, %cst_35 [0] : vector<3x128x512xf32> to vector<128x512xf32>
    %145 = vector.shape_cast %144 : vector<128x512xf32> to vector<1x128x512xf32>
    %146 = arith.truncf %145 : vector<1x128x512xf32> to vector<1x128x512xbf16>
    %147 = arith.extf %146 : vector<1x128x512xbf16> to vector<1x128x512xf32>
    %cst_36 = arith.constant 9.99999997E-7 : f32
    %148 = vector.broadcast %cst_36 : f32 to vector<1x128x512xf32>
    %149 = arith.addf %147, %148 : vector<1x128x512xf32>
    %150 = arith.divf %141, %149 : vector<1x128x512xf32>
    %cst_37 = arith.constant 0.000000e+00 : f32
    %151 = vector.broadcast %cst_37 : f32 to vector<1x128x512xf32>
    %152 = arith.minimumf %150, %151 : vector<1x128x512xf32>
    %153 = arith.truncf %152 : vector<1x128x512xf32> to vector<1x128x512xbf16>
    %154 = vector.broadcast %153 : vector<1x128x512xbf16> to vector<3x128x512xbf16>
    %155 = arith.mulf %154, %135 : vector<3x128x512xbf16>
    %156 = arith.subf %133, %155 : vector<3x128x512xbf16>
    %157 = arith.extf %156 : vector<3x128x512xbf16> to vector<3x128x512xf32>
    %c1_i32 = arith.constant 1 : i32
    %158 = arith.muli %arg1, %c1_i32 : i32
    %159 = arith.addi %158, %arg2 : i32
    %c128_i32 = arith.constant 128 : i32
    %160 = arith.muli %159, %c128_i32 : i32
    %161 = tpu.iota {dimensions = array<i32: 1>} : vector<1x128x1xi32>
    %162 = vector.broadcast %160 : i32 to vector<1x128x1xi32>
    %163 = arith.addi %162, %161 : vector<1x128x1xi32>
    %c8_i32 = arith.constant 8 : i32
    %164 = vector.broadcast %c8_i32 : i32 to vector<1x128x1xi32>
    %165 = arith.cmpi slt, %163, %164 : vector<1x128x1xi32>
    %cst_38 = arith.constant 0xFF800000 : f32
    %166 = vector.shape_cast %165 : vector<1x128x1xi1> to vector<1x128x1xi1>
    %167 = vector.broadcast %166 : vector<1x128x1xi1> to vector<3x128x512xi1>
    %168 = vector.broadcast %cst_38 : f32 to vector<3x128x512xf32>
    %169 = arith.select %167, %157, %168 : vector<3x128x512xi1>, vector<3x128x512xf32>
    %cst_39 = arith.constant dense<0xFF800000> : vector<3x512xf32>
    %170 = vector.multi_reduction <maximumf>, %169, %cst_39 [1] : vector<3x128x512xf32> to vector<3x512xf32>
    %c0_i32 = arith.constant 0 : i32
    %171 = arith.cmpi eq, %arg2, %c0_i32 : i32
    %c0_40 = arith.constant 0 : index
    %c0_41 = arith.constant 0 : index
    %c0_42 = arith.constant 0 : index
    %c0_43 = arith.constant 0 : index
    %172 = vector.load %arg10[%c0_40, %c0_41, %c0_42, %c0_43] : memref<1x1x3x512xf32, #tpu.memory_space<vmem>>, vector<1x1x3x512xf32>
    %173 = vector.shape_cast %172 : vector<1x1x3x512xf32> to vector<3x512xf32>
    %cst_44 = arith.constant 0xFF800000 : f32
    %174 = vector.broadcast %cst_44 : f32 to vector<3x512xf32>
    %175 = arith.select %171, %174, %173 : vector<3x512xf32>
    %176 = arith.maximumf %170, %175 : vector<3x512xf32>
    %c0_45 = arith.constant 0 : index
    %c0_46 = arith.constant 0 : index
    %c0_47 = arith.constant 0 : index
    %c0_48 = arith.constant 0 : index
    %177 = vector.load %arg10[%c0_45, %c0_46, %c0_47, %c0_48] : memref<1x1x3x512xf32, #tpu.memory_space<vmem>>, vector<1x1x3x512xf32>
    %178 = vector.shape_cast %177 : vector<1x1x3x512xf32> to vector<3x512xf32>
    %179 = vector.shape_cast %176 : vector<3x512xf32> to vector<1x1x3x512xf32>
    tpu.vector_store %arg10[%c0_45, %c0_46, %c0_47, %c0_48], %179 {strides = array<i32>} : memref<1x1x3x512xf32, #tpu.memory_space<vmem>>, vector<1x1x3x512xf32>,
    return
  }
  func.func @transform_0(%arg0: i32, %arg1: i32, %arg2: i32) -> (i32, i32, i32) {
    %c1_i32 = arith.constant 1 : i32
    %0 = arith.muli %arg1, %c1_i32 : i32
    %1 = arith.addi %0, %arg2 : i32
    %c0_i32 = arith.constant 0 : i32
    %c0_i32_0 = arith.constant 0 : i32
    return %arg0, %c0_i32, %1 : i32, i32, i32
  }
  func.func @transform_1(%arg0: i32, %arg1: i32, %arg2: i32) -> (i32, i32) {
    %c0_i32 = arith.constant 0 : i32
    %c0_i32_0 = arith.constant 0 : i32
    %c0_i32_1 = arith.constant 0 : i32
    return %c0_i32, %c0_i32_0 : i32, i32
  }
  func.func @transform_2(%arg0: i32, %arg1: i32, %arg2: i32) -> (i32, i32) {
    %c0_i32 = arith.constant 0 : i32
    %c0_i32_0 = arith.constant 0 : i32
    %c0_i32_1 = arith.constant 0 : i32
    return %c0_i32, %c0_i32_0 : i32, i32
  }
  func.func @transform_3(%arg0: i32, %arg1: i32, %arg2: i32) -> (i32, i32) {
    %c0_i32 = arith.constant 0 : i32
    %c0_i32_0 = arith.constant 0 : i32
    %c0_i32_1 = arith.constant 0 : i32
    return %c0_i32, %c0_i32_0 : i32, i32
  }
  func.func @transform_4(%arg0: i32, %arg1: i32, %arg2: i32) -> (i32, i32) {
    %c0_i32 = arith.constant 0 : i32
    %c0_i32_0 = arith.constant 0 : i32
    %c0_i32_1 = arith.constant 0 : i32
    return %c0_i32, %c0_i32_0 : i32, i32
  }
  func.func @transform_5(%arg0: i32, %arg1: i32, %arg2: i32) -> (i32, i32) {
    %c0_i32 = arith.constant 0 : i32
    %c0_i32_0 = arith.constant 0 : i32
    %c0_i32_1 = arith.constant 0 : i32
    return %c0_i32, %c0_i32_0 : i32, i32
  }
  func.func @transform_6(%arg0: i32, %arg1: i32, %arg2: i32) -> (i32, i32, i32) {
    %c1_i32 = arith.constant 1 : i32
    %0 = arith.muli %arg1, %c1_i32 : i32
    %1 = arith.addi %0, %arg2 : i32
    %c0_i32 = arith.constant 0 : i32
    %c0_i32_0 = arith.constant 0 : i32
    return %arg0, %c0_i32, %1 : i32, i32, i32
  }
  func.func @transform_7(%arg0: i32, %arg1: i32, %arg2: i32) -> (i32, i32, i32, i32) {
    %c0_i32 = arith.constant 0 : i32
    %c0_i32_0 = arith.constant 0 : i32
    %c0_i32_1 = arith.constant 0 : i32
    return %arg0, %arg1, %c0_i32, %c0_i32_0 : i32, i32, i32, i32
  }
}

</mosaic_0001>

<llo_original>
// kernel: tpu_custom_call.1
$region0: #{tpu_custom_call.1}
  #allocation0 [shape = 'u32[]', space=smem, size = 0x4, offset = 0x4, fixed_abs, tag = 'smem constant byte address 0x4 - core index']
  #allocation1 [shape = 'u32[144,128]{1,0:T(1,128)}', space=vmem, size = 0x12000, scoped, tag = 'internal scratch']
  %s0 = inlined_call_operand.hbm [shape: f32[2,3,128], index: 0, kind: input, shape index: {}]
  %s1 = inlined_call_operand.hbm [shape: f32[1,128], index: 1, kind: input, shape index: {}]
  %s2 = inlined_call_operand.hbm [shape: bf16[64,128], index: 2, kind: input, shape index: {}]
  %s3 = inlined_call_operand.hbm [shape: bf16[64,128], index: 3, kind: input, shape index: {}]
  %s4 = inlined_call_operand.hbm [shape: bf16[64,256], index: 4, kind: input, shape index: {}]
  %s5 = inlined_call_operand.hbm [shape: bf16[128,1024], index: 5, kind: input, shape index: {}]
  %s6 = inlined_call_operand.hbm [shape: bf16[2,192,128], index: 6, kind: output, shape index: {0}]
  %s7 = inlined_call_operand.hbm [shape: f32[2,1,3,512], index: 7, kind: output, shape index: {1}]
  %8 = xla_tuple %s6, %s7
  %s9 = sld [smem:[#allocation0]]
  $region89: #{tpu_custom_call.1} parent=0
    _
  %s11 = ssub.s32 1, %s9
  %s12 = scalar_select 0, %s11, %s9
  $region1: #{tpu_custom_call.1} parent=0
    #allocation2 [shape = 'u8[4096]{0}', space=vmem, size = 0x1000, scoped, tag = 'input window, operand 0']
    #allocation3 [shape = 's32[2]{0}', space=sflag, size = 0x8, scoped, tag = 'scoped memory for tpu_custom_call.1']
    #allocation4 [shape = 's32[2]{0}', space=sflag, size = 0x8, scoped, tag = 'scoped memory for tpu_custom_call.1']
    #allocation5 [shape = 'u8[512]{0}', space=vmem, size = 0x400, scoped, tag = 'input window, operand 1, single buffered']
    #allocation6 [shape = 's32[1]{0}', space=sflag, size = 0x4, scoped, tag = 'scoped memory for tpu_custom_call.1']
    #allocation7 [shape = 'u8[16384]{0}', space=vmem, size = 0x4000, scoped, tag = 'input window, operand 2, single buffered']
    #allocation8 [shape = 'u8[16384]{0}', space=vmem, size = 0x4000, scoped, tag = 'input window, operand 3, single buffered']
    #allocation9 [shape = 's32[1]{0}', space=sflag, size = 0x4, scoped, tag = 'scoped memory for tpu_custom_call.1']
    #allocation10 [shape = 'u8[32768]{0}', space=vmem, size = 0x8000, scoped, tag = 'input window, operand 4, single buffered']
    #allocation11 [shape = 'u8[262144]{0}', space=vmem, size = 0x40000, scoped, tag = 'input window, operand 5, single buffered']
    #allocation12 [shape = 's32[1]{0}', space=sflag, size = 0x4, scoped, tag = 'scoped memory for tpu_custom_call.1']
    #allocation13 [shape = 'u8[98304]{0}', space=vmem, size = 0x18000, scoped, tag = 'output window, operand 0']
    #allocation14 [shape = 'u8[16384]{0}', space=vmem, size = 0x4000, scoped, tag = 'output window, operand 1']
    #allocation15 [shape = 's32[2]{0}', space=sflag, size = 0x8, scoped, tag = 'scoped memory for tpu_custom_call.1']
    %13 = vsyncpa [#allocation3], 0
    %s14 = scalar_lea.sflag [#allocation3], 1
    %15 = vsyncpa %s14, 0
    %16 = vsyncpa [#allocation6], 0
    %17 = vsyncpa [#allocation9], 0
    %18 = vsyncpa [#allocation12], 0
    %19 = vsyncpa [#allocation4], 0
    %s20 = scalar_lea.sflag [#allocation4], 1
    %21 = vsyncpa %s20, 0
    %22 = vsyncpa [#allocation15], 0
    %s23 = scalar_lea.sflag [#allocation15], 1
    %24 = vsyncpa %s23, 0
    loop: start=0, step=1, limit=4
    $region2: #{tpu_custom_call.1} parent=1 // loop_pre_header
      _
    $region3: #{tpu_custom_call.1} parent=1 // loop_header
      %s26 = sphi 0, %s30
      %p27 = scmp.ge.s32.totalorder %s26, 4
      %s33 = sphi 0, %s52
      %s34 = sphi 0, %s48
      %s35 = sphi 0, %s44
      %s36 = sphi 0, %s33
      %s37 = sphi 0, %s34
      %s38 = sphi 0, %s35
      %s39 = sphi 0, %s36
      %s40 = sphi 0, %s37
      %s41 = sphi 0, %s38
      %s59 = sphi 0, %s61
      %s62 = sphi 0, %s59
      %s63 = sphi 0, %s62
      %s79 = sphi 0, %s63
      %s83 = sphi 0, %s83
      %s85 = sphi 0, %s83
      %s86 = sphi 0, %s85
      %s100 = sphi 0, %s86
      %s104 = sphi 0, %s104
      %s106 = sphi 0, %s104
      %s107 = sphi 0, %s106
      %s121 = sphi 0, %s107
      %s125 = sphi 0, %s125
      %s127 = sphi 0, %s125
      %s128 = sphi 0, %s127
      %s142 = sphi 0, %s128
      %s146 = sphi 0, %s146
      %s148 = sphi 0, %s146
      %s149 = sphi 0, %s148
      %s163 = sphi 0, %s149
      %s167 = sphi 0, %s167
      %s169 = sphi 0, %s167
      %s170 = sphi 0, %s169
      %s184 = sphi 0, %s170
      %s194 = sphi 0, %s196
      %s197 = sphi 0, %s194
      %s198 = sphi 0, %s197
      %s214 = sphi 0, %s198
      %s222 = sphi 0, %s224
      %s225 = sphi 0, %s222
      %s226 = sphi 0, %s225
      %s242 = sphi 0, %s226
    $region4: #{tpu_custom_call.1} parent=1 // loop_header_branch
      %29 = sbr.rel (%p27) target = $region8
    $region5: #{tpu_custom_call.1} parent=1 // loop_body
      %s31 = ssub.s32 %s26, 1
      %s32 = ssub.s32 %s26, 2
      %s42 = sadd.s32 1, %s35
      %p43 = scmp.ge.s32.totalorder %s42, 1
      %s44 = scalar_select %p43, 0, %s42
      %s45 = sadd.s32 1, %s34
      %s46 = scalar_select %p43, %s45, %s34
      %p47 = scmp.ge.s32.totalorder %s46, 1
      %s48 = scalar_select %p47, 0, %s46
      %s49 = sadd.s32 1, %s33
      %s50 = scalar_select %p47, %s49, %s33
      %p51 = scmp.ge.s32.totalorder %s50, 2
      %s52 = scalar_select %p51, 0, %s50
      %s53 = sadd.s32 %s34, %s35
      %s54 = sadd.s32 %s48, %s44
      %s55 = ssub.s32 %s33, %s52
      %s56 = ssub.s32 %s53, %s54
      %s57 = sor.u32 %s55, %s56
      %p58 = scmp.eq.s32.totalorder %s57, 0
      %s60 = sadd.s32 %s59, 1
      %s61 = scalar_select %p58, %s59, %s60
      %p64 = pneg %p58
      %p65 = scmp.eq.s32.totalorder %s26, 1
      %p66 = por %p64, %p65
      %p67 = scmp.ne.s32.totalorder %s59, %s62
      %p68 = scmp.eq.s32.totalorder %s26, 0
      %p69 = por %p67, %p68
      %p70 = scmp.ne.s32.totalorder %s59, %s62
      %p71 = scmp.eq.s32.totalorder %s31, 1
      %p72 = por %p70, %p71
      %p73 = scmp.ne.s32.totalorder %s62, %s63
      %p74 = scmp.eq.s32.totalorder %s31, 0
      %p75 = por %p73, %p74
      %p76 = scmp.ne.s32.totalorder %s62, %s63
      %p77 = scmp.eq.s32.totalorder %s32, 1
      %p78 = por %p76, %p77
      %p80 = scmp.ne.s32.totalorder %s63, %s79
      %p81 = scmp.eq.s32.totalorder %s32, 0
      %p82 = por %p80, %p81
      %s84 = sadd.s32 %s83, 1
      %p87 = scmp.eq.s32.totalorder %s26, 1
      %p88 = scmp.ne.s32.totalorder %s83, %s85
      %p89 = scmp.eq.s32.totalorder %s26, 0
      %p90 = por %p88, %p89
      %p91 = scmp.ne.s32.totalorder %s83, %s85
      %p92 = scmp.eq.s32.totalorder %s31, 1
      %p93 = por %p91, %p92
      %p94 = scmp.ne.s32.totalorder %s85, %s86
      %p95 = scmp.eq.s32.totalorder %s31, 0
      %p96 = por %p94, %p95
      %p97 = scmp.ne.s32.totalorder %s85, %s86
      %p98 = scmp.eq.s32.totalorder %s32, 1
      %p99 = por %p97, %p98
      %p101 = scmp.ne.s32.totalorder %s86, %s100
      %p102 = scmp.eq.s32.totalorder %s32, 0
      %p103 = por %p101, %p102
      %s105 = sadd.s32 %s104, 1
      %p108 = scmp.eq.s32.totalorder %s26, 1
      %p109 = scmp.ne.s32.totalorder %s104, %s106
      %p110 = scmp.eq.s32.totalorder %s26, 0
      %p111 = por %p109, %p110
      %p112 = scmp.ne.s32.totalorder %s104, %s106
      %p113 = scmp.eq.s32.totalorder %s31, 1
      %p114 = por %p112, %p113
      %p115 = scmp.ne.s32.totalorder %s106, %s107
      %p116 = scmp.eq.s32.totalorder %s31, 0
      %p117 = por %p115, %p116
      %p118 = scmp.ne.s32.totalorder %s106, %s107
      %p119 = scmp.eq.s32.totalorder %s32, 1
      %p120 = por %p118, %p119
      %p122 = scmp.ne.s32.totalorder %s107, %s121
      %p123 = scmp.eq.s32.totalorder %s32, 0
      %p124 = por %p122, %p123
      %s126 = sadd.s32 %s125, 1
      %p129 = scmp.eq.s32.totalorder %s26, 1
      %p130 = scmp.ne.s32.totalorder %s125, %s127
      %p131 = scmp.eq.s32.totalorder %s26, 0
      %p132 = por %p130, %p131
      %p133 = scmp.ne.s32.totalorder %s125, %s127
      %p134 = scmp.eq.s32.totalorder %s31, 1
      %p135 = por %p133, %p134
      %p136 = scmp.ne.s32.totalorder %s127, %s128
      %p137 = scmp.eq.s32.totalorder %s31, 0
      %p138 = por %p136, %p137
      %p139 = scmp.ne.s32.totalorder %s127, %s128
      %p140 = scmp.eq.s32.totalorder %s32, 1
      %p141 = por %p139, %p140
      %p143 = scmp.ne.s32.totalorder %s128, %s142
      %p144 = scmp.eq.s32.totalorder %s32, 0
      %p145 = por %p143, %p144
      %s147 = sadd.s32 %s146, 1
      %p150 = scmp.eq.s32.totalorder %s26, 1
      %p151 = scmp.ne.s32.totalorder %s146, %s148
      %p152 = scmp.eq.s32.totalorder %s26, 0
      %p153 = por %p151, %p152
      %p154 = scmp.ne.s32.totalorder %s146, %s148
      %p155 = scmp.eq.s32.totalorder %s31, 1
      %p156 = por %p154, %p155
      %p157 = scmp.ne.s32.totalorder %s148, %s149
      %p158 = scmp.eq.s32.totalorder %s31, 0
      %p159 = por %p157, %p158
      %p160 = scmp.ne.s32.totalorder %s148, %s149
      %p161 = scmp.eq.s32.totalorder %s32, 1
      %p162 = por %p160, %p161
      %p164 = scmp.ne.s32.totalorder %s149, %s163
      %p165 = scmp.eq.s32.totalorder %s32, 0
      %p166 = por %p164, %p165
      %s168 = sadd.s32 %s167, 1
      %p171 = scmp.eq.s32.totalorder %s26, 1
      %p172 = scmp.ne.s32.totalorder %s167, %s169
      %p173 = scmp.eq.s32.totalorder %s26, 0
      %p174 = por %p172, %p173
      %p175 = scmp.ne.s32.totalorder %s167, %s169
      %p176 = scmp.eq.s32.totalorder %s31, 1
      %p177 = por %p175, %p176
      %p178 = scmp.ne.s32.totalorder %s169, %s170
      %p179 = scmp.eq.s32.totalorder %s31, 0
      %p180 = por %p178, %p179
      %p181 = scmp.ne.s32.totalorder %s169, %s170
      %p182 = scmp.eq.s32.totalorder %s32, 1
      %p183 = por %p181, %p182
      %p185 = scmp.ne.s32.totalorder %s170, %s184
      %p186 = scmp.eq.s32.totalorder %s32, 0
      %p187 = por %p185, %p186
      %s188 = sadd.s32 %s34, %s35
      %s189 = sadd.s32 %s48, %s44
      %s190 = ssub.s32 %s33, %s52
      %s191 = ssub.s32 %s188, %s189
      %s192 = sor.u32 %s190, %s191
      %p193 = scmp.eq.s32.totalorder %s192, 0
      %s195 = sadd.s32 %s194, 1
      %s196 = scalar_select %p193, %s194, %s195
      %p199 = pneg %p193
      %p200 = scmp.eq.s32.totalorder %s26, 1
      %p201 = por %p199, %p200
      %p202 = scmp.ne.s32.totalorder %s194, %s197
      %p203 = scmp.eq.s32.totalorder %s26, 0
      %p204 = por %p202, %p203
      %p205 = scmp.ne.s32.totalorder %s194, %s197
      %p206 = scmp.eq.s32.totalorder %s31, 1
      %p207 = por %p205, %p206
      %p208 = scmp.ne.s32.totalorder %s197, %s198
      %p209 = scmp.eq.s32.totalorder %s31, 0
      %p210 = por %p208, %p209
      %p211 = scmp.ne.s32.totalorder %s197, %s198
      %p212 = scmp.eq.s32.totalorder %s32, 1
      %p213 = por %p211, %p212
      %p215 = scmp.ne.s32.totalorder %s198, %s214
      %p216 = scmp.eq.s32.totalorder %s32, 0
      %p217 = por %p215, %p216
      %s218 = ssub.s32 %s33, %s52
      %s219 = ssub.s32 %s34, %s48
      %s220 = sor.u32 %s218, %s219
      %p221 = scmp.eq.s32.totalorder %s220, 0
      %s223 = sadd.s32 %s222, 1
      %s224 = scalar_select %p221, %s222, %s223
      %p227 = pneg %p221
      %p228 = scmp.eq.s32.totalorder %s26, 1
      %p229 = por %p227, %p228
      %p230 = scmp.ne.s32.totalorder %s222, %s225
      %p231 = scmp.eq.s32.totalorder %s26, 0
      %p232 = por %p230, %p231
      %p233 = scmp.ne.s32.totalorder %s222, %s225
      %p234 = scmp.eq.s32.totalorder %s31, 1
      %p235 = por %p233, %p234
      %p236 = scmp.ne.s32.totalorder %s225, %s226
      %p237 = scmp.eq.s32.totalorder %s31, 0
      %p238 = por %p236, %p237
      %p239 = scmp.ne.s32.totalorder %s225, %s226
      %p240 = scmp.eq.s32.totalorder %s32, 1
      %p241 = por %p239, %p240
      %p243 = scmp.ne.s32.totalorder %s226, %s242
      %p244 = scmp.eq.s32.totalorder %s32, 0
      %p245 = por %p243, %p244
      %p246 = scmp.le.s32.totalorder 1, %s26
      %p247 = scmp.lt.s32.totalorder %s26, 3
      %p248 = pnand %p246, %p247
      %p249 = pneg %p248
      // Predicated region
      $region9: #{tpu_custom_call.1} parent=5 // pred_check
        _
      $region10: #{tpu_custom_call.1} parent=5 // pred_check_branch
        %251 = sbr.rel (%p248) target = $region12
      $region11: #{tpu_custom_call.1} parent=5 // pred_region
        %s252 = ssub.s32 %s26, 1
        // Predicated region
        $region13: #{tpu_custom_call.1} parent=11 // pred_check
          %p253 = pneg %p96
        $region14: #{tpu_custom_call.1} parent=11 // pred_check_branch
          %255 = sbr.rel (%p253) target = $region16
        $region15: #{tpu_custom_call.1} parent=11 // pred_region
          %s257 = ssub.s32 16, 16
          %258 = vsyncadd [#allocation6], %s257
          %s260 = sshll.u32 [#allocation5], 4
          %s261 = int_to_ptr.vmem [resolvable:$true] %s260
          %263 = dma.hbm_to_vmem [thread:$0]  %s1, 16, %s261, [#allocation6]
        $region16: #{tpu_custom_call.1} parent=11 // pred_fallthru
          _
        // Predicated region
        $region17: #{tpu_custom_call.1} parent=11 // pred_check
          %p264 = pneg %p117
        $region18: #{tpu_custom_call.1} parent=11 // pred_check_branch
          %266 = sbr.rel (%p264) target = $region20
        $region19: #{tpu_custom_call.1} parent=11 // pred_region
          %s268 = ssub.s32 512, 512
          %269 = vsyncadd [#allocation6], %s268
          %s270 = sshll.u32 [#allocation7], 4
          %s271 = int_to_ptr.vmem [resolvable:$true] %s270
          %276 = dma.hbm_to_vmem [thread:$0]  %s2, 512, %s271, [#allocation6], 64, 64, 4
        $region20: #{tpu_custom_call.1} parent=11 // pred_fallthru
          _
        // Predicated region
        $region21: #{tpu_custom_call.1} parent=11 // pred_check
          %p277 = pneg %p138
        $region22: #{tpu_custom_call.1} parent=11 // pred_check_branch
          %279 = sbr.rel (%p277) target = $region24
        $region23: #{tpu_custom_call.1} parent=11 // pred_region
          %s281 = ssub.s32 512, 512
          %282 = vsyncadd [#allocation9], %s281
          %s283 = sshll.u32 [#allocation8], 4
          %s284 = int_to_ptr.vmem [resolvable:$true] %s283
          %289 = dma.hbm_to_vmem [thread:$0]  %s3, 512, %s284, [#allocation9], 64, 64, 4
        $region24: #{tpu_custom_call.1} parent=11 // pred_fallthru
          _
        // Predicated region
        $region25: #{tpu_custom_call.1} parent=11 // pred_check
          %p290 = pneg %p159
        $region26: #{tpu_custom_call.1} parent=11 // pred_check_branch
          %292 = sbr.rel (%p290) target = $region28
        $region27: #{tpu_custom_call.1} parent=11 // pred_region
          %s294 = ssub.s32 1024, 1024
          %295 = vsyncadd [#allocation9], %s294
          %s296 = sshll.u32 [#allocation10], 4
          %s297 = int_to_ptr.vmem [resolvable:$true] %s296
          %302 = dma.hbm_to_vmem [thread:$0]  %s4, 1024, %s297, [#allocation9], 128, 128, 8
        $region28: #{tpu_custom_call.1} parent=11 // pred_fallthru
          _
        // Predicated region
        $region29: #{tpu_custom_call.1} parent=11 // pred_check
          %p303 = pneg %p180
        $region30: #{tpu_custom_call.1} parent=11 // pred_check_branch
          %305 = sbr.rel (%p303) target = $region32
        $region31: #{tpu_custom_call.1} parent=11 // pred_region
          %s307 = ssub.s32 8192, 8192
          %308 = vsyncadd [#allocation12], %s307
          %s309 = sshll.u32 [#allocation11], 4
          %s310 = int_to_ptr.vmem [resolvable:$true] %s309
          %315 = dma.hbm_to_vmem [thread:$0]  %s5, 8192, %s310, [#allocation12], 512, 512, 32
        $region32: #{tpu_custom_call.1} parent=11 // pred_fallthru
          _
      $region12: #{tpu_custom_call.1} parent=5 // pred_fallthru
        _
      %p316 = scmp.lt.s32.totalorder %s26, 2
      // Predicated region
      $region33: #{tpu_custom_call.1} parent=5 // pred_check
        %p317 = pneg %p316
      $region34: #{tpu_custom_call.1} parent=5 // pred_check_branch
        %319 = sbr.rel (%p317) target = $region36
      $region35: #{tpu_custom_call.1} parent=5 // pred_region
        // Predicated region
        $region37: #{tpu_custom_call.1} parent=35 // pred_check
          %p320 = pneg %p69
        $region38: #{tpu_custom_call.1} parent=35 // pred_check_branch
          %322 = sbr.rel (%p320) target = $region40
        $region39: #{tpu_custom_call.1} parent=35 // pred_region
          %s323 = sand.u32 %s59, 1
          %s324 = scalar_lea.sflag [#allocation3], %s323
          %s325 = sand.u32 %s59, 1
          %s326 = smul.addr %s325, 4
          %s327 = scalar_lea.vmem [#allocation2], %s326
          %s328 = sadd.s32 %s34, %s35
          %s330 = ssub.s32 64, 64
          %331 = vsyncadd %s324, %s330
          %s332 = sadd.s32 %s328, %s33
          %s333 = smul.addr %s332, 64
          %s334 = scalar_lea.hbm %s0, %s333
          %s336 = sshll.u32 %s327, 4
          %s337 = int_to_ptr.vmem [resolvable:$true] %s336
          %339 = dma.hbm_to_vmem [thread:$0]  %s334, 64, %s337, %s324
        $region40: #{tpu_custom_call.1} parent=35 // pred_fallthru
          _
      $region36: #{tpu_custom_call.1} parent=5 // pred_fallthru
        _
      %p340 = scmp.le.s32.totalorder 1, %s26
      %p341 = scmp.lt.s32.totalorder %s26, 3
      %p342 = pnand %p340, %p341
      %p343 = pneg %p342
      // Predicated region
      $region41: #{tpu_custom_call.1} parent=5 // pred_check
        _
      $region42: #{tpu_custom_call.1} parent=5 // pred_check_branch
        %345 = sbr.rel (%p342) target = $region44
      $region43: #{tpu_custom_call.1} parent=5 // pred_region
        %s346 = ssub.s32 %s26, 1
        %s347 = sand.u32 %s62, 1
        %s348 = scalar_lea.sflag [#allocation3], %s347
        %s349 = sand.u32 %s62, 1
        %s350 = smul.addr %s349, 4
        %s351 = scalar_lea.vmem [#allocation2], %s350
        // Predicated region
        $region45: #{tpu_custom_call.1} parent=43 // pred_check
          %p352 = pneg %p75
        $region46: #{tpu_custom_call.1} parent=43 // pred_check_branch
          %354 = sbr.rel (%p352) target = $region48
        $region47: #{tpu_custom_call.1} parent=43 // pred_region
          %355 = dma.done %s348, 64
        $region48: #{tpu_custom_call.1} parent=43 // pred_fallthru
          _
        // Predicated region
        $region49: #{tpu_custom_call.1} parent=43 // pred_check
          %p356 = pneg %p96
        $region50: #{tpu_custom_call.1} parent=43 // pred_check_branch
          %358 = sbr.rel (%p356) target = $region52
        $region51: #{tpu_custom_call.1} parent=43 // pred_region
          %359 = dma.done [#allocation6], 16
        $region52: #{tpu_custom_call.1} parent=43 // pred_fallthru
          _
        // Predicated region
        $region53: #{tpu_custom_call.1} parent=43 // pred_check
          %p360 = pneg %p117
        $region54: #{tpu_custom_call.1} parent=43 // pred_check_branch
          %362 = sbr.rel (%p360) target = $region56
        $region55: #{tpu_custom_call.1} parent=43 // pred_region
          %363 = dma.done [#allocation6], 512
        $region56: #{tpu_custom_call.1} parent=43 // pred_fallthru
          _
        // Predicated region
        $region57: #{tpu_custom_call.1} parent=43 // pred_check
          %p364 = pneg %p138
        $region58: #{tpu_custom_call.1} parent=43 // pred_check_branch
          %366 = sbr.rel (%p364) target = $region60
        $region59: #{tpu_custom_call.1} parent=43 // pred_region
          %367 = dma.done [#allocation9], 512
        $region60: #{tpu_custom_call.1} parent=43 // pred_fallthru
          _
        // Predicated region
        $region61: #{tpu_custom_call.1} parent=43 // pred_check
          %p368 = pneg %p159
        $region62: #{tpu_custom_call.1} parent=43 // pred_check_branch
          %370 = sbr.rel (%p368) target = $region64
        $region63: #{tpu_custom_call.1} parent=43 // pred_region
          %371 = dma.done [#allocation9], 1024
        $region64: #{tpu_custom_call.1} parent=43 // pred_fallthru
          _
        // Predicated region
        $region65: #{tpu_custom_call.1} parent=43 // pred_check
          %p372 = pneg %p180
        $region66: #{tpu_custom_call.1} parent=43 // pred_check_branch
          %374 = sbr.rel (%p372) target = $region68
        $region67: #{tpu_custom_call.1} parent=43 // pred_region
          %375 = dma.done [#allocation12], 8192
        $region68: #{tpu_custom_call.1} parent=43 // pred_fallthru
          _
        %s376 = sand.u32 %s62, 1
        %s377 = scalar_lea.sflag [#allocation3], %s376
        %s378 = sand.u32 %s62, 1
        %s379 = smul.addr %s378, 4
        %s380 = scalar_lea.vmem [#allocation2], %s379
        %p381 = pneg %p75
        %p382 = pneg %p72
        %p383 = pneg %p96
        %p384 = pneg %p93
        %p385 = pneg %p117
        %p386 = pneg %p114
        %p387 = pneg %p138
        %p388 = pneg %p135
        %p389 = pneg %p159
        %p390 = pneg %p156
        %p391 = pneg %p180
        %p392 = pneg %p177
        %p393 = pneg %p210
        %p394 = pneg %p207
        %s395 = sand.u32 %s197, 1
        %s396 = scalar_lea.sflag [#allocation4], %s395
        %s397 = sand.u32 %s197, 1
        %s398 = smul.addr %s397, 96
        %s399 = scalar_lea.vmem [#allocation13], %s398
        %p400 = pneg %p238
        %p401 = pneg %p235
        %s402 = sand.u32 %s225, 1
        %s403 = scalar_lea.sflag [#allocation15], %s402
        %s404 = sand.u32 %s225, 1
        %s405 = smul.addr %s404, 16
        %s406 = scalar_lea.vmem [#allocation14], %s405
        %s407 = sadd.s32 %s37, %s38
        %s408 = sadd.s32 %s37, %s38
        %v410 = vld [vmem:[%s351] sm:$0x7]
        %v411 = vlaneseq
        %v412 = vshrl.u32 %v411, 7
        %v413 = vsub.s32 0, %v412
        %v414 = vrot.slane %v410, %v413
        %416 = vbcast.lane.b32.xlu0 %v414, 256
        %v417 = vpop.permute.xlu0 %416
        %s419 = sor.u32 256, 8
        %420 = vbcast.lane.b32.xlu0 %v414, %s419
        %v421 = vpop.permute.xlu0 %420
        %s423 = sor.u32 256, 16
        %424 = vbcast.lane.b32.xlu0 %v414, %s423
        %v425 = vpop.permute.xlu0 %424
        %s427 = sor.u32 256, 24
        %428 = vbcast.lane.b32.xlu0 %v414, %s427
        %v429 = vpop.permute.xlu0 %428
        %s431 = sor.u32 256, 32
        %432 = vbcast.lane.b32.xlu0 %v414, %s431
        %v433 = vpop.permute.xlu0 %432
        %s435 = sor.u32 256, 40
        %436 = vbcast.lane.b32.xlu0 %v414, %s435
        %v437 = vpop.permute.xlu0 %436
        %s439 = sor.u32 256, 48
        %440 = vbcast.lane.b32.xlu0 %v414, %s439
        %v441 = vpop.permute.xlu0 %440
        %s443 = sor.u32 256, 56
        %444 = vbcast.lane.b32.xlu0 %v414, %s443
        %v445 = vpop.permute.xlu0 %444
        %s447 = sor.u32 256, 64
        %448 = vbcast.lane.b32.xlu0 %v414, %s447
        %v449 = vpop.permute.xlu0 %448
        %s451 = sor.u32 256, 72
        %452 = vbcast.lane.b32.xlu0 %v414, %s451
        %v453 = vpop.permute.xlu0 %452
        %s455 = sor.u32 256, 80
        %456 = vbcast.lane.b32.xlu0 %v414, %s455
        %v457 = vpop.permute.xlu0 %456
        %s459 = sor.u32 256, 88
        %460 = vbcast.lane.b32.xlu0 %v414, %s459
        %v461 = vpop.permute.xlu0 %460
        %s463 = sor.u32 256, 96
        %464 = vbcast.lane.b32.xlu0 %v414, %s463
        %v465 = vpop.permute.xlu0 %464
        %s467 = sor.u32 256, 104
        %468 = vbcast.lane.b32.xlu0 %v414, %s467
        %v469 = vpop.permute.xlu0 %468
        %s471 = sor.u32 256, 112
        %472 = vbcast.lane.b32.xlu0 %v414, %s471
        %v473 = vpop.permute.xlu0 %472
        %s475 = sor.u32 256, 120
        %476 = vbcast.lane.b32.xlu0 %v414, %s475
        %v477 = vpop.permute.xlu0 %476
        %v478 = vlaneseq
        %v479 = vshrl.u32 %v478, 7
        %v480 = vsub.s32 1, %v479
        %v481 = vrot.slane %v410, %v480
        %483 = vbcast.lane.b32.xlu0 %v481, 256
        %v484 = vpop.permute.xlu0 %483
        %s486 = sor.u32 256, 8
        %487 = vbcast.lane.b32.xlu0 %v481, %s486
        %v488 = vpop.permute.xlu0 %487
        %s490 = sor.u32 256, 16
        %491 = vbcast.lane.b32.xlu0 %v481, %s490
        %v492 = vpop.permute.xlu0 %491
        %s494 = sor.u32 256, 24
        %495 = vbcast.lane.b32.xlu0 %v481, %s494
        %v496 = vpop.permute.xlu0 %495
        %s498 = sor.u32 256, 32
        %499 = vbcast.lane.b32.xlu0 %v481, %s498
        %v500 = vpop.permute.xlu0 %499
        %s502 = sor.u32 256, 40
        %503 = vbcast.lane.b32.xlu0 %v481, %s502
        %v504 = vpop.permute.xlu0 %503
        %s506 = sor.u32 256, 48
        %507 = vbcast.lane.b32.xlu0 %v481, %s506
        %v508 = vpop.permute.xlu0 %507
        %s510 = sor.u32 256, 56
        %511 = vbcast.lane.b32.xlu0 %v481, %s510
        %v512 = vpop.permute.xlu0 %511
        %s514 = sor.u32 256, 64
        %515 = vbcast.lane.b32.xlu0 %v481, %s514
        %v516 = vpop.permute.xlu0 %515
        %s518 = sor.u32 256, 72
        %519 = vbcast.lane.b32.xlu0 %v481, %s518
        %v520 = vpop.permute.xlu0 %519
        %s522 = sor.u32 256, 80
        %523 = vbcast.lane.b32.xlu0 %v481, %s522
        %v524 = vpop.permute.xlu0 %523
        %s526 = sor.u32 256, 88
        %527 = vbcast.lane.b32.xlu0 %v481, %s526
        %v528 = vpop.permute.xlu0 %527
        %s530 = sor.u32 256, 96
        %531 = vbcast.lane.b32.xlu0 %v481, %s530
        %v532 = vpop.permute.xlu0 %531
        %s534 = sor.u32 256, 104
        %535 = vbcast.lane.b32.xlu0 %v481, %s534
        %v536 = vpop.permute.xlu0 %535
        %s538 = sor.u32 256, 112
        %539 = vbcast.lane.b32.xlu0 %v481, %s538
        %v540 = vpop.permute.xlu0 %539
        %s542 = sor.u32 256, 120
        %543 = vbcast.lane.b32.xlu0 %v481, %s542
        %v544 = vpop.permute.xlu0 %543
        %v545 = vlaneseq
        %v546 = vshrl.u32 %v545, 7
        %v547 = vsub.s32 2, %v546
        %v548 = vrot.slane %v410, %v547
        %550 = vbcast.lane.b32.xlu0 %v548, 256
        %v551 = vpop.permute.xlu0 %550
        %s553 = sor.u32 256, 8
        %554 = vbcast.lane.b32.xlu0 %v548, %s553
        %v555 = vpop.permute.xlu0 %554
        %s557 = sor.u32 256, 16
        %558 = vbcast.lane.b32.xlu0 %v548, %s557
        %v559 = vpop.permute.xlu0 %558
        %s561 = sor.u32 256, 24
        %562 = vbcast.lane.b32.xlu0 %v548, %s561
        %v563 = vpop.permute.xlu0 %562
        %s565 = sor.u32 256, 32
        %566 = vbcast.lane.b32.xlu0 %v548, %s565
        %v567 = vpop.permute.xlu0 %566
        %s569 = sor.u32 256, 40
        %570 = vbcast.lane.b32.xlu0 %v548, %s569
        %v571 = vpop.permute.xlu0 %570
        %s573 = sor.u32 256, 48
        %574 = vbcast.lane.b32.xlu0 %v548, %s573
        %v575 = vpop.permute.xlu0 %574
        %s577 = sor.u32 256, 56
        %578 = vbcast.lane.b32.xlu0 %v548, %s577
        %v579 = vpop.permute.xlu0 %578
        %s581 = sor.u32 256, 64
        %582 = vbcast.lane.b32.xlu0 %v548, %s581
        %v583 = vpop.permute.xlu0 %582
        %s585 = sor.u32 256, 72
        %586 = vbcast.lane.b32.xlu0 %v548, %s585
        %v587 = vpop.permute.xlu0 %586
        %s589 = sor.u32 256, 80
        %590 = vbcast.lane.b32.xlu0 %v548, %s589
        %v591 = vpop.permute.xlu0 %590
        %s593 = sor.u32 256, 88
        %594 = vbcast.lane.b32.xlu0 %v548, %s593
        %v595 = vpop.permute.xlu0 %594
        %s597 = sor.u32 256, 96
        %598 = vbcast.lane.b32.xlu0 %v548, %s597
        %v599 = vpop.permute.xlu0 %598
        %s601 = sor.u32 256, 104
        %602 = vbcast.lane.b32.xlu0 %v548, %s601
        %v603 = vpop.permute.xlu0 %602
        %s605 = sor.u32 256, 112
        %606 = vbcast.lane.b32.xlu0 %v548, %s605
        %v607 = vpop.permute.xlu0 %606
        %s609 = sor.u32 256, 120
        %610 = vbcast.lane.b32.xlu0 %v548, %s609
        %v611 = vpop.permute.xlu0 %610
        %v612 = vpack.c.bf16 %v421, %v417
        %v613 = vpack.c.bf16 %v429, %v425
        %v614 = vpack.c.bf16 %v437, %v433
        %v615 = vpack.c.bf16 %v445, %v441
        %v616 = vpack.c.bf16 %v453, %v449
        %v617 = vpack.c.bf16 %v461, %v457
        %v618 = vpack.c.bf16 %v469, %v465
        %v619 = vpack.c.bf16 %v477, %v473
        %v620 = vpack.c.bf16 %v488, %v484
        %v621 = vpack.c.bf16 %v496, %v492
        %v622 = vpack.c.bf16 %v504, %v500
        %v623 = vpack.c.bf16 %v512, %v508
        %v624 = vpack.c.bf16 %v520, %v516
        %v625 = vpack.c.bf16 %v528, %v524
        %v626 = vpack.c.bf16 %v536, %v532
        %v627 = vpack.c.bf16 %v544, %v540
        %v628 = vpack.c.bf16 %v555, %v551
        %v629 = vpack.c.bf16 %v563, %v559
        %v630 = vpack.c.bf16 %v571, %v567
        %v631 = vpack.c.bf16 %v579, %v575
        %v632 = vpack.c.bf16 %v587, %v583
        %v633 = vpack.c.bf16 %v595, %v591
        %v634 = vpack.c.bf16 %v603, %v599
        %v635 = vpack.c.bf16 %v611, %v607
        %v636 = vld [vmem:[#allocation5] sm:$0x1]
        %v637 = vpack.c.bf16 %v636, %v636
        %v639 = vpack.i.b16 %v637, %v637
        %v641 = vlaneseq
        %v642 = vshrl.u32 %v641, 7
        %v643 = vsub.s32 0, %v642
        %v644 = vrot.slane %v639, %v643
        %v645 = vmul.bf16 %v612, %v644
        %v646 = vmul.bf16 %v613, %v644
        %v647 = vmul.bf16 %v614, %v644
        %v648 = vmul.bf16 %v615, %v644
        %v649 = vmul.bf16 %v616, %v644
        %v650 = vmul.bf16 %v617, %v644
        %v651 = vmul.bf16 %v618, %v644
        %v652 = vmul.bf16 %v619, %v644
        %v653 = vmul.bf16 %v620, %v644
        %v654 = vmul.bf16 %v621, %v644
        %v655 = vmul.bf16 %v622, %v644
        %v656 = vmul.bf16 %v623, %v644
        %v657 = vmul.bf16 %v624, %v644
        %v658 = vmul.bf16 %v625, %v644
        %v659 = vmul.bf16 %v626, %v644
        %v660 = vmul.bf16 %v627, %v644
        %v661 = vmul.bf16 %v628, %v644
        %v662 = vmul.bf16 %v629, %v644
        %v663 = vmul.bf16 %v630, %v644
        %v664 = vmul.bf16 %v631, %v644
        %v665 = vmul.bf16 %v632, %v644
        %v666 = vmul.bf16 %v633, %v644
        %v667 = vmul.bf16 %v634, %v644
        %v668 = vmul.bf16 %v635, %v644
        %693 = vrot.lane.b32.xlu0 %v645, 64
        %v694 = vpop.permute.xlu0 %693
        %695 = vrot.lane.b32.xlu0 %v646, 64
        %v696 = vpop.permute.xlu0 %695
        %697 = vrot.lane.b32.xlu0 %v647, 64
        %v698 = vpop.permute.xlu0 %697
        %699 = vrot.lane.b32.xlu0 %v648, 64
        %v700 = vpop.permute.xlu0 %699
        %701 = vrot.lane.b32.xlu0 %v649, 64
        %v702 = vpop.permute.xlu0 %701
        %703 = vrot.lane.b32.xlu0 %v650, 64
        %v704 = vpop.permute.xlu0 %703
        %705 = vrot.lane.b32.xlu0 %v651, 64
        %v706 = vpop.permute.xlu0 %705
        %707 = vrot.lane.b32.xlu0 %v652, 64
        %v708 = vpop.permute.xlu0 %707
        %709 = vrot.lane.b32.xlu0 %v653, 64
        %v710 = vpop.permute.xlu0 %709
        %711 = vrot.lane.b32.xlu0 %v654, 64
        %v712 = vpop.permute.xlu0 %711
        %713 = vrot.lane.b32.xlu0 %v655, 64
        %v714 = vpop.permute.xlu0 %713
        %715 = vrot.lane.b32.xlu0 %v656, 64
        %v716 = vpop.permute.xlu0 %715
        %717 = vrot.lane.b32.xlu0 %v657, 64
        %v718 = vpop.permute.xlu0 %717
        %719 = vrot.lane.b32.xlu0 %v658, 64
        %v720 = vpop.permute.xlu0 %719
        %721 = vrot.lane.b32.xlu0 %v659, 64
        %v722 = vpop.permute.xlu0 %721
        %723 = vrot.lane.b32.xlu0 %v660, 64
        %v724 = vpop.permute.xlu0 %723
        %725 = vrot.lane.b32.xlu0 %v661, 64
        %v726 = vpop.permute.xlu0 %725
        %727 = vrot.lane.b32.xlu0 %v662, 64
        %v728 = vpop.permute.xlu0 %727
        %729 = vrot.lane.b32.xlu0 %v663, 64
        %v730 = vpop.permute.xlu0 %729
        %731 = vrot.lane.b32.xlu0 %v664, 64
        %v732 = vpop.permute.xlu0 %731
        %733 = vrot.lane.b32.xlu0 %v665, 64
        %v734 = vpop.permute.xlu0 %733
        %735 = vrot.lane.b32.xlu0 %v666, 64
        %v736 = vpop.permute.xlu0 %735
        %737 = vrot.lane.b32.xlu0 %v667, 64
        %v738 = vpop.permute.xlu0 %737
        %739 = vrot.lane.b32.xlu0 %v668, 64
        %v740 = vpop.permute.xlu0 %739
        %v765 = vmul.bf16 %v645, %v694
        %v766 = vmul.bf16 %v646, %v696
        %v767 = vmul.bf16 %v647, %v698
        %v768 = vmul.bf16 %v648, %v700
        %v769 = vmul.bf16 %v649, %v702
        %v770 = vmul.bf16 %v650, %v704
        %v771 = vmul.bf16 %v651, %v706
        %v772 = vmul.bf16 %v652, %v708
        %v773 = vmul.bf16 %v653, %v710
        %v774 = vmul.bf16 %v654, %v712
        %v775 = vmul.bf16 %v655, %v714
        %v776 = vmul.bf16 %v656, %v716
        %v777 = vmul.bf16 %v657, %v718
        %v778 = vmul.bf16 %v658, %v720
        %v779 = vmul.bf16 %v659, %v722
        %v780 = vmul.bf16 %v660, %v724
        %v781 = vmul.bf16 %v661, %v726
        %v782 = vmul.bf16 %v662, %v728
        %v783 = vmul.bf16 %v663, %v730
        %v784 = vmul.bf16 %v664, %v732
        %v785 = vmul.bf16 %v665, %v734
        %v786 = vmul.bf16 %v666, %v736
        %v787 = vmul.bf16 %v667, %v738
        %v788 = vmul.bf16 %v668, %v740
        %v789 = vunpack.c.l.bf16 %v765
        %v790 = vunpack.c.h.bf16 %v765
        %v791 = vunpack.c.l.bf16 %v766
        %v792 = vunpack.c.h.bf16 %v766
        %v793 = vunpack.c.l.bf16 %v767
        %v794 = vunpack.c.h.bf16 %v767
        %v795 = vunpack.c.l.bf16 %v768
        %v796 = vunpack.c.h.bf16 %v768
        %v797 = vunpack.c.l.bf16 %v769
        %v798 = vunpack.c.h.bf16 %v769
        %v799 = vunpack.c.l.bf16 %v770
        %v800 = vunpack.c.h.bf16 %v770
        %v801 = vunpack.c.l.bf16 %v771
        %v802 = vunpack.c.h.bf16 %v771
        %v803 = vunpack.c.l.bf16 %v772
        %v804 = vunpack.c.h.bf16 %v772
        %v805 = vunpack.c.l.bf16 %v773
        %v806 = vunpack.c.h.bf16 %v773
        %v807 = vunpack.c.l.bf16 %v774
        %v808 = vunpack.c.h.bf16 %v774
        %v809 = vunpack.c.l.bf16 %v775
        %v810 = vunpack.c.h.bf16 %v775
        %v811 = vunpack.c.l.bf16 %v776
        %v812 = vunpack.c.h.bf16 %v776
        %v813 = vunpack.c.l.bf16 %v777
        %v814 = vunpack.c.h.bf16 %v777
        %v815 = vunpack.c.l.bf16 %v778
        %v816 = vunpack.c.h.bf16 %v778
        %v817 = vunpack.c.l.bf16 %v779
        %v818 = vunpack.c.h.bf16 %v779
        %v819 = vunpack.c.l.bf16 %v780
        %v820 = vunpack.c.h.bf16 %v780
        %v821 = vunpack.c.l.bf16 %v781
        %v822 = vunpack.c.h.bf16 %v781
        %v823 = vunpack.c.l.bf16 %v782
        %v824 = vunpack.c.h.bf16 %v782
        %v825 = vunpack.c.l.bf16 %v783
        %v826 = vunpack.c.h.bf16 %v783
        %v827 = vunpack.c.l.bf16 %v784
        %v828 = vunpack.c.h.bf16 %v784
        %v829 = vunpack.c.l.bf16 %v785
        %v830 = vunpack.c.h.bf16 %v785
        %v831 = vunpack.c.l.bf16 %v786
        %v832 = vunpack.c.h.bf16 %v786
        %v833 = vunpack.c.l.bf16 %v787
        %v834 = vunpack.c.h.bf16 %v787
        %v835 = vunpack.c.l.bf16 %v788
        %v836 = vunpack.c.h.bf16 %v788
        %vm837 = vcmask 523264
        %v838 = vsel %vm837, %v789, 0.0
        %v839 = vsel %vm837, %v805, 0.0
        %v840 = vadd.f32 %v838, %v839
        %v841 = vsel %vm837, %v821, 0.0
        %v842 = vadd.f32 %v840, %v841
        %v843 = vsel %vm837, %v790, 0.0
        %v844 = vsel %vm837, %v806, 0.0
        %v845 = vadd.f32 %v843, %v844
        %v846 = vsel %vm837, %v822, 0.0
        %v847 = vadd.f32 %v845, %v846
        %v848 = vsel %vm837, %v791, 0.0
        %v849 = vsel %vm837, %v807, 0.0
        %v850 = vadd.f32 %v848, %v849
        %v851 = vsel %vm837, %v823, 0.0
        %v852 = vadd.f32 %v850, %v851
        %v853 = vsel %vm837, %v792, 0.0
        %v854 = vsel %vm837, %v808, 0.0
        %v855 = vadd.f32 %v853, %v854
        %v856 = vsel %vm837, %v824, 0.0
        %v857 = vadd.f32 %v855, %v856
        %v858 = vsel %vm837, %v793, 0.0
        %v859 = vsel %vm837, %v809, 0.0
        %v860 = vadd.f32 %v858, %v859
        %v861 = vsel %vm837, %v825, 0.0
        %v862 = vadd.f32 %v860, %v861
        %v863 = vsel %vm837, %v794, 0.0
        %v864 = vsel %vm837, %v810, 0.0
        %v865 = vadd.f32 %v863, %v864
        %v866 = vsel %vm837, %v826, 0.0
        %v867 = vadd.f32 %v865, %v866
        %v868 = vsel %vm837, %v795, 0.0
        %v869 = vsel %vm837, %v811, 0.0
        %v870 = vadd.f32 %v868, %v869
        %v871 = vsel %vm837, %v827, 0.0
        %v872 = vadd.f32 %v870, %v871
        %v873 = vsel %vm837, %v796, 0.0
        %v874 = vsel %vm837, %v812, 0.0
        %v875 = vadd.f32 %v873, %v874
        %v876 = vsel %vm837, %v828, 0.0
        %v877 = vadd.f32 %v875, %v876
        %v878 = vsel %vm837, %v797, 0.0
        %v879 = vsel %vm837, %v813, 0.0
        %v880 = vadd.f32 %v878, %v879
        %v881 = vsel %vm837, %v829, 0.0
        %v882 = vadd.f32 %v880, %v881
        %v883 = vsel %vm837, %v798, 0.0
        %v884 = vsel %vm837, %v814, 0.0
        %v885 = vadd.f32 %v883, %v884
        %v886 = vsel %vm837, %v830, 0.0
        %v887 = vadd.f32 %v885, %v886
        %v888 = vsel %vm837, %v799, 0.0
        %v889 = vsel %vm837, %v815, 0.0
        %v890 = vadd.f32 %v888, %v889
        %v891 = vsel %vm837, %v831, 0.0
        %v892 = vadd.f32 %v890, %v891
        %v893 = vsel %vm837, %v800, 0.0
        %v894 = vsel %vm837, %v816, 0.0
        %v895 = vadd.f32 %v893, %v894
        %v896 = vsel %vm837, %v832, 0.0
        %v897 = vadd.f32 %v895, %v896
        %v898 = vsel %vm837, %v801, 0.0
        %v899 = vsel %vm837, %v817, 0.0
        %v900 = vadd.f32 %v898, %v899
        %v901 = vsel %vm837, %v833, 0.0
        %v902 = vadd.f32 %v900, %v901
        %v903 = vsel %vm837, %v802, 0.0
        %v904 = vsel %vm837, %v818, 0.0
        %v905 = vadd.f32 %v903, %v904
        %v906 = vsel %vm837, %v834, 0.0
        %v907 = vadd.f32 %v905, %v906
        %v908 = vsel %vm837, %v803, 0.0
        %v909 = vsel %vm837, %v819, 0.0
        %v910 = vadd.f32 %v908, %v909
        %v911 = vsel %vm837, %v835, 0.0
        %v912 = vadd.f32 %v910, %v911
        %v913 = vsel %vm837, %v804, 0.0
        %v914 = vsel %vm837, %v820, 0.0
        %v915 = vadd.f32 %v913, %v914
        %v916 = vsel %vm837, %v836, 0.0
        %v917 = vadd.f32 %v915, %v916
        %v918 = vpack.c.bf16 %v847, %v842
        %v919 = vpack.c.bf16 %v857, %v852
        %v920 = vpack.c.bf16 %v867, %v862
        %v921 = vpack.c.bf16 %v877, %v872
        %v922 = vpack.c.bf16 %v887, %v882
        %v923 = vpack.c.bf16 %v897, %v892
        %v924 = vpack.c.bf16 %v907, %v902
        %v925 = vpack.c.bf16 %v917, %v912
        %v926 = vunpack.c.l.bf16 %v918
        %v927 = vunpack.c.h.bf16 %v918
        %v928 = vunpack.c.l.bf16 %v919
        %v929 = vunpack.c.h.bf16 %v919
        %v930 = vunpack.c.l.bf16 %v920
        %v931 = vunpack.c.h.bf16 %v920
        %v932 = vunpack.c.l.bf16 %v921
        %v933 = vunpack.c.h.bf16 %v921
        %v934 = vunpack.c.l.bf16 %v922
        %v935 = vunpack.c.h.bf16 %v922
        %v936 = vunpack.c.l.bf16 %v923
        %v937 = vunpack.c.h.bf16 %v923
        %v938 = vunpack.c.l.bf16 %v924
        %v939 = vunpack.c.h.bf16 %v924
        %v940 = vunpack.c.l.bf16 %v925
        %v941 = vunpack.c.h.bf16 %v925
        %v942 = vmul.bf16 %v645, %v645
        %v943 = vmul.bf16 %v646, %v646
        %v944 = vmul.bf16 %v647, %v647
        %v945 = vmul.bf16 %v648, %v648
        %v946 = vmul.bf16 %v649, %v649
        %v947 = vmul.bf16 %v650, %v650
        %v948 = vmul.bf16 %v651, %v651
        %v949 = vmul.bf16 %v652, %v652
        %v950 = vmul.bf16 %v653, %v653
        %v951 = vmul.bf16 %v654, %v654
        %v952 = vmul.bf16 %v655, %v655
        %v953 = vmul.bf16 %v656, %v656
        %v954 = vmul.bf16 %v657, %v657
        %v955 = vmul.bf16 %v658, %v658
        %v956 = vmul.bf16 %v659, %v659
        %v957 = vmul.bf16 %v660, %v660
        %v958 = vmul.bf16 %v661, %v661
        %v959 = vmul.bf16 %v662, %v662
        %v960 = vmul.bf16 %v663, %v663
        %v961 = vmul.bf16 %v664, %v664
        %v962 = vmul.bf16 %v665, %v665
        %v963 = vmul.bf16 %v666, %v666
        %v964 = vmul.bf16 %v667, %v667
        %v965 = vmul.bf16 %v668, %v668
        %v966 = vunpack.c.l.bf16 %v942
        %v967 = vunpack.c.h.bf16 %v942
        %v968 = vunpack.c.l.bf16 %v943
        %v969 = vunpack.c.h.bf16 %v943
        %v970 = vunpack.c.l.bf16 %v944
        %v971 = vunpack.c.h.bf16 %v944
        %v972 = vunpack.c.l.bf16 %v945
        %v973 = vunpack.c.h.bf16 %v945
        %v974 = vunpack.c.l.bf16 %v946
        %v975 = vunpack.c.h.bf16 %v946
        %v976 = vunpack.c.l.bf16 %v947
        %v977 = vunpack.c.h.bf16 %v947
        %v978 = vunpack.c.l.bf16 %v948
        %v979 = vunpack.c.h.bf16 %v948
        %v980 = vunpack.c.l.bf16 %v949
        %v981 = vunpack.c.h.bf16 %v949
        %v982 = vunpack.c.l.bf16 %v950
        %v983 = vunpack.c.h.bf16 %v950
        %v984 = vunpack.c.l.bf16 %v951
        %v985 = vunpack.c.h.bf16 %v951
        %v986 = vunpack.c.l.bf16 %v952
        %v987 = vunpack.c.h.bf16 %v952
        %v988 = vunpack.c.l.bf16 %v953
        %v989 = vunpack.c.h.bf16 %v953
        %v990 = vunpack.c.l.bf16 %v954
        %v991 = vunpack.c.h.bf16 %v954
        %v992 = vunpack.c.l.bf16 %v955
        %v993 = vunpack.c.h.bf16 %v955
        %v994 = vunpack.c.l.bf16 %v956
        %v995 = vunpack.c.h.bf16 %v956
        %v996 = vunpack.c.l.bf16 %v957
        %v997 = vunpack.c.h.bf16 %v957
        %v998 = vunpack.c.l.bf16 %v958
        %v999 = vunpack.c.h.bf16 %v958
        %v1000 = vunpack.c.l.bf16 %v959
        %v1001 = vunpack.c.h.bf16 %v959
        %v1002 = vunpack.c.l.bf16 %v960
        %v1003 = vunpack.c.h.bf16 %v960
        %v1004 = vunpack.c.l.bf16 %v961
        %v1005 = vunpack.c.h.bf16 %v961
        %v1006 = vunpack.c.l.bf16 %v962
        %v1007 = vunpack.c.h.bf16 %v962
        %v1008 = vunpack.c.l.bf16 %v963
        %v1009 = vunpack.c.h.bf16 %v963
        %v1010 = vunpack.c.l.bf16 %v964
        %v1011 = vunpack.c.h.bf16 %v964
        %v1012 = vunpack.c.l.bf16 %v965
        %v1013 = vunpack.c.h.bf16 %v965
        %vm1014 = vcmask 1048064
        %v1015 = vsel %vm1014, %v966, 0.0
        %v1016 = vsel %vm1014, %v982, 0.0
        %v1017 = vadd.f32 %v1015, %v1016
        %v1018 = vsel %vm1014, %v998, 0.0
        %v1019 = vadd.f32 %v1017, %v1018
        %v1020 = vsel %vm1014, %v967, 0.0
        %v1021 = vsel %vm1014, %v983, 0.0
        %v1022 = vadd.f32 %v1020, %v1021
        %v1023 = vsel %vm1014, %v999, 0.0
        %v1024 = vadd.f32 %v1022, %v1023
        %v1025 = vsel %vm1014, %v968, 0.0
        %v1026 = vsel %vm1014, %v984, 0.0
        %v1027 = vadd.f32 %v1025, %v1026
        %v1028 = vsel %vm1014, %v1000, 0.0
        %v1029 = vadd.f32 %v1027, %v1028
        %v1030 = vsel %vm1014, %v969, 0.0
        %v1031 = vsel %vm1014, %v985, 0.0
        %v1032 = vadd.f32 %v1030, %v1031
        %v1033 = vsel %vm1014, %v1001, 0.0
        %v1034 = vadd.f32 %v1032, %v1033
        %v1035 = vsel %vm1014, %v970, 0.0
        %v1036 = vsel %vm1014, %v986, 0.0
        %v1037 = vadd.f32 %v1035, %v1036
        %v1038 = vsel %vm1014, %v1002, 0.0
        %v1039 = vadd.f32 %v1037, %v1038
        %v1040 = vsel %vm1014, %v971, 0.0
        %v1041 = vsel %vm1014, %v987, 0.0
        %v1042 = vadd.f32 %v1040, %v1041
        %v1043 = vsel %vm1014, %v1003, 0.0
        %v1044 = vadd.f32 %v1042, %v1043
        %v1045 = vsel %vm1014, %v972, 0.0
        %v1046 = vsel %vm1014, %v988, 0.0
        %v1047 = vadd.f32 %v1045, %v1046
        %v1048 = vsel %vm1014, %v1004, 0.0
        %v1049 = vadd.f32 %v1047, %v1048
        %v1050 = vsel %vm1014, %v973, 0.0
        %v1051 = vsel %vm1014, %v989, 0.0
        %v1052 = vadd.f32 %v1050, %v1051
        %v1053 = vsel %vm1014, %v1005, 0.0
        %v1054 = vadd.f32 %v1052, %v1053
        %v1055 = vsel %vm1014, %v974, 0.0
        %v1056 = vsel %vm1014, %v990, 0.0
        %v1057 = vadd.f32 %v1055, %v1056
        %v1058 = vsel %vm1014, %v1006, 0.0
        %v1059 = vadd.f32 %v1057, %v1058
        %v1060 = vsel %vm1014, %v975, 0.0
        %v1061 = vsel %vm1014, %v991, 0.0
        %v1062 = vadd.f32 %v1060, %v1061
        %v1063 = vsel %vm1014, %v1007, 0.0
        %v1064 = vadd.f32 %v1062, %v1063
        %v1065 = vsel %vm1014, %v976, 0.0
        %v1066 = vsel %vm1014, %v992, 0.0
        %v1067 = vadd.f32 %v1065, %v1066
        %v1068 = vsel %vm1014, %v1008, 0.0
        %v1069 = vadd.f32 %v1067, %v1068
        %v1070 = vsel %vm1014, %v977, 0.0
        %v1071 = vsel %vm1014, %v993, 0.0
        %v1072 = vadd.f32 %v1070, %v1071
        %v1073 = vsel %vm1014, %v1009, 0.0
        %v1074 = vadd.f32 %v1072, %v1073
        %v1075 = vsel %vm1014, %v978, 0.0
        %v1076 = vsel %vm1014, %v994, 0.0
        %v1077 = vadd.f32 %v1075, %v1076
        %v1078 = vsel %vm1014, %v1010, 0.0
        %v1079 = vadd.f32 %v1077, %v1078
        %v1080 = vsel %vm1014, %v979, 0.0
        %v1081 = vsel %vm1014, %v995, 0.0
        %v1082 = vadd.f32 %v1080, %v1081
        %v1083 = vsel %vm1014, %v1011, 0.0
        %v1084 = vadd.f32 %v1082, %v1083
        %v1085 = vsel %vm1014, %v980, 0.0
        %v1086 = vsel %vm1014, %v996, 0.0
        %v1087 = vadd.f32 %v1085, %v1086
        %v1088 = vsel %vm1014, %v1012, 0.0
        %v1089 = vadd.f32 %v1087, %v1088
        %v1090 = vsel %vm1014, %v981, 0.0
        %v1091 = vsel %vm1014, %v997, 0.0
        %v1092 = vadd.f32 %v1090, %v1091
        %v1093 = vsel %vm1014, %v1013, 0.0
        %v1094 = vadd.f32 %v1092, %v1093
        %v1095 = vpack.c.bf16 %v1024, %v1019
        %v1096 = vpack.c.bf16 %v1034, %v1029
        %v1097 = vpack.c.bf16 %v1044, %v1039
        %v1098 = vpack.c.bf16 %v1054, %v1049
        %v1099 = vpack.c.bf16 %v1064, %v1059
        %v1100 = vpack.c.bf16 %v1074, %v1069
        %v1101 = vpack.c.bf16 %v1084, %v1079
        %v1102 = vpack.c.bf16 %v1094, %v1089
        %v1103 = vunpack.c.l.bf16 %v1095
        %v1104 = vunpack.c.h.bf16 %v1095
        %v1105 = vunpack.c.l.bf16 %v1096
        %v1106 = vunpack.c.h.bf16 %v1096
        %v1107 = vunpack.c.l.bf16 %v1097
        %v1108 = vunpack.c.h.bf16 %v1097
        %v1109 = vunpack.c.l.bf16 %v1098
        %v1110 = vunpack.c.h.bf16 %v1098
        %v1111 = vunpack.c.l.bf16 %v1099
        %v1112 = vunpack.c.h.bf16 %v1099
        %v1113 = vunpack.c.l.bf16 %v1100
        %v1114 = vunpack.c.h.bf16 %v1100
        %v1115 = vunpack.c.l.bf16 %v1101
        %v1116 = vunpack.c.h.bf16 %v1101
        %v1117 = vunpack.c.l.bf16 %v1102
        %v1118 = vunpack.c.h.bf16 %v1102
        %v1119 = vadd.f32 %v1103, 1e-06
        %v1120 = vadd.f32 %v1104, 1e-06
        %v1121 = vadd.f32 %v1105, 1e-06
        %v1122 = vadd.f32 %v1106, 1e-06
        %v1123 = vadd.f32 %v1107, 1e-06
        %v1124 = vadd.f32 %v1108, 1e-06
        %v1125 = vadd.f32 %v1109, 1e-06
        %v1126 = vadd.f32 %v1110, 1e-06
        %v1127 = vadd.f32 %v1111, 1e-06
        %v1128 = vadd.f32 %v1112, 1e-06
        %v1129 = vadd.f32 %v1113, 1e-06
        %v1130 = vadd.f32 %v1114, 1e-06
        %v1131 = vadd.f32 %v1115, 1e-06
        %v1132 = vadd.f32 %v1116, 1e-06
        %v1133 = vadd.f32 %v1117, 1e-06
        %v1134 = vadd.f32 %v1118, 1e-06
        %1151 = vrot.lane.b32.xlu0 %v1119, 64
        %v1152 = vpop.permute.xlu0 %1151
        %1153 = vrot.lane.b32.xlu0 %v1120, 64
        %v1154 = vpop.permute.xlu0 %1153
        %1155 = vrot.lane.b32.xlu0 %v1121, 64
        %v1156 = vpop.permute.xlu0 %1155
        %1157 = vrot.lane.b32.xlu0 %v1122, 64
        %v1158 = vpop.permute.xlu0 %1157
        %1159 = vrot.lane.b32.xlu0 %v1123, 64
        %v1160 = vpop.permute.xlu0 %1159
        %1161 = vrot.lane.b32.xlu0 %v1124, 64
        %v1162 = vpop.permute.xlu0 %1161
        %1163 = vrot.lane.b32.xlu0 %v1125, 64
        %v1164 = vpop.permute.xlu0 %1163
        %1165 = vrot.lane.b32.xlu0 %v1126, 64
        %v1166 = vpop.permute.xlu0 %1165
        %1167 = vrot.lane.b32.xlu0 %v1127, 64
        %v1168 = vpop.permute.xlu0 %1167
        %1169 = vrot.lane.b32.xlu0 %v1128, 64
        %v1170 = vpop.permute.xlu0 %1169
        %1171 = vrot.lane.b32.xlu0 %v1129, 64
        %v1172 = vpop.permute.xlu0 %1171
        %1173 = vrot.lane.b32.xlu0 %v1130, 64
        %v1174 = vpop.permute.xlu0 %1173
        %1175 = vrot.lane.b32.xlu0 %v1131, 64
        %v1176 = vpop.permute.xlu0 %1175
        %1177 = vrot.lane.b32.xlu0 %v1132, 64
        %v1178 = vpop.permute.xlu0 %1177
        %1179 = vrot.lane.b32.xlu0 %v1133, 64
        %v1180 = vpop.permute.xlu0 %1179
        %1181 = vrot.lane.b32.xlu0 %v1134, 64
        %v1182 = vpop.permute.xlu0 %1181
        %v1199 = vrcp.pop %v1152
        %v1200 = vmul.f32 %v926, %v1199
        %v1201 = vrcp.pop %v1154
        %v1202 = vmul.f32 %v927, %v1201
        %v1203 = vrcp.pop %v1156
        %v1204 = vmul.f32 %v928, %v1203
        %v1205 = vrcp.pop %v1158
        %v1206 = vmul.f32 %v929, %v1205
        %v1207 = vrcp.pop %v1160
        %v1208 = vmul.f32 %v930, %v1207
        %v1209 = vrcp.pop %v1162
        %v1210 = vmul.f32 %v931, %v1209
        %v1211 = vrcp.pop %v1164
        %v1212 = vmul.f32 %v932, %v1211
        %v1213 = vrcp.pop %v1166
        %v1214 = vmul.f32 %v933, %v1213
        %v1215 = vrcp.pop %v1168
        %v1216 = vmul.f32 %v934, %v1215
        %v1217 = vrcp.pop %v1170
        %v1218 = vmul.f32 %v935, %v1217
        %v1219 = vrcp.pop %v1172
        %v1220 = vmul.f32 %v936, %v1219
        %v1221 = vrcp.pop %v1174
        %v1222 = vmul.f32 %v937, %v1221
        %v1223 = vrcp.pop %v1176
        %v1224 = vmul.f32 %v938, %v1223
        %v1225 = vrcp.pop %v1178
        %v1226 = vmul.f32 %v939, %v1225
        %v1227 = vrcp.pop %v1180
        %v1228 = vmul.f32 %v940, %v1227
        %v1229 = vrcp.pop %v1182
        %v1230 = vmul.f32 %v941, %v1229
        %v1231 = vmin.f32 %v1200, 0.0
        %v1232 = vmin.f32 %v1202, 0.0
        %v1233 = vmin.f32 %v1204, 0.0
        %v1234 = vmin.f32 %v1206, 0.0
        %v1235 = vmin.f32 %v1208, 0.0
        %v1236 = vmin.f32 %v1210, 0.0
        %v1237 = vmin.f32 %v1212, 0.0
        %v1238 = vmin.f32 %v1214, 0.0
        %v1239 = vmin.f32 %v1216, 0.0
        %v1240 = vmin.f32 %v1218, 0.0
        %v1241 = vmin.f32 %v1220, 0.0
        %v1242 = vmin.f32 %v1222, 0.0
        %v1243 = vmin.f32 %v1224, 0.0
        %v1244 = vmin.f32 %v1226, 0.0
        %v1245 = vmin.f32 %v1228, 0.0
        %v1246 = vmin.f32 %v1230, 0.0
        %v1247 = vpack.c.bf16 %v1232, %v1231
        %v1248 = vpack.c.bf16 %v1234, %v1233
        %v1249 = vpack.c.bf16 %v1236, %v1235
        %v1250 = vpack.c.bf16 %v1238, %v1237
        %v1251 = vpack.c.bf16 %v1240, %v1239
        %v1252 = vpack.c.bf16 %v1242, %v1241
        %v1253 = vpack.c.bf16 %v1244, %v1243
        %v1254 = vpack.c.bf16 %v1246, %v1245
        %v1255 = vmul.bf16 %v1247, %v694
        %v1256 = vmul.bf16 %v1248, %v696
        %v1257 = vmul.bf16 %v1249, %v698
        %v1258 = vmul.bf16 %v1250, %v700
        %v1259 = vmul.bf16 %v1251, %v702
        %v1260 = vmul.bf16 %v1252, %v704
        %v1261 = vmul.bf16 %v1253, %v706
        %v1262 = vmul.bf16 %v1254, %v708
        %v1263 = vmul.bf16 %v1247, %v710
        %v1264 = vmul.bf16 %v1248, %v712
        %v1265 = vmul.bf16 %v1249, %v714
        %v1266 = vmul.bf16 %v1250, %v716
        %v1267 = vmul.bf16 %v1251, %v718
        %v1268 = vmul.bf16 %v1252, %v720
        %v1269 = vmul.bf16 %v1253, %v722
        %v1270 = vmul.bf16 %v1254, %v724
        %v1271 = vmul.bf16 %v1247, %v726
        %v1272 = vmul.bf16 %v1248, %v728
        %v1273 = vmul.bf16 %v1249, %v730
        %v1274 = vmul.bf16 %v1250, %v732
        %v1275 = vmul.bf16 %v1251, %v734
        %v1276 = vmul.bf16 %v1252, %v736
        %v1277 = vmul.bf16 %v1253, %v738
        %v1278 = vmul.bf16 %v1254, %v740
        %v1279 = vsub.bf16 %v645, %v1255
        %v1280 = vsub.bf16 %v646, %v1256
        %v1281 = vsub.bf16 %v647, %v1257
        %v1282 = vsub.bf16 %v648, %v1258
        %v1283 = vsub.bf16 %v649, %v1259
        %v1284 = vsub.bf16 %v650, %v1260
        %v1285 = vsub.bf16 %v651, %v1261
        %v1286 = vsub.bf16 %v652, %v1262
        %v1287 = vsub.bf16 %v653, %v1263
        %v1288 = vsub.bf16 %v654, %v1264
        %v1289 = vsub.bf16 %v655, %v1265
        %v1290 = vsub.bf16 %v656, %v1266
        %v1291 = vsub.bf16 %v657, %v1267
        %v1292 = vsub.bf16 %v658, %v1268
        %v1293 = vsub.bf16 %v659, %v1269
        %v1294 = vsub.bf16 %v660, %v1270
        %v1295 = vsub.bf16 %v661, %v1271
        %v1296 = vsub.bf16 %v662, %v1272
        %v1297 = vsub.bf16 %v663, %v1273
        %v1298 = vsub.bf16 %v664, %v1274
        %v1299 = vsub.bf16 %v665, %v1275
        %v1300 = vsub.bf16 %v666, %v1276
        %v1301 = vsub.bf16 %v667, %v1277
        %v1302 = vsub.bf16 %v668, %v1278
        %v1303 = vld [vmem:[#allocation7] sm:$0xf]
        %v1304 = vld [vmem:[#allocation7 + $0x4] sm:$0xf]
        %v1305 = vld [vmem:[#allocation7 + $0x8] sm:$0xf]
        %v1306 = vld [vmem:[#allocation7 + $0xc] sm:$0xf]
        %v1307 = vld [vmem:[#allocation7 + $0x10] sm:$0xf]
        %v1308 = vld [vmem:[#allocation7 + $0x14] sm:$0xf]
        %v1309 = vld [vmem:[#allocation7 + $0x18] sm:$0xf]
        %v1310 = vld [vmem:[#allocation7 + $0x1c] sm:$0xf]
        %v1319 = vunpack.c.l.b16 %v1303
        %v1320 = vunpack.c.l.b16 %v1304
        %v1321 = vunpack.c.l.b16 %v1305
        %v1322 = vunpack.c.l.b16 %v1306
        %v1323 = vunpack.c.l.b16 %v1307
        %v1324 = vunpack.c.l.b16 %v1308
        %v1325 = vunpack.c.l.b16 %v1309
        %v1326 = vunpack.c.l.b16 %v1310
        %v1327 = vpack.c.b16 %v1320, %v1319
        %v1328 = vpack.c.b16 %v1322, %v1321
        %v1329 = vpack.c.b16 %v1324, %v1323
        %v1330 = vpack.c.b16 %v1326, %v1325
        %v1336 = vsel %vm837, %v1279, 0
        %v1339 = vsel %vm837, %v1280, 0
        %v1342 = vsel %vm837, %v1281, 0
        %v1345 = vsel %vm837, %v1282, 0
        %v1348 = vsel %vm837, %v1283, 0
        %v1351 = vsel %vm837, %v1284, 0
        %v1354 = vsel %vm837, %v1285, 0
        %v1357 = vsel %vm837, %v1286, 0
        %v1360 = vsel %vm837, %v1287, 0
        %v1363 = vsel %vm837, %v1288, 0
        %v1366 = vsel %vm837, %v1289, 0
        %v1369 = vsel %vm837, %v1290, 0
        %v1372 = vsel %vm837, %v1291, 0
        %v1375 = vsel %vm837, %v1292, 0
        %v1378 = vsel %vm837, %v1293, 0
        %v1381 = vsel %vm837, %v1294, 0
        %v1384 = vsel %vm837, %v1295, 0
        %v1387 = vsel %vm837, %v1296, 0
        %v1390 = vsel %vm837, %v1297, 0
        %v1393 = vsel %vm837, %v1298, 0
        %v1396 = vsel %vm837, %v1299, 0
        %v1399 = vsel %vm837, %v1300, 0
        %v1402 = vsel %vm837, %v1301, 0
        %v1405 = vsel %vm837, %v1302, 0
        %1407 = vmatprep.subr.bf16.mxu0 0
        %1408 = vmatpush1.bf16.msra.mxu0 %v1327
        %1409 = vmatprep.subr.bf16.mxu0 0
        %1410 = vmatpush1.bf16.msra.mxu0 %v1328
        %1411 = vmatprep.subr.bf16.mxu0 0
        %1412 = vmatpush1.bf16.msra.mxu0 %v1329
        %1413 = vmatprep.subr.bf16.mxu0 0
        %1414 = vmatpush1.bf16.msra.mxu0 %v1330
        %1415 = vmatprep.subr.bf16.mxu0 0
        %1416 = vmatpush1.bf16.msra.mxu0 0
        %1417 = vmatprep.subr.bf16.mxu0 0
        %1418 = vmatpush1.bf16.msra.mxu0 0
        %1419 = vmatprep.subr.bf16.mxu0 0
        %1420 = vmatpush1.bf16.msra.mxu0 0
        %1421 = vmatprep.subr.bf16.mxu0 0
        %1422 = vmatpush1.bf16.msra.mxu0 0
        %1423 = vmatprep.subr.bf16.mxu0 0
        %1424 = vmatpush1.bf16.msra.mxu0 0
        %1425 = vmatprep.subr.bf16.mxu0 0
        %1426 = vmatpush1.bf16.msra.mxu0 0
        %1427 = vmatprep.subr.bf16.mxu0 0
        %1428 = vmatpush1.bf16.msra.mxu0 0
        %1429 = vmatprep.subr.bf16.mxu0 0
        %1430 = vmatpush1.bf16.msra.mxu0 0
        %1431 = vmatprep.subr.bf16.mxu0 0
        %1432 = vmatpush1.bf16.msra.mxu0 0
        %1433 = vmatprep.subr.bf16.mxu0 0
        %1434 = vmatpush1.bf16.msra.mxu0 0
        %1435 = vmatprep.subr.bf16.mxu0 0
        %1436 = vmatpush1.bf16.msra.mxu0 0
        %1437 = vmatprep.subr.bf16.mxu0 0
        %1438 = vmatpush1.bf16.msra.mxu0 0
        %1439 = vmatprep.mubr.bf16.mxu0 0
        %1440 = vmatmul.mubr.bf16.gmra.mrb[0].mxu0 %v1336
        %v1441 = vpop.f32.mrb[0].mxu0
        %v1442 = vadd.f32 0.0, %v1441
        %v1443 = vpop.f32.mrb[0].mxu0
        %v1444 = vpop.f32.mrb[0].mxu0
        %v1445 = vadd.f32 0.0, %v1444
        %v1446 = vpop.f32.mrb[0].mxu0
        %1447 = vmatprep.mubr.bf16.mxu0 0
        %1448 = vmatmul.mubr.bf16.gmra.mrb[0].mxu0 %v1339
        %v1449 = vpop.f32.mrb[0].mxu0
        %v1450 = vadd.f32 0.0, %v1449
        %v1451 = vpop.f32.mrb[0].mxu0
        %v1452 = vpop.f32.mrb[0].mxu0
        %v1453 = vadd.f32 0.0, %v1452
        %v1454 = vpop.f32.mrb[0].mxu0
        %1455 = vmatprep.mubr.bf16.mxu0 0
        %1456 = vmatmul.mubr.bf16.gmra.mrb[0].mxu0 %v1342
        %v1457 = vpop.f32.mrb[0].mxu0
        %v1458 = vadd.f32 0.0, %v1457
        %v1459 = vpop.f32.mrb[0].mxu0
        %v1460 = vpop.f32.mrb[0].mxu0
        %v1461 = vadd.f32 0.0, %v1460
        %v1462 = vpop.f32.mrb[0].mxu0
        %1463 = vmatprep.mubr.bf16.mxu0 0
        %1464 = vmatmul.mubr.bf16.gmra.mrb[0].mxu0 %v1345
        %v1465 = vpop.f32.mrb[0].mxu0
        %v1466 = vadd.f32 0.0, %v1465
        %v1467 = vpop.f32.mrb[0].mxu0
        %v1468 = vpop.f32.mrb[0].mxu0
        %v1469 = vadd.f32 0.0, %v1468
        %v1470 = vpop.f32.mrb[0].mxu0
        %1471 = vmatprep.mubr.bf16.mxu0 0
        %1472 = vmatmul.mubr.bf16.gmra.mrb[0].mxu0 %v1348
        %v1473 = vpop.f32.mrb[0].mxu0
        %v1474 = vadd.f32 0.0, %v1473
        %v1475 = vpop.f32.mrb[0].mxu0
        %v1476 = vpop.f32.mrb[0].mxu0
        %v1477 = vadd.f32 0.0, %v1476
        %v1478 = vpop.f32.mrb[0].mxu0
        %1479 = vmatprep.mubr.bf16.mxu0 0
        %1480 = vmatmul.mubr.bf16.gmra.mrb[0].mxu0 %v1351
        %v1481 = vpop.f32.mrb[0].mxu0
        %v1482 = vadd.f32 0.0, %v1481
        %v1483 = vpop.f32.mrb[0].mxu0
        %v1484 = vpop.f32.mrb[0].mxu0
        %v1485 = vadd.f32 0.0, %v1484
        %v1486 = vpop.f32.mrb[0].mxu0
        %1487 = vmatprep.mubr.bf16.mxu0 0
        %1488 = vmatmul.mubr.bf16.gmra.mrb[0].mxu0 %v1354
        %v1489 = vpop.f32.mrb[0].mxu0
        %v1490 = vadd.f32 0.0, %v1489
        %v1491 = vpop.f32.mrb[0].mxu0
        %v1492 = vpop.f32.mrb[0].mxu0
        %v1493 = vadd.f32 0.0, %v1492
        %v1494 = vpop.f32.mrb[0].mxu0
        %1495 = vmatprep.mubr.bf16.mxu0 0
        %1496 = vmatmul.mubr.bf16.gmra.mrb[0].mxu0 %v1357
        %v1497 = vpop.f32.mrb[0].mxu0
        %v1498 = vadd.f32 0.0, %v1497
        %v1499 = vpop.f32.mrb[0].mxu0
        %v1500 = vpop.f32.mrb[0].mxu0
        %v1501 = vadd.f32 0.0, %v1500
        %v1502 = vpop.f32.mrb[0].mxu0
        %1503 = vmatprep.mubr.bf16.mxu0 0
        %1504 = vmatmul.mubr.bf16.gmra.mrb[0].mxu0 %v1360
        %v1505 = vpop.f32.mrb[0].mxu0
        %v1506 = vadd.f32 0.0, %v1505
        %v1507 = vpop.f32.mrb[0].mxu0
        %v1508 = vpop.f32.mrb[0].mxu0
        %v1509 = vadd.f32 0.0, %v1508
        %v1510 = vpop.f32.mrb[0].mxu0
        %1511 = vmatprep.mubr.bf16.mxu0 0
        %1512 = vmatmul.mubr.bf16.gmra.mrb[0].mxu0 %v1363
        %v1513 = vpop.f32.mrb[0].mxu0
        %v1514 = vadd.f32 0.0, %v1513
        %v1515 = vpop.f32.mrb[0].mxu0
        %v1516 = vpop.f32.mrb[0].mxu0
        %v1517 = vadd.f32 0.0, %v1516
        %v1518 = vpop.f32.mrb[0].mxu0
        %1519 = vmatprep.mubr.bf16.mxu0 0
        %1520 = vmatmul.mubr.bf16.gmra.mrb[0].mxu0 %v1366
        %v1521 = vpop.f32.mrb[0].mxu0
        %v1522 = vadd.f32 0.0, %v1521
        %v1523 = vpop.f32.mrb[0].mxu0
        %v1524 = vpop.f32.mrb[0].mxu0
        %v1525 = vadd.f32 0.0, %v1524
        %v1526 = vpop.f32.mrb[0].mxu0
        %1527 = vmatprep.mubr.bf16.mxu0 0
        %1528 = vmatmul.mubr.bf16.gmra.mrb[0].mxu0 %v1369
        %v1529 = vpop.f32.mrb[0].mxu0
        %v1530 = vadd.f32 0.0, %v1529
        %v1531 = vpop.f32.mrb[0].mxu0
        %v1532 = vpop.f32.mrb[0].mxu0
        %v1533 = vadd.f32 0.0, %v1532
        %v1534 = vpop.f32.mrb[0].mxu0
        %1535 = vmatprep.mubr.bf16.mxu0 0
        %1536 = vmatmul.mubr.bf16.gmra.mrb[0].mxu0 %v1372
        %v1537 = vpop.f32.mrb[0].mxu0
        %v1538 = vadd.f32 0.0, %v1537
        %v1539 = vpop.f32.mrb[0].mxu0
        %v1540 = vpop.f32.mrb[0].mxu0
        %v1541 = vadd.f32 0.0, %v1540
        %v1542 = vpop.f32.mrb[0].mxu0
        %1543 = vmatprep.mubr.bf16.mxu0 0
        %1544 = vmatmul.mubr.bf16.gmra.mrb[0].mxu0 %v1375
        %v1545 = vpop.f32.mrb[0].mxu0
        %v1546 = vadd.f32 0.0, %v1545
        %v1547 = vpop.f32.mrb[0].mxu0
        %v1548 = vpop.f32.mrb[0].mxu0
        %v1549 = vadd.f32 0.0, %v1548
        %v1550 = vpop.f32.mrb[0].mxu0
        %1551 = vmatprep.mubr.bf16.mxu0 0
        %1552 = vmatmul.mubr.bf16.gmra.mrb[0].mxu0 %v1378
        %v1553 = vpop.f32.mrb[0].mxu0
        %v1554 = vadd.f32 0.0, %v1553
        %v1555 = vpop.f32.mrb[0].mxu0
        %v1556 = vpop.f32.mrb[0].mxu0
        %v1557 = vadd.f32 0.0, %v1556
        %v1558 = vpop.f32.mrb[0].mxu0
        %1559 = vmatprep.mubr.bf16.mxu0 0
        %1560 = vmatmul.mubr.bf16.gmra.mrb[0].mxu0 %v1381
        %v1561 = vpop.f32.mrb[0].mxu0
        %v1562 = vadd.f32 0.0, %v1561
        %v1563 = vpop.f32.mrb[0].mxu0
        %v1564 = vpop.f32.mrb[0].mxu0
        %v1565 = vadd.f32 0.0, %v1564
        %v1566 = vpop.f32.mrb[0].mxu0
        %1567 = vmatprep.mubr.bf16.mxu0 0
        %1568 = vmatmul.mubr.bf16.gmra.mrb[0].mxu0 %v1384
        %v1569 = vpop.f32.mrb[0].mxu0
        %v1570 = vadd.f32 0.0, %v1569
        %v1571 = vpop.f32.mrb[0].mxu0
        %v1572 = vpop.f32.mrb[0].mxu0
        %v1573 = vadd.f32 0.0, %v1572
        %v1574 = vpop.f32.mrb[0].mxu0
        %1575 = vmatprep.mubr.bf16.mxu0 0
        %1576 = vmatmul.mubr.bf16.gmra.mrb[0].mxu0 %v1387
        %v1577 = vpop.f32.mrb[0].mxu0
        %v1578 = vadd.f32 0.0, %v1577
        %v1579 = vpop.f32.mrb[0].mxu0
        %v1580 = vpop.f32.mrb[0].mxu0
        %v1581 = vadd.f32 0.0, %v1580
        %v1582 = vpop.f32.mrb[0].mxu0
        %1583 = vmatprep.mubr.bf16.mxu0 0
        %1584 = vmatmul.mubr.bf16.gmra.mrb[0].mxu0 %v1390
        %v1585 = vpop.f32.mrb[0].mxu0
        %v1586 = vadd.f32 0.0, %v1585
        %v1587 = vpop.f32.mrb[0].mxu0
        %v1588 = vpop.f32.mrb[0].mxu0
        %v1589 = vadd.f32 0.0, %v1588
        %v1590 = vpop.f32.mrb[0].mxu0
        %1591 = vmatprep.mubr.bf16.mxu0 0
        %1592 = vmatmul.mubr.bf16.gmra.mrb[0].mxu0 %v1393
        %v1593 = vpop.f32.mrb[0].mxu0
        %v1594 = vadd.f32 0.0, %v1593
        %v1595 = vpop.f32.mrb[0].mxu0
        %v1596 = vpop.f32.mrb[0].mxu0
        %v1597 = vadd.f32 0.0, %v1596
        %v1598 = vpop.f32.mrb[0].mxu0
        %1599 = vmatprep.mubr.bf16.mxu0 0
        %1600 = vmatmul.mubr.bf16.gmra.mrb[0].mxu0 %v1396
        %v1601 = vpop.f32.mrb[0].mxu0
        %v1602 = vadd.f32 0.0, %v1601
        %v1603 = vpop.f32.mrb[0].mxu0
        %v1604 = vpop.f32.mrb[0].mxu0
        %v1605 = vadd.f32 0.0, %v1604
        %v1606 = vpop.f32.mrb[0].mxu0
        %1607 = vmatprep.mubr.bf16.mxu0 0
        %1608 = vmatmul.mubr.bf16.gmra.mrb[0].mxu0 %v1399
        %v1609 = vpop.f32.mrb[0].mxu0
        %v1610 = vadd.f32 0.0, %v1609
        %v1611 = vpop.f32.mrb[0].mxu0
        %v1612 = vpop.f32.mrb[0].mxu0
        %v1613 = vadd.f32 0.0, %v1612
        %v1614 = vpop.f32.mrb[0].mxu0
        %1615 = vmatprep.mubr.bf16.mxu0 0
        %1616 = vmatmul.mubr.bf16.gmra.mrb[0].mxu0 %v1402
        %v1617 = vpop.f32.mrb[0].mxu0
        %v1618 = vadd.f32 0.0, %v1617
        %v1619 = vpop.f32.mrb[0].mxu0
        %v1620 = vpop.f32.mrb[0].mxu0
        %v1621 = vadd.f32 0.0, %v1620
        %v1622 = vpop.f32.mrb[0].mxu0
        %1623 = vmatprep.mubr.bf16.mxu0 0
        %1624 = vmatmul.mubr.bf16.gmra.mrb[0].mxu0 %v1405
        %v1625 = vpop.f32.mrb[0].mxu0
        %v1626 = vadd.f32 0.0, %v1625
        %v1627 = vpop.f32.mrb[0].mxu0
        %v1628 = vpop.f32.mrb[0].mxu0
        %v1629 = vadd.f32 0.0, %v1628
        %v1630 = vpop.f32.mrb[0].mxu0
        %1631 = vdwg.mxu0
        %v1632 = vpack.c.bf16 %v1445, %v1442
        %v1633 = vpack.c.bf16 %v1453, %v1450
        %v1634 = vpack.c.bf16 %v1461, %v1458
        %v1635 = vpack.c.bf16 %v1469, %v1466
        %v1636 = vpack.c.bf16 %v1477, %v1474
        %v1637 = vpack.c.bf16 %v1485, %v1482
        %v1638 = vpack.c.bf16 %v1493, %v1490
        %v1639 = vpack.c.bf16 %v1501, %v1498
        %v1640 = vpack.c.bf16 %v1509, %v1506
        %v1641 = vpack.c.bf16 %v1517, %v1514
        %v1642 = vpack.c.bf16 %v1525, %v1522
        %v1643 = vpack.c.bf16 %v1533, %v1530
        %v1644 = vpack.c.bf16 %v1541, %v1538
        %v1645 = vpack.c.bf16 %v1549, %v1546
        %v1646 = vpack.c.bf16 %v1557, %v1554
        %v1647 = vpack.c.bf16 %v1565, %v1562
        %v1648 = vpack.c.bf16 %v1573, %v1570
        %v1649 = vpack.c.bf16 %v1581, %v1578
        %v1650 = vpack.c.bf16 %v1589, %v1586
        %v1651 = vpack.c.bf16 %v1597, %v1594
        %v1652 = vpack.c.bf16 %v1605, %v1602
        %v1653 = vpack.c.bf16 %v1613, %v1610
        %v1654 = vpack.c.bf16 %v1621, %v1618
        %v1655 = vpack.c.bf16 %v1629, %v1626
        %1680 = vrot.lane.b32.xlu0 %v1632, 64
        %v1681 = vpop.permute.xlu0 %1680
        %1682 = vrot.lane.b32.xlu0 %v1633, 64
        %v1683 = vpop.permute.xlu0 %1682
        %1684 = vrot.lane.b32.xlu0 %v1634, 64
        %v1685 = vpop.permute.xlu0 %1684
        %1686 = vrot.lane.b32.xlu0 %v1635, 64
        %v1687 = vpop.permute.xlu0 %1686
        %1688 = vrot.lane.b32.xlu0 %v1636, 64
        %v1689 = vpop.permute.xlu0 %1688
        %1690 = vrot.lane.b32.xlu0 %v1637, 64
        %v1691 = vpop.permute.xlu0 %1690
        %1692 = vrot.lane.b32.xlu0 %v1638, 64
        %v1693 = vpop.permute.xlu0 %1692
        %1694 = vrot.lane.b32.xlu0 %v1639, 64
        %v1695 = vpop.permute.xlu0 %1694
        %1696 = vrot.lane.b32.xlu0 %v1640, 64
        %v1697 = vpop.permute.xlu0 %1696
        %1698 = vrot.lane.b32.xlu0 %v1641, 64
        %v1699 = vpop.permute.xlu0 %1698
        %1700 = vrot.lane.b32.xlu0 %v1642, 64
        %v1701 = vpop.permute.xlu0 %1700
        %1702 = vrot.lane.b32.xlu0 %v1643, 64
        %v1703 = vpop.permute.xlu0 %1702
        %1704 = vrot.lane.b32.xlu0 %v1644, 64
        %v1705 = vpop.permute.xlu0 %1704
        %1706 = vrot.lane.b32.xlu0 %v1645, 64
        %v1707 = vpop.permute.xlu0 %1706
        %1708 = vrot.lane.b32.xlu0 %v1646, 64
        %v1709 = vpop.permute.xlu0 %1708
        %1710 = vrot.lane.b32.xlu0 %v1647, 64
        %v1711 = vpop.permute.xlu0 %1710
        %1712 = vrot.lane.b32.xlu0 %v1648, 64
        %v1713 = vpop.permute.xlu0 %1712
        %1714 = vrot.lane.b32.xlu0 %v1649, 64
        %v1715 = vpop.permute.xlu0 %1714
        %1716 = vrot.lane.b32.xlu0 %v1650, 64
        %v1717 = vpop.permute.xlu0 %1716
        %1718 = vrot.lane.b32.xlu0 %v1651, 64
        %v1719 = vpop.permute.xlu0 %1718
        %1720 = vrot.lane.b32.xlu0 %v1652, 64
        %v1721 = vpop.permute.xlu0 %1720
        %1722 = vrot.lane.b32.xlu0 %v1653, 64
        %v1723 = vpop.permute.xlu0 %1722
        %1724 = vrot.lane.b32.xlu0 %v1654, 64
        %v1725 = vpop.permute.xlu0 %1724
        %1726 = vrot.lane.b32.xlu0 %v1655, 64
        %v1727 = vpop.permute.xlu0 %1726
        %v1752 = vmul.bf16 %v1632, %v1681
        %v1753 = vmul.bf16 %v1633, %v1683
        %v1754 = vmul.bf16 %v1634, %v1685
        %v1755 = vmul.bf16 %v1635, %v1687
        %v1756 = vmul.bf16 %v1636, %v1689
        %v1757 = vmul.bf16 %v1637, %v1691
        %v1758 = vmul.bf16 %v1638, %v1693
        %v1759 = vmul.bf16 %v1639, %v1695
        %v1760 = vmul.bf16 %v1640, %v1697
        %v1761 = vmul.bf16 %v1641, %v1699
        %v1762 = vmul.bf16 %v1642, %v1701
        %v1763 = vmul.bf16 %v1643, %v1703
        %v1764 = vmul.bf16 %v1644, %v1705
        %v1765 = vmul.bf16 %v1645, %v1707
        %v1766 = vmul.bf16 %v1646, %v1709
        %v1767 = vmul.bf16 %v1647, %v1711
        %v1768 = vmul.bf16 %v1648, %v1713
        %v1769 = vmul.bf16 %v1649, %v1715
        %v1770 = vmul.bf16 %v1650, %v1717
        %v1771 = vmul.bf16 %v1651, %v1719
        %v1772 = vmul.bf16 %v1652, %v1721
        %v1773 = vmul.bf16 %v1653, %v1723
        %v1774 = vmul.bf16 %v1654, %v1725
        %v1775 = vmul.bf16 %v1655, %v1727
        %v1776 = vunpack.c.l.bf16 %v1752
        %v1777 = vunpack.c.h.bf16 %v1752
        %v1778 = vunpack.c.l.bf16 %v1753
        %v1779 = vunpack.c.h.bf16 %v1753
        %v1780 = vunpack.c.l.bf16 %v1754
        %v1781 = vunpack.c.h.bf16 %v1754
        %v1782 = vunpack.c.l.bf16 %v1755
        %v1783 = vunpack.c.h.bf16 %v1755
        %v1784 = vunpack.c.l.bf16 %v1756
        %v1785 = vunpack.c.h.bf16 %v1756
        %v1786 = vunpack.c.l.bf16 %v1757
        %v1787 = vunpack.c.h.bf16 %v1757
        %v1788 = vunpack.c.l.bf16 %v1758
        %v1789 = vunpack.c.h.bf16 %v1758
        %v1790 = vunpack.c.l.bf16 %v1759
        %v1791 = vunpack.c.h.bf16 %v1759
        %v1792 = vunpack.c.l.bf16 %v1760
        %v1793 = vunpack.c.h.bf16 %v1760
        %v1794 = vunpack.c.l.bf16 %v1761
        %v1795 = vunpack.c.h.bf16 %v1761
        %v1796 = vunpack.c.l.bf16 %v1762
        %v1797 = vunpack.c.h.bf16 %v1762
        %v1798 = vunpack.c.l.bf16 %v1763
        %v1799 = vunpack.c.h.bf16 %v1763
        %v1800 = vunpack.c.l.bf16 %v1764
        %v1801 = vunpack.c.h.bf16 %v1764
        %v1802 = vunpack.c.l.bf16 %v1765
        %v1803 = vunpack.c.h.bf16 %v1765
        %v1804 = vunpack.c.l.bf16 %v1766
        %v1805 = vunpack.c.h.bf16 %v1766
        %v1806 = vunpack.c.l.bf16 %v1767
        %v1807 = vunpack.c.h.bf16 %v1767
        %v1808 = vunpack.c.l.bf16 %v1768
        %v1809 = vunpack.c.h.bf16 %v1768
        %v1810 = vunpack.c.l.bf16 %v1769
        %v1811 = vunpack.c.h.bf16 %v1769
        %v1812 = vunpack.c.l.bf16 %v1770
        %v1813 = vunpack.c.h.bf16 %v1770
        %v1814 = vunpack.c.l.bf16 %v1771
        %v1815 = vunpack.c.h.bf16 %v1771
        %v1816 = vunpack.c.l.bf16 %v1772
        %v1817 = vunpack.c.h.bf16 %v1772
        %v1818 = vunpack.c.l.bf16 %v1773
        %v1819 = vunpack.c.h.bf16 %v1773
        %v1820 = vunpack.c.l.bf16 %v1774
        %v1821 = vunpack.c.h.bf16 %v1774
        %v1822 = vunpack.c.l.bf16 %v1775
        %v1823 = vunpack.c.h.bf16 %v1775
        %v1824 = vsel %vm837, %v1776, 0.0
        %v1825 = vsel %vm837, %v1792, 0.0
        %v1826 = vadd.f32 %v1824, %v1825
        %v1827 = vsel %vm837, %v1808, 0.0
        %v1828 = vadd.f32 %v1826, %v1827
        %v1829 = vsel %vm837, %v1777, 0.0
        %v1830 = vsel %vm837, %v1793, 0.0
        %v1831 = vadd.f32 %v1829, %v1830
        %v1832 = vsel %vm837, %v1809, 0.0
        %v1833 = vadd.f32 %v1831, %v1832
        %v1834 = vsel %vm837, %v1778, 0.0
        %v1835 = vsel %vm837, %v1794, 0.0
        %v1836 = vadd.f32 %v1834, %v1835
        %v1837 = vsel %vm837, %v1810, 0.0
        %v1838 = vadd.f32 %v1836, %v1837
        %v1839 = vsel %vm837, %v1779, 0.0
        %v1840 = vsel %vm837, %v1795, 0.0
        %v1841 = vadd.f32 %v1839, %v1840
        %v1842 = vsel %vm837, %v1811, 0.0
        %v1843 = vadd.f32 %v1841, %v1842
        %v1844 = vsel %vm837, %v1780, 0.0
        %v1845 = vsel %vm837, %v1796, 0.0
        %v1846 = vadd.f32 %v1844, %v1845
        %v1847 = vsel %vm837, %v1812, 0.0
        %v1848 = vadd.f32 %v1846, %v1847
        %v1849 = vsel %vm837, %v1781, 0.0
        %v1850 = vsel %vm837, %v1797, 0.0
        %v1851 = vadd.f32 %v1849, %v1850
        %v1852 = vsel %vm837, %v1813, 0.0
        %v1853 = vadd.f32 %v1851, %v1852
        %v1854 = vsel %vm837, %v1782, 0.0
        %v1855 = vsel %vm837, %v1798, 0.0
        %v1856 = vadd.f32 %v1854, %v1855
        %v1857 = vsel %vm837, %v1814, 0.0
        %v1858 = vadd.f32 %v1856, %v1857
        %v1859 = vsel %vm837, %v1783, 0.0
        %v1860 = vsel %vm837, %v1799, 0.0
        %v1861 = vadd.f32 %v1859, %v1860
        %v1862 = vsel %vm837, %v1815, 0.0
        %v1863 = vadd.f32 %v1861, %v1862
        %v1864 = vsel %vm837, %v1784, 0.0
        %v1865 = vsel %vm837, %v1800, 0.0
        %v1866 = vadd.f32 %v1864, %v1865
        %v1867 = vsel %vm837, %v1816, 0.0
        %v1868 = vadd.f32 %v1866, %v1867
        %v1869 = vsel %vm837, %v1785, 0.0
        %v1870 = vsel %vm837, %v1801, 0.0
        %v1871 = vadd.f32 %v1869, %v1870
        %v1872 = vsel %vm837, %v1817, 0.0
        %v1873 = vadd.f32 %v1871, %v1872
        %v1874 = vsel %vm837, %v1786, 0.0
        %v1875 = vsel %vm837, %v1802, 0.0
        %v1876 = vadd.f32 %v1874, %v1875
        %v1877 = vsel %vm837, %v1818, 0.0
        %v1878 = vadd.f32 %v1876, %v1877
        %v1879 = vsel %vm837, %v1787, 0.0
        %v1880 = vsel %vm837, %v1803, 0.0
        %v1881 = vadd.f32 %v1879, %v1880
        %v1882 = vsel %vm837, %v1819, 0.0
        %v1883 = vadd.f32 %v1881, %v1882
        %v1884 = vsel %vm837, %v1788, 0.0
        %v1885 = vsel %vm837, %v1804, 0.0
        %v1886 = vadd.f32 %v1884, %v1885
        %v1887 = vsel %vm837, %v1820, 0.0
        %v1888 = vadd.f32 %v1886, %v1887
        %v1889 = vsel %vm837, %v1789, 0.0
        %v1890 = vsel %vm837, %v1805, 0.0
        %v1891 = vadd.f32 %v1889, %v1890
        %v1892 = vsel %vm837, %v1821, 0.0
        %v1893 = vadd.f32 %v1891, %v1892
        %v1894 = vsel %vm837, %v1790, 0.0
        %v1895 = vsel %vm837, %v1806, 0.0
        %v1896 = vadd.f32 %v1894, %v1895
        %v1897 = vsel %vm837, %v1822, 0.0
        %v1898 = vadd.f32 %v1896, %v1897
        %v1899 = vsel %vm837, %v1791, 0.0
        %v1900 = vsel %vm837, %v1807, 0.0
        %v1901 = vadd.f32 %v1899, %v1900
        %v1902 = vsel %vm837, %v1823, 0.0
        %v1903 = vadd.f32 %v1901, %v1902
        %v1904 = vpack.c.bf16 %v1833, %v1828
        %v1905 = vpack.c.bf16 %v1843, %v1838
        %v1906 = vpack.c.bf16 %v1853, %v1848
        %v1907 = vpack.c.bf16 %v1863, %v1858
        %v1908 = vpack.c.bf16 %v1873, %v1868
        %v1909 = vpack.c.bf16 %v1883, %v1878
        %v1910 = vpack.c.bf16 %v1893, %v1888
        %v1911 = vpack.c.bf16 %v1903, %v1898
        %v1912 = vunpack.c.l.bf16 %v1904
        %v1913 = vunpack.c.h.bf16 %v1904
        %v1914 = vunpack.c.l.bf16 %v1905
        %v1915 = vunpack.c.h.bf16 %v1905
        %v1916 = vunpack.c.l.bf16 %v1906
        %v1917 = vunpack.c.h.bf16 %v1906
        %v1918 = vunpack.c.l.bf16 %v1907
        %v1919 = vunpack.c.h.bf16 %v1907
        %v1920 = vunpack.c.l.bf16 %v1908
        %v1921 = vunpack.c.h.bf16 %v1908
        %v1922 = vunpack.c.l.bf16 %v1909
        %v1923 = vunpack.c.h.bf16 %v1909
        %v1924 = vunpack.c.l.bf16 %v1910
        %v1925 = vunpack.c.h.bf16 %v1910
        %v1926 = vunpack.c.l.bf16 %v1911
        %v1927 = vunpack.c.h.bf16 %v1911
        %v1928 = vmul.bf16 %v1632, %v1632
        %v1929 = vmul.bf16 %v1633, %v1633
        %v1930 = vmul.bf16 %v1634, %v1634
        %v1931 = vmul.bf16 %v1635, %v1635
        %v1932 = vmul.bf16 %v1636, %v1636
        %v1933 = vmul.bf16 %v1637, %v1637
        %v1934 = vmul.bf16 %v1638, %v1638
        %v1935 = vmul.bf16 %v1639, %v1639
        %v1936 = vmul.bf16 %v1640, %v1640
        %v1937 = vmul.bf16 %v1641, %v1641
        %v1938 = vmul.bf16 %v1642, %v1642
        %v1939 = vmul.bf16 %v1643, %v1643
        %v1940 = vmul.bf16 %v1644, %v1644
        %v1941 = vmul.bf16 %v1645, %v1645
        %v1942 = vmul.bf16 %v1646, %v1646
        %v1943 = vmul.bf16 %v1647, %v1647
        %v1944 = vmul.bf16 %v1648, %v1648
        %v1945 = vmul.bf16 %v1649, %v1649
        %v1946 = vmul.bf16 %v1650, %v1650
        %v1947 = vmul.bf16 %v1651, %v1651
        %v1948 = vmul.bf16 %v1652, %v1652
        %v1949 = vmul.bf16 %v1653, %v1653
        %v1950 = vmul.bf16 %v1654, %v1654
        %v1951 = vmul.bf16 %v1655, %v1655
        %v1952 = vunpack.c.l.bf16 %v1928
        %v1953 = vunpack.c.h.bf16 %v1928
        %v1954 = vunpack.c.l.bf16 %v1929
        %v1955 = vunpack.c.h.bf16 %v1929
        %v1956 = vunpack.c.l.bf16 %v1930
        %v1957 = vunpack.c.h.bf16 %v1930
        %v1958 = vunpack.c.l.bf16 %v1931
        %v1959 = vunpack.c.h.bf16 %v1931
        %v1960 = vunpack.c.l.bf16 %v1932
        %v1961 = vunpack.c.h.bf16 %v1932
        %v1962 = vunpack.c.l.bf16 %v1933
        %v1963 = vunpack.c.h.bf16 %v1933
        %v1964 = vunpack.c.l.bf16 %v1934
        %v1965 = vunpack.c.h.bf16 %v1934
        %v1966 = vunpack.c.l.bf16 %v1935
        %v1967 = vunpack.c.h.bf16 %v1935
        %v1968 = vunpack.c.l.bf16 %v1936
        %v1969 = vunpack.c.h.bf16 %v1936
        %v1970 = vunpack.c.l.bf16 %v1937
        %v1971 = vunpack.c.h.bf16 %v1937
        %v1972 = vunpack.c.l.bf16 %v1938
        %v1973 = vunpack.c.h.bf16 %v1938
        %v1974 = vunpack.c.l.bf16 %v1939
        %v1975 = vunpack.c.h.bf16 %v1939
        %v1976 = vunpack.c.l.bf16 %v1940
        %v1977 = vunpack.c.h.bf16 %v1940
        %v1978 = vunpack.c.l.bf16 %v1941
        %v1979 = vunpack.c.h.bf16 %v1941
        %v1980 = vunpack.c.l.bf16 %v1942
        %v1981 = vunpack.c.h.bf16 %v1942
        %v1982 = vunpack.c.l.bf16 %v1943
        %v1983 = vunpack.c.h.bf16 %v1943
        %v1984 = vunpack.c.l.bf16 %v1944
        %v1985 = vunpack.c.h.bf16 %v1944
        %v1986 = vunpack.c.l.bf16 %v1945
        %v1987 = vunpack.c.h.bf16 %v1945
        %v1988 = vunpack.c.l.bf16 %v1946
        %v1989 = vunpack.c.h.bf16 %v1946
        %v1990 = vunpack.c.l.bf16 %v1947
        %v1991 = vunpack.c.h.bf16 %v1947
        %v1992 = vunpack.c.l.bf16 %v1948
        %v1993 = vunpack.c.h.bf16 %v1948
        %v1994 = vunpack.c.l.bf16 %v1949
        %v1995 = vunpack.c.h.bf16 %v1949
        %v1996 = vunpack.c.l.bf16 %v1950
        %v1997 = vunpack.c.h.bf16 %v1950
        %v1998 = vunpack.c.l.bf16 %v1951
        %v1999 = vunpack.c.h.bf16 %v1951
        %v2000 = vsel %vm1014, %v1952, 0.0
        %v2001 = vsel %vm1014, %v1968, 0.0
        %v2002 = vadd.f32 %v2000, %v2001
        %v2003 = vsel %vm1014, %v1984, 0.0
        %v2004 = vadd.f32 %v2002, %v2003
        %v2005 = vsel %vm1014, %v1953, 0.0
        %v2006 = vsel %vm1014, %v1969, 0.0
        %v2007 = vadd.f32 %v2005, %v2006
        %v2008 = vsel %vm1014, %v1985, 0.0
        %v2009 = vadd.f32 %v2007, %v2008
        %v2010 = vsel %vm1014, %v1954, 0.0
        %v2011 = vsel %vm1014, %v1970, 0.0
        %v2012 = vadd.f32 %v2010, %v2011
        %v2013 = vsel %vm1014, %v1986, 0.0
        %v2014 = vadd.f32 %v2012, %v2013
        %v2015 = vsel %vm1014, %v1955, 0.0
        %v2016 = vsel %vm1014, %v1971, 0.0
        %v2017 = vadd.f32 %v2015, %v2016
        %v2018 = vsel %vm1014, %v1987, 0.0
        %v2019 = vadd.f32 %v2017, %v2018
        %v2020 = vsel %vm1014, %v1956, 0.0
        %v2021 = vsel %vm1014, %v1972, 0.0
        %v2022 = vadd.f32 %v2020, %v2021
        %v2023 = vsel %vm1014, %v1988, 0.0
        %v2024 = vadd.f32 %v2022, %v2023
        %v2025 = vsel %vm1014, %v1957, 0.0
        %v2026 = vsel %vm1014, %v1973, 0.0
        %v2027 = vadd.f32 %v2025, %v2026
        %v2028 = vsel %vm1014, %v1989, 0.0
        %v2029 = vadd.f32 %v2027, %v2028
        %v2030 = vsel %vm1014, %v1958, 0.0
        %v2031 = vsel %vm1014, %v1974, 0.0
        %v2032 = vadd.f32 %v2030, %v2031
        %v2033 = vsel %vm1014, %v1990, 0.0
        %v2034 = vadd.f32 %v2032, %v2033
        %v2035 = vsel %vm1014, %v1959, 0.0
        %v2036 = vsel %vm1014, %v1975, 0.0
        %v2037 = vadd.f32 %v2035, %v2036
        %v2038 = vsel %vm1014, %v1991, 0.0
        %v2039 = vadd.f32 %v2037, %v2038
        %v2040 = vsel %vm1014, %v1960, 0.0
        %v2041 = vsel %vm1014, %v1976, 0.0
        %v2042 = vadd.f32 %v2040, %v2041
        %v2043 = vsel %vm1014, %v1992, 0.0
        %v2044 = vadd.f32 %v2042, %v2043
        %v2045 = vsel %vm1014, %v1961, 0.0
        %v2046 = vsel %vm1014, %v1977, 0.0
        %v2047 = vadd.f32 %v2045, %v2046
        %v2048 = vsel %vm1014, %v1993, 0.0
        %v2049 = vadd.f32 %v2047, %v2048
        %v2050 = vsel %vm1014, %v1962, 0.0
        %v2051 = vsel %vm1014, %v1978, 0.0
        %v2052 = vadd.f32 %v2050, %v2051
        %v2053 = vsel %vm1014, %v1994, 0.0
        %v2054 = vadd.f32 %v2052, %v2053
        %v2055 = vsel %vm1014, %v1963, 0.0
        %v2056 = vsel %vm1014, %v1979, 0.0
        %v2057 = vadd.f32 %v2055, %v2056
        %v2058 = vsel %vm1014, %v1995, 0.0
        %v2059 = vadd.f32 %v2057, %v2058
        %v2060 = vsel %vm1014, %v1964, 0.0
        %v2061 = vsel %vm1014, %v1980, 0.0
        %v2062 = vadd.f32 %v2060, %v2061
        %v2063 = vsel %vm1014, %v1996, 0.0
        %v2064 = vadd.f32 %v2062, %v2063
        %v2065 = vsel %vm1014, %v1965, 0.0
        %v2066 = vsel %vm1014, %v1981, 0.0
        %v2067 = vadd.f32 %v2065, %v2066
        %v2068 = vsel %vm1014, %v1997, 0.0
        %v2069 = vadd.f32 %v2067, %v2068
        %v2070 = vsel %vm1014, %v1966, 0.0
        %v2071 = vsel %vm1014, %v1982, 0.0
        %v2072 = vadd.f32 %v2070, %v2071
        %v2073 = vsel %vm1014, %v1998, 0.0
        %v2074 = vadd.f32 %v2072, %v2073
        %v2075 = vsel %vm1014, %v1967, 0.0
        %v2076 = vsel %vm1014, %v1983, 0.0
        %v2077 = vadd.f32 %v2075, %v2076
        %v2078 = vsel %vm1014, %v1999, 0.0
        %v2079 = vadd.f32 %v2077, %v2078
        %v2080 = vpack.c.bf16 %v2009, %v2004
        %v2081 = vpack.c.bf16 %v2019, %v2014
        %v2082 = vpack.c.bf16 %v2029, %v2024
        %v2083 = vpack.c.bf16 %v2039, %v2034
        %v2084 = vpack.c.bf16 %v2049, %v2044
        %v2085 = vpack.c.bf16 %v2059, %v2054
        %v2086 = vpack.c.bf16 %v2069, %v2064
        %v2087 = vpack.c.bf16 %v2079, %v2074
        %v2088 = vunpack.c.l.bf16 %v2080
        %v2089 = vunpack.c.h.bf16 %v2080
        %v2090 = vunpack.c.l.bf16 %v2081
        %v2091 = vunpack.c.h.bf16 %v2081
        %v2092 = vunpack.c.l.bf16 %v2082
        %v2093 = vunpack.c.h.bf16 %v2082
        %v2094 = vunpack.c.l.bf16 %v2083
        %v2095 = vunpack.c.h.bf16 %v2083
        %v2096 = vunpack.c.l.bf16 %v2084
        %v2097 = vunpack.c.h.bf16 %v2084
        %v2098 = vunpack.c.l.bf16 %v2085
        %v2099 = vunpack.c.h.bf16 %v2085
        %v2100 = vunpack.c.l.bf16 %v2086
        %v2101 = vunpack.c.h.bf16 %v2086
        %v2102 = vunpack.c.l.bf16 %v2087
        %v2103 = vunpack.c.h.bf16 %v2087
        %v2104 = vadd.f32 %v2088, 1e-06
        %v2105 = vadd.f32 %v2089, 1e-06
        %v2106 = vadd.f32 %v2090, 1e-06
        %v2107 = vadd.f32 %v2091, 1e-06
        %v2108 = vadd.f32 %v2092, 1e-06
        %v2109 = vadd.f32 %v2093, 1e-06
        %v2110 = vadd.f32 %v2094, 1e-06
        %v2111 = vadd.f32 %v2095, 1e-06
        %v2112 = vadd.f32 %v2096, 1e-06
        %v2113 = vadd.f32 %v2097, 1e-06
        %v2114 = vadd.f32 %v2098, 1e-06
        %v2115 = vadd.f32 %v2099, 1e-06
        %v2116 = vadd.f32 %v2100, 1e-06
        %v2117 = vadd.f32 %v2101, 1e-06
        %v2118 = vadd.f32 %v2102, 1e-06
        %v2119 = vadd.f32 %v2103, 1e-06
        %2136 = vrot.lane.b32.xlu0 %v2104, 64
        %v2137 = vpop.permute.xlu0 %2136
        %2138 = vrot.lane.b32.xlu0 %v2105, 64
        %v2139 = vpop.permute.xlu0 %2138
        %2140 = vrot.lane.b32.xlu0 %v2106, 64
        %v2141 = vpop.permute.xlu0 %2140
        %2142 = vrot.lane.b32.xlu0 %v2107, 64
        %v2143 = vpop.permute.xlu0 %2142
        %2144 = vrot.lane.b32.xlu0 %v2108, 64
        %v2145 = vpop.permute.xlu0 %2144
        %2146 = vrot.lane.b32.xlu0 %v2109, 64
        %v2147 = vpop.permute.xlu0 %2146
        %2148 = vrot.lane.b32.xlu0 %v2110, 64
        %v2149 = vpop.permute.xlu0 %2148
        %2150 = vrot.lane.b32.xlu0 %v2111, 64
        %v2151 = vpop.permute.xlu0 %2150
        %2152 = vrot.lane.b32.xlu0 %v2112, 64
        %v2153 = vpop.permute.xlu0 %2152
        %2154 = vrot.lane.b32.xlu0 %v2113, 64
        %v2155 = vpop.permute.xlu0 %2154
        %2156 = vrot.lane.b32.xlu0 %v2114, 64
        %v2157 = vpop.permute.xlu0 %2156
        %2158 = vrot.lane.b32.xlu0 %v2115, 64
        %v2159 = vpop.permute.xlu0 %2158
        %2160 = vrot.lane.b32.xlu0 %v2116, 64
        %v2161 = vpop.permute.xlu0 %2160
        %2162 = vrot.lane.b32.xlu0 %v2117, 64
        %v2163 = vpop.permute.xlu0 %2162
        %2164 = vrot.lane.b32.xlu0 %v2118, 64
        %v2165 = vpop.permute.xlu0 %2164
        %2166 = vrot.lane.b32.xlu0 %v2119, 64
        %v2167 = vpop.permute.xlu0 %2166
        %v2184 = vrcp.pop %v2137
        %v2185 = vmul.f32 %v1912, %v2184
        %v2186 = vrcp.pop %v2139
        %v2187 = vmul.f32 %v1913, %v2186
        %v2188 = vrcp.pop %v2141
        %v2189 = vmul.f32 %v1914, %v2188
        %v2190 = vrcp.pop %v2143
        %v2191 = vmul.f32 %v1915, %v2190
        %v2192 = vrcp.pop %v2145
        %v2193 = vmul.f32 %v1916, %v2192
        %v2194 = vrcp.pop %v2147
        %v2195 = vmul.f32 %v1917, %v2194
        %v2196 = vrcp.pop %v2149
        %v2197 = vmul.f32 %v1918, %v2196
        %v2198 = vrcp.pop %v2151
        %v2199 = vmul.f32 %v1919, %v2198
        %v2200 = vrcp.pop %v2153
        %v2201 = vmul.f32 %v1920, %v2200
        %v2202 = vrcp.pop %v2155
        %v2203 = vmul.f32 %v1921, %v2202
        %v2204 = vrcp.pop %v2157
        %v2205 = vmul.f32 %v1922, %v2204
        %v2206 = vrcp.pop %v2159
        %v2207 = vmul.f32 %v1923, %v2206
        %v2208 = vrcp.pop %v2161
        %v2209 = vmul.f32 %v1924, %v2208
        %v2210 = vrcp.pop %v2163
        %v2211 = vmul.f32 %v1925, %v2210
        %v2212 = vrcp.pop %v2165
        %v2213 = vmul.f32 %v1926, %v2212
        %v2214 = vrcp.pop %v2167
        %v2215 = vmul.f32 %v1927, %v2214
        %v2216 = vmin.f32 %v2185, 0.0
        %v2217 = vmin.f32 %v2187, 0.0
        %v2218 = vmin.f32 %v2189, 0.0
        %v2219 = vmin.f32 %v2191, 0.0
        %v2220 = vmin.f32 %v2193, 0.0
        %v2221 = vmin.f32 %v2195, 0.0
        %v2222 = vmin.f32 %v2197, 0.0
        %v2223 = vmin.f32 %v2199, 0.0
        %v2224 = vmin.f32 %v2201, 0.0
        %v2225 = vmin.f32 %v2203, 0.0
        %v2226 = vmin.f32 %v2205, 0.0
        %v2227 = vmin.f32 %v2207, 0.0
        %v2228 = vmin.f32 %v2209, 0.0
        %v2229 = vmin.f32 %v2211, 0.0
        %v2230 = vmin.f32 %v2213, 0.0
        %v2231 = vmin.f32 %v2215, 0.0
        %v2232 = vpack.c.bf16 %v2217, %v2216
        %v2233 = vpack.c.bf16 %v2219, %v2218
        %v2234 = vpack.c.bf16 %v2221, %v2220
        %v2235 = vpack.c.bf16 %v2223, %v2222
        %v2236 = vpack.c.bf16 %v2225, %v2224
        %v2237 = vpack.c.bf16 %v2227, %v2226
        %v2238 = vpack.c.bf16 %v2229, %v2228
        %v2239 = vpack.c.bf16 %v2231, %v2230
        %v2240 = vmul.bf16 %v2232, %v1681
        %v2241 = vmul.bf16 %v2233, %v1683
        %v2242 = vmul.bf16 %v2234, %v1685
        %v2243 = vmul.bf16 %v2235, %v1687
        %v2244 = vmul.bf16 %v2236, %v1689
        %v2245 = vmul.bf16 %v2237, %v1691
        %v2246 = vmul.bf16 %v2238, %v1693
        %v2247 = vmul.bf16 %v2239, %v1695
        %v2248 = vmul.bf16 %v2232, %v1697
        %v2249 = vmul.bf16 %v2233, %v1699
        %v2250 = vmul.bf16 %v2234, %v1701
        %v2251 = vmul.bf16 %v2235, %v1703
        %v2252 = vmul.bf16 %v2236, %v1705
        %v2253 = vmul.bf16 %v2237, %v1707
        %v2254 = vmul.bf16 %v2238, %v1709
        %v2255 = vmul.bf16 %v2239, %v1711
        %v2256 = vmul.bf16 %v2232, %v1713
        %v2257 = vmul.bf16 %v2233, %v1715
        %v2258 = vmul.bf16 %v2234, %v1717
        %v2259 = vmul.bf16 %v2235, %v1719
        %v2260 = vmul.bf16 %v2236, %v1721
        %v2261 = vmul.bf16 %v2237, %v1723
        %v2262 = vmul.bf16 %v2238, %v1725
        %v2263 = vmul.bf16 %v2239, %v1727
        %v2264 = vsub.bf16 %v1632, %v2240
        %v2265 = vsub.bf16 %v1633, %v2241
        %v2266 = vsub.bf16 %v1634, %v2242
        %v2267 = vsub.bf16 %v1635, %v2243
        %v2268 = vsub.bf16 %v1636, %v2244
        %v2269 = vsub.bf16 %v1637, %v2245
        %v2270 = vsub.bf16 %v1638, %v2246
        %v2271 = vsub.bf16 %v1639, %v2247
        %v2272 = vsub.bf16 %v1640, %v2248
        %v2273 = vsub.bf16 %v1641, %v2249
        %v2274 = vsub.bf16 %v1642, %v2250
        %v2275 = vsub.bf16 %v1643, %v2251
        %v2276 = vsub.bf16 %v1644, %v2252
        %v2277 = vsub.bf16 %v1645, %v2253
        %v2278 = vsub.bf16 %v1646, %v2254
        %v2279 = vsub.bf16 %v1647, %v2255
        %v2280 = vsub.bf16 %v1648, %v2256
        %v2281 = vsub.bf16 %v1649, %v2257
        %v2282 = vsub.bf16 %v1650, %v2258
        %v2283 = vsub.bf16 %v1651, %v2259
        %v2284 = vsub.bf16 %v1652, %v2260
        %v2285 = vsub.bf16 %v1653, %v2261
        %v2286 = vsub.bf16 %v1654, %v2262
        %v2287 = vsub.bf16 %v1655, %v2263
        %v2288 = vunpack.c.l.bf16 %v2264
        %v2289 = vunpack.c.h.bf16 %v2264
        %v2290 = vunpack.c.l.bf16 %v2265
        %v2291 = vunpack.c.h.bf16 %v2265
        %v2292 = vunpack.c.l.bf16 %v2266
        %v2293 = vunpack.c.h.bf16 %v2266
        %v2294 = vunpack.c.l.bf16 %v2267
        %v2295 = vunpack.c.h.bf16 %v2267
        %v2296 = vunpack.c.l.bf16 %v2268
        %v2297 = vunpack.c.h.bf16 %v2268
        %v2298 = vunpack.c.l.bf16 %v2269
        %v2299 = vunpack.c.h.bf16 %v2269
        %v2300 = vunpack.c.l.bf16 %v2270
        %v2301 = vunpack.c.h.bf16 %v2270
        %v2302 = vunpack.c.l.bf16 %v2271
        %v2303 = vunpack.c.h.bf16 %v2271
        %v2304 = vunpack.c.l.bf16 %v2272
        %v2305 = vunpack.c.h.bf16 %v2272
        %v2306 = vunpack.c.l.bf16 %v2273
        %v2307 = vunpack.c.h.bf16 %v2273
        %v2308 = vunpack.c.l.bf16 %v2274
        %v2309 = vunpack.c.h.bf16 %v2274
        %v2310 = vunpack.c.l.bf16 %v2275
        %v2311 = vunpack.c.h.bf16 %v2275
        %v2312 = vunpack.c.l.bf16 %v2276
        %v2313 = vunpack.c.h.bf16 %v2276
        %v2314 = vunpack.c.l.bf16 %v2277
        %v2315 = vunpack.c.h.bf16 %v2277
        %v2316 = vunpack.c.l.bf16 %v2278
        %v2317 = vunpack.c.h.bf16 %v2278
        %v2318 = vunpack.c.l.bf16 %v2279
        %v2319 = vunpack.c.h.bf16 %v2279
        %v2320 = vunpack.c.l.bf16 %v2280
        %v2321 = vunpack.c.h.bf16 %v2280
        %v2322 = vunpack.c.l.bf16 %v2281
        %v2323 = vunpack.c.h.bf16 %v2281
        %v2324 = vunpack.c.l.bf16 %v2282
        %v2325 = vunpack.c.h.bf16 %v2282
        %v2326 = vunpack.c.l.bf16 %v2283
        %v2327 = vunpack.c.h.bf16 %v2283
        %v2328 = vunpack.c.l.bf16 %v2284
        %v2329 = vunpack.c.h.bf16 %v2284
        %v2330 = vunpack.c.l.bf16 %v2285
        %v2331 = vunpack.c.h.bf16 %v2285
        %v2332 = vunpack.c.l.bf16 %v2286
        %v2333 = vunpack.c.h.bf16 %v2286
        %v2334 = vunpack.c.l.bf16 %v2287
        %v2335 = vunpack.c.h.bf16 %v2287
        %2336 = vxpose.xlu0.b32.start [1/16] %v2288, 128
        %2337 = vxpose.xlu0.b32.cont [2/16] %v2289, 128
        %2338 = vxpose.xlu0.b32.cont [3/16] %v2290, 128
        %2339 = vxpose.xlu0.b32.cont [4/16] %v2291, 128
        %2340 = vxpose.xlu0.b32.cont [5/16] %v2292, 128
        %2341 = vxpose.xlu0.b32.cont [6/16] %v2293, 128
        %2342 = vxpose.xlu0.b32.cont [7/16] %v2294, 128
        %2343 = vxpose.xlu0.b32.cont [8/16] %v2295, 128
        %2344 = vxpose.xlu0.b32.cont [9/16] %v2296, 128
        %2345 = vxpose.xlu0.b32.cont [10/16] %v2297, 128
        %2346 = vxpose.xlu0.b32.cont [11/16] %v2298, 128
        %2347 = vxpose.xlu0.b32.cont [12/16] %v2299, 128
        %2348 = vxpose.xlu0.b32.cont [13/16] %v2300, 128
        %2349 = vxpose.xlu0.b32.cont [14/16] %v2301, 128
        %2350 = vxpose.xlu0.b32.cont [15/16] %v2302, 128
        %2351 = vxpose.xlu0.b32.end [16/16] %v2303, 128
        %v2352 = vpop.trf.xlu0
        %v2353 = vpop.trf.xlu0
        %v2354 = vpop.trf.xlu0
        %v2355 = vpop.trf.xlu0
        %v2356 = vpop.trf.xlu0
        %v2357 = vpop.trf.xlu0
        %v2358 = vpop.trf.xlu0
        %v2359 = vpop.trf.xlu0
        %v2360 = vpop.trf.xlu0
        %v2361 = vpop.trf.xlu0
        %v2362 = vpop.trf.xlu0
        %v2363 = vpop.trf.xlu0
        %v2364 = vpop.trf.xlu0
        %v2365 = vpop.trf.xlu0
        %v2366 = vpop.trf.xlu0
        %v2367 = vpop.trf.xlu0
        %2368 = vxpose.xlu0.b32.start [1/16] %v2304, 128
        %2369 = vxpose.xlu0.b32.cont [2/16] %v2305, 128
        %2370 = vxpose.xlu0.b32.cont [3/16] %v2306, 128
        %2371 = vxpose.xlu0.b32.cont [4/16] %v2307, 128
        %2372 = vxpose.xlu0.b32.cont [5/16] %v2308, 128
        %2373 = vxpose.xlu0.b32.cont [6/16] %v2309, 128
        %2374 = vxpose.xlu0.b32.cont [7/16] %v2310, 128
        %2375 = vxpose.xlu0.b32.cont [8/16] %v2311, 128
        %2376 = vxpose.xlu0.b32.cont [9/16] %v2312, 128
        %2377 = vxpose.xlu0.b32.cont [10/16] %v2313, 128
        %2378 = vxpose.xlu0.b32.cont [11/16] %v2314, 128
        %2379 = vxpose.xlu0.b32.cont [12/16] %v2315, 128
        %2380 = vxpose.xlu0.b32.cont [13/16] %v2316, 128
        %2381 = vxpose.xlu0.b32.cont [14/16] %v2317, 128
        %2382 = vxpose.xlu0.b32.cont [15/16] %v2318, 128
        %2383 = vxpose.xlu0.b32.end [16/16] %v2319, 128
        %v2384 = vpop.trf.xlu0
        %v2385 = vpop.trf.xlu0
        %v2386 = vpop.trf.xlu0
        %v2387 = vpop.trf.xlu0
        %v2388 = vpop.trf.xlu0
        %v2389 = vpop.trf.xlu0
        %v2390 = vpop.trf.xlu0
        %v2391 = vpop.trf.xlu0
        %v2392 = vpop.trf.xlu0
        %v2393 = vpop.trf.xlu0
        %v2394 = vpop.trf.xlu0
        %v2395 = vpop.trf.xlu0
        %v2396 = vpop.trf.xlu0
        %v2397 = vpop.trf.xlu0
        %v2398 = vpop.trf.xlu0
        %v2399 = vpop.trf.xlu0
        %2400 = vxpose.xlu0.b32.start [1/16] %v2320, 128
        %2401 = vxpose.xlu0.b32.cont [2/16] %v2321, 128
        %2402 = vxpose.xlu0.b32.cont [3/16] %v2322, 128
        %2403 = vxpose.xlu0.b32.cont [4/16] %v2323, 128
        %2404 = vxpose.xlu0.b32.cont [5/16] %v2324, 128
        %2405 = vxpose.xlu0.b32.cont [6/16] %v2325, 128
        %2406 = vxpose.xlu0.b32.cont [7/16] %v2326, 128
        %2407 = vxpose.xlu0.b32.cont [8/16] %v2327, 128
        %2408 = vxpose.xlu0.b32.cont [9/16] %v2328, 128
        %2409 = vxpose.xlu0.b32.cont [10/16] %v2329, 128
        %2410 = vxpose.xlu0.b32.cont [11/16] %v2330, 128
        %2411 = vxpose.xlu0.b32.cont [12/16] %v2331, 128
        %2412 = vxpose.xlu0.b32.cont [13/16] %v2332, 128
        %2413 = vxpose.xlu0.b32.cont [14/16] %v2333, 128
        %2414 = vxpose.xlu0.b32.cont [15/16] %v2334, 128
        %2415 = vxpose.xlu0.b32.end [16/16] %v2335, 128
        %v2416 = vpop.trf.xlu0
        %v2417 = vpop.trf.xlu0
        %v2418 = vpop.trf.xlu0
        %v2419 = vpop.trf.xlu0
        %v2420 = vpop.trf.xlu0
        %v2421 = vpop.trf.xlu0
        %v2422 = vpop.trf.xlu0
        %v2423 = vpop.trf.xlu0
        %v2424 = vpop.trf.xlu0
        %v2425 = vpop.trf.xlu0
        %v2426 = vpop.trf.xlu0
        %v2427 = vpop.trf.xlu0
        %v2428 = vpop.trf.xlu0
        %v2429 = vpop.trf.xlu0
        %v2430 = vpop.trf.xlu0
        %v2431 = vpop.trf.xlu0
        %v2432 = vpack.c.bf16 %v2353, %v2352
        %v2433 = vpack.c.bf16 %v2355, %v2354
        %v2434 = vpack.c.bf16 %v2357, %v2356
        %v2435 = vpack.c.bf16 %v2359, %v2358
        %v2436 = vpack.c.bf16 %v2385, %v2384
        %v2437 = vpack.c.bf16 %v2387, %v2386
        %v2438 = vpack.c.bf16 %v2389, %v2388
        %v2439 = vpack.c.bf16 %v2391, %v2390
        %v2440 = vpack.c.bf16 %v2417, %v2416
        %v2441 = vpack.c.bf16 %v2419, %v2418
        %v2442 = vpack.c.bf16 %v2421, %v2420
        %v2443 = vpack.c.bf16 %v2423, %v2422
        %v2456 = vunpack.c.l.b16 %v2432
        %v2457 = vunpack.c.h.b16 %v2432
        %v2458 = vunpack.c.l.b16 %v2433
        %v2459 = vunpack.c.h.b16 %v2433
        %v2460 = vunpack.c.l.b16 %v2434
        %v2461 = vunpack.c.h.b16 %v2434
        %v2462 = vunpack.c.l.b16 %v2435
        %v2463 = vunpack.c.h.b16 %v2435
        %v2464 = vunpack.c.l.b16 %v2436
        %v2465 = vunpack.c.h.b16 %v2436
        %v2466 = vunpack.c.l.b16 %v2437
        %v2467 = vunpack.c.h.b16 %v2437
        %v2468 = vunpack.c.l.b16 %v2438
        %v2469 = vunpack.c.h.b16 %v2438
        %v2470 = vunpack.c.l.b16 %v2439
        %v2471 = vunpack.c.h.b16 %v2439
        %v2472 = vunpack.c.l.b16 %v2440
        %v2473 = vunpack.c.h.b16 %v2440
        %v2474 = vunpack.c.l.b16 %v2441
        %v2475 = vunpack.c.h.b16 %v2441
        %v2476 = vunpack.c.l.b16 %v2442
        %v2477 = vunpack.c.h.b16 %v2442
        %v2478 = vunpack.c.l.b16 %v2443
        %v2479 = vunpack.c.h.b16 %v2443
        %v2480 = vpack.c.b16 %v2456, %v2456
        %v2481 = vpack.c.b16 %v2457, %v2457
        %v2482 = vpack.c.b16 %v2458, %v2458
        %v2483 = vpack.c.b16 %v2459, %v2459
        %v2484 = vpack.c.b16 %v2460, %v2460
        %v2485 = vpack.c.b16 %v2461, %v2461
        %v2486 = vpack.c.b16 %v2462, %v2462
        %v2487 = vpack.c.b16 %v2463, %v2463
        %v2488 = vpack.c.b16 %v2464, %v2464
        %v2489 = vpack.c.b16 %v2465, %v2465
        %v2490 = vpack.c.b16 %v2466, %v2466
        %v2491 = vpack.c.b16 %v2467, %v2467
        %v2492 = vpack.c.b16 %v2468, %v2468
        %v2493 = vpack.c.b16 %v2469, %v2469
        %v2494 = vpack.c.b16 %v2470, %v2470
        %v2495 = vpack.c.b16 %v2471, %v2471
        %v2496 = vpack.c.b16 %v2472, %v2472
        %v2497 = vpack.c.b16 %v2473, %v2473
        %v2498 = vpack.c.b16 %v2474, %v2474
        %v2499 = vpack.c.b16 %v2475, %v2475
        %v2500 = vpack.c.b16 %v2476, %v2476
        %v2501 = vpack.c.b16 %v2477, %v2477
        %v2502 = vpack.c.b16 %v2478, %v2478
        %v2503 = vpack.c.b16 %v2479, %v2479
        %2528 = vst [vmem:[%s399] sm:$0xf] %v2480
        %2529 = vst [vmem:[%s399 + $0x4] sm:$0xf] %v2481
        %2530 = vst [vmem:[%s399 + $0x8] sm:$0xf] %v2482
        %2531 = vst [vmem:[%s399 + $0xc] sm:$0xf] %v2483
        %2532 = vst [vmem:[%s399 + $0x10] sm:$0xf] %v2484
        %2533 = vst [vmem:[%s399 + $0x14] sm:$0xf] %v2485
        %2534 = vst [vmem:[%s399 + $0x18] sm:$0xf] %v2486
        %2535 = vst [vmem:[%s399 + $0x1c] sm:$0xf] %v2487
        %2536 = vst [vmem:[%s399 + $0x20] sm:$0xf] %v2488
        %2537 = vst [vmem:[%s399 + $0x24] sm:$0xf] %v2489
        %2538 = vst [vmem:[%s399 + $0x28] sm:$0xf] %v2490
        %2539 = vst [vmem:[%s399 + $0x2c] sm:$0xf] %v2491
        %2540 = vst [vmem:[%s399 + $0x30] sm:$0xf] %v2492
        %2541 = vst [vmem:[%s399 + $0x34] sm:$0xf] %v2493
        %2542 = vst [vmem:[%s399 + $0x38] sm:$0xf] %v2494
        %2543 = vst [vmem:[%s399 + $0x3c] sm:$0xf] %v2495
        %2544 = vst [vmem:[%s399 + $0x40] sm:$0xf] %v2496
        %2545 = vst [vmem:[%s399 + $0x44] sm:$0xf] %v2497
        %2546 = vst [vmem:[%s399 + $0x48] sm:$0xf] %v2498
        %2547 = vst [vmem:[%s399 + $0x4c] sm:$0xf] %v2499
        %2548 = vst [vmem:[%s399 + $0x50] sm:$0xf] %v2500
        %2549 = vst [vmem:[%s399 + $0x54] sm:$0xf] %v2501
        %2550 = vst [vmem:[%s399 + $0x58] sm:$0xf] %v2502
        %2551 = vst [vmem:[%s399 + $0x5c] sm:$0xf] %v2503
        %v2552 = vld [vmem:[#allocation8] sm:$0xf]
        %v2553 = vld [vmem:[#allocation8 + $0x4] sm:$0xf]
        %v2554 = vld [vmem:[#allocation8 + $0x8] sm:$0xf]
        %v2555 = vld [vmem:[#allocation8 + $0xc] sm:$0xf]
        %v2556 = vld [vmem:[#allocation8 + $0x10] sm:$0xf]
        %v2557 = vld [vmem:[#allocation8 + $0x14] sm:$0xf]
        %v2558 = vld [vmem:[#allocation8 + $0x18] sm:$0xf]
        %v2559 = vld [vmem:[#allocation8 + $0x1c] sm:$0xf]
        %v2568 = vunpack.c.l.b16 %v2552
        %v2569 = vunpack.c.l.b16 %v2553
        %v2570 = vunpack.c.l.b16 %v2554
        %v2571 = vunpack.c.l.b16 %v2555
        %v2572 = vunpack.c.l.b16 %v2556
        %v2573 = vunpack.c.l.b16 %v2557
        %v2574 = vunpack.c.l.b16 %v2558
        %v2575 = vunpack.c.l.b16 %v2559
        %v2576 = vpack.c.b16 %v2569, %v2568
        %v2577 = vpack.c.b16 %v2571, %v2570
        %v2578 = vpack.c.b16 %v2573, %v2572
        %v2579 = vpack.c.b16 %v2575, %v2574
        %v2585 = vsel %vm837, %v2264, 0
        %v2588 = vsel %vm837, %v2265, 0
        %v2591 = vsel %vm837, %v2266, 0
        %v2594 = vsel %vm837, %v2267, 0
        %v2597 = vsel %vm837, %v2268, 0
        %v2600 = vsel %vm837, %v2269, 0
        %v2603 = vsel %vm837, %v2270, 0
        %v2606 = vsel %vm837, %v2271, 0
        %v2609 = vsel %vm837, %v2272, 0
        %v2612 = vsel %vm837, %v2273, 0
        %v2615 = vsel %vm837, %v2274, 0
        %v2618 = vsel %vm837, %v2275, 0
        %v2621 = vsel %vm837, %v2276, 0
        %v2624 = vsel %vm837, %v2277, 0
        %v2627 = vsel %vm837, %v2278, 0
        %v2630 = vsel %vm837, %v2279, 0
        %v2633 = vsel %vm837, %v2280, 0
        %v2636 = vsel %vm837, %v2281, 0
        %v2639 = vsel %vm837, %v2282, 0
        %v2642 = vsel %vm837, %v2283, 0
        %v2645 = vsel %vm837, %v2284, 0
        %v2648 = vsel %vm837, %v2285, 0
        %v2651 = vsel %vm837, %v2286, 0
        %v2654 = vsel %vm837, %v2287, 0
        %2656 = vmatprep.subr.bf16.mxu0 0
        %2657 = vmatpush1.bf16.msra.mxu0 %v2576
        %2658 = vmatprep.subr.bf16.mxu0 0
        %2659 = vmatpush1.bf16.msra.mxu0 %v2577
        %2660 = vmatprep.subr.bf16.mxu0 0
        %2661 = vmatpush1.bf16.msra.mxu0 %v2578
        %2662 = vmatprep.subr.bf16.mxu0 0
        %2663 = vmatpush1.bf16.msra.mxu0 %v2579
        %2664 = vmatprep.subr.bf16.mxu0 0
        %2665 = vmatpush1.bf16.msra.mxu0 0
        %2666 = vmatprep.subr.bf16.mxu0 0
        %2667 = vmatpush1.bf16.msra.mxu0 0
        %2668 = vmatprep.subr.bf16.mxu0 0
        %2669 = vmatpush1.bf16.msra.mxu0 0
        %2670 = vmatprep.subr.bf16.mxu0 0
        %2671 = vmatpush1.bf16.msra.mxu0 0
        %2672 = vmatprep.subr.bf16.mxu0 0
        %2673 = vmatpush1.bf16.msra.mxu0 0
        %2674 = vmatprep.subr.bf16.mxu0 0
        %2675 = vmatpush1.bf16.msra.mxu0 0
        %2676 = vmatprep.subr.bf16.mxu0 0
        %2677 = vmatpush1.bf16.msra.mxu0 0
        %2678 = vmatprep.subr.bf16.mxu0 0
        %2679 = vmatpush1.bf16.msra.mxu0 0
        %2680 = vmatprep.subr.bf16.mxu0 0
        %2681 = vmatpush1.bf16.msra.mxu0 0
        %2682 = vmatprep.subr.bf16.mxu0 0
        %2683 = vmatpush1.bf16.msra.mxu0 0
        %2684 = vmatprep.subr.bf16.mxu0 0
        %2685 = vmatpush1.bf16.msra.mxu0 0
        %2686 = vmatprep.subr.bf16.mxu0 0
        %2687 = vmatpush1.bf16.msra.mxu0 0
        %2688 = vmatprep.mubr.bf16.mxu0 0
        %2689 = vmatmul.mubr.bf16.gmra.mrb[0].mxu0 %v2585
        %v2690 = vpop.f32.mrb[0].mxu0
        %v2691 = vadd.f32 0.0, %v2690
        %v2692 = vpop.f32.mrb[0].mxu0
        %v2693 = vpop.f32.mrb[0].mxu0
        %v2694 = vadd.f32 0.0, %v2693
        %v2695 = vpop.f32.mrb[0].mxu0
        %2696 = vmatprep.mubr.bf16.mxu0 0
        %2697 = vmatmul.mubr.bf16.gmra.mrb[0].mxu0 %v2588
        %v2698 = vpop.f32.mrb[0].mxu0
        %v2699 = vadd.f32 0.0, %v2698
        %v2700 = vpop.f32.mrb[0].mxu0
        %v2701 = vpop.f32.mrb[0].mxu0
        %v2702 = vadd.f32 0.0, %v2701
        %v2703 = vpop.f32.mrb[0].mxu0
        %2704 = vmatprep.mubr.bf16.mxu0 0
        %2705 = vmatmul.mubr.bf16.gmra.mrb[0].mxu0 %v2591
        %v2706 = vpop.f32.mrb[0].mxu0
        %v2707 = vadd.f32 0.0, %v2706
        %v2708 = vpop.f32.mrb[0].mxu0
        %v2709 = vpop.f32.mrb[0].mxu0
        %v2710 = vadd.f32 0.0, %v2709
        %v2711 = vpop.f32.mrb[0].mxu0
        %2712 = vmatprep.mubr.bf16.mxu0 0
        %2713 = vmatmul.mubr.bf16.gmra.mrb[0].mxu0 %v2594
        %v2714 = vpop.f32.mrb[0].mxu0
        %v2715 = vadd.f32 0.0, %v2714
        %v2716 = vpop.f32.mrb[0].mxu0
        %v2717 = vpop.f32.mrb[0].mxu0
        %v2718 = vadd.f32 0.0, %v2717
        %v2719 = vpop.f32.mrb[0].mxu0
        %2720 = vmatprep.mubr.bf16.mxu0 0
        %2721 = vmatmul.mubr.bf16.gmra.mrb[0].mxu0 %v2597
        %v2722 = vpop.f32.mrb[0].mxu0
        %v2723 = vadd.f32 0.0, %v2722
        %v2724 = vpop.f32.mrb[0].mxu0
        %v2725 = vpop.f32.mrb[0].mxu0
        %v2726 = vadd.f32 0.0, %v2725
        %v2727 = vpop.f32.mrb[0].mxu0
        %2728 = vmatprep.mubr.bf16.mxu0 0
        %2729 = vmatmul.mubr.bf16.gmra.mrb[0].mxu0 %v2600
        %v2730 = vpop.f32.mrb[0].mxu0
        %v2731 = vadd.f32 0.0, %v2730
        %v2732 = vpop.f32.mrb[0].mxu0
        %v2733 = vpop.f32.mrb[0].mxu0
        %v2734 = vadd.f32 0.0, %v2733
        %v2735 = vpop.f32.mrb[0].mxu0
        %2736 = vmatprep.mubr.bf16.mxu0 0
        %2737 = vmatmul.mubr.bf16.gmra.mrb[0].mxu0 %v2603
        %v2738 = vpop.f32.mrb[0].mxu0
        %v2739 = vadd.f32 0.0, %v2738
        %v2740 = vpop.f32.mrb[0].mxu0
        %v2741 = vpop.f32.mrb[0].mxu0
        %v2742 = vadd.f32 0.0, %v2741
        %v2743 = vpop.f32.mrb[0].mxu0
        %2744 = vmatprep.mubr.bf16.mxu0 0
        %2745 = vmatmul.mubr.bf16.gmra.mrb[0].mxu0 %v2606
        %v2746 = vpop.f32.mrb[0].mxu0
        %v2747 = vadd.f32 0.0, %v2746
        %v2748 = vpop.f32.mrb[0].mxu0
        %v2749 = vpop.f32.mrb[0].mxu0
        %v2750 = vadd.f32 0.0, %v2749
        %v2751 = vpop.f32.mrb[0].mxu0
        %2752 = vmatprep.mubr.bf16.mxu0 0
        %2753 = vmatmul.mubr.bf16.gmra.mrb[0].mxu0 %v2609
        %v2754 = vpop.f32.mrb[0].mxu0
        %v2755 = vadd.f32 0.0, %v2754
        %v2756 = vpop.f32.mrb[0].mxu0
        %v2757 = vpop.f32.mrb[0].mxu0
        %v2758 = vadd.f32 0.0, %v2757
        %v2759 = vpop.f32.mrb[0].mxu0
        %2760 = vmatprep.mubr.bf16.mxu0 0
        %2761 = vmatmul.mubr.bf16.gmra.mrb[0].mxu0 %v2612
        %v2762 = vpop.f32.mrb[0].mxu0
        %v2763 = vadd.f32 0.0, %v2762
        %v2764 = vpop.f32.mrb[0].mxu0
        %v2765 = vpop.f32.mrb[0].mxu0
        %v2766 = vadd.f32 0.0, %v2765
        %v2767 = vpop.f32.mrb[0].mxu0
        %2768 = vmatprep.mubr.bf16.mxu0 0
        %2769 = vmatmul.mubr.bf16.gmra.mrb[0].mxu0 %v2615
        %v2770 = vpop.f32.mrb[0].mxu0
        %v2771 = vadd.f32 0.0, %v2770
        %v2772 = vpop.f32.mrb[0].mxu0
        %v2773 = vpop.f32.mrb[0].mxu0
        %v2774 = vadd.f32 0.0, %v2773
        %v2775 = vpop.f32.mrb[0].mxu0
        %2776 = vmatprep.mubr.bf16.mxu0 0
        %2777 = vmatmul.mubr.bf16.gmra.mrb[0].mxu0 %v2618
        %v2778 = vpop.f32.mrb[0].mxu0
        %v2779 = vadd.f32 0.0, %v2778
        %v2780 = vpop.f32.mrb[0].mxu0
        %v2781 = vpop.f32.mrb[0].mxu0
        %v2782 = vadd.f32 0.0, %v2781
        %v2783 = vpop.f32.mrb[0].mxu0
        %2784 = vmatprep.mubr.bf16.mxu0 0
        %2785 = vmatmul.mubr.bf16.gmra.mrb[0].mxu0 %v2621
        %v2786 = vpop.f32.mrb[0].mxu0
        %v2787 = vadd.f32 0.0, %v2786
        %v2788 = vpop.f32.mrb[0].mxu0
        %v2789 = vpop.f32.mrb[0].mxu0
        %v2790 = vadd.f32 0.0, %v2789
        %v2791 = vpop.f32.mrb[0].mxu0
        %2792 = vmatprep.mubr.bf16.mxu0 0
        %2793 = vmatmul.mubr.bf16.gmra.mrb[0].mxu0 %v2624
        %v2794 = vpop.f32.mrb[0].mxu0
        %v2795 = vadd.f32 0.0, %v2794
        %v2796 = vpop.f32.mrb[0].mxu0
        %v2797 = vpop.f32.mrb[0].mxu0
        %v2798 = vadd.f32 0.0, %v2797
        %v2799 = vpop.f32.mrb[0].mxu0
        %2800 = vmatprep.mubr.bf16.mxu0 0
        %2801 = vmatmul.mubr.bf16.gmra.mrb[0].mxu0 %v2627
        %v2802 = vpop.f32.mrb[0].mxu0
        %v2803 = vadd.f32 0.0, %v2802
        %v2804 = vpop.f32.mrb[0].mxu0
        %v2805 = vpop.f32.mrb[0].mxu0
        %v2806 = vadd.f32 0.0, %v2805
        %v2807 = vpop.f32.mrb[0].mxu0
        %2808 = vmatprep.mubr.bf16.mxu0 0
        %2809 = vmatmul.mubr.bf16.gmra.mrb[0].mxu0 %v2630
        %v2810 = vpop.f32.mrb[0].mxu0
        %v2811 = vadd.f32 0.0, %v2810
        %v2812 = vpop.f32.mrb[0].mxu0
        %v2813 = vpop.f32.mrb[0].mxu0
        %v2814 = vadd.f32 0.0, %v2813
        %v2815 = vpop.f32.mrb[0].mxu0
        %2816 = vmatprep.mubr.bf16.mxu0 0
        %2817 = vmatmul.mubr.bf16.gmra.mrb[0].mxu0 %v2633
        %v2818 = vpop.f32.mrb[0].mxu0
        %v2819 = vadd.f32 0.0, %v2818
        %v2820 = vpop.f32.mrb[0].mxu0
        %v2821 = vpop.f32.mrb[0].mxu0
        %v2822 = vadd.f32 0.0, %v2821
        %v2823 = vpop.f32.mrb[0].mxu0
        %2824 = vmatprep.mubr.bf16.mxu0 0
        %2825 = vmatmul.mubr.bf16.gmra.mrb[0].mxu0 %v2636
        %v2826 = vpop.f32.mrb[0].mxu0
        %v2827 = vadd.f32 0.0, %v2826
        %v2828 = vpop.f32.mrb[0].mxu0
        %v2829 = vpop.f32.mrb[0].mxu0
        %v2830 = vadd.f32 0.0, %v2829
        %v2831 = vpop.f32.mrb[0].mxu0
        %2832 = vmatprep.mubr.bf16.mxu0 0
        %2833 = vmatmul.mubr.bf16.gmra.mrb[0].mxu0 %v2639
        %v2834 = vpop.f32.mrb[0].mxu0
        %v2835 = vadd.f32 0.0, %v2834
        %v2836 = vpop.f32.mrb[0].mxu0
        %v2837 = vpop.f32.mrb[0].mxu0
        %v2838 = vadd.f32 0.0, %v2837
        %v2839 = vpop.f32.mrb[0].mxu0
        %2840 = vmatprep.mubr.bf16.mxu0 0
        %2841 = vmatmul.mubr.bf16.gmra.mrb[0].mxu0 %v2642
        %v2842 = vpop.f32.mrb[0].mxu0
        %v2843 = vadd.f32 0.0, %v2842
        %v2844 = vpop.f32.mrb[0].mxu0
        %v2845 = vpop.f32.mrb[0].mxu0
        %v2846 = vadd.f32 0.0, %v2845
        %v2847 = vpop.f32.mrb[0].mxu0
        %2848 = vmatprep.mubr.bf16.mxu0 0
        %2849 = vmatmul.mubr.bf16.gmra.mrb[0].mxu0 %v2645
        %v2850 = vpop.f32.mrb[0].mxu0
        %v2851 = vadd.f32 0.0, %v2850
        %v2852 = vpop.f32.mrb[0].mxu0
        %v2853 = vpop.f32.mrb[0].mxu0
        %v2854 = vadd.f32 0.0, %v2853
        %v2855 = vpop.f32.mrb[0].mxu0
        %2856 = vmatprep.mubr.bf16.mxu0 0
        %2857 = vmatmul.mubr.bf16.gmra.mrb[0].mxu0 %v2648
        %v2858 = vpop.f32.mrb[0].mxu0
        %v2859 = vadd.f32 0.0, %v2858
        %v2860 = vpop.f32.mrb[0].mxu0
        %v2861 = vpop.f32.mrb[0].mxu0
        %v2862 = vadd.f32 0.0, %v2861
        %v2863 = vpop.f32.mrb[0].mxu0
        %2864 = vmatprep.mubr.bf16.mxu0 0
        %2865 = vmatmul.mubr.bf16.gmra.mrb[0].mxu0 %v2651
        %v2866 = vpop.f32.mrb[0].mxu0
        %v2867 = vadd.f32 0.0, %v2866
        %v2868 = vpop.f32.mrb[0].mxu0
        %v2869 = vpop.f32.mrb[0].mxu0
        %v2870 = vadd.f32 0.0, %v2869
        %v2871 = vpop.f32.mrb[0].mxu0
        %2872 = vmatprep.mubr.bf16.mxu0 0
        %2873 = vmatmul.mubr.bf16.gmra.mrb[0].mxu0 %v2654
        %v2874 = vpop.f32.mrb[0].mxu0
        %v2875 = vadd.f32 0.0, %v2874
        %v2876 = vpop.f32.mrb[0].mxu0
        %v2877 = vpop.f32.mrb[0].mxu0
        %v2878 = vadd.f32 0.0, %v2877
        %v2879 = vpop.f32.mrb[0].mxu0
        %2880 = vdwg.mxu0
        %v2881 = vpack.c.bf16 %v2694, %v2691
        %v2882 = vpack.c.bf16 %v2702, %v2699
        %v2883 = vpack.c.bf16 %v2710, %v2707
        %v2884 = vpack.c.bf16 %v2718, %v2715
        %v2885 = vpack.c.bf16 %v2726, %v2723
        %v2886 = vpack.c.bf16 %v2734, %v2731
        %v2887 = vpack.c.bf16 %v2742, %v2739
        %v2888 = vpack.c.bf16 %v2750, %v2747
        %v2889 = vpack.c.bf16 %v2758, %v2755
        %v2890 = vpack.c.bf16 %v2766, %v2763
        %v2891 = vpack.c.bf16 %v2774, %v2771
        %v2892 = vpack.c.bf16 %v2782, %v2779
        %v2893 = vpack.c.bf16 %v2790, %v2787
        %v2894 = vpack.c.bf16 %v2798, %v2795
        %v2895 = vpack.c.bf16 %v2806, %v2803
        %v2896 = vpack.c.bf16 %v2814, %v2811
        %v2897 = vpack.c.bf16 %v2822, %v2819
        %v2898 = vpack.c.bf16 %v2830, %v2827
        %v2899 = vpack.c.bf16 %v2838, %v2835
        %v2900 = vpack.c.bf16 %v2846, %v2843
        %v2901 = vpack.c.bf16 %v2854, %v2851
        %v2902 = vpack.c.bf16 %v2862, %v2859
        %v2903 = vpack.c.bf16 %v2870, %v2867
        %v2904 = vpack.c.bf16 %v2878, %v2875
        %2929 = vrot.lane.b32.xlu0 %v2881, 64
        %v2930 = vpop.permute.xlu0 %2929
        %2931 = vrot.lane.b32.xlu0 %v2882, 64
        %v2932 = vpop.permute.xlu0 %2931
        %2933 = vrot.lane.b32.xlu0 %v2883, 64
        %v2934 = vpop.permute.xlu0 %2933
        %2935 = vrot.lane.b32.xlu0 %v2884, 64
        %v2936 = vpop.permute.xlu0 %2935
        %2937 = vrot.lane.b32.xlu0 %v2885, 64
        %v2938 = vpop.permute.xlu0 %2937
        %2939 = vrot.lane.b32.xlu0 %v2886, 64
        %v2940 = vpop.permute.xlu0 %2939
        %2941 = vrot.lane.b32.xlu0 %v2887, 64
        %v2942 = vpop.permute.xlu0 %2941
        %2943 = vrot.lane.b32.xlu0 %v2888, 64
        %v2944 = vpop.permute.xlu0 %2943
        %2945 = vrot.lane.b32.xlu0 %v2889, 64
        %v2946 = vpop.permute.xlu0 %2945
        %2947 = vrot.lane.b32.xlu0 %v2890, 64
        %v2948 = vpop.permute.xlu0 %2947
        %2949 = vrot.lane.b32.xlu0 %v2891, 64
        %v2950 = vpop.permute.xlu0 %2949
        %2951 = vrot.lane.b32.xlu0 %v2892, 64
        %v2952 = vpop.permute.xlu0 %2951
        %2953 = vrot.lane.b32.xlu0 %v2893, 64
        %v2954 = vpop.permute.xlu0 %2953
        %2955 = vrot.lane.b32.xlu0 %v2894, 64
        %v2956 = vpop.permute.xlu0 %2955
        %2957 = vrot.lane.b32.xlu0 %v2895, 64
        %v2958 = vpop.permute.xlu0 %2957
        %2959 = vrot.lane.b32.xlu0 %v2896, 64
        %v2960 = vpop.permute.xlu0 %2959
        %2961 = vrot.lane.b32.xlu0 %v2897, 64
        %v2962 = vpop.permute.xlu0 %2961
        %2963 = vrot.lane.b32.xlu0 %v2898, 64
        %v2964 = vpop.permute.xlu0 %2963
        %2965 = vrot.lane.b32.xlu0 %v2899, 64
        %v2966 = vpop.permute.xlu0 %2965
        %2967 = vrot.lane.b32.xlu0 %v2900, 64
        %v2968 = vpop.permute.xlu0 %2967
        %2969 = vrot.lane.b32.xlu0 %v2901, 64
        %v2970 = vpop.permute.xlu0 %2969
        %2971 = vrot.lane.b32.xlu0 %v2902, 64
        %v2972 = vpop.permute.xlu0 %2971
        %2973 = vrot.lane.b32.xlu0 %v2903, 64
        %v2974 = vpop.permute.xlu0 %2973
        %2975 = vrot.lane.b32.xlu0 %v2904, 64
        %v2976 = vpop.permute.xlu0 %2975
        %v3001 = vmul.bf16 %v2881, %v2930
        %v3002 = vmul.bf16 %v2882, %v2932
        %v3003 = vmul.bf16 %v2883, %v2934
        %v3004 = vmul.bf16 %v2884, %v2936
        %v3005 = vmul.bf16 %v2885, %v2938
        %v3006 = vmul.bf16 %v2886, %v2940
        %v3007 = vmul.bf16 %v2887, %v2942
        %v3008 = vmul.bf16 %v2888, %v2944
        %v3009 = vmul.bf16 %v2889, %v2946
        %v3010 = vmul.bf16 %v2890, %v2948
        %v3011 = vmul.bf16 %v2891, %v2950
        %v3012 = vmul.bf16 %v2892, %v2952
        %v3013 = vmul.bf16 %v2893, %v2954
        %v3014 = vmul.bf16 %v2894, %v2956
        %v3015 = vmul.bf16 %v2895, %v2958
        %v3016 = vmul.bf16 %v2896, %v2960
        %v3017 = vmul.bf16 %v2897, %v2962
        %v3018 = vmul.bf16 %v2898, %v2964
        %v3019 = vmul.bf16 %v2899, %v2966
        %v3020 = vmul.bf16 %v2900, %v2968
        %v3021 = vmul.bf16 %v2901, %v2970
        %v3022 = vmul.bf16 %v2902, %v2972
        %v3023 = vmul.bf16 %v2903, %v2974
        %v3024 = vmul.bf16 %v2904, %v2976
        %v3025 = vunpack.c.l.bf16 %v3001
        %v3026 = vunpack.c.h.bf16 %v3001
        %v3027 = vunpack.c.l.bf16 %v3002
        %v3028 = vunpack.c.h.bf16 %v3002
        %v3029 = vunpack.c.l.bf16 %v3003
        %v3030 = vunpack.c.h.bf16 %v3003
        %v3031 = vunpack.c.l.bf16 %v3004
        %v3032 = vunpack.c.h.bf16 %v3004
        %v3033 = vunpack.c.l.bf16 %v3005
        %v3034 = vunpack.c.h.bf16 %v3005
        %v3035 = vunpack.c.l.bf16 %v3006
        %v3036 = vunpack.c.h.bf16 %v3006
        %v3037 = vunpack.c.l.bf16 %v3007
        %v3038 = vunpack.c.h.bf16 %v3007
        %v3039 = vunpack.c.l.bf16 %v3008
        %v3040 = vunpack.c.h.bf16 %v3008
        %v3041 = vunpack.c.l.bf16 %v3009
        %v3042 = vunpack.c.h.bf16 %v3009
        %v3043 = vunpack.c.l.bf16 %v3010
        %v3044 = vunpack.c.h.bf16 %v3010
        %v3045 = vunpack.c.l.bf16 %v3011
        %v3046 = vunpack.c.h.bf16 %v3011
        %v3047 = vunpack.c.l.bf16 %v3012
        %v3048 = vunpack.c.h.bf16 %v3012
        %v3049 = vunpack.c.l.bf16 %v3013
        %v3050 = vunpack.c.h.bf16 %v3013
        %v3051 = vunpack.c.l.bf16 %v3014
        %v3052 = vunpack.c.h.bf16 %v3014
        %v3053 = vunpack.c.l.bf16 %v3015
        %v3054 = vunpack.c.h.bf16 %v3015
        %v3055 = vunpack.c.l.bf16 %v3016
        %v3056 = vunpack.c.h.bf16 %v3016
        %v3057 = vunpack.c.l.bf16 %v3017
        %v3058 = vunpack.c.h.bf16 %v3017
        %v3059 = vunpack.c.l.bf16 %v3018
        %v3060 = vunpack.c.h.bf16 %v3018
        %v3061 = vunpack.c.l.bf16 %v3019
        %v3062 = vunpack.c.h.bf16 %v3019
        %v3063 = vunpack.c.l.bf16 %v3020
        %v3064 = vunpack.c.h.bf16 %v3020
        %v3065 = vunpack.c.l.bf16 %v3021
        %v3066 = vunpack.c.h.bf16 %v3021
        %v3067 = vunpack.c.l.bf16 %v3022
        %v3068 = vunpack.c.h.bf16 %v3022
        %v3069 = vunpack.c.l.bf16 %v3023
        %v3070 = vunpack.c.h.bf16 %v3023
        %v3071 = vunpack.c.l.bf16 %v3024
        %v3072 = vunpack.c.h.bf16 %v3024
        %v3073 = vsel %vm837, %v3025, 0.0
        %v3074 = vsel %vm837, %v3041, 0.0
        %v3075 = vadd.f32 %v3073, %v3074
        %v3076 = vsel %vm837, %v3057, 0.0
        %v3077 = vadd.f32 %v3075, %v3076
        %v3078 = vsel %vm837, %v3026, 0.0
        %v3079 = vsel %vm837, %v3042, 0.0
        %v3080 = vadd.f32 %v3078, %v3079
        %v3081 = vsel %vm837, %v3058, 0.0
        %v3082 = vadd.f32 %v3080, %v3081
        %v3083 = vsel %vm837, %v3027, 0.0
        %v3084 = vsel %vm837, %v3043, 0.0
        %v3085 = vadd.f32 %v3083, %v3084
        %v3086 = vsel %vm837, %v3059, 0.0
        %v3087 = vadd.f32 %v3085, %v3086
        %v3088 = vsel %vm837, %v3028, 0.0
        %v3089 = vsel %vm837, %v3044, 0.0
        %v3090 = vadd.f32 %v3088, %v3089
        %v3091 = vsel %vm837, %v3060, 0.0
        %v3092 = vadd.f32 %v3090, %v3091
        %v3093 = vsel %vm837, %v3029, 0.0
        %v3094 = vsel %vm837, %v3045, 0.0
        %v3095 = vadd.f32 %v3093, %v3094
        %v3096 = vsel %vm837, %v3061, 0.0
        %v3097 = vadd.f32 %v3095, %v3096
        %v3098 = vsel %vm837, %v3030, 0.0
        %v3099 = vsel %vm837, %v3046, 0.0
        %v3100 = vadd.f32 %v3098, %v3099
        %v3101 = vsel %vm837, %v3062, 0.0
        %v3102 = vadd.f32 %v3100, %v3101
        %v3103 = vsel %vm837, %v3031, 0.0
        %v3104 = vsel %vm837, %v3047, 0.0
        %v3105 = vadd.f32 %v3103, %v3104
        %v3106 = vsel %vm837, %v3063, 0.0
        %v3107 = vadd.f32 %v3105, %v3106
        %v3108 = vsel %vm837, %v3032, 0.0
        %v3109 = vsel %vm837, %v3048, 0.0
        %v3110 = vadd.f32 %v3108, %v3109
        %v3111 = vsel %vm837, %v3064, 0.0
        %v3112 = vadd.f32 %v3110, %v3111
        %v3113 = vsel %vm837, %v3033, 0.0
        %v3114 = vsel %vm837, %v3049, 0.0
        %v3115 = vadd.f32 %v3113, %v3114
        %v3116 = vsel %vm837, %v3065, 0.0
        %v3117 = vadd.f32 %v3115, %v3116
        %v3118 = vsel %vm837, %v3034, 0.0
        %v3119 = vsel %vm837, %v3050, 0.0
        %v3120 = vadd.f32 %v3118, %v3119
        %v3121 = vsel %vm837, %v3066, 0.0
        %v3122 = vadd.f32 %v3120, %v3121
        %v3123 = vsel %vm837, %v3035, 0.0
        %v3124 = vsel %vm837, %v3051, 0.0
        %v3125 = vadd.f32 %v3123, %v3124
        %v3126 = vsel %vm837, %v3067, 0.0
        %v3127 = vadd.f32 %v3125, %v3126
        %v3128 = vsel %vm837, %v3036, 0.0
        %v3129 = vsel %vm837, %v3052, 0.0
        %v3130 = vadd.f32 %v3128, %v3129
        %v3131 = vsel %vm837, %v3068, 0.0
        %v3132 = vadd.f32 %v3130, %v3131
        %v3133 = vsel %vm837, %v3037, 0.0
        %v3134 = vsel %vm837, %v3053, 0.0
        %v3135 = vadd.f32 %v3133, %v3134
        %v3136 = vsel %vm837, %v3069, 0.0
        %v3137 = vadd.f32 %v3135, %v3136
        %v3138 = vsel %vm837, %v3038, 0.0
        %v3139 = vsel %vm837, %v3054, 0.0
        %v3140 = vadd.f32 %v3138, %v3139
        %v3141 = vsel %vm837, %v3070, 0.0
        %v3142 = vadd.f32 %v3140, %v3141
        %v3143 = vsel %vm837, %v3039, 0.0
        %v3144 = vsel %vm837, %v3055, 0.0
        %v3145 = vadd.f32 %v3143, %v3144
        %v3146 = vsel %vm837, %v3071, 0.0
        %v3147 = vadd.f32 %v3145, %v3146
        %v3148 = vsel %vm837, %v3040, 0.0
        %v3149 = vsel %vm837, %v3056, 0.0
        %v3150 = vadd.f32 %v3148, %v3149
        %v3151 = vsel %vm837, %v3072, 0.0
        %v3152 = vadd.f32 %v3150, %v3151
        %v3153 = vpack.c.bf16 %v3082, %v3077
        %v3154 = vpack.c.bf16 %v3092, %v3087
        %v3155 = vpack.c.bf16 %v3102, %v3097
        %v3156 = vpack.c.bf16 %v3112, %v3107
        %v3157 = vpack.c.bf16 %v3122, %v3117
        %v3158 = vpack.c.bf16 %v3132, %v3127
        %v3159 = vpack.c.bf16 %v3142, %v3137
        %v3160 = vpack.c.bf16 %v3152, %v3147
        %v3161 = vunpack.c.l.bf16 %v3153
        %v3162 = vunpack.c.h.bf16 %v3153
        %v3163 = vunpack.c.l.bf16 %v3154
        %v3164 = vunpack.c.h.bf16 %v3154
        %v3165 = vunpack.c.l.bf16 %v3155
        %v3166 = vunpack.c.h.bf16 %v3155
        %v3167 = vunpack.c.l.bf16 %v3156
        %v3168 = vunpack.c.h.bf16 %v3156
        %v3169 = vunpack.c.l.bf16 %v3157
        %v3170 = vunpack.c.h.bf16 %v3157
        %v3171 = vunpack.c.l.bf16 %v3158
        %v3172 = vunpack.c.h.bf16 %v3158
        %v3173 = vunpack.c.l.bf16 %v3159
        %v3174 = vunpack.c.h.bf16 %v3159
        %v3175 = vunpack.c.l.bf16 %v3160
        %v3176 = vunpack.c.h.bf16 %v3160
        %v3177 = vmul.bf16 %v2881, %v2881
        %v3178 = vmul.bf16 %v2882, %v2882
        %v3179 = vmul.bf16 %v2883, %v2883
        %v3180 = vmul.bf16 %v2884, %v2884
        %v3181 = vmul.bf16 %v2885, %v2885
        %v3182 = vmul.bf16 %v2886, %v2886
        %v3183 = vmul.bf16 %v2887, %v2887
        %v3184 = vmul.bf16 %v2888, %v2888
        %v3185 = vmul.bf16 %v2889, %v2889
        %v3186 = vmul.bf16 %v2890, %v2890
        %v3187 = vmul.bf16 %v2891, %v2891
        %v3188 = vmul.bf16 %v2892, %v2892
        %v3189 = vmul.bf16 %v2893, %v2893
        %v3190 = vmul.bf16 %v2894, %v2894
        %v3191 = vmul.bf16 %v2895, %v2895
        %v3192 = vmul.bf16 %v2896, %v2896
        %v3193 = vmul.bf16 %v2897, %v2897
        %v3194 = vmul.bf16 %v2898, %v2898
        %v3195 = vmul.bf16 %v2899, %v2899
        %v3196 = vmul.bf16 %v2900, %v2900
        %v3197 = vmul.bf16 %v2901, %v2901
        %v3198 = vmul.bf16 %v2902, %v2902
        %v3199 = vmul.bf16 %v2903, %v2903
        %v3200 = vmul.bf16 %v2904, %v2904
        %v3201 = vunpack.c.l.bf16 %v3177
        %v3202 = vunpack.c.h.bf16 %v3177
        %v3203 = vunpack.c.l.bf16 %v3178
        %v3204 = vunpack.c.h.bf16 %v3178
        %v3205 = vunpack.c.l.bf16 %v3179
        %v3206 = vunpack.c.h.bf16 %v3179
        %v3207 = vunpack.c.l.bf16 %v3180
        %v3208 = vunpack.c.h.bf16 %v3180
        %v3209 = vunpack.c.l.bf16 %v3181
        %v3210 = vunpack.c.h.bf16 %v3181
        %v3211 = vunpack.c.l.bf16 %v3182
        %v3212 = vunpack.c.h.bf16 %v3182
        %v3213 = vunpack.c.l.bf16 %v3183
        %v3214 = vunpack.c.h.bf16 %v3183
        %v3215 = vunpack.c.l.bf16 %v3184
        %v3216 = vunpack.c.h.bf16 %v3184
        %v3217 = vunpack.c.l.bf16 %v3185
        %v3218 = vunpack.c.h.bf16 %v3185
        %v3219 = vunpack.c.l.bf16 %v3186
        %v3220 = vunpack.c.h.bf16 %v3186
        %v3221 = vunpack.c.l.bf16 %v3187
        %v3222 = vunpack.c.h.bf16 %v3187
        %v3223 = vunpack.c.l.bf16 %v3188
        %v3224 = vunpack.c.h.bf16 %v3188
        %v3225 = vunpack.c.l.bf16 %v3189
        %v3226 = vunpack.c.h.bf16 %v3189
        %v3227 = vunpack.c.l.bf16 %v3190
        %v3228 = vunpack.c.h.bf16 %v3190
        %v3229 = vunpack.c.l.bf16 %v3191
        %v3230 = vunpack.c.h.bf16 %v3191
        %v3231 = vunpack.c.l.bf16 %v3192
        %v3232 = vunpack.c.h.bf16 %v3192
        %v3233 = vunpack.c.l.bf16 %v3193
        %v3234 = vunpack.c.h.bf16 %v3193
        %v3235 = vunpack.c.l.bf16 %v3194
        %v3236 = vunpack.c.h.bf16 %v3194
        %v3237 = vunpack.c.l.bf16 %v3195
        %v3238 = vunpack.c.h.bf16 %v3195
        %v3239 = vunpack.c.l.bf16 %v3196
        %v3240 = vunpack.c.h.bf16 %v3196
        %v3241 = vunpack.c.l.bf16 %v3197
        %v3242 = vunpack.c.h.bf16 %v3197
        %v3243 = vunpack.c.l.bf16 %v3198
        %v3244 = vunpack.c.h.bf16 %v3198
        %v3245 = vunpack.c.l.bf16 %v3199
        %v3246 = vunpack.c.h.bf16 %v3199
        %v3247 = vunpack.c.l.bf16 %v3200
        %v3248 = vunpack.c.h.bf16 %v3200
        %v3249 = vsel %vm1014, %v3201, 0.0
        %v3250 = vsel %vm1014, %v3217, 0.0
        %v3251 = vadd.f32 %v3249, %v3250
        %v3252 = vsel %vm1014, %v3233, 0.0
        %v3253 = vadd.f32 %v3251, %v3252
        %v3254 = vsel %vm1014, %v3202, 0.0
        %v3255 = vsel %vm1014, %v3218, 0.0
        %v3256 = vadd.f32 %v3254, %v3255
        %v3257 = vsel %vm1014, %v3234, 0.0
        %v3258 = vadd.f32 %v3256, %v3257
        %v3259 = vsel %vm1014, %v3203, 0.0
        %v3260 = vsel %vm1014, %v3219, 0.0
        %v3261 = vadd.f32 %v3259, %v3260
        %v3262 = vsel %vm1014, %v3235, 0.0
        %v3263 = vadd.f32 %v3261, %v3262
        %v3264 = vsel %vm1014, %v3204, 0.0
        %v3265 = vsel %vm1014, %v3220, 0.0
        %v3266 = vadd.f32 %v3264, %v3265
        %v3267 = vsel %vm1014, %v3236, 0.0
        %v3268 = vadd.f32 %v3266, %v3267
        %v3269 = vsel %vm1014, %v3205, 0.0
        %v3270 = vsel %vm1014, %v3221, 0.0
        %v3271 = vadd.f32 %v3269, %v3270
        %v3272 = vsel %vm1014, %v3237, 0.0
        %v3273 = vadd.f32 %v3271, %v3272
        %v3274 = vsel %vm1014, %v3206, 0.0
        %v3275 = vsel %vm1014, %v3222, 0.0
        %v3276 = vadd.f32 %v3274, %v3275
        %v3277 = vsel %vm1014, %v3238, 0.0
        %v3278 = vadd.f32 %v3276, %v3277
        %v3279 = vsel %vm1014, %v3207, 0.0
        %v3280 = vsel %vm1014, %v3223, 0.0
        %v3281 = vadd.f32 %v3279, %v3280
        %v3282 = vsel %vm1014, %v3239, 0.0
        %v3283 = vadd.f32 %v3281, %v3282
        %v3284 = vsel %vm1014, %v3208, 0.0
        %v3285 = vsel %vm1014, %v3224, 0.0
        %v3286 = vadd.f32 %v3284, %v3285
        %v3287 = vsel %vm1014, %v3240, 0.0
        %v3288 = vadd.f32 %v3286, %v3287
        %v3289 = vsel %vm1014, %v3209, 0.0
        %v3290 = vsel %vm1014, %v3225, 0.0
        %v3291 = vadd.f32 %v3289, %v3290
        %v3292 = vsel %vm1014, %v3241, 0.0
        %v3293 = vadd.f32 %v3291, %v3292
        %v3294 = vsel %vm1014, %v3210, 0.0
        %v3295 = vsel %vm1014, %v3226, 0.0
        %v3296 = vadd.f32 %v3294, %v3295
        %v3297 = vsel %vm1014, %v3242, 0.0
        %v3298 = vadd.f32 %v3296, %v3297
        %v3299 = vsel %vm1014, %v3211, 0.0
        %v3300 = vsel %vm1014, %v3227, 0.0
        %v3301 = vadd.f32 %v3299, %v3300
        %v3302 = vsel %vm1014, %v3243, 0.0
        %v3303 = vadd.f32 %v3301, %v3302
        %v3304 = vsel %vm1014, %v3212, 0.0
        %v3305 = vsel %vm1014, %v3228, 0.0
        %v3306 = vadd.f32 %v3304, %v3305
        %v3307 = vsel %vm1014, %v3244, 0.0
        %v3308 = vadd.f32 %v3306, %v3307
        %v3309 = vsel %vm1014, %v3213, 0.0
        %v3310 = vsel %vm1014, %v3229, 0.0
        %v3311 = vadd.f32 %v3309, %v3310
        %v3312 = vsel %vm1014, %v3245, 0.0
        %v3313 = vadd.f32 %v3311, %v3312
        %v3314 = vsel %vm1014, %v3214, 0.0
        %v3315 = vsel %vm1014, %v3230, 0.0
        %v3316 = vadd.f32 %v3314, %v3315
        %v3317 = vsel %vm1014, %v3246, 0.0
        %v3318 = vadd.f32 %v3316, %v3317
        %v3319 = vsel %vm1014, %v3215, 0.0
        %v3320 = vsel %vm1014, %v3231, 0.0
        %v3321 = vadd.f32 %v3319, %v3320
        %v3322 = vsel %vm1014, %v3247, 0.0
        %v3323 = vadd.f32 %v3321, %v3322
        %v3324 = vsel %vm1014, %v3216, 0.0
        %v3325 = vsel %vm1014, %v3232, 0.0
        %v3326 = vadd.f32 %v3324, %v3325
        %v3327 = vsel %vm1014, %v3248, 0.0
        %v3328 = vadd.f32 %v3326, %v3327
        %v3329 = vpack.c.bf16 %v3258, %v3253
        %v3330 = vpack.c.bf16 %v3268, %v3263
        %v3331 = vpack.c.bf16 %v3278, %v3273
        %v3332 = vpack.c.bf16 %v3288, %v3283
        %v3333 = vpack.c.bf16 %v3298, %v3293
        %v3334 = vpack.c.bf16 %v3308, %v3303
        %v3335 = vpack.c.bf16 %v3318, %v3313
        %v3336 = vpack.c.bf16 %v3328, %v3323
        %v3337 = vunpack.c.l.bf16 %v3329
        %v3338 = vunpack.c.h.bf16 %v3329
        %v3339 = vunpack.c.l.bf16 %v3330
        %v3340 = vunpack.c.h.bf16 %v3330
        %v3341 = vunpack.c.l.bf16 %v3331
        %v3342 = vunpack.c.h.bf16 %v3331
        %v3343 = vunpack.c.l.bf16 %v3332
        %v3344 = vunpack.c.h.bf16 %v3332
        %v3345 = vunpack.c.l.bf16 %v3333
        %v3346 = vunpack.c.h.bf16 %v3333
        %v3347 = vunpack.c.l.bf16 %v3334
        %v3348 = vunpack.c.h.bf16 %v3334
        %v3349 = vunpack.c.l.bf16 %v3335
        %v3350 = vunpack.c.h.bf16 %v3335
        %v3351 = vunpack.c.l.bf16 %v3336
        %v3352 = vunpack.c.h.bf16 %v3336
        %v3353 = vadd.f32 %v3337, 1e-06
        %v3354 = vadd.f32 %v3338, 1e-06
        %v3355 = vadd.f32 %v3339, 1e-06
        %v3356 = vadd.f32 %v3340, 1e-06
        %v3357 = vadd.f32 %v3341, 1e-06
        %v3358 = vadd.f32 %v3342, 1e-06
        %v3359 = vadd.f32 %v3343, 1e-06
        %v3360 = vadd.f32 %v3344, 1e-06
        %v3361 = vadd.f32 %v3345, 1e-06
        %v3362 = vadd.f32 %v3346, 1e-06
        %v3363 = vadd.f32 %v3347, 1e-06
        %v3364 = vadd.f32 %v3348, 1e-06
        %v3365 = vadd.f32 %v3349, 1e-06
        %v3366 = vadd.f32 %v3350, 1e-06
        %v3367 = vadd.f32 %v3351, 1e-06
        %v3368 = vadd.f32 %v3352, 1e-06
        %3385 = vrot.lane.b32.xlu0 %v3353, 64
        %v3386 = vpop.permute.xlu0 %3385
        %3387 = vrot.lane.b32.xlu0 %v3354, 64
        %v3388 = vpop.permute.xlu0 %3387
        %3389 = vrot.lane.b32.xlu0 %v3355, 64
        %v3390 = vpop.permute.xlu0 %3389
        %3391 = vrot.lane.b32.xlu0 %v3356, 64
        %v3392 = vpop.permute.xlu0 %3391
        %3393 = vrot.lane.b32.xlu0 %v3357, 64
        %v3394 = vpop.permute.xlu0 %3393
        %3395 = vrot.lane.b32.xlu0 %v3358, 64
        %v3396 = vpop.permute.xlu0 %3395
        %3397 = vrot.lane.b32.xlu0 %v3359, 64
        %v3398 = vpop.permute.xlu0 %3397
        %3399 = vrot.lane.b32.xlu0 %v3360, 64
        %v3400 = vpop.permute.xlu0 %3399
        %3401 = vrot.lane.b32.xlu0 %v3361, 64
        %v3402 = vpop.permute.xlu0 %3401
        %3403 = vrot.lane.b32.xlu0 %v3362, 64
        %v3404 = vpop.permute.xlu0 %3403
        %3405 = vrot.lane.b32.xlu0 %v3363, 64
        %v3406 = vpop.permute.xlu0 %3405
        %3407 = vrot.lane.b32.xlu0 %v3364, 64
        %v3408 = vpop.permute.xlu0 %3407
        %3409 = vrot.lane.b32.xlu0 %v3365, 64
        %v3410 = vpop.permute.xlu0 %3409
        %3411 = vrot.lane.b32.xlu0 %v3366, 64
        %v3412 = vpop.permute.xlu0 %3411
        %3413 = vrot.lane.b32.xlu0 %v3367, 64
        %v3414 = vpop.permute.xlu0 %3413
        %3415 = vrot.lane.b32.xlu0 %v3368, 64
        %v3416 = vpop.permute.xlu0 %3415
        %v3433 = vrcp.pop %v3386
        %v3434 = vmul.f32 %v3161, %v3433
        %v3435 = vrcp.pop %v3388
        %v3436 = vmul.f32 %v3162, %v3435
        %v3437 = vrcp.pop %v3390
        %v3438 = vmul.f32 %v3163, %v3437
        %v3439 = vrcp.pop %v3392
        %v3440 = vmul.f32 %v3164, %v3439
        %v3441 = vrcp.pop %v3394
        %v3442 = vmul.f32 %v3165, %v3441
        %v3443 = vrcp.pop %v3396
        %v3444 = vmul.f32 %v3166, %v3443
        %v3445 = vrcp.pop %v3398
        %v3446 = vmul.f32 %v3167, %v3445
        %v3447 = vrcp.pop %v3400
        %v3448 = vmul.f32 %v3168, %v3447
        %v3449 = vrcp.pop %v3402
        %v3450 = vmul.f32 %v3169, %v3449
        %v3451 = vrcp.pop %v3404
        %v3452 = vmul.f32 %v3170, %v3451
        %v3453 = vrcp.pop %v3406
        %v3454 = vmul.f32 %v3171, %v3453
        %v3455 = vrcp.pop %v3408
        %v3456 = vmul.f32 %v3172, %v3455
        %v3457 = vrcp.pop %v3410
        %v3458 = vmul.f32 %v3173, %v3457
        %v3459 = vrcp.pop %v3412
        %v3460 = vmul.f32 %v3174, %v3459
        %v3461 = vrcp.pop %v3414
        %v3462 = vmul.f32 %v3175, %v3461
        %v3463 = vrcp.pop %v3416
        %v3464 = vmul.f32 %v3176, %v3463
        %v3465 = vmin.f32 %v3434, 0.0
        %v3466 = vmin.f32 %v3436, 0.0
        %v3467 = vmin.f32 %v3438, 0.0
        %v3468 = vmin.f32 %v3440, 0.0
        %v3469 = vmin.f32 %v3442, 0.0
        %v3470 = vmin.f32 %v3444, 0.0
        %v3471 = vmin.f32 %v3446, 0.0
        %v3472 = vmin.f32 %v3448, 0.0
        %v3473 = vmin.f32 %v3450, 0.0
        %v3474 = vmin.f32 %v3452, 0.0
        %v3475 = vmin.f32 %v3454, 0.0
        %v3476 = vmin.f32 %v3456, 0.0
        %v3477 = vmin.f32 %v3458, 0.0
        %v3478 = vmin.f32 %v3460, 0.0
        %v3479 = vmin.f32 %v3462, 0.0
        %v3480 = vmin.f32 %v3464, 0.0
        %v3481 = vpack.c.bf16 %v3466, %v3465
        %v3482 = vpack.c.bf16 %v3468, %v3467
        %v3483 = vpack.c.bf16 %v3470, %v3469
        %v3484 = vpack.c.bf16 %v3472, %v3471
        %v3485 = vpack.c.bf16 %v3474, %v3473
        %v3486 = vpack.c.bf16 %v3476, %v3475
        %v3487 = vpack.c.bf16 %v3478, %v3477
        %v3488 = vpack.c.bf16 %v3480, %v3479
        %v3489 = vmul.bf16 %v3481, %v2930
        %v3490 = vmul.bf16 %v3482, %v2932
        %v3491 = vmul.bf16 %v3483, %v2934
        %v3492 = vmul.bf16 %v3484, %v2936
        %v3493 = vmul.bf16 %v3485, %v2938
        %v3494 = vmul.bf16 %v3486, %v2940
        %v3495 = vmul.bf16 %v3487, %v2942
        %v3496 = vmul.bf16 %v3488, %v2944
        %v3497 = vmul.bf16 %v3481, %v2946
        %v3498 = vmul.bf16 %v3482, %v2948
        %v3499 = vmul.bf16 %v3483, %v2950
        %v3500 = vmul.bf16 %v3484, %v2952
        %v3501 = vmul.bf16 %v3485, %v2954
        %v3502 = vmul.bf16 %v3486, %v2956
        %v3503 = vmul.bf16 %v3487, %v2958
        %v3504 = vmul.bf16 %v3488, %v2960
        %v3505 = vmul.bf16 %v3481, %v2962
        %v3506 = vmul.bf16 %v3482, %v2964
        %v3507 = vmul.bf16 %v3483, %v2966
        %v3508 = vmul.bf16 %v3484, %v2968
        %v3509 = vmul.bf16 %v3485, %v2970
        %v3510 = vmul.bf16 %v3486, %v2972
        %v3511 = vmul.bf16 %v3487, %v2974
        %v3512 = vmul.bf16 %v3488, %v2976
        %v3513 = vsub.bf16 %v2881, %v3489
        %v3514 = vsub.bf16 %v2882, %v3490
        %v3515 = vsub.bf16 %v2883, %v3491
        %v3516 = vsub.bf16 %v2884, %v3492
        %v3517 = vsub.bf16 %v2885, %v3493
        %v3518 = vsub.bf16 %v2886, %v3494
        %v3519 = vsub.bf16 %v2887, %v3495
        %v3520 = vsub.bf16 %v2888, %v3496
        %v3521 = vsub.bf16 %v2889, %v3497
        %v3522 = vsub.bf16 %v2890, %v3498
        %v3523 = vsub.bf16 %v2891, %v3499
        %v3524 = vsub.bf16 %v2892, %v3500
        %v3525 = vsub.bf16 %v2893, %v3501
        %v3526 = vsub.bf16 %v2894, %v3502
        %v3527 = vsub.bf16 %v2895, %v3503
        %v3528 = vsub.bf16 %v2896, %v3504
        %v3529 = vsub.bf16 %v2897, %v3505
        %v3530 = vsub.bf16 %v2898, %v3506
        %v3531 = vsub.bf16 %v2899, %v3507
        %v3532 = vsub.bf16 %v2900, %v3508
        %v3533 = vsub.bf16 %v2901, %v3509
        %v3534 = vsub.bf16 %v2902, %v3510
        %v3535 = vsub.bf16 %v2903, %v3511
        %v3536 = vsub.bf16 %v2904, %v3512
        %v3537 = vld [vmem:[#allocation10] sm:$0xff]
        %v3538 = vld [vmem:[#allocation10 + $0x8] sm:$0xff]
        %v3539 = vld [vmem:[#allocation10 + $0x10] sm:$0xff]
        %v3540 = vld [vmem:[#allocation10 + $0x18] sm:$0xff]
        %v3541 = vld [vmem:[#allocation10 + $0x20] sm:$0xff]
        %v3542 = vld [vmem:[#allocation10 + $0x28] sm:$0xff]
        %v3543 = vld [vmem:[#allocation10 + $0x30] sm:$0xff]
        %v3544 = vld [vmem:[#allocation10 + $0x38] sm:$0xff]
        %v3553 = vunpack.c.l.b16 %v3537
        %v3554 = vunpack.c.h.b16 %v3537
        %v3555 = vunpack.c.l.b16 %v3538
        %v3556 = vunpack.c.h.b16 %v3538
        %v3557 = vunpack.c.l.b16 %v3539
        %v3558 = vunpack.c.h.b16 %v3539
        %v3559 = vunpack.c.l.b16 %v3540
        %v3560 = vunpack.c.h.b16 %v3540
        %v3561 = vunpack.c.l.b16 %v3541
        %v3562 = vunpack.c.h.b16 %v3541
        %v3563 = vunpack.c.l.b16 %v3542
        %v3564 = vunpack.c.h.b16 %v3542
        %v3565 = vunpack.c.l.b16 %v3543
        %v3566 = vunpack.c.h.b16 %v3543
        %v3567 = vunpack.c.l.b16 %v3544
        %v3568 = vunpack.c.h.b16 %v3544
        %v3569 = vpack.c.b16 %v3555, %v3553
        %v3570 = vpack.c.b16 %v3556, %v3554
        %v3571 = vpack.c.b16 %v3559, %v3557
        %v3572 = vpack.c.b16 %v3560, %v3558
        %v3573 = vpack.c.b16 %v3563, %v3561
        %v3574 = vpack.c.b16 %v3564, %v3562
        %v3575 = vpack.c.b16 %v3567, %v3565
        %v3576 = vpack.c.b16 %v3568, %v3566
        %v3586 = vsel %vm837, %v3513, 0
        %v3589 = vsel %vm837, %v3514, 0
        %v3592 = vsel %vm837, %v3515, 0
        %v3595 = vsel %vm837, %v3516, 0
        %v3598 = vsel %vm837, %v3517, 0
        %v3601 = vsel %vm837, %v3518, 0
        %v3604 = vsel %vm837, %v3519, 0
        %v3607 = vsel %vm837, %v3520, 0
        %v3610 = vsel %vm837, %v3521, 0
        %v3613 = vsel %vm837, %v3522, 0
        %v3616 = vsel %vm837, %v3523, 0
        %v3619 = vsel %vm837, %v3524, 0
        %v3622 = vsel %vm837, %v3525, 0
        %v3625 = vsel %vm837, %v3526, 0
        %v3628 = vsel %vm837, %v3527, 0
        %v3631 = vsel %vm837, %v3528, 0
        %v3634 = vsel %vm837, %v3529, 0
        %v3637 = vsel %vm837, %v3530, 0
        %v3640 = vsel %vm837, %v3531, 0
        %v3643 = vsel %vm837, %v3532, 0
        %v3646 = vsel %vm837, %v3533, 0
        %v3649 = vsel %vm837, %v3534, 0
        %v3652 = vsel %vm837, %v3535, 0
        %v3655 = vsel %vm837, %v3536, 0
        %3657 = vmatprep.subr.bf16.mxu0 %v3570
        %3658 = vmatpush1.bf16.msra.mxu0 %v3569
        %3659 = vmatprep.subr.bf16.mxu0 %v3572
        %3660 = vmatpush1.bf16.msra.mxu0 %v3571
        %3661 = vmatprep.subr.bf16.mxu0 %v3574
        %3662 = vmatpush1.bf16.msra.mxu0 %v3573
        %3663 = vmatprep.subr.bf16.mxu0 %v3576
        %3664 = vmatpush1.bf16.msra.mxu0 %v3575
        %3665 = vmatprep.subr.bf16.mxu0 0
        %3666 = vmatpush1.bf16.msra.mxu0 0
        %3667 = vmatprep.subr.bf16.mxu0 0
        %3668 = vmatpush1.bf16.msra.mxu0 0
        %3669 = vmatprep.subr.bf16.mxu0 0
        %3670 = vmatpush1.bf16.msra.mxu0 0
        %3671 = vmatprep.subr.bf16.mxu0 0
        %3672 = vmatpush1.bf16.msra.mxu0 0
        %3673 = vmatprep.subr.bf16.mxu0 0
        %3674 = vmatpush1.bf16.msra.mxu0 0
        %3675 = vmatprep.subr.bf16.mxu0 0
        %3676 = vmatpush1.bf16.msra.mxu0 0
        %3677 = vmatprep.subr.bf16.mxu0 0
        %3678 = vmatpush1.bf16.msra.mxu0 0
        %3679 = vmatprep.subr.bf16.mxu0 0
        %3680 = vmatpush1.bf16.msra.mxu0 0
        %3681 = vmatprep.subr.bf16.mxu0 0
        %3682 = vmatpush1.bf16.msra.mxu0 0
        %3683 = vmatprep.subr.bf16.mxu0 0
        %3684 = vmatpush1.bf16.msra.mxu0 0
        %3685 = vmatprep.subr.bf16.mxu0 0
        %3686 = vmatpush1.bf16.msra.mxu0 0
        %3687 = vmatprep.subr.bf16.mxu0 0
        %3688 = vmatpush1.bf16.msra.mxu0 0
        %3689 = vmatprep.mubr.bf16.mxu0 0
        %3690 = vmatmul.mubr.bf16.gmra.mrb[0].mxu0 %v3586
        %v3691 = vpop.f32.mrb[0].mxu0
        %v3692 = vadd.f32 0.0, %v3691
        %v3693 = vpop.f32.mrb[0].mxu0
        %v3694 = vadd.f32 0.0, %v3693
        %v3695 = vpop.f32.mrb[0].mxu0
        %v3696 = vadd.f32 0.0, %v3695
        %v3697 = vpop.f32.mrb[0].mxu0
        %v3698 = vadd.f32 0.0, %v3697
        %3699 = vmatprep.mubr.bf16.mxu0 0
        %3700 = vmatmul.mubr.bf16.gmra.mrb[0].mxu0 %v3589
        %v3701 = vpop.f32.mrb[0].mxu0
        %v3702 = vadd.f32 0.0, %v3701
        %v3703 = vpop.f32.mrb[0].mxu0
        %v3704 = vadd.f32 0.0, %v3703
        %v3705 = vpop.f32.mrb[0].mxu0
        %v3706 = vadd.f32 0.0, %v3705
        %v3707 = vpop.f32.mrb[0].mxu0
        %v3708 = vadd.f32 0.0, %v3707
        %3709 = vmatprep.mubr.bf16.mxu0 0
        %3710 = vmatmul.mubr.bf16.gmra.mrb[0].mxu0 %v3592
        %v3711 = vpop.f32.mrb[0].mxu0
        %v3712 = vadd.f32 0.0, %v3711
        %v3713 = vpop.f32.mrb[0].mxu0
        %v3714 = vadd.f32 0.0, %v3713
        %v3715 = vpop.f32.mrb[0].mxu0
        %v3716 = vadd.f32 0.0, %v3715
        %v3717 = vpop.f32.mrb[0].mxu0
        %v3718 = vadd.f32 0.0, %v3717
        %3719 = vmatprep.mubr.bf16.mxu0 0
        %3720 = vmatmul.mubr.bf16.gmra.mrb[0].mxu0 %v3595
        %v3721 = vpop.f32.mrb[0].mxu0
        %v3722 = vadd.f32 0.0, %v3721
        %v3723 = vpop.f32.mrb[0].mxu0
        %v3724 = vadd.f32 0.0, %v3723
        %v3725 = vpop.f32.mrb[0].mxu0
        %v3726 = vadd.f32 0.0, %v3725
        %v3727 = vpop.f32.mrb[0].mxu0
        %v3728 = vadd.f32 0.0, %v3727
        %3729 = vmatprep.mubr.bf16.mxu0 0
        %3730 = vmatmul.mubr.bf16.gmra.mrb[0].mxu0 %v3598
        %v3731 = vpop.f32.mrb[0].mxu0
        %v3732 = vadd.f32 0.0, %v3731
        %v3733 = vpop.f32.mrb[0].mxu0
        %v3734 = vadd.f32 0.0, %v3733
        %v3735 = vpop.f32.mrb[0].mxu0
        %v3736 = vadd.f32 0.0, %v3735
        %v3737 = vpop.f32.mrb[0].mxu0
        %v3738 = vadd.f32 0.0, %v3737
        %3739 = vmatprep.mubr.bf16.mxu0 0
        %3740 = vmatmul.mubr.bf16.gmra.mrb[0].mxu0 %v3601
        %v3741 = vpop.f32.mrb[0].mxu0
        %v3742 = vadd.f32 0.0, %v3741
        %v3743 = vpop.f32.mrb[0].mxu0
        %v3744 = vadd.f32 0.0, %v3743
        %v3745 = vpop.f32.mrb[0].mxu0
        %v3746 = vadd.f32 0.0, %v3745
        %v3747 = vpop.f32.mrb[0].mxu0
        %v3748 = vadd.f32 0.0, %v3747
        %3749 = vmatprep.mubr.bf16.mxu0 0
        %3750 = vmatmul.mubr.bf16.gmra.mrb[0].mxu0 %v3604
        %v3751 = vpop.f32.mrb[0].mxu0
        %v3752 = vadd.f32 0.0, %v3751
        %v3753 = vpop.f32.mrb[0].mxu0
        %v3754 = vadd.f32 0.0, %v3753
        %v3755 = vpop.f32.mrb[0].mxu0
        %v3756 = vadd.f32 0.0, %v3755
        %v3757 = vpop.f32.mrb[0].mxu0
        %v3758 = vadd.f32 0.0, %v3757
        %3759 = vmatprep.mubr.bf16.mxu0 0
        %3760 = vmatmul.mubr.bf16.gmra.mrb[0].mxu0 %v3607
        %v3761 = vpop.f32.mrb[0].mxu0
        %v3762 = vadd.f32 0.0, %v3761
        %v3763 = vpop.f32.mrb[0].mxu0
        %v3764 = vadd.f32 0.0, %v3763
        %v3765 = vpop.f32.mrb[0].mxu0
        %v3766 = vadd.f32 0.0, %v3765
        %v3767 = vpop.f32.mrb[0].mxu0
        %v3768 = vadd.f32 0.0, %v3767
        %3769 = vmatprep.mubr.bf16.mxu0 0
        %3770 = vmatmul.mubr.bf16.gmra.mrb[0].mxu0 %v3610
        %v3771 = vpop.f32.mrb[0].mxu0
        %v3772 = vadd.f32 0.0, %v3771
        %v3773 = vpop.f32.mrb[0].mxu0
        %v3774 = vadd.f32 0.0, %v3773
        %v3775 = vpop.f32.mrb[0].mxu0
        %v3776 = vadd.f32 0.0, %v3775
        %v3777 = vpop.f32.mrb[0].mxu0
        %v3778 = vadd.f32 0.0, %v3777
        %3779 = vmatprep.mubr.bf16.mxu0 0
        %3780 = vmatmul.mubr.bf16.gmra.mrb[0].mxu0 %v3613
        %v3781 = vpop.f32.mrb[0].mxu0
        %v3782 = vadd.f32 0.0, %v3781
        %v3783 = vpop.f32.mrb[0].mxu0
        %v3784 = vadd.f32 0.0, %v3783
        %v3785 = vpop.f32.mrb[0].mxu0
        %v3786 = vadd.f32 0.0, %v3785
        %v3787 = vpop.f32.mrb[0].mxu0
        %v3788 = vadd.f32 0.0, %v3787
        %3789 = vmatprep.mubr.bf16.mxu0 0
        %3790 = vmatmul.mubr.bf16.gmra.mrb[0].mxu0 %v3616
        %v3791 = vpop.f32.mrb[0].mxu0
        %v3792 = vadd.f32 0.0, %v3791
        %v3793 = vpop.f32.mrb[0].mxu0
        %v3794 = vadd.f32 0.0, %v3793
        %v3795 = vpop.f32.mrb[0].mxu0
        %v3796 = vadd.f32 0.0, %v3795
        %v3797 = vpop.f32.mrb[0].mxu0
        %v3798 = vadd.f32 0.0, %v3797
        %3799 = vmatprep.mubr.bf16.mxu0 0
        %3800 = vmatmul.mubr.bf16.gmra.mrb[0].mxu0 %v3619
        %v3801 = vpop.f32.mrb[0].mxu0
        %v3802 = vadd.f32 0.0, %v3801
        %v3803 = vpop.f32.mrb[0].mxu0
        %v3804 = vadd.f32 0.0, %v3803
        %v3805 = vpop.f32.mrb[0].mxu0
        %v3806 = vadd.f32 0.0, %v3805
        %v3807 = vpop.f32.mrb[0].mxu0
        %v3808 = vadd.f32 0.0, %v3807
        %3809 = vmatprep.mubr.bf16.mxu0 0
        %3810 = vmatmul.mubr.bf16.gmra.mrb[0].mxu0 %v3622
        %v3811 = vpop.f32.mrb[0].mxu0
        %v3812 = vadd.f32 0.0, %v3811
        %v3813 = vpop.f32.mrb[0].mxu0
        %v3814 = vadd.f32 0.0, %v3813
        %v3815 = vpop.f32.mrb[0].mxu0
        %v3816 = vadd.f32 0.0, %v3815
        %v3817 = vpop.f32.mrb[0].mxu0
        %v3818 = vadd.f32 0.0, %v3817
        %3819 = vmatprep.mubr.bf16.mxu0 0
        %3820 = vmatmul.mubr.bf16.gmra.mrb[0].mxu0 %v3625
        %v3821 = vpop.f32.mrb[0].mxu0
        %v3822 = vadd.f32 0.0, %v3821
        %v3823 = vpop.f32.mrb[0].mxu0
        %v3824 = vadd.f32 0.0, %v3823
        %v3825 = vpop.f32.mrb[0].mxu0
        %v3826 = vadd.f32 0.0, %v3825
        %v3827 = vpop.f32.mrb[0].mxu0
        %v3828 = vadd.f32 0.0, %v3827
        %3829 = vmatprep.mubr.bf16.mxu0 0
        %3830 = vmatmul.mubr.bf16.gmra.mrb[0].mxu0 %v3628
        %v3831 = vpop.f32.mrb[0].mxu0
        %v3832 = vadd.f32 0.0, %v3831
        %v3833 = vpop.f32.mrb[0].mxu0
        %v3834 = vadd.f32 0.0, %v3833
        %v3835 = vpop.f32.mrb[0].mxu0
        %v3836 = vadd.f32 0.0, %v3835
        %v3837 = vpop.f32.mrb[0].mxu0
        %v3838 = vadd.f32 0.0, %v3837
        %3839 = vmatprep.mubr.bf16.mxu0 0
        %3840 = vmatmul.mubr.bf16.gmra.mrb[0].mxu0 %v3631
        %v3841 = vpop.f32.mrb[0].mxu0
        %v3842 = vadd.f32 0.0, %v3841
        %v3843 = vpop.f32.mrb[0].mxu0
        %v3844 = vadd.f32 0.0, %v3843
        %v3845 = vpop.f32.mrb[0].mxu0
        %v3846 = vadd.f32 0.0, %v3845
        %v3847 = vpop.f32.mrb[0].mxu0
        %v3848 = vadd.f32 0.0, %v3847
        %3849 = vmatprep.mubr.bf16.mxu0 0
        %3850 = vmatmul.mubr.bf16.gmra.mrb[0].mxu0 %v3634
        %v3851 = vpop.f32.mrb[0].mxu0
        %v3852 = vadd.f32 0.0, %v3851
        %v3853 = vpop.f32.mrb[0].mxu0
        %v3854 = vadd.f32 0.0, %v3853
        %v3855 = vpop.f32.mrb[0].mxu0
        %v3856 = vadd.f32 0.0, %v3855
        %v3857 = vpop.f32.mrb[0].mxu0
        %v3858 = vadd.f32 0.0, %v3857
        %3859 = vmatprep.mubr.bf16.mxu0 0
        %3860 = vmatmul.mubr.bf16.gmra.mrb[0].mxu0 %v3637
        %v3861 = vpop.f32.mrb[0].mxu0
        %v3862 = vadd.f32 0.0, %v3861
        %v3863 = vpop.f32.mrb[0].mxu0
        %v3864 = vadd.f32 0.0, %v3863
        %v3865 = vpop.f32.mrb[0].mxu0
        %v3866 = vadd.f32 0.0, %v3865
        %v3867 = vpop.f32.mrb[0].mxu0
        %v3868 = vadd.f32 0.0, %v3867
        %3869 = vmatprep.mubr.bf16.mxu0 0
        %3870 = vmatmul.mubr.bf16.gmra.mrb[0].mxu0 %v3640
        %v3871 = vpop.f32.mrb[0].mxu0
        %v3872 = vadd.f32 0.0, %v3871
        %v3873 = vpop.f32.mrb[0].mxu0
        %v3874 = vadd.f32 0.0, %v3873
        %v3875 = vpop.f32.mrb[0].mxu0
        %v3876 = vadd.f32 0.0, %v3875
        %v3877 = vpop.f32.mrb[0].mxu0
        %v3878 = vadd.f32 0.0, %v3877
        %3879 = vmatprep.mubr.bf16.mxu0 0
        %3880 = vmatmul.mubr.bf16.gmra.mrb[0].mxu0 %v3643
        %v3881 = vpop.f32.mrb[0].mxu0
        %v3882 = vadd.f32 0.0, %v3881
        %v3883 = vpop.f32.mrb[0].mxu0
        %v3884 = vadd.f32 0.0, %v3883
        %v3885 = vpop.f32.mrb[0].mxu0
        %v3886 = vadd.f32 0.0, %v3885
        %v3887 = vpop.f32.mrb[0].mxu0
        %v3888 = vadd.f32 0.0, %v3887
        %3889 = vmatprep.mubr.bf16.mxu0 0
        %3890 = vmatmul.mubr.bf16.gmra.mrb[0].mxu0 %v3646
        %v3891 = vpop.f32.mrb[0].mxu0
        %v3892 = vadd.f32 0.0, %v3891
        %v3893 = vpop.f32.mrb[0].mxu0
        %v3894 = vadd.f32 0.0, %v3893
        %v3895 = vpop.f32.mrb[0].mxu0
        %v3896 = vadd.f32 0.0, %v3895
        %v3897 = vpop.f32.mrb[0].mxu0
        %v3898 = vadd.f32 0.0, %v3897
        %3899 = vmatprep.mubr.bf16.mxu0 0
        %3900 = vmatmul.mubr.bf16.gmra.mrb[0].mxu0 %v3649
        %v3901 = vpop.f32.mrb[0].mxu0
        %v3902 = vadd.f32 0.0, %v3901
        %v3903 = vpop.f32.mrb[0].mxu0
        %v3904 = vadd.f32 0.0, %v3903
        %v3905 = vpop.f32.mrb[0].mxu0
        %v3906 = vadd.f32 0.0, %v3905
        %v3907 = vpop.f32.mrb[0].mxu0
        %v3908 = vadd.f32 0.0, %v3907
        %3909 = vmatprep.mubr.bf16.mxu0 0
        %3910 = vmatmul.mubr.bf16.gmra.mrb[0].mxu0 %v3652
        %v3911 = vpop.f32.mrb[0].mxu0
        %v3912 = vadd.f32 0.0, %v3911
        %v3913 = vpop.f32.mrb[0].mxu0
        %v3914 = vadd.f32 0.0, %v3913
        %v3915 = vpop.f32.mrb[0].mxu0
        %v3916 = vadd.f32 0.0, %v3915
        %v3917 = vpop.f32.mrb[0].mxu0
        %v3918 = vadd.f32 0.0, %v3917
        %3919 = vmatprep.mubr.bf16.mxu0 0
        %3920 = vmatmul.mubr.bf16.gmra.mrb[0].mxu0 %v3655
        %v3921 = vpop.f32.mrb[0].mxu0
        %v3922 = vadd.f32 0.0, %v3921
        %v3923 = vpop.f32.mrb[0].mxu0
        %v3924 = vadd.f32 0.0, %v3923
        %v3925 = vpop.f32.mrb[0].mxu0
        %v3926 = vadd.f32 0.0, %v3925
        %v3927 = vpop.f32.mrb[0].mxu0
        %v3928 = vadd.f32 0.0, %v3927
        %3929 = vdwg.mxu0
        %v3930 = vpack.c.bf16 %v3696, %v3692
        %v3931 = vpack.c.bf16 %v3706, %v3702
        %v3932 = vpack.c.bf16 %v3716, %v3712
        %v3933 = vpack.c.bf16 %v3726, %v3722
        %v3934 = vpack.c.bf16 %v3736, %v3732
        %v3935 = vpack.c.bf16 %v3746, %v3742
        %v3936 = vpack.c.bf16 %v3756, %v3752
        %v3937 = vpack.c.bf16 %v3766, %v3762
        %v3938 = vpack.c.bf16 %v3776, %v3772
        %v3939 = vpack.c.bf16 %v3786, %v3782
        %v3940 = vpack.c.bf16 %v3796, %v3792
        %v3941 = vpack.c.bf16 %v3806, %v3802
        %v3942 = vpack.c.bf16 %v3816, %v3812
        %v3943 = vpack.c.bf16 %v3826, %v3822
        %v3944 = vpack.c.bf16 %v3836, %v3832
        %v3945 = vpack.c.bf16 %v3846, %v3842
        %v3946 = vpack.c.bf16 %v3856, %v3852
        %v3947 = vpack.c.bf16 %v3866, %v3862
        %v3948 = vpack.c.bf16 %v3876, %v3872
        %v3949 = vpack.c.bf16 %v3886, %v3882
        %v3950 = vpack.c.bf16 %v3896, %v3892
        %v3951 = vpack.c.bf16 %v3906, %v3902
        %v3952 = vpack.c.bf16 %v3916, %v3912
        %v3953 = vpack.c.bf16 %v3926, %v3922
        %v3954 = vpack.c.bf16 %v3698, %v3694
        %v3955 = vpack.c.bf16 %v3708, %v3704
        %v3956 = vpack.c.bf16 %v3718, %v3714
        %v3957 = vpack.c.bf16 %v3728, %v3724
        %v3958 = vpack.c.bf16 %v3738, %v3734
        %v3959 = vpack.c.bf16 %v3748, %v3744
        %v3960 = vpack.c.bf16 %v3758, %v3754
        %v3961 = vpack.c.bf16 %v3768, %v3764
        %v3962 = vpack.c.bf16 %v3778, %v3774
        %v3963 = vpack.c.bf16 %v3788, %v3784
        %v3964 = vpack.c.bf16 %v3798, %v3794
        %v3965 = vpack.c.bf16 %v3808, %v3804
        %v3966 = vpack.c.bf16 %v3818, %v3814
        %v3967 = vpack.c.bf16 %v3828, %v3824
        %v3968 = vpack.c.bf16 %v3838, %v3834
        %v3969 = vpack.c.bf16 %v3848, %v3844
        %v3970 = vpack.c.bf16 %v3858, %v3854
        %v3971 = vpack.c.bf16 %v3868, %v3864
        %v3972 = vpack.c.bf16 %v3878, %v3874
        %v3973 = vpack.c.bf16 %v3888, %v3884
        %v3974 = vpack.c.bf16 %v3898, %v3894
        %v3975 = vpack.c.bf16 %v3908, %v3904
        %v3976 = vpack.c.bf16 %v3918, %v3914
        %v3977 = vpack.c.bf16 %v3928, %v3924
        %v3978 = vmul.bf16 %v3930, %v3954
        %v3979 = vmul.bf16 %v3931, %v3955
        %v3980 = vmul.bf16 %v3932, %v3956
        %v3981 = vmul.bf16 %v3933, %v3957
        %v3982 = vmul.bf16 %v3934, %v3958
        %v3983 = vmul.bf16 %v3935, %v3959
        %v3984 = vmul.bf16 %v3936, %v3960
        %v3985 = vmul.bf16 %v3937, %v3961
        %v3986 = vmul.bf16 %v3938, %v3962
        %v3987 = vmul.bf16 %v3939, %v3963
        %v3988 = vmul.bf16 %v3940, %v3964
        %v3989 = vmul.bf16 %v3941, %v3965
        %v3990 = vmul.bf16 %v3942, %v3966
        %v3991 = vmul.bf16 %v3943, %v3967
        %v3992 = vmul.bf16 %v3944, %v3968
        %v3993 = vmul.bf16 %v3945, %v3969
        %v3994 = vmul.bf16 %v3946, %v3970
        %v3995 = vmul.bf16 %v3947, %v3971
        %v3996 = vmul.bf16 %v3948, %v3972
        %v3997 = vmul.bf16 %v3949, %v3973
        %v3998 = vmul.bf16 %v3950, %v3974
        %v3999 = vmul.bf16 %v3951, %v3975
        %v4000 = vmul.bf16 %v3952, %v3976
        %v4001 = vmul.bf16 %v3953, %v3977
        %v4002 = vunpack.c.l.bf16 %v3978
        %v4003 = vunpack.c.h.bf16 %v3978
        %v4004 = vunpack.c.l.bf16 %v3979
        %v4005 = vunpack.c.h.bf16 %v3979
        %v4006 = vunpack.c.l.bf16 %v3980
        %v4007 = vunpack.c.h.bf16 %v3980
        %v4008 = vunpack.c.l.bf16 %v3981
        %v4009 = vunpack.c.h.bf16 %v3981
        %v4010 = vunpack.c.l.bf16 %v3982
        %v4011 = vunpack.c.h.bf16 %v3982
        %v4012 = vunpack.c.l.bf16 %v3983
        %v4013 = vunpack.c.h.bf16 %v3983
        %v4014 = vunpack.c.l.bf16 %v3984
        %v4015 = vunpack.c.h.bf16 %v3984
        %v4016 = vunpack.c.l.bf16 %v3985
        %v4017 = vunpack.c.h.bf16 %v3985
        %v4018 = vunpack.c.l.bf16 %v3986
        %v4019 = vunpack.c.h.bf16 %v3986
        %v4020 = vunpack.c.l.bf16 %v3987
        %v4021 = vunpack.c.h.bf16 %v3987
        %v4022 = vunpack.c.l.bf16 %v3988
        %v4023 = vunpack.c.h.bf16 %v3988
        %v4024 = vunpack.c.l.bf16 %v3989
        %v4025 = vunpack.c.h.bf16 %v3989
        %v4026 = vunpack.c.l.bf16 %v3990
        %v4027 = vunpack.c.h.bf16 %v3990
        %v4028 = vunpack.c.l.bf16 %v3991
        %v4029 = vunpack.c.h.bf16 %v3991
        %v4030 = vunpack.c.l.bf16 %v3992
        %v4031 = vunpack.c.h.bf16 %v3992
        %v4032 = vunpack.c.l.bf16 %v3993
        %v4033 = vunpack.c.h.bf16 %v3993
        %v4034 = vunpack.c.l.bf16 %v3994
        %v4035 = vunpack.c.h.bf16 %v3994
        %v4036 = vunpack.c.l.bf16 %v3995
        %v4037 = vunpack.c.h.bf16 %v3995
        %v4038 = vunpack.c.l.bf16 %v3996
        %v4039 = vunpack.c.h.bf16 %v3996
        %v4040 = vunpack.c.l.bf16 %v3997
        %v4041 = vunpack.c.h.bf16 %v3997
        %v4042 = vunpack.c.l.bf16 %v3998
        %v4043 = vunpack.c.h.bf16 %v3998
        %v4044 = vunpack.c.l.bf16 %v3999
        %v4045 = vunpack.c.h.bf16 %v3999
        %v4046 = vunpack.c.l.bf16 %v4000
        %v4047 = vunpack.c.h.bf16 %v4000
        %v4048 = vunpack.c.l.bf16 %v4001
        %v4049 = vunpack.c.h.bf16 %v4001
        %v4050 = vadd.f32 %v4002, %v4018
        %v4051 = vadd.f32 %v4050, %v4034
        %v4052 = vadd.f32 %v4003, %v4019
        %v4053 = vadd.f32 %v4052, %v4035
        %v4054 = vadd.f32 %v4004, %v4020
        %v4055 = vadd.f32 %v4054, %v4036
        %v4056 = vadd.f32 %v4005, %v4021
        %v4057 = vadd.f32 %v4056, %v4037
        %v4058 = vadd.f32 %v4006, %v4022
        %v4059 = vadd.f32 %v4058, %v4038
        %v4060 = vadd.f32 %v4007, %v4023
        %v4061 = vadd.f32 %v4060, %v4039
        %v4062 = vadd.f32 %v4008, %v4024
        %v4063 = vadd.f32 %v4062, %v4040
        %v4064 = vadd.f32 %v4009, %v4025
        %v4065 = vadd.f32 %v4064, %v4041
        %v4066 = vadd.f32 %v4010, %v4026
        %v4067 = vadd.f32 %v4066, %v4042
        %v4068 = vadd.f32 %v4011, %v4027
        %v4069 = vadd.f32 %v4068, %v4043
        %v4070 = vadd.f32 %v4012, %v4028
        %v4071 = vadd.f32 %v4070, %v4044
        %v4072 = vadd.f32 %v4013, %v4029
        %v4073 = vadd.f32 %v4072, %v4045
        %v4074 = vadd.f32 %v4014, %v4030
        %v4075 = vadd.f32 %v4074, %v4046
        %v4076 = vadd.f32 %v4015, %v4031
        %v4077 = vadd.f32 %v4076, %v4047
        %v4078 = vadd.f32 %v4016, %v4032
        %v4079 = vadd.f32 %v4078, %v4048
        %v4080 = vadd.f32 %v4017, %v4033
        %v4081 = vadd.f32 %v4080, %v4049
        %v4082 = vpack.c.bf16 %v4053, %v4051
        %v4083 = vpack.c.bf16 %v4057, %v4055
        %v4084 = vpack.c.bf16 %v4061, %v4059
        %v4085 = vpack.c.bf16 %v4065, %v4063
        %v4086 = vpack.c.bf16 %v4069, %v4067
        %v4087 = vpack.c.bf16 %v4073, %v4071
        %v4088 = vpack.c.bf16 %v4077, %v4075
        %v4089 = vpack.c.bf16 %v4081, %v4079
        %v4090 = vunpack.c.l.bf16 %v4082
        %v4091 = vunpack.c.h.bf16 %v4082
        %v4092 = vunpack.c.l.bf16 %v4083
        %v4093 = vunpack.c.h.bf16 %v4083
        %v4094 = vunpack.c.l.bf16 %v4084
        %v4095 = vunpack.c.h.bf16 %v4084
        %v4096 = vunpack.c.l.bf16 %v4085
        %v4097 = vunpack.c.h.bf16 %v4085
        %v4098 = vunpack.c.l.bf16 %v4086
        %v4099 = vunpack.c.h.bf16 %v4086
        %v4100 = vunpack.c.l.bf16 %v4087
        %v4101 = vunpack.c.h.bf16 %v4087
        %v4102 = vunpack.c.l.bf16 %v4088
        %v4103 = vunpack.c.h.bf16 %v4088
        %v4104 = vunpack.c.l.bf16 %v4089
        %v4105 = vunpack.c.h.bf16 %v4089
        %v4106 = vmul.bf16 %v3954, %v3954
        %v4107 = vmul.bf16 %v3955, %v3955
        %v4108 = vmul.bf16 %v3956, %v3956
        %v4109 = vmul.bf16 %v3957, %v3957
        %v4110 = vmul.bf16 %v3958, %v3958
        %v4111 = vmul.bf16 %v3959, %v3959
        %v4112 = vmul.bf16 %v3960, %v3960
        %v4113 = vmul.bf16 %v3961, %v3961
        %v4114 = vmul.bf16 %v3962, %v3962
        %v4115 = vmul.bf16 %v3963, %v3963
        %v4116 = vmul.bf16 %v3964, %v3964
        %v4117 = vmul.bf16 %v3965, %v3965
        %v4118 = vmul.bf16 %v3966, %v3966
        %v4119 = vmul.bf16 %v3967, %v3967
        %v4120 = vmul.bf16 %v3968, %v3968
        %v4121 = vmul.bf16 %v3969, %v3969
        %v4122 = vmul.bf16 %v3970, %v3970
        %v4123 = vmul.bf16 %v3971, %v3971
        %v4124 = vmul.bf16 %v3972, %v3972
        %v4125 = vmul.bf16 %v3973, %v3973
        %v4126 = vmul.bf16 %v3974, %v3974
        %v4127 = vmul.bf16 %v3975, %v3975
        %v4128 = vmul.bf16 %v3976, %v3976
        %v4129 = vmul.bf16 %v3977, %v3977
        %v4130 = vunpack.c.l.bf16 %v4106
        %v4131 = vunpack.c.h.bf16 %v4106
        %v4132 = vunpack.c.l.bf16 %v4107
        %v4133 = vunpack.c.h.bf16 %v4107
        %v4134 = vunpack.c.l.bf16 %v4108
        %v4135 = vunpack.c.h.bf16 %v4108
        %v4136 = vunpack.c.l.bf16 %v4109
        %v4137 = vunpack.c.h.bf16 %v4109
        %v4138 = vunpack.c.l.bf16 %v4110
        %v4139 = vunpack.c.h.bf16 %v4110
        %v4140 = vunpack.c.l.bf16 %v4111
        %v4141 = vunpack.c.h.bf16 %v4111
        %v4142 = vunpack.c.l.bf16 %v4112
        %v4143 = vunpack.c.h.bf16 %v4112
        %v4144 = vunpack.c.l.bf16 %v4113
        %v4145 = vunpack.c.h.bf16 %v4113
        %v4146 = vunpack.c.l.bf16 %v4114
        %v4147 = vunpack.c.h.bf16 %v4114
        %v4148 = vunpack.c.l.bf16 %v4115
        %v4149 = vunpack.c.h.bf16 %v4115
        %v4150 = vunpack.c.l.bf16 %v4116
        %v4151 = vunpack.c.h.bf16 %v4116
        %v4152 = vunpack.c.l.bf16 %v4117
        %v4153 = vunpack.c.h.bf16 %v4117
        %v4154 = vunpack.c.l.bf16 %v4118
        %v4155 = vunpack.c.h.bf16 %v4118
        %v4156 = vunpack.c.l.bf16 %v4119
        %v4157 = vunpack.c.h.bf16 %v4119
        %v4158 = vunpack.c.l.bf16 %v4120
        %v4159 = vunpack.c.h.bf16 %v4120
        %v4160 = vunpack.c.l.bf16 %v4121
        %v4161 = vunpack.c.h.bf16 %v4121
        %v4162 = vunpack.c.l.bf16 %v4122
        %v4163 = vunpack.c.h.bf16 %v4122
        %v4164 = vunpack.c.l.bf16 %v4123
        %v4165 = vunpack.c.h.bf16 %v4123
        %v4166 = vunpack.c.l.bf16 %v4124
        %v4167 = vunpack.c.h.bf16 %v4124
        %v4168 = vunpack.c.l.bf16 %v4125
        %v4169 = vunpack.c.h.bf16 %v4125
        %v4170 = vunpack.c.l.bf16 %v4126
        %v4171 = vunpack.c.h.bf16 %v4126
        %v4172 = vunpack.c.l.bf16 %v4127
        %v4173 = vunpack.c.h.bf16 %v4127
        %v4174 = vunpack.c.l.bf16 %v4128
        %v4175 = vunpack.c.h.bf16 %v4128
        %v4176 = vunpack.c.l.bf16 %v4129
        %v4177 = vunpack.c.h.bf16 %v4129
        %v4178 = vadd.f32 %v4130, %v4146
        %v4179 = vadd.f32 %v4178, %v4162
        %v4180 = vadd.f32 %v4131, %v4147
        %v4181 = vadd.f32 %v4180, %v4163
        %v4182 = vadd.f32 %v4132, %v4148
        %v4183 = vadd.f32 %v4182, %v4164
        %v4184 = vadd.f32 %v4133, %v4149
        %v4185 = vadd.f32 %v4184, %v4165
        %v4186 = vadd.f32 %v4134, %v4150
        %v4187 = vadd.f32 %v4186, %v4166
        %v4188 = vadd.f32 %v4135, %v4151
        %v4189 = vadd.f32 %v4188, %v4167
        %v4190 = vadd.f32 %v4136, %v4152
        %v4191 = vadd.f32 %v4190, %v4168
        %v4192 = vadd.f32 %v4137, %v4153
        %v4193 = vadd.f32 %v4192, %v4169
        %v4194 = vadd.f32 %v4138, %v4154
        %v4195 = vadd.f32 %v4194, %v4170
        %v4196 = vadd.f32 %v4139, %v4155
        %v4197 = vadd.f32 %v4196, %v4171
        %v4198 = vadd.f32 %v4140, %v4156
        %v4199 = vadd.f32 %v4198, %v4172
        %v4200 = vadd.f32 %v4141, %v4157
        %v4201 = vadd.f32 %v4200, %v4173
        %v4202 = vadd.f32 %v4142, %v4158
        %v4203 = vadd.f32 %v4202, %v4174
        %v4204 = vadd.f32 %v4143, %v4159
        %v4205 = vadd.f32 %v4204, %v4175
        %v4206 = vadd.f32 %v4144, %v4160
        %v4207 = vadd.f32 %v4206, %v4176
        %v4208 = vadd.f32 %v4145, %v4161
        %v4209 = vadd.f32 %v4208, %v4177
        %v4210 = vpack.c.bf16 %v4181, %v4179
        %v4211 = vpack.c.bf16 %v4185, %v4183
        %v4212 = vpack.c.bf16 %v4189, %v4187
        %v4213 = vpack.c.bf16 %v4193, %v4191
        %v4214 = vpack.c.bf16 %v4197, %v4195
        %v4215 = vpack.c.bf16 %v4201, %v4199
        %v4216 = vpack.c.bf16 %v4205, %v4203
        %v4217 = vpack.c.bf16 %v4209, %v4207
        %v4218 = vunpack.c.l.bf16 %v4210
        %v4219 = vunpack.c.h.bf16 %v4210
        %v4220 = vunpack.c.l.bf16 %v4211
        %v4221 = vunpack.c.h.bf16 %v4211
        %v4222 = vunpack.c.l.bf16 %v4212
        %v4223 = vunpack.c.h.bf16 %v4212
        %v4224 = vunpack.c.l.bf16 %v4213
        %v4225 = vunpack.c.h.bf16 %v4213
        %v4226 = vunpack.c.l.bf16 %v4214
        %v4227 = vunpack.c.h.bf16 %v4214
        %v4228 = vunpack.c.l.bf16 %v4215
        %v4229 = vunpack.c.h.bf16 %v4215
        %v4230 = vunpack.c.l.bf16 %v4216
        %v4231 = vunpack.c.h.bf16 %v4216
        %v4232 = vunpack.c.l.bf16 %v4217
        %v4233 = vunpack.c.h.bf16 %v4217
        %v4234 = vadd.f32 %v4218, 1e-06
        %v4235 = vadd.f32 %v4219, 1e-06
        %v4236 = vadd.f32 %v4220, 1e-06
        %v4237 = vadd.f32 %v4221, 1e-06
        %v4238 = vadd.f32 %v4222, 1e-06
        %v4239 = vadd.f32 %v4223, 1e-06
        %v4240 = vadd.f32 %v4224, 1e-06
        %v4241 = vadd.f32 %v4225, 1e-06
        %v4242 = vadd.f32 %v4226, 1e-06
        %v4243 = vadd.f32 %v4227, 1e-06
        %v4244 = vadd.f32 %v4228, 1e-06
        %v4245 = vadd.f32 %v4229, 1e-06
        %v4246 = vadd.f32 %v4230, 1e-06
        %v4247 = vadd.f32 %v4231, 1e-06
        %v4248 = vadd.f32 %v4232, 1e-06
        %v4249 = vadd.f32 %v4233, 1e-06
        %v4250 = vrcp.pop %v4234
        %v4251 = vmul.f32 %v4090, %v4250
        %v4252 = vrcp.pop %v4235
        %v4253 = vmul.f32 %v4091, %v4252
        %v4254 = vrcp.pop %v4236
        %v4255 = vmul.f32 %v4092, %v4254
        %v4256 = vrcp.pop %v4237
        %v4257 = vmul.f32 %v4093, %v4256
        %v4258 = vrcp.pop %v4238
        %v4259 = vmul.f32 %v4094, %v4258
        %v4260 = vrcp.pop %v4239
        %v4261 = vmul.f32 %v4095, %v4260
        %v4262 = vrcp.pop %v4240
        %v4263 = vmul.f32 %v4096, %v4262
        %v4264 = vrcp.pop %v4241
        %v4265 = vmul.f32 %v4097, %v4264
        %v4266 = vrcp.pop %v4242
        %v4267 = vmul.f32 %v4098, %v4266
        %v4268 = vrcp.pop %v4243
        %v4269 = vmul.f32 %v4099, %v4268
        %v4270 = vrcp.pop %v4244
        %v4271 = vmul.f32 %v4100, %v4270
        %v4272 = vrcp.pop %v4245
        %v4273 = vmul.f32 %v4101, %v4272
        %v4274 = vrcp.pop %v4246
        %v4275 = vmul.f32 %v4102, %v4274
        %v4276 = vrcp.pop %v4247
        %v4277 = vmul.f32 %v4103, %v4276
        %v4278 = vrcp.pop %v4248
        %v4279 = vmul.f32 %v4104, %v4278
        %v4280 = vrcp.pop %v4249
        %v4281 = vmul.f32 %v4105, %v4280
        %v4282 = vmin.f32 %v4251, 0.0
        %v4283 = vmin.f32 %v4253, 0.0
        %v4284 = vmin.f32 %v4255, 0.0
        %v4285 = vmin.f32 %v4257, 0.0
        %v4286 = vmin.f32 %v4259, 0.0
        %v4287 = vmin.f32 %v4261, 0.0
        %v4288 = vmin.f32 %v4263, 0.0
        %v4289 = vmin.f32 %v4265, 0.0
        %v4290 = vmin.f32 %v4267, 0.0
        %v4291 = vmin.f32 %v4269, 0.0
        %v4292 = vmin.f32 %v4271, 0.0
        %v4293 = vmin.f32 %v4273, 0.0
        %v4294 = vmin.f32 %v4275, 0.0
        %v4295 = vmin.f32 %v4277, 0.0
        %v4296 = vmin.f32 %v4279, 0.0
        %v4297 = vmin.f32 %v4281, 0.0
        %v4298 = vpack.c.bf16 %v4283, %v4282
        %v4299 = vpack.c.bf16 %v4285, %v4284
        %v4300 = vpack.c.bf16 %v4287, %v4286
        %v4301 = vpack.c.bf16 %v4289, %v4288
        %v4302 = vpack.c.bf16 %v4291, %v4290
        %v4303 = vpack.c.bf16 %v4293, %v4292
        %v4304 = vpack.c.bf16 %v4295, %v4294
        %v4305 = vpack.c.bf16 %v4297, %v4296
        %v4306 = vmul.bf16 %v4298, %v3954
        %v4307 = vmul.bf16 %v4299, %v3955
        %v4308 = vmul.bf16 %v4300, %v3956
        %v4309 = vmul.bf16 %v4301, %v3957
        %v4310 = vmul.bf16 %v4302, %v3958
        %v4311 = vmul.bf16 %v4303, %v3959
        %v4312 = vmul.bf16 %v4304, %v3960
        %v4313 = vmul.bf16 %v4305, %v3961
        %v4314 = vmul.bf16 %v4298, %v3962
        %v4315 = vmul.bf16 %v4299, %v3963
        %v4316 = vmul.bf16 %v4300, %v3964
        %v4317 = vmul.bf16 %v4301, %v3965
        %v4318 = vmul.bf16 %v4302, %v3966
        %v4319 = vmul.bf16 %v4303, %v3967
        %v4320 = vmul.bf16 %v4304, %v3968
        %v4321 = vmul.bf16 %v4305, %v3969
        %v4322 = vmul.bf16 %v4298, %v3970
        %v4323 = vmul.bf16 %v4299, %v3971
        %v4324 = vmul.bf16 %v4300, %v3972
        %v4325 = vmul.bf16 %v4301, %v3973
        %v4326 = vmul.bf16 %v4302, %v3974
        %v4327 = vmul.bf16 %v4303, %v3975
        %v4328 = vmul.bf16 %v4304, %v3976
        %v4329 = vmul.bf16 %v4305, %v3977
        %v4330 = vsub.bf16 %v3930, %v4306
        %v4331 = vsub.bf16 %v3931, %v4307
        %v4332 = vsub.bf16 %v3932, %v4308
        %v4333 = vsub.bf16 %v3933, %v4309
        %v4334 = vsub.bf16 %v3934, %v4310
        %v4335 = vsub.bf16 %v3935, %v4311
        %v4336 = vsub.bf16 %v3936, %v4312
        %v4337 = vsub.bf16 %v3937, %v4313
        %v4338 = vsub.bf16 %v3938, %v4314
        %v4339 = vsub.bf16 %v3939, %v4315
        %v4340 = vsub.bf16 %v3940, %v4316
        %v4341 = vsub.bf16 %v3941, %v4317
        %v4342 = vsub.bf16 %v3942, %v4318
        %v4343 = vsub.bf16 %v3943, %v4319
        %v4344 = vsub.bf16 %v3944, %v4320
        %v4345 = vsub.bf16 %v3945, %v4321
        %v4346 = vsub.bf16 %v3946, %v4322
        %v4347 = vsub.bf16 %v3947, %v4323
        %v4348 = vsub.bf16 %v3948, %v4324
        %v4349 = vsub.bf16 %v3949, %v4325
        %v4350 = vsub.bf16 %v3950, %v4326
        %v4351 = vsub.bf16 %v3951, %v4327
        %v4352 = vsub.bf16 %v3952, %v4328
        %v4353 = vsub.bf16 %v3953, %v4329
        %v4354 = vld [vmem:[#allocation11] sm:$0xff]
        %v4355 = vld [vmem:[#allocation11 + $0x8] sm:$0xff]
        %v4356 = vld [vmem:[#allocation11 + $0x10] sm:$0xff]
        %v4357 = vld [vmem:[#allocation11 + $0x18] sm:$0xff]
        %v4358 = vld [vmem:[#allocation11 + $0x20] sm:$0xff]
        %v4359 = vld [vmem:[#allocation11 + $0x28] sm:$0xff]
        %v4360 = vld [vmem:[#allocation11 + $0x30] sm:$0xff]
        %v4361 = vld [vmem:[#allocation11 + $0x38] sm:$0xff]
        %v4362 = vld [vmem:[#allocation11 + $0x40] sm:$0xff]
        %v4363 = vld [vmem:[#allocation11 + $0x48] sm:$0xff]
        %v4364 = vld [vmem:[#allocation11 + $0x50] sm:$0xff]
        %v4365 = vld [vmem:[#allocation11 + $0x58] sm:$0xff]
        %v4366 = vld [vmem:[#allocation11 + $0x60] sm:$0xff]
        %v4367 = vld [vmem:[#allocation11 + $0x68] sm:$0xff]
        %v4368 = vld [vmem:[#allocation11 + $0x70] sm:$0xff]
        %v4369 = vld [vmem:[#allocation11 + $0x78] sm:$0xff]
        %v4370 = vld [vmem:[#allocation11 + $0x80] sm:$0xff]
        %v4371 = vld [vmem:[#allocation11 + $0x88] sm:$0xff]
        %v4372 = vld [vmem:[#allocation11 + $0x90] sm:$0xff]
        %v4373 = vld [vmem:[#allocation11 + $0x98] sm:$0xff]
        %v4374 = vld [vmem:[#allocation11 + $0xa0] sm:$0xff]
        %v4375 = vld [vmem:[#allocation11 + $0xa8] sm:$0xff]
        %v4376 = vld [vmem:[#allocation11 + $0xb0] sm:$0xff]
        %v4377 = vld [vmem:[#allocation11 + $0xb8] sm:$0xff]
        %v4378 = vld [vmem:[#allocation11 + $0xc0] sm:$0xff]
        %v4379 = vld [vmem:[#allocation11 + $0xc8] sm:$0xff]
        %v4380 = vld [vmem:[#allocation11 + $0xd0] sm:$0xff]
        %v4381 = vld [vmem:[#allocation11 + $0xd8] sm:$0xff]
        %v4382 = vld [vmem:[#allocation11 + $0xe0] sm:$0xff]
        %v4383 = vld [vmem:[#allocation11 + $0xe8] sm:$0xff]
        %v4384 = vld [vmem:[#allocation11 + $0xf0] sm:$0xff]
        %v4385 = vld [vmem:[#allocation11 + $0xf8] sm:$0xff]
        %v4386 = vld [vmem:[#allocation11 + $0x100] sm:$0xff]
        %v4387 = vld [vmem:[#allocation11 + $0x108] sm:$0xff]
        %v4388 = vld [vmem:[#allocation11 + $0x110] sm:$0xff]
        %v4389 = vld [vmem:[#allocation11 + $0x118] sm:$0xff]
        %v4390 = vld [vmem:[#allocation11 + $0x120] sm:$0xff]
        %v4391 = vld [vmem:[#allocation11 + $0x128] sm:$0xff]
        %v4392 = vld [vmem:[#allocation11 + $0x130] sm:$0xff]
        %v4393 = vld [vmem:[#allocation11 + $0x138] sm:$0xff]
        %v4394 = vld [vmem:[#allocation11 + $0x140] sm:$0xff]
        %v4395 = vld [vmem:[#allocation11 + $0x148] sm:$0xff]
        %v4396 = vld [vmem:[#allocation11 + $0x150] sm:$0xff]
        %v4397 = vld [vmem:[#allocation11 + $0x158] sm:$0xff]
        %v4398 = vld [vmem:[#allocation11 + $0x160] sm:$0xff]
        %v4399 = vld [vmem:[#allocation11 + $0x168] sm:$0xff]
        %v4400 = vld [vmem:[#allocation11 + $0x170] sm:$0xff]
        %v4401 = vld [vmem:[#allocation11 + $0x178] sm:$0xff]
        %v4402 = vld [vmem:[#allocation11 + $0x180] sm:$0xff]
        %v4403 = vld [vmem:[#allocation11 + $0x188] sm:$0xff]
        %v4404 = vld [vmem:[#allocation11 + $0x190] sm:$0xff]
        %v4405 = vld [vmem:[#allocation11 + $0x198] sm:$0xff]
        %v4406 = vld [vmem:[#allocation11 + $0x1a0] sm:$0xff]
        %v4407 = vld [vmem:[#allocation11 + $0x1a8] sm:$0xff]
        %v4408 = vld [vmem:[#allocation11 + $0x1b0] sm:$0xff]
        %v4409 = vld [vmem:[#allocation11 + $0x1b8] sm:$0xff]
        %v4410 = vld [vmem:[#allocation11 + $0x1c0] sm:$0xff]
        %v4411 = vld [vmem:[#allocation11 + $0x1c8] sm:$0xff]
        %v4412 = vld [vmem:[#allocation11 + $0x1d0] sm:$0xff]
        %v4413 = vld [vmem:[#allocation11 + $0x1d8] sm:$0xff]
        %v4414 = vld [vmem:[#allocation11 + $0x1e0] sm:$0xff]
        %v4415 = vld [vmem:[#allocation11 + $0x1e8] sm:$0xff]
        %v4416 = vld [vmem:[#allocation11 + $0x1f0] sm:$0xff]
        %v4417 = vld [vmem:[#allocation11 + $0x1f8] sm:$0xff]
        %v4482 = vunpack.c.l.b16 %v4354
        %v4483 = vunpack.c.h.b16 %v4354
        %v4484 = vunpack.c.l.b16 %v4355
        %v4485 = vunpack.c.h.b16 %v4355
        %v4486 = vunpack.c.l.b16 %v4356
        %v4487 = vunpack.c.h.b16 %v4356
        %v4488 = vunpack.c.l.b16 %v4357
        %v4489 = vunpack.c.h.b16 %v4357
        %v4490 = vunpack.c.l.b16 %v4358
        %v4491 = vunpack.c.h.b16 %v4358
        %v4492 = vunpack.c.l.b16 %v4359
        %v4493 = vunpack.c.h.b16 %v4359
        %v4494 = vunpack.c.l.b16 %v4360
        %v4495 = vunpack.c.h.b16 %v4360
        %v4496 = vunpack.c.l.b16 %v4361
        %v4497 = vunpack.c.h.b16 %v4361
        %v4498 = vunpack.c.l.b16 %v4362
        %v4499 = vunpack.c.h.b16 %v4362
        %v4500 = vunpack.c.l.b16 %v4363
        %v4501 = vunpack.c.h.b16 %v4363
        %v4502 = vunpack.c.l.b16 %v4364
        %v4503 = vunpack.c.h.b16 %v4364
        %v4504 = vunpack.c.l.b16 %v4365
        %v4505 = vunpack.c.h.b16 %v4365
        %v4506 = vunpack.c.l.b16 %v4366
        %v4507 = vunpack.c.h.b16 %v4366
        %v4508 = vunpack.c.l.b16 %v4367
        %v4509 = vunpack.c.h.b16 %v4367
        %v4510 = vunpack.c.l.b16 %v4368
        %v4511 = vunpack.c.h.b16 %v4368
        %v4512 = vunpack.c.l.b16 %v4369
        %v4513 = vunpack.c.h.b16 %v4369
        %v4514 = vunpack.c.l.b16 %v4370
        %v4515 = vunpack.c.h.b16 %v4370
        %v4516 = vunpack.c.l.b16 %v4371
        %v4517 = vunpack.c.h.b16 %v4371
        %v4518 = vunpack.c.l.b16 %v4372
        %v4519 = vunpack.c.h.b16 %v4372
        %v4520 = vunpack.c.l.b16 %v4373
        %v4521 = vunpack.c.h.b16 %v4373
        %v4522 = vunpack.c.l.b16 %v4374
        %v4523 = vunpack.c.h.b16 %v4374
        %v4524 = vunpack.c.l.b16 %v4375
        %v4525 = vunpack.c.h.b16 %v4375
        %v4526 = vunpack.c.l.b16 %v4376
        %v4527 = vunpack.c.h.b16 %v4376
        %v4528 = vunpack.c.l.b16 %v4377
        %v4529 = vunpack.c.h.b16 %v4377
        %v4530 = vunpack.c.l.b16 %v4378
        %v4531 = vunpack.c.h.b16 %v4378
        %v4532 = vunpack.c.l.b16 %v4379
        %v4533 = vunpack.c.h.b16 %v4379
        %v4534 = vunpack.c.l.b16 %v4380
        %v4535 = vunpack.c.h.b16 %v4380
        %v4536 = vunpack.c.l.b16 %v4381
        %v4537 = vunpack.c.h.b16 %v4381
        %v4538 = vunpack.c.l.b16 %v4382
        %v4539 = vunpack.c.h.b16 %v4382
        %v4540 = vunpack.c.l.b16 %v4383
        %v4541 = vunpack.c.h.b16 %v4383
        %v4542 = vunpack.c.l.b16 %v4384
        %v4543 = vunpack.c.h.b16 %v4384
        %v4544 = vunpack.c.l.b16 %v4385
        %v4545 = vunpack.c.h.b16 %v4385
        %v4546 = vunpack.c.l.b16 %v4386
        %v4547 = vunpack.c.h.b16 %v4386
        %v4548 = vunpack.c.l.b16 %v4387
        %v4549 = vunpack.c.h.b16 %v4387
        %v4550 = vunpack.c.l.b16 %v4388
        %v4551 = vunpack.c.h.b16 %v4388
        %v4552 = vunpack.c.l.b16 %v4389
        %v4553 = vunpack.c.h.b16 %v4389
        %v4554 = vunpack.c.l.b16 %v4390
        %v4555 = vunpack.c.h.b16 %v4390
        %v4556 = vunpack.c.l.b16 %v4391
        %v4557 = vunpack.c.h.b16 %v4391
        %v4558 = vunpack.c.l.b16 %v4392
        %v4559 = vunpack.c.h.b16 %v4392
        %v4560 = vunpack.c.l.b16 %v4393
        %v4561 = vunpack.c.h.b16 %v4393
        %v4562 = vunpack.c.l.b16 %v4394
        %v4563 = vunpack.c.h.b16 %v4394
        %v4564 = vunpack.c.l.b16 %v4395
        %v4565 = vunpack.c.h.b16 %v4395
        %v4566 = vunpack.c.l.b16 %v4396
        %v4567 = vunpack.c.h.b16 %v4396
        %v4568 = vunpack.c.l.b16 %v4397
        %v4569 = vunpack.c.h.b16 %v4397
        %v4570 = vunpack.c.l.b16 %v4398
        %v4571 = vunpack.c.h.b16 %v4398
        %v4572 = vunpack.c.l.b16 %v4399
        %v4573 = vunpack.c.h.b16 %v4399
        %v4574 = vunpack.c.l.b16 %v4400
        %v4575 = vunpack.c.h.b16 %v4400
        %v4576 = vunpack.c.l.b16 %v4401
        %v4577 = vunpack.c.h.b16 %v4401
        %v4578 = vunpack.c.l.b16 %v4402
        %v4579 = vunpack.c.h.b16 %v4402
        %v4580 = vunpack.c.l.b16 %v4403
        %v4581 = vunpack.c.h.b16 %v4403
        %v4582 = vunpack.c.l.b16 %v4404
        %v4583 = vunpack.c.h.b16 %v4404
        %v4584 = vunpack.c.l.b16 %v4405
        %v4585 = vunpack.c.h.b16 %v4405
        %v4586 = vunpack.c.l.b16 %v4406
        %v4587 = vunpack.c.h.b16 %v4406
        %v4588 = vunpack.c.l.b16 %v4407
        %v4589 = vunpack.c.h.b16 %v4407
        %v4590 = vunpack.c.l.b16 %v4408
        %v4591 = vunpack.c.h.b16 %v4408
        %v4592 = vunpack.c.l.b16 %v4409
        %v4593 = vunpack.c.h.b16 %v4409
        %v4594 = vunpack.c.l.b16 %v4410
        %v4595 = vunpack.c.h.b16 %v4410
        %v4596 = vunpack.c.l.b16 %v4411
        %v4597 = vunpack.c.h.b16 %v4411
        %v4598 = vunpack.c.l.b16 %v4412
        %v4599 = vunpack.c.h.b16 %v4412
        %v4600 = vunpack.c.l.b16 %v4413
        %v4601 = vunpack.c.h.b16 %v4413
        %v4602 = vunpack.c.l.b16 %v4414
        %v4603 = vunpack.c.h.b16 %v4414
        %v4604 = vunpack.c.l.b16 %v4415
        %v4605 = vunpack.c.h.b16 %v4415
        %v4606 = vunpack.c.l.b16 %v4416
        %v4607 = vunpack.c.h.b16 %v4416
        %v4608 = vunpack.c.l.b16 %v4417
        %v4609 = vunpack.c.h.b16 %v4417
        %v4610 = vpack.c.b16 %v4490, %v4482
        %v4611 = vpack.c.b16 %v4491, %v4483
        %v4612 = vpack.c.b16 %v4492, %v4484
        %v4613 = vpack.c.b16 %v4493, %v4485
        %v4614 = vpack.c.b16 %v4494, %v4486
        %v4615 = vpack.c.b16 %v4495, %v4487
        %v4616 = vpack.c.b16 %v4496, %v4488
        %v4617 = vpack.c.b16 %v4497, %v4489
        %v4618 = vpack.c.b16 %v4506, %v4498
        %v4619 = vpack.c.b16 %v4507, %v4499
        %v4620 = vpack.c.b16 %v4508, %v4500
        %v4621 = vpack.c.b16 %v4509, %v4501
        %v4622 = vpack.c.b16 %v4510, %v4502
        %v4623 = vpack.c.b16 %v4511, %v4503
        %v4624 = vpack.c.b16 %v4512, %v4504
        %v4625 = vpack.c.b16 %v4513, %v4505
        %v4626 = vpack.c.b16 %v4522, %v4514
        %v4627 = vpack.c.b16 %v4523, %v4515
        %v4628 = vpack.c.b16 %v4524, %v4516
        %v4629 = vpack.c.b16 %v4525, %v4517
        %v4630 = vpack.c.b16 %v4526, %v4518
        %v4631 = vpack.c.b16 %v4527, %v4519
        %v4632 = vpack.c.b16 %v4528, %v4520
        %v4633 = vpack.c.b16 %v4529, %v4521
        %v4634 = vpack.c.b16 %v4538, %v4530
        %v4635 = vpack.c.b16 %v4539, %v4531
        %v4636 = vpack.c.b16 %v4540, %v4532
        %v4637 = vpack.c.b16 %v4541, %v4533
        %v4638 = vpack.c.b16 %v4542, %v4534
        %v4639 = vpack.c.b16 %v4543, %v4535
        %v4640 = vpack.c.b16 %v4544, %v4536
        %v4641 = vpack.c.b16 %v4545, %v4537
        %v4642 = vpack.c.b16 %v4554, %v4546
        %v4643 = vpack.c.b16 %v4555, %v4547
        %v4644 = vpack.c.b16 %v4556, %v4548
        %v4645 = vpack.c.b16 %v4557, %v4549
        %v4646 = vpack.c.b16 %v4558, %v4550
        %v4647 = vpack.c.b16 %v4559, %v4551
        %v4648 = vpack.c.b16 %v4560, %v4552
        %v4649 = vpack.c.b16 %v4561, %v4553
        %v4650 = vpack.c.b16 %v4570, %v4562
        %v4651 = vpack.c.b16 %v4571, %v4563
        %v4652 = vpack.c.b16 %v4572, %v4564
        %v4653 = vpack.c.b16 %v4573, %v4565
        %v4654 = vpack.c.b16 %v4574, %v4566
        %v4655 = vpack.c.b16 %v4575, %v4567
        %v4656 = vpack.c.b16 %v4576, %v4568
        %v4657 = vpack.c.b16 %v4577, %v4569
        %v4658 = vpack.c.b16 %v4586, %v4578
        %v4659 = vpack.c.b16 %v4587, %v4579
        %v4660 = vpack.c.b16 %v4588, %v4580
        %v4661 = vpack.c.b16 %v4589, %v4581
        %v4662 = vpack.c.b16 %v4590, %v4582
        %v4663 = vpack.c.b16 %v4591, %v4583
        %v4664 = vpack.c.b16 %v4592, %v4584
        %v4665 = vpack.c.b16 %v4593, %v4585
        %v4666 = vpack.c.b16 %v4602, %v4594
        %v4667 = vpack.c.b16 %v4603, %v4595
        %v4668 = vpack.c.b16 %v4604, %v4596
        %v4669 = vpack.c.b16 %v4605, %v4597
        %v4670 = vpack.c.b16 %v4606, %v4598
        %v4671 = vpack.c.b16 %v4607, %v4599
        %v4672 = vpack.c.b16 %v4608, %v4600
        %v4673 = vpack.c.b16 %v4609, %v4601
        %4738 = vmatprep.subr.bf16.mxu0 %v4611
        %4739 = vmatpush1.bf16.msra.mxu0 %v4610
        %4740 = vmatprep.subr.bf16.mxu0 %v4619
        %4741 = vmatpush1.bf16.msra.mxu0 %v4618
        %4742 = vmatprep.subr.bf16.mxu0 %v4627
        %4743 = vmatpush1.bf16.msra.mxu0 %v4626
        %4744 = vmatprep.subr.bf16.mxu0 %v4635
        %4745 = vmatpush1.bf16.msra.mxu0 %v4634
        %4746 = vmatprep.subr.bf16.mxu0 %v4643
        %4747 = vmatpush1.bf16.msra.mxu0 %v4642
        %4748 = vmatprep.subr.bf16.mxu0 %v4651
        %4749 = vmatpush1.bf16.msra.mxu0 %v4650
        %4750 = vmatprep.subr.bf16.mxu0 %v4659
        %4751 = vmatpush1.bf16.msra.mxu0 %v4658
        %4752 = vmatprep.subr.bf16.mxu0 %v4667
        %4753 = vmatpush1.bf16.msra.mxu0 %v4666
        %4754 = vmatprep.subr.bf16.mxu0 0
        %4755 = vmatpush1.bf16.msra.mxu0 0
        %4756 = vmatprep.subr.bf16.mxu0 0
        %4757 = vmatpush1.bf16.msra.mxu0 0
        %4758 = vmatprep.subr.bf16.mxu0 0
        %4759 = vmatpush1.bf16.msra.mxu0 0
        %4760 = vmatprep.subr.bf16.mxu0 0
        %4761 = vmatpush1.bf16.msra.mxu0 0
        %4762 = vmatprep.subr.bf16.mxu0 0
        %4763 = vmatpush1.bf16.msra.mxu0 0
        %4764 = vmatprep.subr.bf16.mxu0 0
        %4765 = vmatpush1.bf16.msra.mxu0 0
        %4766 = vmatprep.subr.bf16.mxu0 0
        %4767 = vmatpush1.bf16.msra.mxu0 0
        %4768 = vmatprep.subr.bf16.mxu0 0
        %4769 = vmatpush1.bf16.msra.mxu0 0
        %4770 = vmatprep.mubr.bf16.mxu0 0
        %4771 = vmatmul.mubr.bf16.gmra.mrb[0].mxu0 %v4330
        %v4772 = vpop.f32.mrb[0].mxu0
        %v4773 = vadd.f32 0.0, %v4772
        %v4774 = vpop.f32.mrb[0].mxu0
        %v4775 = vadd.f32 0.0, %v4774
        %v4776 = vpop.f32.mrb[0].mxu0
        %v4777 = vadd.f32 0.0, %v4776
        %v4778 = vpop.f32.mrb[0].mxu0
        %v4779 = vadd.f32 0.0, %v4778
        %4780 = vmatprep.mubr.bf16.mxu0 0
        %4781 = vmatmul.mubr.bf16.gmra.mrb[0].mxu0 %v4331
        %v4782 = vpop.f32.mrb[0].mxu0
        %v4783 = vadd.f32 0.0, %v4782
        %v4784 = vpop.f32.mrb[0].mxu0
        %v4785 = vadd.f32 0.0, %v4784
        %v4786 = vpop.f32.mrb[0].mxu0
        %v4787 = vadd.f32 0.0, %v4786
        %v4788 = vpop.f32.mrb[0].mxu0
        %v4789 = vadd.f32 0.0, %v4788
        %4790 = vmatprep.mubr.bf16.mxu0 0
        %4791 = vmatmul.mubr.bf16.gmra.mrb[0].mxu0 %v4332
        %v4792 = vpop.f32.mrb[0].mxu0
        %v4793 = vadd.f32 0.0, %v4792
        %v4794 = vpop.f32.mrb[0].mxu0
        %v4795 = vadd.f32 0.0, %v4794
        %v4796 = vpop.f32.mrb[0].mxu0
        %v4797 = vadd.f32 0.0, %v4796
        %v4798 = vpop.f32.mrb[0].mxu0
        %v4799 = vadd.f32 0.0, %v4798
        %4800 = vmatprep.mubr.bf16.mxu0 0
        %4801 = vmatmul.mubr.bf16.gmra.mrb[0].mxu0 %v4333
        %v4802 = vpop.f32.mrb[0].mxu0
        %v4803 = vadd.f32 0.0, %v4802
        %v4804 = vpop.f32.mrb[0].mxu0
        %v4805 = vadd.f32 0.0, %v4804
        %v4806 = vpop.f32.mrb[0].mxu0
        %v4807 = vadd.f32 0.0, %v4806
        %v4808 = vpop.f32.mrb[0].mxu0
        %v4809 = vadd.f32 0.0, %v4808
        %4810 = vmatprep.mubr.bf16.mxu0 0
        %4811 = vmatmul.mubr.bf16.gmra.mrb[0].mxu0 %v4334
        %v4812 = vpop.f32.mrb[0].mxu0
        %v4813 = vadd.f32 0.0, %v4812
        %v4814 = vpop.f32.mrb[0].mxu0
        %v4815 = vadd.f32 0.0, %v4814
        %v4816 = vpop.f32.mrb[0].mxu0
        %v4817 = vadd.f32 0.0, %v4816
        %v4818 = vpop.f32.mrb[0].mxu0
        %v4819 = vadd.f32 0.0, %v4818
        %4820 = vmatprep.mubr.bf16.mxu0 0
        %4821 = vmatmul.mubr.bf16.gmra.mrb[0].mxu0 %v4335
        %v4822 = vpop.f32.mrb[0].mxu0
        %v4823 = vadd.f32 0.0, %v4822
        %v4824 = vpop.f32.mrb[0].mxu0
        %v4825 = vadd.f32 0.0, %v4824
        %v4826 = vpop.f32.mrb[0].mxu0
        %v4827 = vadd.f32 0.0, %v4826
        %v4828 = vpop.f32.mrb[0].mxu0
        %v4829 = vadd.f32 0.0, %v4828
        %4830 = vmatprep.mubr.bf16.mxu0 0
        %4831 = vmatmul.mubr.bf16.gmra.mrb[0].mxu0 %v4336
        %v4832 = vpop.f32.mrb[0].mxu0
        %v4833 = vadd.f32 0.0, %v4832
        %v4834 = vpop.f32.mrb[0].mxu0
        %v4835 = vadd.f32 0.0, %v4834
        %v4836 = vpop.f32.mrb[0].mxu0
        %v4837 = vadd.f32 0.0, %v4836
        %v4838 = vpop.f32.mrb[0].mxu0
        %v4839 = vadd.f32 0.0, %v4838
        %4840 = vmatprep.mubr.bf16.mxu0 0
        %4841 = vmatmul.mubr.bf16.gmra.mrb[0].mxu0 %v4337
        %v4842 = vpop.f32.mrb[0].mxu0
        %v4843 = vadd.f32 0.0, %v4842
        %v4844 = vpop.f32.mrb[0].mxu0
        %v4845 = vadd.f32 0.0, %v4844
        %v4846 = vpop.f32.mrb[0].mxu0
        %v4847 = vadd.f32 0.0, %v4846
        %v4848 = vpop.f32.mrb[0].mxu0
        %v4849 = vadd.f32 0.0, %v4848
        %4850 = vmatprep.mubr.bf16.mxu0 0
        %4851 = vmatmul.mubr.bf16.gmra.mrb[0].mxu0 %v4338
        %v4852 = vpop.f32.mrb[0].mxu0
        %v4853 = vadd.f32 0.0, %v4852
        %v4854 = vpop.f32.mrb[0].mxu0
        %v4855 = vadd.f32 0.0, %v4854
        %v4856 = vpop.f32.mrb[0].mxu0
        %v4857 = vadd.f32 0.0, %v4856
        %v4858 = vpop.f32.mrb[0].mxu0
        %v4859 = vadd.f32 0.0, %v4858
        %4860 = vmatprep.mubr.bf16.mxu0 0
        %4861 = vmatmul.mubr.bf16.gmra.mrb[0].mxu0 %v4339
        %v4862 = vpop.f32.mrb[0].mxu0
        %v4863 = vadd.f32 0.0, %v4862
        %v4864 = vpop.f32.mrb[0].mxu0
        %v4865 = vadd.f32 0.0, %v4864
        %v4866 = vpop.f32.mrb[0].mxu0
        %v4867 = vadd.f32 0.0, %v4866
        %v4868 = vpop.f32.mrb[0].mxu0
        %v4869 = vadd.f32 0.0, %v4868
        %4870 = vmatprep.mubr.bf16.mxu0 0
        %4871 = vmatmul.mubr.bf16.gmra.mrb[0].mxu0 %v4340
        %v4872 = vpop.f32.mrb[0].mxu0
        %v4873 = vadd.f32 0.0, %v4872
        %v4874 = vpop.f32.mrb[0].mxu0
        %v4875 = vadd.f32 0.0, %v4874
        %v4876 = vpop.f32.mrb[0].mxu0
        %v4877 = vadd.f32 0.0, %v4876
        %v4878 = vpop.f32.mrb[0].mxu0
        %v4879 = vadd.f32 0.0, %v4878
        %4880 = vmatprep.mubr.bf16.mxu0 0
        %4881 = vmatmul.mubr.bf16.gmra.mrb[0].mxu0 %v4341
        %v4882 = vpop.f32.mrb[0].mxu0
        %v4883 = vadd.f32 0.0, %v4882
        %v4884 = vpop.f32.mrb[0].mxu0
        %v4885 = vadd.f32 0.0, %v4884
        %v4886 = vpop.f32.mrb[0].mxu0
        %v4887 = vadd.f32 0.0, %v4886
        %v4888 = vpop.f32.mrb[0].mxu0
        %v4889 = vadd.f32 0.0, %v4888
        %4890 = vmatprep.mubr.bf16.mxu0 0
        %4891 = vmatmul.mubr.bf16.gmra.mrb[0].mxu0 %v4342
        %v4892 = vpop.f32.mrb[0].mxu0
        %v4893 = vadd.f32 0.0, %v4892
        %v4894 = vpop.f32.mrb[0].mxu0
        %v4895 = vadd.f32 0.0, %v4894
        %v4896 = vpop.f32.mrb[0].mxu0
        %v4897 = vadd.f32 0.0, %v4896
        %v4898 = vpop.f32.mrb[0].mxu0
        %v4899 = vadd.f32 0.0, %v4898
        %4900 = vmatprep.mubr.bf16.mxu0 0
        %4901 = vmatmul.mubr.bf16.gmra.mrb[0].mxu0 %v4343
        %v4902 = vpop.f32.mrb[0].mxu0
        %v4903 = vadd.f32 0.0, %v4902
        %v4904 = vpop.f32.mrb[0].mxu0
        %v4905 = vadd.f32 0.0, %v4904
        %v4906 = vpop.f32.mrb[0].mxu0
        %v4907 = vadd.f32 0.0, %v4906
        %v4908 = vpop.f32.mrb[0].mxu0
        %v4909 = vadd.f32 0.0, %v4908
        %4910 = vmatprep.mubr.bf16.mxu0 0
        %4911 = vmatmul.mubr.bf16.gmra.mrb[0].mxu0 %v4344
        %v4912 = vpop.f32.mrb[0].mxu0
        %v4913 = vadd.f32 0.0, %v4912
        %v4914 = vpop.f32.mrb[0].mxu0
        %v4915 = vadd.f32 0.0, %v4914
        %v4916 = vpop.f32.mrb[0].mxu0
        %v4917 = vadd.f32 0.0, %v4916
        %v4918 = vpop.f32.mrb[0].mxu0
        %v4919 = vadd.f32 0.0, %v4918
        %4920 = vmatprep.mubr.bf16.mxu0 0
        %4921 = vmatmul.mubr.bf16.gmra.mrb[0].mxu0 %v4345
        %v4922 = vpop.f32.mrb[0].mxu0
        %v4923 = vadd.f32 0.0, %v4922
        %v4924 = vpop.f32.mrb[0].mxu0
        %v4925 = vadd.f32 0.0, %v4924
        %v4926 = vpop.f32.mrb[0].mxu0
        %v4927 = vadd.f32 0.0, %v4926
        %v4928 = vpop.f32.mrb[0].mxu0
        %v4929 = vadd.f32 0.0, %v4928
        %4930 = vmatprep.mubr.bf16.mxu0 0
        %4931 = vmatmul.mubr.bf16.gmra.mrb[0].mxu0 %v4346
        %v4932 = vpop.f32.mrb[0].mxu0
        %v4933 = vadd.f32 0.0, %v4932
        %v4934 = vpop.f32.mrb[0].mxu0
        %v4935 = vadd.f32 0.0, %v4934
        %v4936 = vpop.f32.mrb[0].mxu0
        %v4937 = vadd.f32 0.0, %v4936
        %v4938 = vpop.f32.mrb[0].mxu0
        %v4939 = vadd.f32 0.0, %v4938
        %4940 = vmatprep.mubr.bf16.mxu0 0
        %4941 = vmatmul.mubr.bf16.gmra.mrb[0].mxu0 %v4347
        %v4942 = vpop.f32.mrb[0].mxu0
        %v4943 = vadd.f32 0.0, %v4942
        %v4944 = vpop.f32.mrb[0].mxu0
        %v4945 = vadd.f32 0.0, %v4944
        %v4946 = vpop.f32.mrb[0].mxu0
        %v4947 = vadd.f32 0.0, %v4946
        %v4948 = vpop.f32.mrb[0].mxu0
        %v4949 = vadd.f32 0.0, %v4948
        %4950 = vmatprep.mubr.bf16.mxu0 0
        %4951 = vmatmul.mubr.bf16.gmra.mrb[0].mxu0 %v4348
        %v4952 = vpop.f32.mrb[0].mxu0
        %v4953 = vadd.f32 0.0, %v4952
        %v4954 = vpop.f32.mrb[0].mxu0
        %v4955 = vadd.f32 0.0, %v4954
        %v4956 = vpop.f32.mrb[0].mxu0
        %v4957 = vadd.f32 0.0, %v4956
        %v4958 = vpop.f32.mrb[0].mxu0
        %v4959 = vadd.f32 0.0, %v4958
        %4960 = vmatprep.mubr.bf16.mxu0 0
        %4961 = vmatmul.mubr.bf16.gmra.mrb[0].mxu0 %v4349
        %v4962 = vpop.f32.mrb[0].mxu0
        %v4963 = vadd.f32 0.0, %v4962
        %v4964 = vpop.f32.mrb[0].mxu0
        %v4965 = vadd.f32 0.0, %v4964
        %v4966 = vpop.f32.mrb[0].mxu0
        %v4967 = vadd.f32 0.0, %v4966
        %v4968 = vpop.f32.mrb[0].mxu0
        %v4969 = vadd.f32 0.0, %v4968
        %4970 = vmatprep.mubr.bf16.mxu0 0
        %4971 = vmatmul.mubr.bf16.gmra.mrb[0].mxu0 %v4350
        %v4972 = vpop.f32.mrb[0].mxu0
        %v4973 = vadd.f32 0.0, %v4972
        %v4974 = vpop.f32.mrb[0].mxu0
        %v4975 = vadd.f32 0.0, %v4974
        %v4976 = vpop.f32.mrb[0].mxu0
        %v4977 = vadd.f32 0.0, %v4976
        %v4978 = vpop.f32.mrb[0].mxu0
        %v4979 = vadd.f32 0.0, %v4978
        %4980 = vmatprep.mubr.bf16.mxu0 0
        %4981 = vmatmul.mubr.bf16.gmra.mrb[0].mxu0 %v4351
        %v4982 = vpop.f32.mrb[0].mxu0
        %v4983 = vadd.f32 0.0, %v4982
        %v4984 = vpop.f32.mrb[0].mxu0
        %v4985 = vadd.f32 0.0, %v4984
        %v4986 = vpop.f32.mrb[0].mxu0
        %v4987 = vadd.f32 0.0, %v4986
        %v4988 = vpop.f32.mrb[0].mxu0
        %v4989 = vadd.f32 0.0, %v4988
        %4990 = vmatprep.mubr.bf16.mxu0 0
        %4991 = vmatmul.mubr.bf16.gmra.mrb[0].mxu0 %v4352
        %v4992 = vpop.f32.mrb[0].mxu0
        %v4993 = vadd.f32 0.0, %v4992
        %v4994 = vpop.f32.mrb[0].mxu0
        %v4995 = vadd.f32 0.0, %v4994
        %v4996 = vpop.f32.mrb[0].mxu0
        %v4997 = vadd.f32 0.0, %v4996
        %v4998 = vpop.f32.mrb[0].mxu0
        %v4999 = vadd.f32 0.0, %v4998
        %5000 = vmatprep.mubr.bf16.mxu0 0
        %5001 = vmatmul.mubr.bf16.gmra.mrb[0].mxu0 %v4353
        %v5002 = vpop.f32.mrb[0].mxu0
        %v5003 = vadd.f32 0.0, %v5002
        %v5004 = vpop.f32.mrb[0].mxu0
        %v5005 = vadd.f32 0.0, %v5004
        %v5006 = vpop.f32.mrb[0].mxu0
        %v5007 = vadd.f32 0.0, %v5006
        %v5008 = vpop.f32.mrb[0].mxu0
        %v5009 = vadd.f32 0.0, %v5008
        %5010 = vdwg.mxu0
        %5011 = vmatprep.subr.bf16.mxu0 %v4613
        %5012 = vmatpush1.bf16.msra.mxu0 %v4612
        %5013 = vmatprep.subr.bf16.mxu0 %v4621
        %5014 = vmatpush1.bf16.msra.mxu0 %v4620
        %5015 = vmatprep.subr.bf16.mxu0 %v4629
        %5016 = vmatpush1.bf16.msra.mxu0 %v4628
        %5017 = vmatprep.subr.bf16.mxu0 %v4637
        %5018 = vmatpush1.bf16.msra.mxu0 %v4636
        %5019 = vmatprep.subr.bf16.mxu0 %v4645
        %5020 = vmatpush1.bf16.msra.mxu0 %v4644
        %5021 = vmatprep.subr.bf16.mxu0 %v4653
        %5022 = vmatpush1.bf16.msra.mxu0 %v4652
        %5023 = vmatprep.subr.bf16.mxu0 %v4661
        %5024 = vmatpush1.bf16.msra.mxu0 %v4660
        %5025 = vmatprep.subr.bf16.mxu0 %v4669
        %5026 = vmatpush1.bf16.msra.mxu0 %v4668
        %5027 = vmatprep.subr.bf16.mxu0 0
        %5028 = vmatpush1.bf16.msra.mxu0 0
        %5029 = vmatprep.subr.bf16.mxu0 0
        %5030 = vmatpush1.bf16.msra.mxu0 0
        %5031 = vmatprep.subr.bf16.mxu0 0
        %5032 = vmatpush1.bf16.msra.mxu0 0
        %5033 = vmatprep.subr.bf16.mxu0 0
        %5034 = vmatpush1.bf16.msra.mxu0 0
        %5035 = vmatprep.subr.bf16.mxu0 0
        %5036 = vmatpush1.bf16.msra.mxu0 0
        %5037 = vmatprep.subr.bf16.mxu0 0
        %5038 = vmatpush1.bf16.msra.mxu0 0
        %5039 = vmatprep.subr.bf16.mxu0 0
        %5040 = vmatpush1.bf16.msra.mxu0 0
        %5041 = vmatprep.subr.bf16.mxu0 0
        %5042 = vmatpush1.bf16.msra.mxu0 0
        %5043 = vmatprep.mubr.bf16.mxu0 0
        %5044 = vmatmul.mubr.bf16.gmra.mrb[0].mxu0 %v4330
        %v5045 = vpop.f32.mrb[0].mxu0
        %v5046 = vadd.f32 0.0, %v5045
        %v5047 = vpop.f32.mrb[0].mxu0
        %v5048 = vadd.f32 0.0, %v5047
        %v5049 = vpop.f32.mrb[0].mxu0
        %v5050 = vadd.f32 0.0, %v5049
        %v5051 = vpop.f32.mrb[0].mxu0
        %v5052 = vadd.f32 0.0, %v5051
        %5053 = vmatprep.mubr.bf16.mxu0 0
        %5054 = vmatmul.mubr.bf16.gmra.mrb[0].mxu0 %v4331
        %v5055 = vpop.f32.mrb[0].mxu0
        %v5056 = vadd.f32 0.0, %v5055
        %v5057 = vpop.f32.mrb[0].mxu0
        %v5058 = vadd.f32 0.0, %v5057
        %v5059 = vpop.f32.mrb[0].mxu0
        %v5060 = vadd.f32 0.0, %v5059
        %v5061 = vpop.f32.mrb[0].mxu0
        %v5062 = vadd.f32 0.0, %v5061
        %5063 = vmatprep.mubr.bf16.mxu0 0
        %5064 = vmatmul.mubr.bf16.gmra.mrb[0].mxu0 %v4332
        %v5065 = vpop.f32.mrb[0].mxu0
        %v5066 = vadd.f32 0.0, %v5065
        %v5067 = vpop.f32.mrb[0].mxu0
        %v5068 = vadd.f32 0.0, %v5067
        %v5069 = vpop.f32.mrb[0].mxu0
        %v5070 = vadd.f32 0.0, %v5069
        %v5071 = vpop.f32.mrb[0].mxu0
        %v5072 = vadd.f32 0.0, %v5071
        %5073 = vmatprep.mubr.bf16.mxu0 0
        %5074 = vmatmul.mubr.bf16.gmra.mrb[0].mxu0 %v4333
        %v5075 = vpop.f32.mrb[0].mxu0
        %v5076 = vadd.f32 0.0, %v5075
        %v5077 = vpop.f32.mrb[0].mxu0
        %v5078 = vadd.f32 0.0, %v5077
        %v5079 = vpop.f32.mrb[0].mxu0
        %v5080 = vadd.f32 0.0, %v5079
        %v5081 = vpop.f32.mrb[0].mxu0
        %v5082 = vadd.f32 0.0, %v5081
        %5083 = vmatprep.mubr.bf16.mxu0 0
        %5084 = vmatmul.mubr.bf16.gmra.mrb[0].mxu0 %v4334
        %v5085 = vpop.f32.mrb[0].mxu0
        %v5086 = vadd.f32 0.0, %v5085
        %v5087 = vpop.f32.mrb[0].mxu0
        %v5088 = vadd.f32 0.0, %v5087
        %v5089 = vpop.f32.mrb[0].mxu0
        %v5090 = vadd.f32 0.0, %v5089
        %v5091 = vpop.f32.mrb[0].mxu0
        %v5092 = vadd.f32 0.0, %v5091
        %5093 = vmatprep.mubr.bf16.mxu0 0
        %5094 = vmatmul.mubr.bf16.gmra.mrb[0].mxu0 %v4335
        %v5095 = vpop.f32.mrb[0].mxu0
        %v5096 = vadd.f32 0.0, %v5095
        %v5097 = vpop.f32.mrb[0].mxu0
        %v5098 = vadd.f32 0.0, %v5097
        %v5099 = vpop.f32.mrb[0].mxu0
        %v5100 = vadd.f32 0.0, %v5099
        %v5101 = vpop.f32.mrb[0].mxu0
        %v5102 = vadd.f32 0.0, %v5101
        %5103 = vmatprep.mubr.bf16.mxu0 0
        %5104 = vmatmul.mubr.bf16.gmra.mrb[0].mxu0 %v4336
        %v5105 = vpop.f32.mrb[0].mxu0
        %v5106 = vadd.f32 0.0, %v5105
        %v5107 = vpop.f32.mrb[0].mxu0
        %v5108 = vadd.f32 0.0, %v5107
        %v5109 = vpop.f32.mrb[0].mxu0
        %v5110 = vadd.f32 0.0, %v5109
        %v5111 = vpop.f32.mrb[0].mxu0
        %v5112 = vadd.f32 0.0, %v5111
        %5113 = vmatprep.mubr.bf16.mxu0 0
        %5114 = vmatmul.mubr.bf16.gmra.mrb[0].mxu0 %v4337
        %v5115 = vpop.f32.mrb[0].mxu0
        %v5116 = vadd.f32 0.0, %v5115
        %v5117 = vpop.f32.mrb[0].mxu0
        %v5118 = vadd.f32 0.0, %v5117
        %v5119 = vpop.f32.mrb[0].mxu0
        %v5120 = vadd.f32 0.0, %v5119
        %v5121 = vpop.f32.mrb[0].mxu0
        %v5122 = vadd.f32 0.0, %v5121
        %5123 = vmatprep.mubr.bf16.mxu0 0
        %5124 = vmatmul.mubr.bf16.gmra.mrb[0].mxu0 %v4338
        %v5125 = vpop.f32.mrb[0].mxu0
        %v5126 = vadd.f32 0.0, %v5125
        %v5127 = vpop.f32.mrb[0].mxu0
        %v5128 = vadd.f32 0.0, %v5127
        %v5129 = vpop.f32.mrb[0].mxu0
        %v5130 = vadd.f32 0.0, %v5129
        %v5131 = vpop.f32.mrb[0].mxu0
        %v5132 = vadd.f32 0.0, %v5131
        %5133 = vmatprep.mubr.bf16.mxu0 0
        %5134 = vmatmul.mubr.bf16.gmra.mrb[0].mxu0 %v4339
        %v5135 = vpop.f32.mrb[0].mxu0
        %v5136 = vadd.f32 0.0, %v5135
        %v5137 = vpop.f32.mrb[0].mxu0
        %v5138 = vadd.f32 0.0, %v5137
        %v5139 = vpop.f32.mrb[0].mxu0
        %v5140 = vadd.f32 0.0, %v5139
        %v5141 = vpop.f32.mrb[0].mxu0
        %v5142 = vadd.f32 0.0, %v5141
        %5143 = vmatprep.mubr.bf16.mxu0 0
        %5144 = vmatmul.mubr.bf16.gmra.mrb[0].mxu0 %v4340
        %v5145 = vpop.f32.mrb[0].mxu0
        %v5146 = vadd.f32 0.0, %v5145
        %v5147 = vpop.f32.mrb[0].mxu0
        %v5148 = vadd.f32 0.0, %v5147
        %v5149 = vpop.f32.mrb[0].mxu0
        %v5150 = vadd.f32 0.0, %v5149
        %v5151 = vpop.f32.mrb[0].mxu0
        %v5152 = vadd.f32 0.0, %v5151
        %5153 = vmatprep.mubr.bf16.mxu0 0
        %5154 = vmatmul.mubr.bf16.gmra.mrb[0].mxu0 %v4341
        %v5155 = vpop.f32.mrb[0].mxu0
        %v5156 = vadd.f32 0.0, %v5155
        %v5157 = vpop.f32.mrb[0].mxu0
        %v5158 = vadd.f32 0.0, %v5157
        %v5159 = vpop.f32.mrb[0].mxu0
        %v5160 = vadd.f32 0.0, %v5159
        %v5161 = vpop.f32.mrb[0].mxu0
        %v5162 = vadd.f32 0.0, %v5161
        %5163 = vmatprep.mubr.bf16.mxu0 0
        %5164 = vmatmul.mubr.bf16.gmra.mrb[0].mxu0 %v4342
        %v5165 = vpop.f32.mrb[0].mxu0
        %v5166 = vadd.f32 0.0, %v5165
        %v5167 = vpop.f32.mrb[0].mxu0
        %v5168 = vadd.f32 0.0, %v5167
        %v5169 = vpop.f32.mrb[0].mxu0
        %v5170 = vadd.f32 0.0, %v5169
        %v5171 = vpop.f32.mrb[0].mxu0
        %v5172 = vadd.f32 0.0, %v5171
        %5173 = vmatprep.mubr.bf16.mxu0 0
        %5174 = vmatmul.mubr.bf16.gmra.mrb[0].mxu0 %v4343
        %v5175 = vpop.f32.mrb[0].mxu0
        %v5176 = vadd.f32 0.0, %v5175
        %v5177 = vpop.f32.mrb[0].mxu0
        %v5178 = vadd.f32 0.0, %v5177
        %v5179 = vpop.f32.mrb[0].mxu0
        %v5180 = vadd.f32 0.0, %v5179
        %v5181 = vpop.f32.mrb[0].mxu0
        %v5182 = vadd.f32 0.0, %v5181
        %5183 = vmatprep.mubr.bf16.mxu0 0
        %5184 = vmatmul.mubr.bf16.gmra.mrb[0].mxu0 %v4344
        %v5185 = vpop.f32.mrb[0].mxu0
        %v5186 = vadd.f32 0.0, %v5185
        %v5187 = vpop.f32.mrb[0].mxu0
        %v5188 = vadd.f32 0.0, %v5187
        %v5189 = vpop.f32.mrb[0].mxu0
        %v5190 = vadd.f32 0.0, %v5189
        %v5191 = vpop.f32.mrb[0].mxu0
        %v5192 = vadd.f32 0.0, %v5191
        %5193 = vmatprep.mubr.bf16.mxu0 0
        %5194 = vmatmul.mubr.bf16.gmra.mrb[0].mxu0 %v4345
        %v5195 = vpop.f32.mrb[0].mxu0
        %v5196 = vadd.f32 0.0, %v5195
        %v5197 = vpop.f32.mrb[0].mxu0
        %v5198 = vadd.f32 0.0, %v5197
        %v5199 = vpop.f32.mrb[0].mxu0
        %v5200 = vadd.f32 0.0, %v5199
        %v5201 = vpop.f32.mrb[0].mxu0
        %v5202 = vadd.f32 0.0, %v5201
        %5203 = vmatprep.mubr.bf16.mxu0 0
        %5204 = vmatmul.mubr.bf16.gmra.mrb[0].mxu0 %v4346
        %v5205 = vpop.f32.mrb[0].mxu0
        %v5206 = vadd.f32 0.0, %v5205
        %v5207 = vpop.f32.mrb[0].mxu0
        %v5208 = vadd.f32 0.0, %v5207
        %v5209 = vpop.f32.mrb[0].mxu0
        %v5210 = vadd.f32 0.0, %v5209
        %v5211 = vpop.f32.mrb[0].mxu0
        %v5212 = vadd.f32 0.0, %v5211
        %5213 = vmatprep.mubr.bf16.mxu0 0
        %5214 = vmatmul.mubr.bf16.gmra.mrb[0].mxu0 %v4347
        %v5215 = vpop.f32.mrb[0].mxu0
        %v5216 = vadd.f32 0.0, %v5215
        %v5217 = vpop.f32.mrb[0].mxu0
        %v5218 = vadd.f32 0.0, %v5217
        %v5219 = vpop.f32.mrb[0].mxu0
        %v5220 = vadd.f32 0.0, %v5219
        %v5221 = vpop.f32.mrb[0].mxu0
        %v5222 = vadd.f32 0.0, %v5221
        %5223 = vmatprep.mubr.bf16.mxu0 0
        %5224 = vmatmul.mubr.bf16.gmra.mrb[0].mxu0 %v4348
        %v5225 = vpop.f32.mrb[0].mxu0
        %v5226 = vadd.f32 0.0, %v5225
        %v5227 = vpop.f32.mrb[0].mxu0
        %v5228 = vadd.f32 0.0, %v5227
        %v5229 = vpop.f32.mrb[0].mxu0
        %v5230 = vadd.f32 0.0, %v5229
        %v5231 = vpop.f32.mrb[0].mxu0
        %v5232 = vadd.f32 0.0, %v5231
        %5233 = vmatprep.mubr.bf16.mxu0 0
        %5234 = vmatmul.mubr.bf16.gmra.mrb[0].mxu0 %v4349
        %v5235 = vpop.f32.mrb[0].mxu0
        %v5236 = vadd.f32 0.0, %v5235
        %v5237 = vpop.f32.mrb[0].mxu0
        %v5238 = vadd.f32 0.0, %v5237
        %v5239 = vpop.f32.mrb[0].mxu0
        %v5240 = vadd.f32 0.0, %v5239
        %v5241 = vpop.f32.mrb[0].mxu0
        %v5242 = vadd.f32 0.0, %v5241
        %5243 = vmatprep.mubr.bf16.mxu0 0
        %5244 = vmatmul.mubr.bf16.gmra.mrb[0].mxu0 %v4350
        %v5245 = vpop.f32.mrb[0].mxu0
        %v5246 = vadd.f32 0.0, %v5245
        %v5247 = vpop.f32.mrb[0].mxu0
        %v5248 = vadd.f32 0.0, %v5247
        %v5249 = vpop.f32.mrb[0].mxu0
        %v5250 = vadd.f32 0.0, %v5249
        %v5251 = vpop.f32.mrb[0].mxu0
        %v5252 = vadd.f32 0.0, %v5251
        %5253 = vmatprep.mubr.bf16.mxu0 0
        %5254 = vmatmul.mubr.bf16.gmra.mrb[0].mxu0 %v4351
        %v5255 = vpop.f32.mrb[0].mxu0
        %v5256 = vadd.f32 0.0, %v5255
        %v5257 = vpop.f32.mrb[0].mxu0
        %v5258 = vadd.f32 0.0, %v5257
        %v5259 = vpop.f32.mrb[0].mxu0
        %v5260 = vadd.f32 0.0, %v5259
        %v5261 = vpop.f32.mrb[0].mxu0
        %v5262 = vadd.f32 0.0, %v5261
        %5263 = vmatprep.mubr.bf16.mxu0 0
        %5264 = vmatmul.mubr.bf16.gmra.mrb[0].mxu0 %v4352
        %v5265 = vpop.f32.mrb[0].mxu0
        %v5266 = vadd.f32 0.0, %v5265
        %v5267 = vpop.f32.mrb[0].mxu0
        %v5268 = vadd.f32 0.0, %v5267
        %v5269 = vpop.f32.mrb[0].mxu0
        %v5270 = vadd.f32 0.0, %v5269
        %v5271 = vpop.f32.mrb[0].mxu0
        %v5272 = vadd.f32 0.0, %v5271
        %5273 = vmatprep.mubr.bf16.mxu0 0
        %5274 = vmatmul.mubr.bf16.gmra.mrb[0].mxu0 %v4353
        %v5275 = vpop.f32.mrb[0].mxu0
        %v5276 = vadd.f32 0.0, %v5275
        %v5277 = vpop.f32.mrb[0].mxu0
        %v5278 = vadd.f32 0.0, %v5277
        %v5279 = vpop.f32.mrb[0].mxu0
        %v5280 = vadd.f32 0.0, %v5279
        %v5281 = vpop.f32.mrb[0].mxu0
        %v5282 = vadd.f32 0.0, %v5281
        %5283 = vdwg.mxu0
        %5284 = vmatprep.subr.bf16.mxu0 %v4615
        %5285 = vmatpush1.bf16.msra.mxu0 %v4614
        %5286 = vmatprep.subr.bf16.mxu0 %v4623
        %5287 = vmatpush1.bf16.msra.mxu0 %v4622
        %5288 = vmatprep.subr.bf16.mxu0 %v4631
        %5289 = vmatpush1.bf16.msra.mxu0 %v4630
        %5290 = vmatprep.subr.bf16.mxu0 %v4639
        %5291 = vmatpush1.bf16.msra.mxu0 %v4638
        %5292 = vmatprep.subr.bf16.mxu0 %v4647
        %5293 = vmatpush1.bf16.msra.mxu0 %v4646
        %5294 = vmatprep.subr.bf16.mxu0 %v4655
        %5295 = vmatpush1.bf16.msra.mxu0 %v4654
        %5296 = vmatprep.subr.bf16.mxu0 %v4663
        %5297 = vmatpush1.bf16.msra.mxu0 %v4662
        %5298 = vmatprep.subr.bf16.mxu0 %v4671
        %5299 = vmatpush1.bf16.msra.mxu0 %v4670
        %5300 = vmatprep.subr.bf16.mxu0 0
        %5301 = vmatpush1.bf16.msra.mxu0 0
        %5302 = vmatprep.subr.bf16.mxu0 0
        %5303 = vmatpush1.bf16.msra.mxu0 0
        %5304 = vmatprep.subr.bf16.mxu0 0
        %5305 = vmatpush1.bf16.msra.mxu0 0
        %5306 = vmatprep.subr.bf16.mxu0 0
        %5307 = vmatpush1.bf16.msra.mxu0 0
        %5308 = vmatprep.subr.bf16.mxu0 0
        %5309 = vmatpush1.bf16.msra.mxu0 0
        %5310 = vmatprep.subr.bf16.mxu0 0
        %5311 = vmatpush1.bf16.msra.mxu0 0
        %5312 = vmatprep.subr.bf16.mxu0 0
        %5313 = vmatpush1.bf16.msra.mxu0 0
        %5314 = vmatprep.subr.bf16.mxu0 0
        %5315 = vmatpush1.bf16.msra.mxu0 0
        %5316 = vmatprep.mubr.bf16.mxu0 0
        %5317 = vmatmul.mubr.bf16.gmra.mrb[0].mxu0 %v4330
        %v5318 = vpop.f32.mrb[0].mxu0
        %v5319 = vadd.f32 0.0, %v5318
        %v5320 = vpop.f32.mrb[0].mxu0
        %v5321 = vadd.f32 0.0, %v5320
        %v5322 = vpop.f32.mrb[0].mxu0
        %v5323 = vadd.f32 0.0, %v5322
        %v5324 = vpop.f32.mrb[0].mxu0
        %v5325 = vadd.f32 0.0, %v5324
        %5326 = vmatprep.mubr.bf16.mxu0 0
        %5327 = vmatmul.mubr.bf16.gmra.mrb[0].mxu0 %v4331
        %v5328 = vpop.f32.mrb[0].mxu0
        %v5329 = vadd.f32 0.0, %v5328
        %v5330 = vpop.f32.mrb[0].mxu0
        %v5331 = vadd.f32 0.0, %v5330
        %v5332 = vpop.f32.mrb[0].mxu0
        %v5333 = vadd.f32 0.0, %v5332
        %v5334 = vpop.f32.mrb[0].mxu0
        %v5335 = vadd.f32 0.0, %v5334
        %5336 = vmatprep.mubr.bf16.mxu0 0
        %5337 = vmatmul.mubr.bf16.gmra.mrb[0].mxu0 %v4332
        %v5338 = vpop.f32.mrb[0].mxu0
        %v5339 = vadd.f32 0.0, %v5338
        %v5340 = vpop.f32.mrb[0].mxu0
        %v5341 = vadd.f32 0.0, %v5340
        %v5342 = vpop.f32.mrb[0].mxu0
        %v5343 = vadd.f32 0.0, %v5342
        %v5344 = vpop.f32.mrb[0].mxu0
        %v5345 = vadd.f32 0.0, %v5344
        %5346 = vmatprep.mubr.bf16.mxu0 0
        %5347 = vmatmul.mubr.bf16.gmra.mrb[0].mxu0 %v4333
        %v5348 = vpop.f32.mrb[0].mxu0
        %v5349 = vadd.f32 0.0, %v5348
        %v5350 = vpop.f32.mrb[0].mxu0
        %v5351 = vadd.f32 0.0, %v5350
        %v5352 = vpop.f32.mrb[0].mxu0
        %v5353 = vadd.f32 0.0, %v5352
        %v5354 = vpop.f32.mrb[0].mxu0
        %v5355 = vadd.f32 0.0, %v5354
        %5356 = vmatprep.mubr.bf16.mxu0 0
        %5357 = vmatmul.mubr.bf16.gmra.mrb[0].mxu0 %v4334
        %v5358 = vpop.f32.mrb[0].mxu0
        %v5359 = vadd.f32 0.0, %v5358
        %v5360 = vpop.f32.mrb[0].mxu0
        %v5361 = vadd.f32 0.0, %v5360
        %v5362 = vpop.f32.mrb[0].mxu0
        %v5363 = vadd.f32 0.0, %v5362
        %v5364 = vpop.f32.mrb[0].mxu0
        %v5365 = vadd.f32 0.0, %v5364
        %5366 = vmatprep.mubr.bf16.mxu0 0
        %5367 = vmatmul.mubr.bf16.gmra.mrb[0].mxu0 %v4335
        %v5368 = vpop.f32.mrb[0].mxu0
        %v5369 = vadd.f32 0.0, %v5368
        %v5370 = vpop.f32.mrb[0].mxu0
        %v5371 = vadd.f32 0.0, %v5370
        %v5372 = vpop.f32.mrb[0].mxu0
        %v5373 = vadd.f32 0.0, %v5372
        %v5374 = vpop.f32.mrb[0].mxu0
        %v5375 = vadd.f32 0.0, %v5374
        %5376 = vmatprep.mubr.bf16.mxu0 0
        %5377 = vmatmul.mubr.bf16.gmra.mrb[0].mxu0 %v4336
        %v5378 = vpop.f32.mrb[0].mxu0
        %v5379 = vadd.f32 0.0, %v5378
        %v5380 = vpop.f32.mrb[0].mxu0
        %v5381 = vadd.f32 0.0, %v5380
        %v5382 = vpop.f32.mrb[0].mxu0
        %v5383 = vadd.f32 0.0, %v5382
        %v5384 = vpop.f32.mrb[0].mxu0
        %v5385 = vadd.f32 0.0, %v5384
        %5386 = vmatprep.mubr.bf16.mxu0 0
        %5387 = vmatmul.mubr.bf16.gmra.mrb[0].mxu0 %v4337
        %v5388 = vpop.f32.mrb[0].mxu0
        %v5389 = vadd.f32 0.0, %v5388
        %v5390 = vpop.f32.mrb[0].mxu0
        %v5391 = vadd.f32 0.0, %v5390
        %v5392 = vpop.f32.mrb[0].mxu0
        %v5393 = vadd.f32 0.0, %v5392
        %v5394 = vpop.f32.mrb[0].mxu0
        %v5395 = vadd.f32 0.0, %v5394
        %5396 = vmatprep.mubr.bf16.mxu0 0
        %5397 = vmatmul.mubr.bf16.gmra.mrb[0].mxu0 %v4338
        %v5398 = vpop.f32.mrb[0].mxu0
        %v5399 = vadd.f32 0.0, %v5398
        %v5400 = vpop.f32.mrb[0].mxu0
        %v5401 = vadd.f32 0.0, %v5400
        %v5402 = vpop.f32.mrb[0].mxu0
        %v5403 = vadd.f32 0.0, %v5402
        %v5404 = vpop.f32.mrb[0].mxu0
        %v5405 = vadd.f32 0.0, %v5404
        %5406 = vmatprep.mubr.bf16.mxu0 0
        %5407 = vmatmul.mubr.bf16.gmra.mrb[0].mxu0 %v4339
        %v5408 = vpop.f32.mrb[0].mxu0
        %v5409 = vadd.f32 0.0, %v5408
        %v5410 = vpop.f32.mrb[0].mxu0
        %v5411 = vadd.f32 0.0, %v5410
        %v5412 = vpop.f32.mrb[0].mxu0
        %v5413 = vadd.f32 0.0, %v5412
        %v5414 = vpop.f32.mrb[0].mxu0
        %v5415 = vadd.f32 0.0, %v5414
        %5416 = vmatprep.mubr.bf16.mxu0 0
        %5417 = vmatmul.mubr.bf16.gmra.mrb[0].mxu0 %v4340
        %v5418 = vpop.f32.mrb[0].mxu0
        %v5419 = vadd.f32 0.0, %v5418
        %v5420 = vpop.f32.mrb[0].mxu0
        %v5421 = vadd.f32 0.0, %v5420
        %v5422 = vpop.f32.mrb[0].mxu0
        %v5423 = vadd.f32 0.0, %v5422
        %v5424 = vpop.f32.mrb[0].mxu0
        %v5425 = vadd.f32 0.0, %v5424
        %5426 = vmatprep.mubr.bf16.mxu0 0
        %5427 = vmatmul.mubr.bf16.gmra.mrb[0].mxu0 %v4341
        %v5428 = vpop.f32.mrb[0].mxu0
        %v5429 = vadd.f32 0.0, %v5428
        %v5430 = vpop.f32.mrb[0].mxu0
        %v5431 = vadd.f32 0.0, %v5430
        %v5432 = vpop.f32.mrb[0].mxu0
        %v5433 = vadd.f32 0.0, %v5432
        %v5434 = vpop.f32.mrb[0].mxu0
        %v5435 = vadd.f32 0.0, %v5434
        %5436 = vmatprep.mubr.bf16.mxu0 0
        %5437 = vmatmul.mubr.bf16.gmra.mrb[0].mxu0 %v4342
        %v5438 = vpop.f32.mrb[0].mxu0
        %v5439 = vadd.f32 0.0, %v5438
        %v5440 = vpop.f32.mrb[0].mxu0
        %v5441 = vadd.f32 0.0, %v5440
        %v5442 = vpop.f32.mrb[0].mxu0
        %v5443 = vadd.f32 0.0, %v5442
        %v5444 = vpop.f32.mrb[0].mxu0
        %v5445 = vadd.f32 0.0, %v5444
        %5446 = vmatprep.mubr.bf16.mxu0 0
        %5447 = vmatmul.mubr.bf16.gmra.mrb[0].mxu0 %v4343
        %v5448 = vpop.f32.mrb[0].mxu0
        %v5449 = vadd.f32 0.0, %v5448
        %v5450 = vpop.f32.mrb[0].mxu0
        %v5451 = vadd.f32 0.0, %v5450
        %v5452 = vpop.f32.mrb[0].mxu0
        %v5453 = vadd.f32 0.0, %v5452
        %v5454 = vpop.f32.mrb[0].mxu0
        %v5455 = vadd.f32 0.0, %v5454
        %5456 = vmatprep.mubr.bf16.mxu0 0
        %5457 = vmatmul.mubr.bf16.gmra.mrb[0].mxu0 %v4344
        %v5458 = vpop.f32.mrb[0].mxu0
        %v5459 = vadd.f32 0.0, %v5458
        %v5460 = vpop.f32.mrb[0].mxu0
        %v5461 = vadd.f32 0.0, %v5460
        %v5462 = vpop.f32.mrb[0].mxu0
        %v5463 = vadd.f32 0.0, %v5462
        %v5464 = vpop.f32.mrb[0].mxu0
        %v5465 = vadd.f32 0.0, %v5464
        %5466 = vmatprep.mubr.bf16.mxu0 0
        %5467 = vmatmul.mubr.bf16.gmra.mrb[0].mxu0 %v4345
        %v5468 = vpop.f32.mrb[0].mxu0
        %v5469 = vadd.f32 0.0, %v5468
        %v5470 = vpop.f32.mrb[0].mxu0
        %v5471 = vadd.f32 0.0, %v5470
        %v5472 = vpop.f32.mrb[0].mxu0
        %v5473 = vadd.f32 0.0, %v5472
        %v5474 = vpop.f32.mrb[0].mxu0
        %v5475 = vadd.f32 0.0, %v5474
        %5476 = vmatprep.mubr.bf16.mxu0 0
        %5477 = vmatmul.mubr.bf16.gmra.mrb[0].mxu0 %v4346
        %v5478 = vpop.f32.mrb[0].mxu0
        %v5479 = vadd.f32 0.0, %v5478
        %v5480 = vpop.f32.mrb[0].mxu0
        %v5481 = vadd.f32 0.0, %v5480
        %v5482 = vpop.f32.mrb[0].mxu0
        %v5483 = vadd.f32 0.0, %v5482
        %v5484 = vpop.f32.mrb[0].mxu0
        %v5485 = vadd.f32 0.0, %v5484
        %5486 = vmatprep.mubr.bf16.mxu0 0
        %5487 = vmatmul.mubr.bf16.gmra.mrb[0].mxu0 %v4347
        %v5488 = vpop.f32.mrb[0].mxu0
        %v5489 = vadd.f32 0.0, %v5488
        %v5490 = vpop.f32.mrb[0].mxu0
        %v5491 = vadd.f32 0.0, %v5490
        %v5492 = vpop.f32.mrb[0].mxu0
        %v5493 = vadd.f32 0.0, %v5492
        %v5494 = vpop.f32.mrb[0].mxu0
        %v5495 = vadd.f32 0.0, %v5494
        %5496 = vmatprep.mubr.bf16.mxu0 0
        %5497 = vmatmul.mubr.bf16.gmra.mrb[0].mxu0 %v4348
        %v5498 = vpop.f32.mrb[0].mxu0
        %v5499 = vadd.f32 0.0, %v5498
        %v5500 = vpop.f32.mrb[0].mxu0
        %v5501 = vadd.f32 0.0, %v5500
        %v5502 = vpop.f32.mrb[0].mxu0
        %v5503 = vadd.f32 0.0, %v5502
        %v5504 = vpop.f32.mrb[0].mxu0
        %v5505 = vadd.f32 0.0, %v5504
        %5506 = vmatprep.mubr.bf16.mxu0 0
        %5507 = vmatmul.mubr.bf16.gmra.mrb[0].mxu0 %v4349
        %v5508 = vpop.f32.mrb[0].mxu0
        %v5509 = vadd.f32 0.0, %v5508
        %v5510 = vpop.f32.mrb[0].mxu0
        %v5511 = vadd.f32 0.0, %v5510
        %v5512 = vpop.f32.mrb[0].mxu0
        %v5513 = vadd.f32 0.0, %v5512
        %v5514 = vpop.f32.mrb[0].mxu0
        %v5515 = vadd.f32 0.0, %v5514
        %5516 = vmatprep.mubr.bf16.mxu0 0
        %5517 = vmatmul.mubr.bf16.gmra.mrb[0].mxu0 %v4350
        %v5518 = vpop.f32.mrb[0].mxu0
        %v5519 = vadd.f32 0.0, %v5518
        %v5520 = vpop.f32.mrb[0].mxu0
        %v5521 = vadd.f32 0.0, %v5520
        %v5522 = vpop.f32.mrb[0].mxu0
        %v5523 = vadd.f32 0.0, %v5522
        %v5524 = vpop.f32.mrb[0].mxu0
        %v5525 = vadd.f32 0.0, %v5524
        %5526 = vmatprep.mubr.bf16.mxu0 0
        %5527 = vmatmul.mubr.bf16.gmra.mrb[0].mxu0 %v4351
        %v5528 = vpop.f32.mrb[0].mxu0
        %v5529 = vadd.f32 0.0, %v5528
        %v5530 = vpop.f32.mrb[0].mxu0
        %v5531 = vadd.f32 0.0, %v5530
        %v5532 = vpop.f32.mrb[0].mxu0
        %v5533 = vadd.f32 0.0, %v5532
        %v5534 = vpop.f32.mrb[0].mxu0
        %v5535 = vadd.f32 0.0, %v5534
        %5536 = vmatprep.mubr.bf16.mxu0 0
        %5537 = vmatmul.mubr.bf16.gmra.mrb[0].mxu0 %v4352
        %v5538 = vpop.f32.mrb[0].mxu0
        %v5539 = vadd.f32 0.0, %v5538
        %v5540 = vpop.f32.mrb[0].mxu0
        %v5541 = vadd.f32 0.0, %v5540
        %v5542 = vpop.f32.mrb[0].mxu0
        %v5543 = vadd.f32 0.0, %v5542
        %v5544 = vpop.f32.mrb[0].mxu0
        %v5545 = vadd.f32 0.0, %v5544
        %5546 = vmatprep.mubr.bf16.mxu0 0
        %5547 = vmatmul.mubr.bf16.gmra.mrb[0].mxu0 %v4353
        %v5548 = vpop.f32.mrb[0].mxu0
        %v5549 = vadd.f32 0.0, %v5548
        %v5550 = vpop.f32.mrb[0].mxu0
        %v5551 = vadd.f32 0.0, %v5550
        %v5552 = vpop.f32.mrb[0].mxu0
        %v5553 = vadd.f32 0.0, %v5552
        %v5554 = vpop.f32.mrb[0].mxu0
        %v5555 = vadd.f32 0.0, %v5554
        %5556 = vdwg.mxu0
        %5557 = vmatprep.subr.bf16.mxu0 %v4617
        %5558 = vmatpush1.bf16.msra.mxu0 %v4616
        %5559 = vmatprep.subr.bf16.mxu0 %v4625
        %5560 = vmatpush1.bf16.msra.mxu0 %v4624
        %5561 = vmatprep.subr.bf16.mxu0 %v4633
        %5562 = vmatpush1.bf16.msra.mxu0 %v4632
        %5563 = vmatprep.subr.bf16.mxu0 %v4641
        %5564 = vmatpush1.bf16.msra.mxu0 %v4640
        %5565 = vmatprep.subr.bf16.mxu0 %v4649
        %5566 = vmatpush1.bf16.msra.mxu0 %v4648
        %5567 = vmatprep.subr.bf16.mxu0 %v4657
        %5568 = vmatpush1.bf16.msra.mxu0 %v4656
        %5569 = vmatprep.subr.bf16.mxu0 %v4665
        %5570 = vmatpush1.bf16.msra.mxu0 %v4664
        %5571 = vmatprep.subr.bf16.mxu0 %v4673
        %5572 = vmatpush1.bf16.msra.mxu0 %v4672
        %5573 = vmatprep.subr.bf16.mxu0 0
        %5574 = vmatpush1.bf16.msra.mxu0 0
        %5575 = vmatprep.subr.bf16.mxu0 0
        %5576 = vmatpush1.bf16.msra.mxu0 0
        %5577 = vmatprep.subr.bf16.mxu0 0
        %5578 = vmatpush1.bf16.msra.mxu0 0
        %5579 = vmatprep.subr.bf16.mxu0 0
        %5580 = vmatpush1.bf16.msra.mxu0 0
        %5581 = vmatprep.subr.bf16.mxu0 0
        %5582 = vmatpush1.bf16.msra.mxu0 0
        %5583 = vmatprep.subr.bf16.mxu0 0
        %5584 = vmatpush1.bf16.msra.mxu0 0
        %5585 = vmatprep.subr.bf16.mxu0 0
        %5586 = vmatpush1.bf16.msra.mxu0 0
        %5587 = vmatprep.subr.bf16.mxu0 0
        %5588 = vmatpush1.bf16.msra.mxu0 0
        %5589 = vmatprep.mubr.bf16.mxu0 0
        %5590 = vmatmul.mubr.bf16.gmra.mrb[0].mxu0 %v4330
        %v5591 = vpop.f32.mrb[0].mxu0
        %v5592 = vadd.f32 0.0, %v5591
        %v5593 = vpop.f32.mrb[0].mxu0
        %v5594 = vadd.f32 0.0, %v5593
        %v5595 = vpop.f32.mrb[0].mxu0
        %v5596 = vadd.f32 0.0, %v5595
        %v5597 = vpop.f32.mrb[0].mxu0
        %v5598 = vadd.f32 0.0, %v5597
        %5599 = vmatprep.mubr.bf16.mxu0 0
        %5600 = vmatmul.mubr.bf16.gmra.mrb[0].mxu0 %v4331
        %v5601 = vpop.f32.mrb[0].mxu0
        %v5602 = vadd.f32 0.0, %v5601
        %v5603 = vpop.f32.mrb[0].mxu0
        %v5604 = vadd.f32 0.0, %v5603
        %v5605 = vpop.f32.mrb[0].mxu0
        %v5606 = vadd.f32 0.0, %v5605
        %v5607 = vpop.f32.mrb[0].mxu0
        %v5608 = vadd.f32 0.0, %v5607
        %5609 = vmatprep.mubr.bf16.mxu0 0
        %5610 = vmatmul.mubr.bf16.gmra.mrb[0].mxu0 %v4332
        %v5611 = vpop.f32.mrb[0].mxu0
        %v5612 = vadd.f32 0.0, %v5611
        %v5613 = vpop.f32.mrb[0].mxu0
        %v5614 = vadd.f32 0.0, %v5613
        %v5615 = vpop.f32.mrb[0].mxu0
        %v5616 = vadd.f32 0.0, %v5615
        %v5617 = vpop.f32.mrb[0].mxu0
        %v5618 = vadd.f32 0.0, %v5617
        %5619 = vmatprep.mubr.bf16.mxu0 0
        %5620 = vmatmul.mubr.bf16.gmra.mrb[0].mxu0 %v4333
        %v5621 = vpop.f32.mrb[0].mxu0
        %v5622 = vadd.f32 0.0, %v5621
        %v5623 = vpop.f32.mrb[0].mxu0
        %v5624 = vadd.f32 0.0, %v5623
        %v5625 = vpop.f32.mrb[0].mxu0
        %v5626 = vadd.f32 0.0, %v5625
        %v5627 = vpop.f32.mrb[0].mxu0
        %v5628 = vadd.f32 0.0, %v5627
        %5629 = vmatprep.mubr.bf16.mxu0 0
        %5630 = vmatmul.mubr.bf16.gmra.mrb[0].mxu0 %v4334
        %v5631 = vpop.f32.mrb[0].mxu0
        %v5632 = vadd.f32 0.0, %v5631
        %v5633 = vpop.f32.mrb[0].mxu0
        %v5634 = vadd.f32 0.0, %v5633
        %v5635 = vpop.f32.mrb[0].mxu0
        %v5636 = vadd.f32 0.0, %v5635
        %v5637 = vpop.f32.mrb[0].mxu0
        %v5638 = vadd.f32 0.0, %v5637
        %5639 = vmatprep.mubr.bf16.mxu0 0
        %5640 = vmatmul.mubr.bf16.gmra.mrb[0].mxu0 %v4335
        %v5641 = vpop.f32.mrb[0].mxu0
        %v5642 = vadd.f32 0.0, %v5641
        %v5643 = vpop.f32.mrb[0].mxu0
        %v5644 = vadd.f32 0.0, %v5643
        %v5645 = vpop.f32.mrb[0].mxu0
        %v5646 = vadd.f32 0.0, %v5645
        %v5647 = vpop.f32.mrb[0].mxu0
        %v5648 = vadd.f32 0.0, %v5647
        %5649 = vmatprep.mubr.bf16.mxu0 0
        %5650 = vmatmul.mubr.bf16.gmra.mrb[0].mxu0 %v4336
        %v5651 = vpop.f32.mrb[0].mxu0
        %v5652 = vadd.f32 0.0, %v5651
        %v5653 = vpop.f32.mrb[0].mxu0
        %v5654 = vadd.f32 0.0, %v5653
        %v5655 = vpop.f32.mrb[0].mxu0
        %v5656 = vadd.f32 0.0, %v5655
        %v5657 = vpop.f32.mrb[0].mxu0
        %v5658 = vadd.f32 0.0, %v5657
        %5659 = vmatprep.mubr.bf16.mxu0 0
        %5660 = vmatmul.mubr.bf16.gmra.mrb[0].mxu0 %v4337
        %v5661 = vpop.f32.mrb[0].mxu0
        %v5662 = vadd.f32 0.0, %v5661
        %v5663 = vpop.f32.mrb[0].mxu0
        %v5664 = vadd.f32 0.0, %v5663
        %v5665 = vpop.f32.mrb[0].mxu0
        %v5666 = vadd.f32 0.0, %v5665
        %v5667 = vpop.f32.mrb[0].mxu0
        %v5668 = vadd.f32 0.0, %v5667
        %5669 = vmatprep.mubr.bf16.mxu0 0
        %5670 = vmatmul.mubr.bf16.gmra.mrb[0].mxu0 %v4338
        %v5671 = vpop.f32.mrb[0].mxu0
        %v5672 = vadd.f32 0.0, %v5671
        %v5673 = vpop.f32.mrb[0].mxu0
        %v5674 = vadd.f32 0.0, %v5673
        %v5675 = vpop.f32.mrb[0].mxu0
        %v5676 = vadd.f32 0.0, %v5675
        %v5677 = vpop.f32.mrb[0].mxu0
        %v5678 = vadd.f32 0.0, %v5677
        %5679 = vmatprep.mubr.bf16.mxu0 0
        %5680 = vmatmul.mubr.bf16.gmra.mrb[0].mxu0 %v4339
        %v5681 = vpop.f32.mrb[0].mxu0
        %v5682 = vadd.f32 0.0, %v5681
        %v5683 = vpop.f32.mrb[0].mxu0
        %v5684 = vadd.f32 0.0, %v5683
        %v5685 = vpop.f32.mrb[0].mxu0
        %v5686 = vadd.f32 0.0, %v5685
        %v5687 = vpop.f32.mrb[0].mxu0
        %v5688 = vadd.f32 0.0, %v5687
        %5689 = vmatprep.mubr.bf16.mxu0 0
        %5690 = vmatmul.mubr.bf16.gmra.mrb[0].mxu0 %v4340
        %v5691 = vpop.f32.mrb[0].mxu0
        %v5692 = vadd.f32 0.0, %v5691
        %v5693 = vpop.f32.mrb[0].mxu0
        %v5694 = vadd.f32 0.0, %v5693
        %v5695 = vpop.f32.mrb[0].mxu0
        %v5696 = vadd.f32 0.0, %v5695
        %v5697 = vpop.f32.mrb[0].mxu0
        %v5698 = vadd.f32 0.0, %v5697
        %5699 = vmatprep.mubr.bf16.mxu0 0
        %5700 = vmatmul.mubr.bf16.gmra.mrb[0].mxu0 %v4341
        %v5701 = vpop.f32.mrb[0].mxu0
        %v5702 = vadd.f32 0.0, %v5701
        %v5703 = vpop.f32.mrb[0].mxu0
        %v5704 = vadd.f32 0.0, %v5703
        %v5705 = vpop.f32.mrb[0].mxu0
        %v5706 = vadd.f32 0.0, %v5705
        %v5707 = vpop.f32.mrb[0].mxu0
        %v5708 = vadd.f32 0.0, %v5707
        %5709 = vmatprep.mubr.bf16.mxu0 0
        %5710 = vmatmul.mubr.bf16.gmra.mrb[0].mxu0 %v4342
        %v5711 = vpop.f32.mrb[0].mxu0
        %v5712 = vadd.f32 0.0, %v5711
        %v5713 = vpop.f32.mrb[0].mxu0
        %v5714 = vadd.f32 0.0, %v5713
        %v5715 = vpop.f32.mrb[0].mxu0
        %v5716 = vadd.f32 0.0, %v5715
        %v5717 = vpop.f32.mrb[0].mxu0
        %v5718 = vadd.f32 0.0, %v5717
        %5719 = vmatprep.mubr.bf16.mxu0 0
        %5720 = vmatmul.mubr.bf16.gmra.mrb[0].mxu0 %v4343
        %v5721 = vpop.f32.mrb[0].mxu0
        %v5722 = vadd.f32 0.0, %v5721
        %v5723 = vpop.f32.mrb[0].mxu0
        %v5724 = vadd.f32 0.0, %v5723
        %v5725 = vpop.f32.mrb[0].mxu0
        %v5726 = vadd.f32 0.0, %v5725
        %v5727 = vpop.f32.mrb[0].mxu0
        %v5728 = vadd.f32 0.0, %v5727
        %5729 = vmatprep.mubr.bf16.mxu0 0
        %5730 = vmatmul.mubr.bf16.gmra.mrb[0].mxu0 %v4344
        %v5731 = vpop.f32.mrb[0].mxu0
        %v5732 = vadd.f32 0.0, %v5731
        %v5733 = vpop.f32.mrb[0].mxu0
        %v5734 = vadd.f32 0.0, %v5733
        %v5735 = vpop.f32.mrb[0].mxu0
        %v5736 = vadd.f32 0.0, %v5735
        %v5737 = vpop.f32.mrb[0].mxu0
        %v5738 = vadd.f32 0.0, %v5737
        %5739 = vmatprep.mubr.bf16.mxu0 0
        %5740 = vmatmul.mubr.bf16.gmra.mrb[0].mxu0 %v4345
        %v5741 = vpop.f32.mrb[0].mxu0
        %v5742 = vadd.f32 0.0, %v5741
        %v5743 = vpop.f32.mrb[0].mxu0
        %v5744 = vadd.f32 0.0, %v5743
        %v5745 = vpop.f32.mrb[0].mxu0
        %v5746 = vadd.f32 0.0, %v5745
        %v5747 = vpop.f32.mrb[0].mxu0
        %v5748 = vadd.f32 0.0, %v5747
        %5749 = vmatprep.mubr.bf16.mxu0 0
        %5750 = vmatmul.mubr.bf16.gmra.mrb[0].mxu0 %v4346
        %v5751 = vpop.f32.mrb[0].mxu0
        %v5752 = vadd.f32 0.0, %v5751
        %v5753 = vpop.f32.mrb[0].mxu0
        %v5754 = vadd.f32 0.0, %v5753
        %v5755 = vpop.f32.mrb[0].mxu0
        %v5756 = vadd.f32 0.0, %v5755
        %v5757 = vpop.f32.mrb[0].mxu0
        %v5758 = vadd.f32 0.0, %v5757
        %5759 = vmatprep.mubr.bf16.mxu0 0
        %5760 = vmatmul.mubr.bf16.gmra.mrb[0].mxu0 %v4347
        %v5761 = vpop.f32.mrb[0].mxu0
        %v5762 = vadd.f32 0.0, %v5761
        %v5763 = vpop.f32.mrb[0].mxu0
        %v5764 = vadd.f32 0.0, %v5763
        %v5765 = vpop.f32.mrb[0].mxu0
        %v5766 = vadd.f32 0.0, %v5765
        %v5767 = vpop.f32.mrb[0].mxu0
        %v5768 = vadd.f32 0.0, %v5767
        %5769 = vmatprep.mubr.bf16.mxu0 0
        %5770 = vmatmul.mubr.bf16.gmra.mrb[0].mxu0 %v4348
        %v5771 = vpop.f32.mrb[0].mxu0
        %v5772 = vadd.f32 0.0, %v5771
        %v5773 = vpop.f32.mrb[0].mxu0
        %v5774 = vadd.f32 0.0, %v5773
        %v5775 = vpop.f32.mrb[0].mxu0
        %v5776 = vadd.f32 0.0, %v5775
        %v5777 = vpop.f32.mrb[0].mxu0
        %v5778 = vadd.f32 0.0, %v5777
        %5779 = vmatprep.mubr.bf16.mxu0 0
        %5780 = vmatmul.mubr.bf16.gmra.mrb[0].mxu0 %v4349
        %v5781 = vpop.f32.mrb[0].mxu0
        %v5782 = vadd.f32 0.0, %v5781
        %v5783 = vpop.f32.mrb[0].mxu0
        %v5784 = vadd.f32 0.0, %v5783
        %v5785 = vpop.f32.mrb[0].mxu0
        %v5786 = vadd.f32 0.0, %v5785
        %v5787 = vpop.f32.mrb[0].mxu0
        %v5788 = vadd.f32 0.0, %v5787
        %5789 = vmatprep.mubr.bf16.mxu0 0
        %5790 = vmatmul.mubr.bf16.gmra.mrb[0].mxu0 %v4350
        %v5791 = vpop.f32.mrb[0].mxu0
        %v5792 = vadd.f32 0.0, %v5791
        %v5793 = vpop.f32.mrb[0].mxu0
        %v5794 = vadd.f32 0.0, %v5793
        %v5795 = vpop.f32.mrb[0].mxu0
        %v5796 = vadd.f32 0.0, %v5795
        %v5797 = vpop.f32.mrb[0].mxu0
        %v5798 = vadd.f32 0.0, %v5797
        %5799 = vmatprep.mubr.bf16.mxu0 0
        %5800 = vmatmul.mubr.bf16.gmra.mrb[0].mxu0 %v4351
        %v5801 = vpop.f32.mrb[0].mxu0
        %v5802 = vadd.f32 0.0, %v5801
        %v5803 = vpop.f32.mrb[0].mxu0
        %v5804 = vadd.f32 0.0, %v5803
        %v5805 = vpop.f32.mrb[0].mxu0
        %v5806 = vadd.f32 0.0, %v5805
        %v5807 = vpop.f32.mrb[0].mxu0
        %v5808 = vadd.f32 0.0, %v5807
        %5809 = vmatprep.mubr.bf16.mxu0 0
        %5810 = vmatmul.mubr.bf16.gmra.mrb[0].mxu0 %v4352
        %v5811 = vpop.f32.mrb[0].mxu0
        %v5812 = vadd.f32 0.0, %v5811
        %v5813 = vpop.f32.mrb[0].mxu0
        %v5814 = vadd.f32 0.0, %v5813
        %v5815 = vpop.f32.mrb[0].mxu0
        %v5816 = vadd.f32 0.0, %v5815
        %v5817 = vpop.f32.mrb[0].mxu0
        %v5818 = vadd.f32 0.0, %v5817
        %5819 = vmatprep.mubr.bf16.mxu0 0
        %5820 = vmatmul.mubr.bf16.gmra.mrb[0].mxu0 %v4353
        %v5821 = vpop.f32.mrb[0].mxu0
        %v5822 = vadd.f32 0.0, %v5821
        %v5823 = vpop.f32.mrb[0].mxu0
        %v5824 = vadd.f32 0.0, %v5823
        %v5825 = vpop.f32.mrb[0].mxu0
        %v5826 = vadd.f32 0.0, %v5825
        %v5827 = vpop.f32.mrb[0].mxu0
        %v5828 = vadd.f32 0.0, %v5827
        %5829 = vdwg.mxu0
        %v5830 = vpack.c.bf16 %v4777, %v4773
        %v5831 = vpack.c.bf16 %v4779, %v4775
        %v5832 = vpack.c.bf16 %v5050, %v5046
        %v5833 = vpack.c.bf16 %v5052, %v5048
        %v5834 = vpack.c.bf16 %v4787, %v4783
        %v5835 = vpack.c.bf16 %v4789, %v4785
        %v5836 = vpack.c.bf16 %v5060, %v5056
        %v5837 = vpack.c.bf16 %v5062, %v5058
        %v5838 = vpack.c.bf16 %v4797, %v4793
        %v5839 = vpack.c.bf16 %v4799, %v4795
        %v5840 = vpack.c.bf16 %v5070, %v5066
        %v5841 = vpack.c.bf16 %v5072, %v5068
        %v5842 = vpack.c.bf16 %v4807, %v4803
        %v5843 = vpack.c.bf16 %v4809, %v4805
        %v5844 = vpack.c.bf16 %v5080, %v5076
        %v5845 = vpack.c.bf16 %v5082, %v5078
        %v5846 = vpack.c.bf16 %v4817, %v4813
        %v5847 = vpack.c.bf16 %v4819, %v4815
        %v5848 = vpack.c.bf16 %v5090, %v5086
        %v5849 = vpack.c.bf16 %v5092, %v5088
        %v5850 = vpack.c.bf16 %v4827, %v4823
        %v5851 = vpack.c.bf16 %v4829, %v4825
        %v5852 = vpack.c.bf16 %v5100, %v5096
        %v5853 = vpack.c.bf16 %v5102, %v5098
        %v5854 = vpack.c.bf16 %v4837, %v4833
        %v5855 = vpack.c.bf16 %v4839, %v4835
        %v5856 = vpack.c.bf16 %v5110, %v5106
        %v5857 = vpack.c.bf16 %v5112, %v5108
        %v5858 = vpack.c.bf16 %v4847, %v4843
        %v5859 = vpack.c.bf16 %v4849, %v4845
        %v5860 = vpack.c.bf16 %v5120, %v5116
        %v5861 = vpack.c.bf16 %v5122, %v5118
        %v5862 = vpack.c.bf16 %v4857, %v4853
        %v5863 = vpack.c.bf16 %v4859, %v4855
        %v5864 = vpack.c.bf16 %v5130, %v5126
        %v5865 = vpack.c.bf16 %v5132, %v5128
        %v5866 = vpack.c.bf16 %v4867, %v4863
        %v5867 = vpack.c.bf16 %v4869, %v4865
        %v5868 = vpack.c.bf16 %v5140, %v5136
        %v5869 = vpack.c.bf16 %v5142, %v5138
        %v5870 = vpack.c.bf16 %v4877, %v4873
        %v5871 = vpack.c.bf16 %v4879, %v4875
        %v5872 = vpack.c.bf16 %v5150, %v5146
        %v5873 = vpack.c.bf16 %v5152, %v5148
        %v5874 = vpack.c.bf16 %v4887, %v4883
        %v5875 = vpack.c.bf16 %v4889, %v4885
        %v5876 = vpack.c.bf16 %v5160, %v5156
        %v5877 = vpack.c.bf16 %v5162, %v5158
        %v5878 = vpack.c.bf16 %v4897, %v4893
        %v5879 = vpack.c.bf16 %v4899, %v4895
        %v5880 = vpack.c.bf16 %v5170, %v5166
        %v5881 = vpack.c.bf16 %v5172, %v5168
        %v5882 = vpack.c.bf16 %v4907, %v4903
        %v5883 = vpack.c.bf16 %v4909, %v4905
        %v5884 = vpack.c.bf16 %v5180, %v5176
        %v5885 = vpack.c.bf16 %v5182, %v5178
        %v5886 = vpack.c.bf16 %v4917, %v4913
        %v5887 = vpack.c.bf16 %v4919, %v4915
        %v5888 = vpack.c.bf16 %v5190, %v5186
        %v5889 = vpack.c.bf16 %v5192, %v5188
        %v5890 = vpack.c.bf16 %v4927, %v4923
        %v5891 = vpack.c.bf16 %v4929, %v4925
        %v5892 = vpack.c.bf16 %v5200, %v5196
        %v5893 = vpack.c.bf16 %v5202, %v5198
        %v5894 = vpack.c.bf16 %v4937, %v4933
        %v5895 = vpack.c.bf16 %v4939, %v4935
        %v5896 = vpack.c.bf16 %v5210, %v5206
        %v5897 = vpack.c.bf16 %v5212, %v5208
        %v5898 = vpack.c.bf16 %v4947, %v4943
        %v5899 = vpack.c.bf16 %v4949, %v4945
        %v5900 = vpack.c.bf16 %v5220, %v5216
        %v5901 = vpack.c.bf16 %v5222, %v5218
        %v5902 = vpack.c.bf16 %v4957, %v4953
        %v5903 = vpack.c.bf16 %v4959, %v4955
        %v5904 = vpack.c.bf16 %v5230, %v5226
        %v5905 = vpack.c.bf16 %v5232, %v5228
        %v5906 = vpack.c.bf16 %v4967, %v4963
        %v5907 = vpack.c.bf16 %v4969, %v4965
        %v5908 = vpack.c.bf16 %v5240, %v5236
        %v5909 = vpack.c.bf16 %v5242, %v5238
        %v5910 = vpack.c.bf16 %v4977, %v4973
        %v5911 = vpack.c.bf16 %v4979, %v4975
        %v5912 = vpack.c.bf16 %v5250, %v5246
        %v5913 = vpack.c.bf16 %v5252, %v5248
        %v5914 = vpack.c.bf16 %v4987, %v4983
        %v5915 = vpack.c.bf16 %v4989, %v4985
        %v5916 = vpack.c.bf16 %v5260, %v5256
        %v5917 = vpack.c.bf16 %v5262, %v5258
        %v5918 = vpack.c.bf16 %v4997, %v4993
        %v5919 = vpack.c.bf16 %v4999, %v4995
        %v5920 = vpack.c.bf16 %v5270, %v5266
        %v5921 = vpack.c.bf16 %v5272, %v5268
        %v5922 = vpack.c.bf16 %v5007, %v5003
        %v5923 = vpack.c.bf16 %v5009, %v5005
        %v5924 = vpack.c.bf16 %v5280, %v5276
        %v5925 = vpack.c.bf16 %v5282, %v5278
        %v5926 = vpack.c.bf16 %v5323, %v5319
        %v5927 = vpack.c.bf16 %v5325, %v5321
        %v5928 = vpack.c.bf16 %v5596, %v5592
        %v5929 = vpack.c.bf16 %v5598, %v5594
        %v5930 = vpack.c.bf16 %v5333, %v5329
        %v5931 = vpack.c.bf16 %v5335, %v5331
        %v5932 = vpack.c.bf16 %v5606, %v5602
        %v5933 = vpack.c.bf16 %v5608, %v5604
        %v5934 = vpack.c.bf16 %v5343, %v5339
        %v5935 = vpack.c.bf16 %v5345, %v5341
        %v5936 = vpack.c.bf16 %v5616, %v5612
        %v5937 = vpack.c.bf16 %v5618, %v5614
        %v5938 = vpack.c.bf16 %v5353, %v5349
        %v5939 = vpack.c.bf16 %v5355, %v5351
        %v5940 = vpack.c.bf16 %v5626, %v5622
        %v5941 = vpack.c.bf16 %v5628, %v5624
        %v5942 = vpack.c.bf16 %v5363, %v5359
        %v5943 = vpack.c.bf16 %v5365, %v5361
        %v5944 = vpack.c.bf16 %v5636, %v5632
        %v5945 = vpack.c.bf16 %v5638, %v5634
        %v5946 = vpack.c.bf16 %v5373, %v5369
        %v5947 = vpack.c.bf16 %v5375, %v5371
        %v5948 = vpack.c.bf16 %v5646, %v5642
        %v5949 = vpack.c.bf16 %v5648, %v5644
        %v5950 = vpack.c.bf16 %v5383, %v5379
        %v5951 = vpack.c.bf16 %v5385, %v5381
        %v5952 = vpack.c.bf16 %v5656, %v5652
        %v5953 = vpack.c.bf16 %v5658, %v5654
        %v5954 = vpack.c.bf16 %v5393, %v5389
        %v5955 = vpack.c.bf16 %v5395, %v5391
        %v5956 = vpack.c.bf16 %v5666, %v5662
        %v5957 = vpack.c.bf16 %v5668, %v5664
        %v5958 = vpack.c.bf16 %v5403, %v5399
        %v5959 = vpack.c.bf16 %v5405, %v5401
        %v5960 = vpack.c.bf16 %v5676, %v5672
        %v5961 = vpack.c.bf16 %v5678, %v5674
        %v5962 = vpack.c.bf16 %v5413, %v5409
        %v5963 = vpack.c.bf16 %v5415, %v5411
        %v5964 = vpack.c.bf16 %v5686, %v5682
        %v5965 = vpack.c.bf16 %v5688, %v5684
        %v5966 = vpack.c.bf16 %v5423, %v5419
        %v5967 = vpack.c.bf16 %v5425, %v5421
        %v5968 = vpack.c.bf16 %v5696, %v5692
        %v5969 = vpack.c.bf16 %v5698, %v5694
        %v5970 = vpack.c.bf16 %v5433, %v5429
        %v5971 = vpack.c.bf16 %v5435, %v5431
        %v5972 = vpack.c.bf16 %v5706, %v5702
        %v5973 = vpack.c.bf16 %v5708, %v5704
        %v5974 = vpack.c.bf16 %v5443, %v5439
        %v5975 = vpack.c.bf16 %v5445, %v5441
        %v5976 = vpack.c.bf16 %v5716, %v5712
        %v5977 = vpack.c.bf16 %v5718, %v5714
        %v5978 = vpack.c.bf16 %v5453, %v5449
        %v5979 = vpack.c.bf16 %v5455, %v5451
        %v5980 = vpack.c.bf16 %v5726, %v5722
        %v5981 = vpack.c.bf16 %v5728, %v5724
        %v5982 = vpack.c.bf16 %v5463, %v5459
        %v5983 = vpack.c.bf16 %v5465, %v5461
        %v5984 = vpack.c.bf16 %v5736, %v5732
        %v5985 = vpack.c.bf16 %v5738, %v5734
        %v5986 = vpack.c.bf16 %v5473, %v5469
        %v5987 = vpack.c.bf16 %v5475, %v5471
        %v5988 = vpack.c.bf16 %v5746, %v5742
        %v5989 = vpack.c.bf16 %v5748, %v5744
        %v5990 = vpack.c.bf16 %v5483, %v5479
        %v5991 = vpack.c.bf16 %v5485, %v5481
        %v5992 = vpack.c.bf16 %v5756, %v5752
        %v5993 = vpack.c.bf16 %v5758, %v5754
        %v5994 = vpack.c.bf16 %v5493, %v5489
        %v5995 = vpack.c.bf16 %v5495, %v5491
        %v5996 = vpack.c.bf16 %v5766, %v5762
        %v5997 = vpack.c.bf16 %v5768, %v5764
        %v5998 = vpack.c.bf16 %v5503, %v5499
        %v5999 = vpack.c.bf16 %v5505, %v5501
        %v6000 = vpack.c.bf16 %v5776, %v5772
        %v6001 = vpack.c.bf16 %v5778, %v5774
        %v6002 = vpack.c.bf16 %v5513, %v5509
        %v6003 = vpack.c.bf16 %v5515, %v5511
        %v6004 = vpack.c.bf16 %v5786, %v5782
        %v6005 = vpack.c.bf16 %v5788, %v5784
        %v6006 = vpack.c.bf16 %v5523, %v5519
        %v6007 = vpack.c.bf16 %v5525, %v5521
        %v6008 = vpack.c.bf16 %v5796, %v5792
        %v6009 = vpack.c.bf16 %v5798, %v5794
        %v6010 = vpack.c.bf16 %v5533, %v5529
        %v6011 = vpack.c.bf16 %v5535, %v5531
        %v6012 = vpack.c.bf16 %v5806, %v5802
        %v6013 = vpack.c.bf16 %v5808, %v5804
        %v6014 = vpack.c.bf16 %v5543, %v5539
        %v6015 = vpack.c.bf16 %v5545, %v5541
        %v6016 = vpack.c.bf16 %v5816, %v5812
        %v6017 = vpack.c.bf16 %v5818, %v5814
        %v6018 = vpack.c.bf16 %v5553, %v5549
        %v6019 = vpack.c.bf16 %v5555, %v5551
        %v6020 = vpack.c.bf16 %v5826, %v5822
        %v6021 = vpack.c.bf16 %v5828, %v5824
        %v6022 = vmul.bf16 %v5830, %v5926
        %v6023 = vmul.bf16 %v5831, %v5927
        %v6024 = vmul.bf16 %v5832, %v5928
        %v6025 = vmul.bf16 %v5833, %v5929
        %v6026 = vmul.bf16 %v5834, %v5930
        %v6027 = vmul.bf16 %v5835, %v5931
        %v6028 = vmul.bf16 %v5836, %v5932
        %v6029 = vmul.bf16 %v5837, %v5933
        %v6030 = vmul.bf16 %v5838, %v5934
        %v6031 = vmul.bf16 %v5839, %v5935
        %v6032 = vmul.bf16 %v5840, %v5936
        %v6033 = vmul.bf16 %v5841, %v5937
        %v6034 = vmul.bf16 %v5842, %v5938
        %v6035 = vmul.bf16 %v5843, %v5939
        %v6036 = vmul.bf16 %v5844, %v5940
        %v6037 = vmul.bf16 %v5845, %v5941
        %v6038 = vmul.bf16 %v5846, %v5942
        %v6039 = vmul.bf16 %v5847, %v5943
        %v6040 = vmul.bf16 %v5848, %v5944
        %v6041 = vmul.bf16 %v5849, %v5945
        %v6042 = vmul.bf16 %v5850, %v5946
        %v6043 = vmul.bf16 %v5851, %v5947
        %v6044 = vmul.bf16 %v5852, %v5948
        %v6045 = vmul.bf16 %v5853, %v5949
        %v6046 = vmul.bf16 %v5854, %v5950
        %v6047 = vmul.bf16 %v5855, %v5951
        %v6048 = vmul.bf16 %v5856, %v5952
        %v6049 = vmul.bf16 %v5857, %v5953
        %v6050 = vmul.bf16 %v5858, %v5954
        %v6051 = vmul.bf16 %v5859, %v5955
        %v6052 = vmul.bf16 %v5860, %v5956
        %v6053 = vmul.bf16 %v5861, %v5957
        %v6054 = vmul.bf16 %v5862, %v5958
        %v6055 = vmul.bf16 %v5863, %v5959
        %v6056 = vmul.bf16 %v5864, %v5960
        %v6057 = vmul.bf16 %v5865, %v5961
        %v6058 = vmul.bf16 %v5866, %v5962
        %v6059 = vmul.bf16 %v5867, %v5963
        %v6060 = vmul.bf16 %v5868, %v5964
        %v6061 = vmul.bf16 %v5869, %v5965
        %v6062 = vmul.bf16 %v5870, %v5966
        %v6063 = vmul.bf16 %v5871, %v5967
        %v6064 = vmul.bf16 %v5872, %v5968
        %v6065 = vmul.bf16 %v5873, %v5969
        %v6066 = vmul.bf16 %v5874, %v5970
        %v6067 = vmul.bf16 %v5875, %v5971
        %v6068 = vmul.bf16 %v5876, %v5972
        %v6069 = vmul.bf16 %v5877, %v5973
        %v6070 = vmul.bf16 %v5878, %v5974
        %v6071 = vmul.bf16 %v5879, %v5975
        %v6072 = vmul.bf16 %v5880, %v5976
        %v6073 = vmul.bf16 %v5881, %v5977
        %v6074 = vmul.bf16 %v5882, %v5978
        %v6075 = vmul.bf16 %v5883, %v5979
        %v6076 = vmul.bf16 %v5884, %v5980
        %v6077 = vmul.bf16 %v5885, %v5981
        %v6078 = vmul.bf16 %v5886, %v5982
        %v6079 = vmul.bf16 %v5887, %v5983
        %v6080 = vmul.bf16 %v5888, %v5984
        %v6081 = vmul.bf16 %v5889, %v5985
        %v6082 = vmul.bf16 %v5890, %v5986
        %v6083 = vmul.bf16 %v5891, %v5987
        %v6084 = vmul.bf16 %v5892, %v5988
        %v6085 = vmul.bf16 %v5893, %v5989
        %v6086 = vmul.bf16 %v5894, %v5990
        %v6087 = vmul.bf16 %v5895, %v5991
        %v6088 = vmul.bf16 %v5896, %v5992
        %v6089 = vmul.bf16 %v5897, %v5993
        %v6090 = vmul.bf16 %v5898, %v5994
        %v6091 = vmul.bf16 %v5899, %v5995
        %v6092 = vmul.bf16 %v5900, %v5996
        %v6093 = vmul.bf16 %v5901, %v5997
        %v6094 = vmul.bf16 %v5902, %v5998
        %v6095 = vmul.bf16 %v5903, %v5999
        %v6096 = vmul.bf16 %v5904, %v6000
        %v6097 = vmul.bf16 %v5905, %v6001
        %v6098 = vmul.bf16 %v5906, %v6002
        %v6099 = vmul.bf16 %v5907, %v6003
        %v6100 = vmul.bf16 %v5908, %v6004
        %v6101 = vmul.bf16 %v5909, %v6005
        %v6102 = vmul.bf16 %v5910, %v6006
        %v6103 = vmul.bf16 %v5911, %v6007
        %v6104 = vmul.bf16 %v5912, %v6008
        %v6105 = vmul.bf16 %v5913, %v6009
        %v6106 = vmul.bf16 %v5914, %v6010
        %v6107 = vmul.bf16 %v5915, %v6011
        %v6108 = vmul.bf16 %v5916, %v6012
        %v6109 = vmul.bf16 %v5917, %v6013
        %v6110 = vmul.bf16 %v5918, %v6014
        %v6111 = vmul.bf16 %v5919, %v6015
        %v6112 = vmul.bf16 %v5920, %v6016
        %v6113 = vmul.bf16 %v5921, %v6017
        %v6114 = vmul.bf16 %v5922, %v6018
        %v6115 = vmul.bf16 %v5923, %v6019
        %v6116 = vmul.bf16 %v5924, %v6020
        %v6117 = vmul.bf16 %v5925, %v6021
        %v6118 = vunpack.c.l.bf16 %v6022
        %v6119 = vunpack.c.l.bf16 %v6023
        %v6120 = vunpack.c.l.bf16 %v6024
        %v6121 = vunpack.c.l.bf16 %v6025
        %v6122 = vunpack.c.h.bf16 %v6022
        %v6123 = vunpack.c.h.bf16 %v6023
        %v6124 = vunpack.c.h.bf16 %v6024
        %v6125 = vunpack.c.h.bf16 %v6025
        %v6126 = vunpack.c.l.bf16 %v6026
        %v6127 = vunpack.c.l.bf16 %v6027
        %v6128 = vunpack.c.l.bf16 %v6028
        %v6129 = vunpack.c.l.bf16 %v6029
        %v6130 = vunpack.c.h.bf16 %v6026
        %v6131 = vunpack.c.h.bf16 %v6027
        %v6132 = vunpack.c.h.bf16 %v6028
        %v6133 = vunpack.c.h.bf16 %v6029
        %v6134 = vunpack.c.l.bf16 %v6030
        %v6135 = vunpack.c.l.bf16 %v6031
        %v6136 = vunpack.c.l.bf16 %v6032
        %v6137 = vunpack.c.l.bf16 %v6033
        %v6138 = vunpack.c.h.bf16 %v6030
        %v6139 = vunpack.c.h.bf16 %v6031
        %v6140 = vunpack.c.h.bf16 %v6032
        %v6141 = vunpack.c.h.bf16 %v6033
        %v6142 = vunpack.c.l.bf16 %v6034
        %v6143 = vunpack.c.l.bf16 %v6035
        %v6144 = vunpack.c.l.bf16 %v6036
        %v6145 = vunpack.c.l.bf16 %v6037
        %v6146 = vunpack.c.h.bf16 %v6034
        %v6147 = vunpack.c.h.bf16 %v6035
        %v6148 = vunpack.c.h.bf16 %v6036
        %v6149 = vunpack.c.h.bf16 %v6037
        %v6150 = vunpack.c.l.bf16 %v6038
        %v6151 = vunpack.c.l.bf16 %v6039
        %v6152 = vunpack.c.l.bf16 %v6040
        %v6153 = vunpack.c.l.bf16 %v6041
        %v6154 = vunpack.c.h.bf16 %v6038
        %v6155 = vunpack.c.h.bf16 %v6039
        %v6156 = vunpack.c.h.bf16 %v6040
        %v6157 = vunpack.c.h.bf16 %v6041
        %v6158 = vunpack.c.l.bf16 %v6042
        %v6159 = vunpack.c.l.bf16 %v6043
        %v6160 = vunpack.c.l.bf16 %v6044
        %v6161 = vunpack.c.l.bf16 %v6045
        %v6162 = vunpack.c.h.bf16 %v6042
        %v6163 = vunpack.c.h.bf16 %v6043
        %v6164 = vunpack.c.h.bf16 %v6044
        %v6165 = vunpack.c.h.bf16 %v6045
        %v6166 = vunpack.c.l.bf16 %v6046
        %v6167 = vunpack.c.l.bf16 %v6047
        %v6168 = vunpack.c.l.bf16 %v6048
        %v6169 = vunpack.c.l.bf16 %v6049
        %v6170 = vunpack.c.h.bf16 %v6046
        %v6171 = vunpack.c.h.bf16 %v6047
        %v6172 = vunpack.c.h.bf16 %v6048
        %v6173 = vunpack.c.h.bf16 %v6049
        %v6174 = vunpack.c.l.bf16 %v6050
        %v6175 = vunpack.c.l.bf16 %v6051
        %v6176 = vunpack.c.l.bf16 %v6052
        %v6177 = vunpack.c.l.bf16 %v6053
        %v6178 = vunpack.c.h.bf16 %v6050
        %v6179 = vunpack.c.h.bf16 %v6051
        %v6180 = vunpack.c.h.bf16 %v6052
        %v6181 = vunpack.c.h.bf16 %v6053
        %v6182 = vunpack.c.l.bf16 %v6054
        %v6183 = vunpack.c.l.bf16 %v6055
        %v6184 = vunpack.c.l.bf16 %v6056
        %v6185 = vunpack.c.l.bf16 %v6057
        %v6186 = vunpack.c.h.bf16 %v6054
        %v6187 = vunpack.c.h.bf16 %v6055
        %v6188 = vunpack.c.h.bf16 %v6056
        %v6189 = vunpack.c.h.bf16 %v6057
        %v6190 = vunpack.c.l.bf16 %v6058
        %v6191 = vunpack.c.l.bf16 %v6059
        %v6192 = vunpack.c.l.bf16 %v6060
        %v6193 = vunpack.c.l.bf16 %v6061
        %v6194 = vunpack.c.h.bf16 %v6058
        %v6195 = vunpack.c.h.bf16 %v6059
        %v6196 = vunpack.c.h.bf16 %v6060
        %v6197 = vunpack.c.h.bf16 %v6061
        %v6198 = vunpack.c.l.bf16 %v6062
        %v6199 = vunpack.c.l.bf16 %v6063
        %v6200 = vunpack.c.l.bf16 %v6064
        %v6201 = vunpack.c.l.bf16 %v6065
        %v6202 = vunpack.c.h.bf16 %v6062
        %v6203 = vunpack.c.h.bf16 %v6063
        %v6204 = vunpack.c.h.bf16 %v6064
        %v6205 = vunpack.c.h.bf16 %v6065
        %v6206 = vunpack.c.l.bf16 %v6066
        %v6207 = vunpack.c.l.bf16 %v6067
        %v6208 = vunpack.c.l.bf16 %v6068
        %v6209 = vunpack.c.l.bf16 %v6069
        %v6210 = vunpack.c.h.bf16 %v6066
        %v6211 = vunpack.c.h.bf16 %v6067
        %v6212 = vunpack.c.h.bf16 %v6068
        %v6213 = vunpack.c.h.bf16 %v6069
        %v6214 = vunpack.c.l.bf16 %v6070
        %v6215 = vunpack.c.l.bf16 %v6071
        %v6216 = vunpack.c.l.bf16 %v6072
        %v6217 = vunpack.c.l.bf16 %v6073
        %v6218 = vunpack.c.h.bf16 %v6070
        %v6219 = vunpack.c.h.bf16 %v6071
        %v6220 = vunpack.c.h.bf16 %v6072
        %v6221 = vunpack.c.h.bf16 %v6073
        %v6222 = vunpack.c.l.bf16 %v6074
        %v6223 = vunpack.c.l.bf16 %v6075
        %v6224 = vunpack.c.l.bf16 %v6076
        %v6225 = vunpack.c.l.bf16 %v6077
        %v6226 = vunpack.c.h.bf16 %v6074
        %v6227 = vunpack.c.h.bf16 %v6075
        %v6228 = vunpack.c.h.bf16 %v6076
        %v6229 = vunpack.c.h.bf16 %v6077
        %v6230 = vunpack.c.l.bf16 %v6078
        %v6231 = vunpack.c.l.bf16 %v6079
        %v6232 = vunpack.c.l.bf16 %v6080
        %v6233 = vunpack.c.l.bf16 %v6081
        %v6234 = vunpack.c.h.bf16 %v6078
        %v6235 = vunpack.c.h.bf16 %v6079
        %v6236 = vunpack.c.h.bf16 %v6080
        %v6237 = vunpack.c.h.bf16 %v6081
        %v6238 = vunpack.c.l.bf16 %v6082
        %v6239 = vunpack.c.l.bf16 %v6083
        %v6240 = vunpack.c.l.bf16 %v6084
        %v6241 = vunpack.c.l.bf16 %v6085
        %v6242 = vunpack.c.h.bf16 %v6082
        %v6243 = vunpack.c.h.bf16 %v6083
        %v6244 = vunpack.c.h.bf16 %v6084
        %v6245 = vunpack.c.h.bf16 %v6085
        %v6246 = vunpack.c.l.bf16 %v6086
        %v6247 = vunpack.c.l.bf16 %v6087
        %v6248 = vunpack.c.l.bf16 %v6088
        %v6249 = vunpack.c.l.bf16 %v6089
        %v6250 = vunpack.c.h.bf16 %v6086
        %v6251 = vunpack.c.h.bf16 %v6087
        %v6252 = vunpack.c.h.bf16 %v6088
        %v6253 = vunpack.c.h.bf16 %v6089
        %v6254 = vunpack.c.l.bf16 %v6090
        %v6255 = vunpack.c.l.bf16 %v6091
        %v6256 = vunpack.c.l.bf16 %v6092
        %v6257 = vunpack.c.l.bf16 %v6093
        %v6258 = vunpack.c.h.bf16 %v6090
        %v6259 = vunpack.c.h.bf16 %v6091
        %v6260 = vunpack.c.h.bf16 %v6092
        %v6261 = vunpack.c.h.bf16 %v6093
        %v6262 = vunpack.c.l.bf16 %v6094
        %v6263 = vunpack.c.l.bf16 %v6095
        %v6264 = vunpack.c.l.bf16 %v6096
        %v6265 = vunpack.c.l.bf16 %v6097
        %v6266 = vunpack.c.h.bf16 %v6094
        %v6267 = vunpack.c.h.bf16 %v6095
        %v6268 = vunpack.c.h.bf16 %v6096
        %v6269 = vunpack.c.h.bf16 %v6097
        %v6270 = vunpack.c.l.bf16 %v6098
        %v6271 = vunpack.c.l.bf16 %v6099
        %v6272 = vunpack.c.l.bf16 %v6100
        %v6273 = vunpack.c.l.bf16 %v6101
        %v6274 = vunpack.c.h.bf16 %v6098
        %v6275 = vunpack.c.h.bf16 %v6099
        %v6276 = vunpack.c.h.bf16 %v6100
        %v6277 = vunpack.c.h.bf16 %v6101
        %v6278 = vunpack.c.l.bf16 %v6102
        %v6279 = vunpack.c.l.bf16 %v6103
        %v6280 = vunpack.c.l.bf16 %v6104
        %v6281 = vunpack.c.l.bf16 %v6105
        %v6282 = vunpack.c.h.bf16 %v6102
        %v6283 = vunpack.c.h.bf16 %v6103
        %v6284 = vunpack.c.h.bf16 %v6104
        %v6285 = vunpack.c.h.bf16 %v6105
        %v6286 = vunpack.c.l.bf16 %v6106
        %v6287 = vunpack.c.l.bf16 %v6107
        %v6288 = vunpack.c.l.bf16 %v6108
        %v6289 = vunpack.c.l.bf16 %v6109
        %v6290 = vunpack.c.h.bf16 %v6106
        %v6291 = vunpack.c.h.bf16 %v6107
        %v6292 = vunpack.c.h.bf16 %v6108
        %v6293 = vunpack.c.h.bf16 %v6109
        %v6294 = vunpack.c.l.bf16 %v6110
        %v6295 = vunpack.c.l.bf16 %v6111
        %v6296 = vunpack.c.l.bf16 %v6112
        %v6297 = vunpack.c.l.bf16 %v6113
        %v6298 = vunpack.c.h.bf16 %v6110
        %v6299 = vunpack.c.h.bf16 %v6111
        %v6300 = vunpack.c.h.bf16 %v6112
        %v6301 = vunpack.c.h.bf16 %v6113
        %v6302 = vunpack.c.l.bf16 %v6114
        %v6303 = vunpack.c.l.bf16 %v6115
        %v6304 = vunpack.c.l.bf16 %v6116
        %v6305 = vunpack.c.l.bf16 %v6117
        %v6306 = vunpack.c.h.bf16 %v6114
        %v6307 = vunpack.c.h.bf16 %v6115
        %v6308 = vunpack.c.h.bf16 %v6116
        %v6309 = vunpack.c.h.bf16 %v6117
        %v6310 = vadd.f32 %v6118, %v6182
        %v6311 = vadd.f32 %v6310, %v6246
        %v6312 = vadd.f32 %v6119, %v6183
        %v6313 = vadd.f32 %v6312, %v6247
        %v6314 = vadd.f32 %v6120, %v6184
        %v6315 = vadd.f32 %v6314, %v6248
        %v6316 = vadd.f32 %v6121, %v6185
        %v6317 = vadd.f32 %v6316, %v6249
        %v6318 = vadd.f32 %v6122, %v6186
        %v6319 = vadd.f32 %v6318, %v6250
        %v6320 = vadd.f32 %v6123, %v6187
        %v6321 = vadd.f32 %v6320, %v6251
        %v6322 = vadd.f32 %v6124, %v6188
        %v6323 = vadd.f32 %v6322, %v6252
        %v6324 = vadd.f32 %v6125, %v6189
        %v6325 = vadd.f32 %v6324, %v6253
        %v6326 = vadd.f32 %v6126, %v6190
        %v6327 = vadd.f32 %v6326, %v6254
        %v6328 = vadd.f32 %v6127, %v6191
        %v6329 = vadd.f32 %v6328, %v6255
        %v6330 = vadd.f32 %v6128, %v6192
        %v6331 = vadd.f32 %v6330, %v6256
        %v6332 = vadd.f32 %v6129, %v6193
        %v6333 = vadd.f32 %v6332, %v6257
        %v6334 = vadd.f32 %v6130, %v6194
        %v6335 = vadd.f32 %v6334, %v6258
        %v6336 = vadd.f32 %v6131, %v6195
        %v6337 = vadd.f32 %v6336, %v6259
        %v6338 = vadd.f32 %v6132, %v6196
        %v6339 = vadd.f32 %v6338, %v6260
        %v6340 = vadd.f32 %v6133, %v6197
        %v6341 = vadd.f32 %v6340, %v6261
        %v6342 = vadd.f32 %v6134, %v6198
        %v6343 = vadd.f32 %v6342, %v6262
        %v6344 = vadd.f32 %v6135, %v6199
        %v6345 = vadd.f32 %v6344, %v6263
        %v6346 = vadd.f32 %v6136, %v6200
        %v6347 = vadd.f32 %v6346, %v6264
        %v6348 = vadd.f32 %v6137, %v6201
        %v6349 = vadd.f32 %v6348, %v6265
        %v6350 = vadd.f32 %v6138, %v6202
        %v6351 = vadd.f32 %v6350, %v6266
        %v6352 = vadd.f32 %v6139, %v6203
        %v6353 = vadd.f32 %v6352, %v6267
        %v6354 = vadd.f32 %v6140, %v6204
        %v6355 = vadd.f32 %v6354, %v6268
        %v6356 = vadd.f32 %v6141, %v6205
        %v6357 = vadd.f32 %v6356, %v6269
        %v6358 = vadd.f32 %v6142, %v6206
        %v6359 = vadd.f32 %v6358, %v6270
        %v6360 = vadd.f32 %v6143, %v6207
        %v6361 = vadd.f32 %v6360, %v6271
        %v6362 = vadd.f32 %v6144, %v6208
        %v6363 = vadd.f32 %v6362, %v6272
        %v6364 = vadd.f32 %v6145, %v6209
        %v6365 = vadd.f32 %v6364, %v6273
        %v6366 = vadd.f32 %v6146, %v6210
        %v6367 = vadd.f32 %v6366, %v6274
        %v6368 = vadd.f32 %v6147, %v6211
        %v6369 = vadd.f32 %v6368, %v6275
        %v6370 = vadd.f32 %v6148, %v6212
        %v6371 = vadd.f32 %v6370, %v6276
        %v6372 = vadd.f32 %v6149, %v6213
        %v6373 = vadd.f32 %v6372, %v6277
        %v6374 = vadd.f32 %v6150, %v6214
        %v6375 = vadd.f32 %v6374, %v6278
        %v6376 = vadd.f32 %v6151, %v6215
        %v6377 = vadd.f32 %v6376, %v6279
        %v6378 = vadd.f32 %v6152, %v6216
        %v6379 = vadd.f32 %v6378, %v6280
        %v6380 = vadd.f32 %v6153, %v6217
        %v6381 = vadd.f32 %v6380, %v6281
        %v6382 = vadd.f32 %v6154, %v6218
        %v6383 = vadd.f32 %v6382, %v6282
        %v6384 = vadd.f32 %v6155, %v6219
        %v6385 = vadd.f32 %v6384, %v6283
        %v6386 = vadd.f32 %v6156, %v6220
        %v6387 = vadd.f32 %v6386, %v6284
        %v6388 = vadd.f32 %v6157, %v6221
        %v6389 = vadd.f32 %v6388, %v6285
        %v6390 = vadd.f32 %v6158, %v6222
        %v6391 = vadd.f32 %v6390, %v6286
        %v6392 = vadd.f32 %v6159, %v6223
        %v6393 = vadd.f32 %v6392, %v6287
        %v6394 = vadd.f32 %v6160, %v6224
        %v6395 = vadd.f32 %v6394, %v6288
        %v6396 = vadd.f32 %v6161, %v6225
        %v6397 = vadd.f32 %v6396, %v6289
        %v6398 = vadd.f32 %v6162, %v6226
        %v6399 = vadd.f32 %v6398, %v6290
        %v6400 = vadd.f32 %v6163, %v6227
        %v6401 = vadd.f32 %v6400, %v6291
        %v6402 = vadd.f32 %v6164, %v6228
        %v6403 = vadd.f32 %v6402, %v6292
        %v6404 = vadd.f32 %v6165, %v6229
        %v6405 = vadd.f32 %v6404, %v6293
        %v6406 = vadd.f32 %v6166, %v6230
        %v6407 = vadd.f32 %v6406, %v6294
        %v6408 = vadd.f32 %v6167, %v6231
        %v6409 = vadd.f32 %v6408, %v6295
        %v6410 = vadd.f32 %v6168, %v6232
        %v6411 = vadd.f32 %v6410, %v6296
        %v6412 = vadd.f32 %v6169, %v6233
        %v6413 = vadd.f32 %v6412, %v6297
        %v6414 = vadd.f32 %v6170, %v6234
        %v6415 = vadd.f32 %v6414, %v6298
        %v6416 = vadd.f32 %v6171, %v6235
        %v6417 = vadd.f32 %v6416, %v6299
        %v6418 = vadd.f32 %v6172, %v6236
        %v6419 = vadd.f32 %v6418, %v6300
        %v6420 = vadd.f32 %v6173, %v6237
        %v6421 = vadd.f32 %v6420, %v6301
        %v6422 = vadd.f32 %v6174, %v6238
        %v6423 = vadd.f32 %v6422, %v6302
        %v6424 = vadd.f32 %v6175, %v6239
        %v6425 = vadd.f32 %v6424, %v6303
        %v6426 = vadd.f32 %v6176, %v6240
        %v6427 = vadd.f32 %v6426, %v6304
        %v6428 = vadd.f32 %v6177, %v6241
        %v6429 = vadd.f32 %v6428, %v6305
        %v6430 = vadd.f32 %v6178, %v6242
        %v6431 = vadd.f32 %v6430, %v6306
        %v6432 = vadd.f32 %v6179, %v6243
        %v6433 = vadd.f32 %v6432, %v6307
        %v6434 = vadd.f32 %v6180, %v6244
        %v6435 = vadd.f32 %v6434, %v6308
        %v6436 = vadd.f32 %v6181, %v6245
        %v6437 = vadd.f32 %v6436, %v6309
        %v6438 = vpack.c.bf16 %v6319, %v6311
        %v6439 = vpack.c.bf16 %v6321, %v6313
        %v6440 = vpack.c.bf16 %v6323, %v6315
        %v6441 = vpack.c.bf16 %v6325, %v6317
        %v6442 = vpack.c.bf16 %v6335, %v6327
        %v6443 = vpack.c.bf16 %v6337, %v6329
        %v6444 = vpack.c.bf16 %v6339, %v6331
        %v6445 = vpack.c.bf16 %v6341, %v6333
        %v6446 = vpack.c.bf16 %v6351, %v6343
        %v6447 = vpack.c.bf16 %v6353, %v6345
        %v6448 = vpack.c.bf16 %v6355, %v6347
        %v6449 = vpack.c.bf16 %v6357, %v6349
        %v6450 = vpack.c.bf16 %v6367, %v6359
        %v6451 = vpack.c.bf16 %v6369, %v6361
        %v6452 = vpack.c.bf16 %v6371, %v6363
        %v6453 = vpack.c.bf16 %v6373, %v6365
        %v6454 = vpack.c.bf16 %v6383, %v6375
        %v6455 = vpack.c.bf16 %v6385, %v6377
        %v6456 = vpack.c.bf16 %v6387, %v6379
        %v6457 = vpack.c.bf16 %v6389, %v6381
        %v6458 = vpack.c.bf16 %v6399, %v6391
        %v6459 = vpack.c.bf16 %v6401, %v6393
        %v6460 = vpack.c.bf16 %v6403, %v6395
        %v6461 = vpack.c.bf16 %v6405, %v6397
        %v6462 = vpack.c.bf16 %v6415, %v6407
        %v6463 = vpack.c.bf16 %v6417, %v6409
        %v6464 = vpack.c.bf16 %v6419, %v6411
        %v6465 = vpack.c.bf16 %v6421, %v6413
        %v6466 = vpack.c.bf16 %v6431, %v6423
        %v6467 = vpack.c.bf16 %v6433, %v6425
        %v6468 = vpack.c.bf16 %v6435, %v6427
        %v6469 = vpack.c.bf16 %v6437, %v6429
        %v6470 = vunpack.c.l.bf16 %v6438
        %v6471 = vunpack.c.l.bf16 %v6439
        %v6472 = vunpack.c.l.bf16 %v6440
        %v6473 = vunpack.c.l.bf16 %v6441
        %v6474 = vunpack.c.h.bf16 %v6438
        %v6475 = vunpack.c.h.bf16 %v6439
        %v6476 = vunpack.c.h.bf16 %v6440
        %v6477 = vunpack.c.h.bf16 %v6441
        %v6478 = vunpack.c.l.bf16 %v6442
        %v6479 = vunpack.c.l.bf16 %v6443
        %v6480 = vunpack.c.l.bf16 %v6444
        %v6481 = vunpack.c.l.bf16 %v6445
        %v6482 = vunpack.c.h.bf16 %v6442
        %v6483 = vunpack.c.h.bf16 %v6443
        %v6484 = vunpack.c.h.bf16 %v6444
        %v6485 = vunpack.c.h.bf16 %v6445
        %v6486 = vunpack.c.l.bf16 %v6446
        %v6487 = vunpack.c.l.bf16 %v6447
        %v6488 = vunpack.c.l.bf16 %v6448
        %v6489 = vunpack.c.l.bf16 %v6449
        %v6490 = vunpack.c.h.bf16 %v6446
        %v6491 = vunpack.c.h.bf16 %v6447
        %v6492 = vunpack.c.h.bf16 %v6448
        %v6493 = vunpack.c.h.bf16 %v6449
        %v6494 = vunpack.c.l.bf16 %v6450
        %v6495 = vunpack.c.l.bf16 %v6451
        %v6496 = vunpack.c.l.bf16 %v6452
        %v6497 = vunpack.c.l.bf16 %v6453
        %v6498 = vunpack.c.h.bf16 %v6450
        %v6499 = vunpack.c.h.bf16 %v6451
        %v6500 = vunpack.c.h.bf16 %v6452
        %v6501 = vunpack.c.h.bf16 %v6453
        %v6502 = vunpack.c.l.bf16 %v6454
        %v6503 = vunpack.c.l.bf16 %v6455
        %v6504 = vunpack.c.l.bf16 %v6456
        %v6505 = vunpack.c.l.bf16 %v6457
        %v6506 = vunpack.c.h.bf16 %v6454
        %v6507 = vunpack.c.h.bf16 %v6455
        %v6508 = vunpack.c.h.bf16 %v6456
        %v6509 = vunpack.c.h.bf16 %v6457
        %v6510 = vunpack.c.l.bf16 %v6458
        %v6511 = vunpack.c.l.bf16 %v6459
        %v6512 = vunpack.c.l.bf16 %v6460
        %v6513 = vunpack.c.l.bf16 %v6461
        %v6514 = vunpack.c.h.bf16 %v6458
        %v6515 = vunpack.c.h.bf16 %v6459
        %v6516 = vunpack.c.h.bf16 %v6460
        %v6517 = vunpack.c.h.bf16 %v6461
        %v6518 = vunpack.c.l.bf16 %v6462
        %v6519 = vunpack.c.l.bf16 %v6463
        %v6520 = vunpack.c.l.bf16 %v6464
        %v6521 = vunpack.c.l.bf16 %v6465
        %v6522 = vunpack.c.h.bf16 %v6462
        %v6523 = vunpack.c.h.bf16 %v6463
        %v6524 = vunpack.c.h.bf16 %v6464
        %v6525 = vunpack.c.h.bf16 %v6465
        %v6526 = vunpack.c.l.bf16 %v6466
        %v6527 = vunpack.c.l.bf16 %v6467
        %v6528 = vunpack.c.l.bf16 %v6468
        %v6529 = vunpack.c.l.bf16 %v6469
        %v6530 = vunpack.c.h.bf16 %v6466
        %v6531 = vunpack.c.h.bf16 %v6467
        %v6532 = vunpack.c.h.bf16 %v6468
        %v6533 = vunpack.c.h.bf16 %v6469
        %v6534 = vmul.bf16 %v5926, %v5926
        %v6535 = vmul.bf16 %v5927, %v5927
        %v6536 = vmul.bf16 %v5928, %v5928
        %v6537 = vmul.bf16 %v5929, %v5929
        %v6538 = vmul.bf16 %v5930, %v5930
        %v6539 = vmul.bf16 %v5931, %v5931
        %v6540 = vmul.bf16 %v5932, %v5932
        %v6541 = vmul.bf16 %v5933, %v5933
        %v6542 = vmul.bf16 %v5934, %v5934
        %v6543 = vmul.bf16 %v5935, %v5935
        %v6544 = vmul.bf16 %v5936, %v5936
        %v6545 = vmul.bf16 %v5937, %v5937
        %v6546 = vmul.bf16 %v5938, %v5938
        %v6547 = vmul.bf16 %v5939, %v5939
        %v6548 = vmul.bf16 %v5940, %v5940
        %v6549 = vmul.bf16 %v5941, %v5941
        %v6550 = vmul.bf16 %v5942, %v5942
        %v6551 = vmul.bf16 %v5943, %v5943
        %v6552 = vmul.bf16 %v5944, %v5944
        %v6553 = vmul.bf16 %v5945, %v5945
        %v6554 = vmul.bf16 %v5946, %v5946
        %v6555 = vmul.bf16 %v5947, %v5947
        %v6556 = vmul.bf16 %v5948, %v5948
        %v6557 = vmul.bf16 %v5949, %v5949
        %v6558 = vmul.bf16 %v5950, %v5950
        %v6559 = vmul.bf16 %v5951, %v5951
        %v6560 = vmul.bf16 %v5952, %v5952
        %v6561 = vmul.bf16 %v5953, %v5953
        %v6562 = vmul.bf16 %v5954, %v5954
        %v6563 = vmul.bf16 %v5955, %v5955
        %v6564 = vmul.bf16 %v5956, %v5956
        %v6565 = vmul.bf16 %v5957, %v5957
        %v6566 = vmul.bf16 %v5958, %v5958
        %v6567 = vmul.bf16 %v5959, %v5959
        %v6568 = vmul.bf16 %v5960, %v5960
        %v6569 = vmul.bf16 %v5961, %v5961
        %v6570 = vmul.bf16 %v5962, %v5962
        %v6571 = vmul.bf16 %v5963, %v5963
        %v6572 = vmul.bf16 %v5964, %v5964
        %v6573 = vmul.bf16 %v5965, %v5965
        %v6574 = vmul.bf16 %v5966, %v5966
        %v6575 = vmul.bf16 %v5967, %v5967
        %v6576 = vmul.bf16 %v5968, %v5968
        %v6577 = vmul.bf16 %v5969, %v5969
        %v6578 = vmul.bf16 %v5970, %v5970
        %v6579 = vmul.bf16 %v5971, %v5971
        %v6580 = vmul.bf16 %v5972, %v5972
        %v6581 = vmul.bf16 %v5973, %v5973
        %v6582 = vmul.bf16 %v5974, %v5974
        %v6583 = vmul.bf16 %v5975, %v5975
        %v6584 = vmul.bf16 %v5976, %v5976
        %v6585 = vmul.bf16 %v5977, %v5977
        %v6586 = vmul.bf16 %v5978, %v5978
        %v6587 = vmul.bf16 %v5979, %v5979
        %v6588 = vmul.bf16 %v5980, %v5980
        %v6589 = vmul.bf16 %v5981, %v5981
        %v6590 = vmul.bf16 %v5982, %v5982
        %v6591 = vmul.bf16 %v5983, %v5983
        %v6592 = vmul.bf16 %v5984, %v5984
        %v6593 = vmul.bf16 %v5985, %v5985
        %v6594 = vmul.bf16 %v5986, %v5986
        %v6595 = vmul.bf16 %v5987, %v5987
        %v6596 = vmul.bf16 %v5988, %v5988
        %v6597 = vmul.bf16 %v5989, %v5989
        %v6598 = vmul.bf16 %v5990, %v5990
        %v6599 = vmul.bf16 %v5991, %v5991
        %v6600 = vmul.bf16 %v5992, %v5992
        %v6601 = vmul.bf16 %v5993, %v5993
        %v6602 = vmul.bf16 %v5994, %v5994
        %v6603 = vmul.bf16 %v5995, %v5995
        %v6604 = vmul.bf16 %v5996, %v5996
        %v6605 = vmul.bf16 %v5997, %v5997
        %v6606 = vmul.bf16 %v5998, %v5998
        %v6607 = vmul.bf16 %v5999, %v5999
        %v6608 = vmul.bf16 %v6000, %v6000
        %v6609 = vmul.bf16 %v6001, %v6001
        %v6610 = vmul.bf16 %v6002, %v6002
        %v6611 = vmul.bf16 %v6003, %v6003
        %v6612 = vmul.bf16 %v6004, %v6004
        %v6613 = vmul.bf16 %v6005, %v6005
        %v6614 = vmul.bf16 %v6006, %v6006
        %v6615 = vmul.bf16 %v6007, %v6007
        %v6616 = vmul.bf16 %v6008, %v6008
        %v6617 = vmul.bf16 %v6009, %v6009
        %v6618 = vmul.bf16 %v6010, %v6010
        %v6619 = vmul.bf16 %v6011, %v6011
        %v6620 = vmul.bf16 %v6012, %v6012
        %v6621 = vmul.bf16 %v6013, %v6013
        %v6622 = vmul.bf16 %v6014, %v6014
        %v6623 = vmul.bf16 %v6015, %v6015
        %v6624 = vmul.bf16 %v6016, %v6016
        %v6625 = vmul.bf16 %v6017, %v6017
        %v6626 = vmul.bf16 %v6018, %v6018
        %v6627 = vmul.bf16 %v6019, %v6019
        %v6628 = vmul.bf16 %v6020, %v6020
        %v6629 = vmul.bf16 %v6021, %v6021
        %v6630 = vunpack.c.l.bf16 %v6534
        %v6631 = vunpack.c.l.bf16 %v6535
        %v6632 = vunpack.c.l.bf16 %v6536
        %v6633 = vunpack.c.l.bf16 %v6537
        %v6634 = vunpack.c.h.bf16 %v6534
        %v6635 = vunpack.c.h.bf16 %v6535
        %v6636 = vunpack.c.h.bf16 %v6536
        %v6637 = vunpack.c.h.bf16 %v6537
        %v6638 = vunpack.c.l.bf16 %v6538
        %v6639 = vunpack.c.l.bf16 %v6539
        %v6640 = vunpack.c.l.bf16 %v6540
        %v6641 = vunpack.c.l.bf16 %v6541
        %v6642 = vunpack.c.h.bf16 %v6538
        %v6643 = vunpack.c.h.bf16 %v6539
        %v6644 = vunpack.c.h.bf16 %v6540
        %v6645 = vunpack.c.h.bf16 %v6541
        %v6646 = vunpack.c.l.bf16 %v6542
        %v6647 = vunpack.c.l.bf16 %v6543
        %v6648 = vunpack.c.l.bf16 %v6544
        %v6649 = vunpack.c.l.bf16 %v6545
        %v6650 = vunpack.c.h.bf16 %v6542
        %v6651 = vunpack.c.h.bf16 %v6543
        %v6652 = vunpack.c.h.bf16 %v6544
        %v6653 = vunpack.c.h.bf16 %v6545
        %v6654 = vunpack.c.l.bf16 %v6546
        %v6655 = vunpack.c.l.bf16 %v6547
        %v6656 = vunpack.c.l.bf16 %v6548
        %v6657 = vunpack.c.l.bf16 %v6549
        %v6658 = vunpack.c.h.bf16 %v6546
        %v6659 = vunpack.c.h.bf16 %v6547
        %v6660 = vunpack.c.h.bf16 %v6548
        %v6661 = vunpack.c.h.bf16 %v6549
        %v6662 = vunpack.c.l.bf16 %v6550
        %v6663 = vunpack.c.l.bf16 %v6551
        %v6664 = vunpack.c.l.bf16 %v6552
        %v6665 = vunpack.c.l.bf16 %v6553
        %v6666 = vunpack.c.h.bf16 %v6550
        %v6667 = vunpack.c.h.bf16 %v6551
        %v6668 = vunpack.c.h.bf16 %v6552
        %v6669 = vunpack.c.h.bf16 %v6553
        %v6670 = vunpack.c.l.bf16 %v6554
        %v6671 = vunpack.c.l.bf16 %v6555
        %v6672 = vunpack.c.l.bf16 %v6556
        %v6673 = vunpack.c.l.bf16 %v6557
        %v6674 = vunpack.c.h.bf16 %v6554
        %v6675 = vunpack.c.h.bf16 %v6555
        %v6676 = vunpack.c.h.bf16 %v6556
        %v6677 = vunpack.c.h.bf16 %v6557
        %v6678 = vunpack.c.l.bf16 %v6558
        %v6679 = vunpack.c.l.bf16 %v6559
        %v6680 = vunpack.c.l.bf16 %v6560
        %v6681 = vunpack.c.l.bf16 %v6561
        %v6682 = vunpack.c.h.bf16 %v6558
        %v6683 = vunpack.c.h.bf16 %v6559
        %v6684 = vunpack.c.h.bf16 %v6560
        %v6685 = vunpack.c.h.bf16 %v6561
        %v6686 = vunpack.c.l.bf16 %v6562
        %v6687 = vunpack.c.l.bf16 %v6563
        %v6688 = vunpack.c.l.bf16 %v6564
        %v6689 = vunpack.c.l.bf16 %v6565
        %v6690 = vunpack.c.h.bf16 %v6562
        %v6691 = vunpack.c.h.bf16 %v6563
        %v6692 = vunpack.c.h.bf16 %v6564
        %v6693 = vunpack.c.h.bf16 %v6565
        %v6694 = vunpack.c.l.bf16 %v6566
        %v6695 = vunpack.c.l.bf16 %v6567
        %v6696 = vunpack.c.l.bf16 %v6568
        %v6697 = vunpack.c.l.bf16 %v6569
        %v6698 = vunpack.c.h.bf16 %v6566
        %v6699 = vunpack.c.h.bf16 %v6567
        %v6700 = vunpack.c.h.bf16 %v6568
        %v6701 = vunpack.c.h.bf16 %v6569
        %v6702 = vunpack.c.l.bf16 %v6570
        %v6703 = vunpack.c.l.bf16 %v6571
        %v6704 = vunpack.c.l.bf16 %v6572
        %v6705 = vunpack.c.l.bf16 %v6573
        %v6706 = vunpack.c.h.bf16 %v6570
        %v6707 = vunpack.c.h.bf16 %v6571
        %v6708 = vunpack.c.h.bf16 %v6572
        %v6709 = vunpack.c.h.bf16 %v6573
        %v6710 = vunpack.c.l.bf16 %v6574
        %v6711 = vunpack.c.l.bf16 %v6575
        %v6712 = vunpack.c.l.bf16 %v6576
        %v6713 = vunpack.c.l.bf16 %v6577
        %v6714 = vunpack.c.h.bf16 %v6574
        %v6715 = vunpack.c.h.bf16 %v6575
        %v6716 = vunpack.c.h.bf16 %v6576
        %v6717 = vunpack.c.h.bf16 %v6577
        %v6718 = vunpack.c.l.bf16 %v6578
        %v6719 = vunpack.c.l.bf16 %v6579
        %v6720 = vunpack.c.l.bf16 %v6580
        %v6721 = vunpack.c.l.bf16 %v6581
        %v6722 = vunpack.c.h.bf16 %v6578
        %v6723 = vunpack.c.h.bf16 %v6579
        %v6724 = vunpack.c.h.bf16 %v6580
        %v6725 = vunpack.c.h.bf16 %v6581
        %v6726 = vunpack.c.l.bf16 %v6582
        %v6727 = vunpack.c.l.bf16 %v6583
        %v6728 = vunpack.c.l.bf16 %v6584
        %v6729 = vunpack.c.l.bf16 %v6585
        %v6730 = vunpack.c.h.bf16 %v6582
        %v6731 = vunpack.c.h.bf16 %v6583
        %v6732 = vunpack.c.h.bf16 %v6584
        %v6733 = vunpack.c.h.bf16 %v6585
        %v6734 = vunpack.c.l.bf16 %v6586
        %v6735 = vunpack.c.l.bf16 %v6587
        %v6736 = vunpack.c.l.bf16 %v6588
        %v6737 = vunpack.c.l.bf16 %v6589
        %v6738 = vunpack.c.h.bf16 %v6586
        %v6739 = vunpack.c.h.bf16 %v6587
        %v6740 = vunpack.c.h.bf16 %v6588
        %v6741 = vunpack.c.h.bf16 %v6589
        %v6742 = vunpack.c.l.bf16 %v6590
        %v6743 = vunpack.c.l.bf16 %v6591
        %v6744 = vunpack.c.l.bf16 %v6592
        %v6745 = vunpack.c.l.bf16 %v6593
        %v6746 = vunpack.c.h.bf16 %v6590
        %v6747 = vunpack.c.h.bf16 %v6591
        %v6748 = vunpack.c.h.bf16 %v6592
        %v6749 = vunpack.c.h.bf16 %v6593
        %v6750 = vunpack.c.l.bf16 %v6594
        %v6751 = vunpack.c.l.bf16 %v6595
        %v6752 = vunpack.c.l.bf16 %v6596
        %v6753 = vunpack.c.l.bf16 %v6597
        %v6754 = vunpack.c.h.bf16 %v6594
        %v6755 = vunpack.c.h.bf16 %v6595
        %v6756 = vunpack.c.h.bf16 %v6596
        %v6757 = vunpack.c.h.bf16 %v6597
        %v6758 = vunpack.c.l.bf16 %v6598
        %v6759 = vunpack.c.l.bf16 %v6599
        %v6760 = vunpack.c.l.bf16 %v6600
        %v6761 = vunpack.c.l.bf16 %v6601
        %v6762 = vunpack.c.h.bf16 %v6598
        %v6763 = vunpack.c.h.bf16 %v6599
        %v6764 = vunpack.c.h.bf16 %v6600
        %v6765 = vunpack.c.h.bf16 %v6601
        %v6766 = vunpack.c.l.bf16 %v6602
        %v6767 = vunpack.c.l.bf16 %v6603
        %v6768 = vunpack.c.l.bf16 %v6604
        %v6769 = vunpack.c.l.bf16 %v6605
        %v6770 = vunpack.c.h.bf16 %v6602
        %v6771 = vunpack.c.h.bf16 %v6603
        %v6772 = vunpack.c.h.bf16 %v6604
        %v6773 = vunpack.c.h.bf16 %v6605
        %v6774 = vunpack.c.l.bf16 %v6606
        %v6775 = vunpack.c.l.bf16 %v6607
        %v6776 = vunpack.c.l.bf16 %v6608
        %v6777 = vunpack.c.l.bf16 %v6609
        %v6778 = vunpack.c.h.bf16 %v6606
        %v6779 = vunpack.c.h.bf16 %v6607
        %v6780 = vunpack.c.h.bf16 %v6608
        %v6781 = vunpack.c.h.bf16 %v6609
        %v6782 = vunpack.c.l.bf16 %v6610
        %v6783 = vunpack.c.l.bf16 %v6611
        %v6784 = vunpack.c.l.bf16 %v6612
        %v6785 = vunpack.c.l.bf16 %v6613
        %v6786 = vunpack.c.h.bf16 %v6610
        %v6787 = vunpack.c.h.bf16 %v6611
        %v6788 = vunpack.c.h.bf16 %v6612
        %v6789 = vunpack.c.h.bf16 %v6613
        %v6790 = vunpack.c.l.bf16 %v6614
        %v6791 = vunpack.c.l.bf16 %v6615
        %v6792 = vunpack.c.l.bf16 %v6616
        %v6793 = vunpack.c.l.bf16 %v6617
        %v6794 = vunpack.c.h.bf16 %v6614
        %v6795 = vunpack.c.h.bf16 %v6615
        %v6796 = vunpack.c.h.bf16 %v6616
        %v6797 = vunpack.c.h.bf16 %v6617
        %v6798 = vunpack.c.l.bf16 %v6618
        %v6799 = vunpack.c.l.bf16 %v6619
        %v6800 = vunpack.c.l.bf16 %v6620
        %v6801 = vunpack.c.l.bf16 %v6621
        %v6802 = vunpack.c.h.bf16 %v6618
        %v6803 = vunpack.c.h.bf16 %v6619
        %v6804 = vunpack.c.h.bf16 %v6620
        %v6805 = vunpack.c.h.bf16 %v6621
        %v6806 = vunpack.c.l.bf16 %v6622
        %v6807 = vunpack.c.l.bf16 %v6623
        %v6808 = vunpack.c.l.bf16 %v6624
        %v6809 = vunpack.c.l.bf16 %v6625
        %v6810 = vunpack.c.h.bf16 %v6622
        %v6811 = vunpack.c.h.bf16 %v6623
        %v6812 = vunpack.c.h.bf16 %v6624
        %v6813 = vunpack.c.h.bf16 %v6625
        %v6814 = vunpack.c.l.bf16 %v6626
        %v6815 = vunpack.c.l.bf16 %v6627
        %v6816 = vunpack.c.l.bf16 %v6628
        %v6817 = vunpack.c.l.bf16 %v6629
        %v6818 = vunpack.c.h.bf16 %v6626
        %v6819 = vunpack.c.h.bf16 %v6627
        %v6820 = vunpack.c.h.bf16 %v6628
        %v6821 = vunpack.c.h.bf16 %v6629
        %v6822 = vadd.f32 %v6630, %v6694
        %v6823 = vadd.f32 %v6822, %v6758
        %v6824 = vadd.f32 %v6631, %v6695
        %v6825 = vadd.f32 %v6824, %v6759
        %v6826 = vadd.f32 %v6632, %v6696
        %v6827 = vadd.f32 %v6826, %v6760
        %v6828 = vadd.f32 %v6633, %v6697
        %v6829 = vadd.f32 %v6828, %v6761
        %v6830 = vadd.f32 %v6634, %v6698
        %v6831 = vadd.f32 %v6830, %v6762
        %v6832 = vadd.f32 %v6635, %v6699
        %v6833 = vadd.f32 %v6832, %v6763
        %v6834 = vadd.f32 %v6636, %v6700
        %v6835 = vadd.f32 %v6834, %v6764
        %v6836 = vadd.f32 %v6637, %v6701
        %v6837 = vadd.f32 %v6836, %v6765
        %v6838 = vadd.f32 %v6638, %v6702
        %v6839 = vadd.f32 %v6838, %v6766
        %v6840 = vadd.f32 %v6639, %v6703
        %v6841 = vadd.f32 %v6840, %v6767
        %v6842 = vadd.f32 %v6640, %v6704
        %v6843 = vadd.f32 %v6842, %v6768
        %v6844 = vadd.f32 %v6641, %v6705
        %v6845 = vadd.f32 %v6844, %v6769
        %v6846 = vadd.f32 %v6642, %v6706
        %v6847 = vadd.f32 %v6846, %v6770
        %v6848 = vadd.f32 %v6643, %v6707
        %v6849 = vadd.f32 %v6848, %v6771
        %v6850 = vadd.f32 %v6644, %v6708
        %v6851 = vadd.f32 %v6850, %v6772
        %v6852 = vadd.f32 %v6645, %v6709
        %v6853 = vadd.f32 %v6852, %v6773
        %v6854 = vadd.f32 %v6646, %v6710
        %v6855 = vadd.f32 %v6854, %v6774
        %v6856 = vadd.f32 %v6647, %v6711
        %v6857 = vadd.f32 %v6856, %v6775
        %v6858 = vadd.f32 %v6648, %v6712
        %v6859 = vadd.f32 %v6858, %v6776
        %v6860 = vadd.f32 %v6649, %v6713
        %v6861 = vadd.f32 %v6860, %v6777
        %v6862 = vadd.f32 %v6650, %v6714
        %v6863 = vadd.f32 %v6862, %v6778
        %v6864 = vadd.f32 %v6651, %v6715
        %v6865 = vadd.f32 %v6864, %v6779
        %v6866 = vadd.f32 %v6652, %v6716
        %v6867 = vadd.f32 %v6866, %v6780
        %v6868 = vadd.f32 %v6653, %v6717
        %v6869 = vadd.f32 %v6868, %v6781
        %v6870 = vadd.f32 %v6654, %v6718
        %v6871 = vadd.f32 %v6870, %v6782
        %v6872 = vadd.f32 %v6655, %v6719
        %v6873 = vadd.f32 %v6872, %v6783
        %v6874 = vadd.f32 %v6656, %v6720
        %v6875 = vadd.f32 %v6874, %v6784
        %v6876 = vadd.f32 %v6657, %v6721
        %v6877 = vadd.f32 %v6876, %v6785
        %v6878 = vadd.f32 %v6658, %v6722
        %v6879 = vadd.f32 %v6878, %v6786
        %v6880 = vadd.f32 %v6659, %v6723
        %v6881 = vadd.f32 %v6880, %v6787
        %v6882 = vadd.f32 %v6660, %v6724
        %v6883 = vadd.f32 %v6882, %v6788
        %v6884 = vadd.f32 %v6661, %v6725
        %v6885 = vadd.f32 %v6884, %v6789
        %v6886 = vadd.f32 %v6662, %v6726
        %v6887 = vadd.f32 %v6886, %v6790
        %v6888 = vadd.f32 %v6663, %v6727
        %v6889 = vadd.f32 %v6888, %v6791
        %v6890 = vadd.f32 %v6664, %v6728
        %v6891 = vadd.f32 %v6890, %v6792
        %v6892 = vadd.f32 %v6665, %v6729
        %v6893 = vadd.f32 %v6892, %v6793
        %v6894 = vadd.f32 %v6666, %v6730
        %v6895 = vadd.f32 %v6894, %v6794
        %v6896 = vadd.f32 %v6667, %v6731
        %v6897 = vadd.f32 %v6896, %v6795
        %v6898 = vadd.f32 %v6668, %v6732
        %v6899 = vadd.f32 %v6898, %v6796
        %v6900 = vadd.f32 %v6669, %v6733
        %v6901 = vadd.f32 %v6900, %v6797
        %v6902 = vadd.f32 %v6670, %v6734
        %v6903 = vadd.f32 %v6902, %v6798
        %v6904 = vadd.f32 %v6671, %v6735
        %v6905 = vadd.f32 %v6904, %v6799
        %v6906 = vadd.f32 %v6672, %v6736
        %v6907 = vadd.f32 %v6906, %v6800
        %v6908 = vadd.f32 %v6673, %v6737
        %v6909 = vadd.f32 %v6908, %v6801
        %v6910 = vadd.f32 %v6674, %v6738
        %v6911 = vadd.f32 %v6910, %v6802
        %v6912 = vadd.f32 %v6675, %v6739
        %v6913 = vadd.f32 %v6912, %v6803
        %v6914 = vadd.f32 %v6676, %v6740
        %v6915 = vadd.f32 %v6914, %v6804
        %v6916 = vadd.f32 %v6677, %v6741
        %v6917 = vadd.f32 %v6916, %v6805
        %v6918 = vadd.f32 %v6678, %v6742
        %v6919 = vadd.f32 %v6918, %v6806
        %v6920 = vadd.f32 %v6679, %v6743
        %v6921 = vadd.f32 %v6920, %v6807
        %v6922 = vadd.f32 %v6680, %v6744
        %v6923 = vadd.f32 %v6922, %v6808
        %v6924 = vadd.f32 %v6681, %v6745
        %v6925 = vadd.f32 %v6924, %v6809
        %v6926 = vadd.f32 %v6682, %v6746
        %v6927 = vadd.f32 %v6926, %v6810
        %v6928 = vadd.f32 %v6683, %v6747
        %v6929 = vadd.f32 %v6928, %v6811
        %v6930 = vadd.f32 %v6684, %v6748
        %v6931 = vadd.f32 %v6930, %v6812
        %v6932 = vadd.f32 %v6685, %v6749
        %v6933 = vadd.f32 %v6932, %v6813
        %v6934 = vadd.f32 %v6686, %v6750
        %v6935 = vadd.f32 %v6934, %v6814
        %v6936 = vadd.f32 %v6687, %v6751
        %v6937 = vadd.f32 %v6936, %v6815
        %v6938 = vadd.f32 %v6688, %v6752
        %v6939 = vadd.f32 %v6938, %v6816
        %v6940 = vadd.f32 %v6689, %v6753
        %v6941 = vadd.f32 %v6940, %v6817
        %v6942 = vadd.f32 %v6690, %v6754
        %v6943 = vadd.f32 %v6942, %v6818
        %v6944 = vadd.f32 %v6691, %v6755
        %v6945 = vadd.f32 %v6944, %v6819
        %v6946 = vadd.f32 %v6692, %v6756
        %v6947 = vadd.f32 %v6946, %v6820
        %v6948 = vadd.f32 %v6693, %v6757
        %v6949 = vadd.f32 %v6948, %v6821
        %v6950 = vpack.c.bf16 %v6831, %v6823
        %v6951 = vpack.c.bf16 %v6833, %v6825
        %v6952 = vpack.c.bf16 %v6835, %v6827
        %v6953 = vpack.c.bf16 %v6837, %v6829
        %v6954 = vpack.c.bf16 %v6847, %v6839
        %v6955 = vpack.c.bf16 %v6849, %v6841
        %v6956 = vpack.c.bf16 %v6851, %v6843
        %v6957 = vpack.c.bf16 %v6853, %v6845
        %v6958 = vpack.c.bf16 %v6863, %v6855
        %v6959 = vpack.c.bf16 %v6865, %v6857
        %v6960 = vpack.c.bf16 %v6867, %v6859
        %v6961 = vpack.c.bf16 %v6869, %v6861
        %v6962 = vpack.c.bf16 %v6879, %v6871
        %v6963 = vpack.c.bf16 %v6881, %v6873
        %v6964 = vpack.c.bf16 %v6883, %v6875
        %v6965 = vpack.c.bf16 %v6885, %v6877
        %v6966 = vpack.c.bf16 %v6895, %v6887
        %v6967 = vpack.c.bf16 %v6897, %v6889
        %v6968 = vpack.c.bf16 %v6899, %v6891
        %v6969 = vpack.c.bf16 %v6901, %v6893
        %v6970 = vpack.c.bf16 %v6911, %v6903
        %v6971 = vpack.c.bf16 %v6913, %v6905
        %v6972 = vpack.c.bf16 %v6915, %v6907
        %v6973 = vpack.c.bf16 %v6917, %v6909
        %v6974 = vpack.c.bf16 %v6927, %v6919
        %v6975 = vpack.c.bf16 %v6929, %v6921
        %v6976 = vpack.c.bf16 %v6931, %v6923
        %v6977 = vpack.c.bf16 %v6933, %v6925
        %v6978 = vpack.c.bf16 %v6943, %v6935
        %v6979 = vpack.c.bf16 %v6945, %v6937
        %v6980 = vpack.c.bf16 %v6947, %v6939
        %v6981 = vpack.c.bf16 %v6949, %v6941
        %v6982 = vunpack.c.l.bf16 %v6950
        %v6983 = vunpack.c.l.bf16 %v6951
        %v6984 = vunpack.c.l.bf16 %v6952
        %v6985 = vunpack.c.l.bf16 %v6953
        %v6986 = vunpack.c.h.bf16 %v6950
        %v6987 = vunpack.c.h.bf16 %v6951
        %v6988 = vunpack.c.h.bf16 %v6952
        %v6989 = vunpack.c.h.bf16 %v6953
        %v6990 = vunpack.c.l.bf16 %v6954
        %v6991 = vunpack.c.l.bf16 %v6955
        %v6992 = vunpack.c.l.bf16 %v6956
        %v6993 = vunpack.c.l.bf16 %v6957
        %v6994 = vunpack.c.h.bf16 %v6954
        %v6995 = vunpack.c.h.bf16 %v6955
        %v6996 = vunpack.c.h.bf16 %v6956
        %v6997 = vunpack.c.h.bf16 %v6957
        %v6998 = vunpack.c.l.bf16 %v6958
        %v6999 = vunpack.c.l.bf16 %v6959
        %v7000 = vunpack.c.l.bf16 %v6960
        %v7001 = vunpack.c.l.bf16 %v6961
        %v7002 = vunpack.c.h.bf16 %v6958
        %v7003 = vunpack.c.h.bf16 %v6959
        %v7004 = vunpack.c.h.bf16 %v6960
        %v7005 = vunpack.c.h.bf16 %v6961
        %v7006 = vunpack.c.l.bf16 %v6962
        %v7007 = vunpack.c.l.bf16 %v6963
        %v7008 = vunpack.c.l.bf16 %v6964
        %v7009 = vunpack.c.l.bf16 %v6965
        %v7010 = vunpack.c.h.bf16 %v6962
        %v7011 = vunpack.c.h.bf16 %v6963
        %v7012 = vunpack.c.h.bf16 %v6964
        %v7013 = vunpack.c.h.bf16 %v6965
        %v7014 = vunpack.c.l.bf16 %v6966
        %v7015 = vunpack.c.l.bf16 %v6967
        %v7016 = vunpack.c.l.bf16 %v6968
        %v7017 = vunpack.c.l.bf16 %v6969
        %v7018 = vunpack.c.h.bf16 %v6966
        %v7019 = vunpack.c.h.bf16 %v6967
        %v7020 = vunpack.c.h.bf16 %v6968
        %v7021 = vunpack.c.h.bf16 %v6969
        %v7022 = vunpack.c.l.bf16 %v6970
        %v7023 = vunpack.c.l.bf16 %v6971
        %v7024 = vunpack.c.l.bf16 %v6972
        %v7025 = vunpack.c.l.bf16 %v6973
        %v7026 = vunpack.c.h.bf16 %v6970
        %v7027 = vunpack.c.h.bf16 %v6971
        %v7028 = vunpack.c.h.bf16 %v6972
        %v7029 = vunpack.c.h.bf16 %v6973
        %v7030 = vunpack.c.l.bf16 %v6974
        %v7031 = vunpack.c.l.bf16 %v6975
        %v7032 = vunpack.c.l.bf16 %v6976
        %v7033 = vunpack.c.l.bf16 %v6977
        %v7034 = vunpack.c.h.bf16 %v6974
        %v7035 = vunpack.c.h.bf16 %v6975
        %v7036 = vunpack.c.h.bf16 %v6976
        %v7037 = vunpack.c.h.bf16 %v6977
        %v7038 = vunpack.c.l.bf16 %v6978
        %v7039 = vunpack.c.l.bf16 %v6979
        %v7040 = vunpack.c.l.bf16 %v6980
        %v7041 = vunpack.c.l.bf16 %v6981
        %v7042 = vunpack.c.h.bf16 %v6978
        %v7043 = vunpack.c.h.bf16 %v6979
        %v7044 = vunpack.c.h.bf16 %v6980
        %v7045 = vunpack.c.h.bf16 %v6981
        %v7046 = vadd.f32 %v6982, 1e-06
        %v7047 = vadd.f32 %v6983, 1e-06
        %v7048 = vadd.f32 %v6984, 1e-06
        %v7049 = vadd.f32 %v6985, 1e-06
        %v7050 = vadd.f32 %v6986, 1e-06
        %v7051 = vadd.f32 %v6987, 1e-06
        %v7052 = vadd.f32 %v6988, 1e-06
        %v7053 = vadd.f32 %v6989, 1e-06
        %v7054 = vadd.f32 %v6990, 1e-06
        %v7055 = vadd.f32 %v6991, 1e-06
        %v7056 = vadd.f32 %v6992, 1e-06
        %v7057 = vadd.f32 %v6993, 1e-06
        %v7058 = vadd.f32 %v6994, 1e-06
        %v7059 = vadd.f32 %v6995, 1e-06
        %v7060 = vadd.f32 %v6996, 1e-06
        %v7061 = vadd.f32 %v6997, 1e-06
        %v7062 = vadd.f32 %v6998, 1e-06
        %v7063 = vadd.f32 %v6999, 1e-06
        %v7064 = vadd.f32 %v7000, 1e-06
        %v7065 = vadd.f32 %v7001, 1e-06
        %v7066 = vadd.f32 %v7002, 1e-06
        %v7067 = vadd.f32 %v7003, 1e-06
        %v7068 = vadd.f32 %v7004, 1e-06
        %v7069 = vadd.f32 %v7005, 1e-06
        %v7070 = vadd.f32 %v7006, 1e-06
        %v7071 = vadd.f32 %v7007, 1e-06
        %v7072 = vadd.f32 %v7008, 1e-06
        %v7073 = vadd.f32 %v7009, 1e-06
        %v7074 = vadd.f32 %v7010, 1e-06
        %v7075 = vadd.f32 %v7011, 1e-06
        %v7076 = vadd.f32 %v7012, 1e-06
        %v7077 = vadd.f32 %v7013, 1e-06
        %v7078 = vadd.f32 %v7014, 1e-06
        %v7079 = vadd.f32 %v7015, 1e-06
        %v7080 = vadd.f32 %v7016, 1e-06
        %v7081 = vadd.f32 %v7017, 1e-06
        %v7082 = vadd.f32 %v7018, 1e-06
        %v7083 = vadd.f32 %v7019, 1e-06
        %v7084 = vadd.f32 %v7020, 1e-06
        %v7085 = vadd.f32 %v7021, 1e-06
        %v7086 = vadd.f32 %v7022, 1e-06
        %v7087 = vadd.f32 %v7023, 1e-06
        %v7088 = vadd.f32 %v7024, 1e-06
        %v7089 = vadd.f32 %v7025, 1e-06
        %v7090 = vadd.f32 %v7026, 1e-06
        %v7091 = vadd.f32 %v7027, 1e-06
        %v7092 = vadd.f32 %v7028, 1e-06
        %v7093 = vadd.f32 %v7029, 1e-06
        %v7094 = vadd.f32 %v7030, 1e-06
        %v7095 = vadd.f32 %v7031, 1e-06
        %v7096 = vadd.f32 %v7032, 1e-06
        %v7097 = vadd.f32 %v7033, 1e-06
        %v7098 = vadd.f32 %v7034, 1e-06
        %v7099 = vadd.f32 %v7035, 1e-06
        %v7100 = vadd.f32 %v7036, 1e-06
        %v7101 = vadd.f32 %v7037, 1e-06
        %v7102 = vadd.f32 %v7038, 1e-06
        %v7103 = vadd.f32 %v7039, 1e-06
        %v7104 = vadd.f32 %v7040, 1e-06
        %v7105 = vadd.f32 %v7041, 1e-06
        %v7106 = vadd.f32 %v7042, 1e-06
        %v7107 = vadd.f32 %v7043, 1e-06
        %v7108 = vadd.f32 %v7044, 1e-06
        %v7109 = vadd.f32 %v7045, 1e-06
        %v7110 = vrcp.pop %v7046
        %v7111 = vmul.f32 %v6470, %v7110
        %v7112 = vrcp.pop %v7047
        %v7113 = vmul.f32 %v6471, %v7112
        %v7114 = vrcp.pop %v7048
        %v7115 = vmul.f32 %v6472, %v7114
        %v7116 = vrcp.pop %v7049
        %v7117 = vmul.f32 %v6473, %v7116
        %v7118 = vrcp.pop %v7050
        %v7119 = vmul.f32 %v6474, %v7118
        %v7120 = vrcp.pop %v7051
        %v7121 = vmul.f32 %v6475, %v7120
        %v7122 = vrcp.pop %v7052
        %v7123 = vmul.f32 %v6476, %v7122
        %v7124 = vrcp.pop %v7053
        %v7125 = vmul.f32 %v6477, %v7124
        %v7126 = vrcp.pop %v7054
        %v7127 = vmul.f32 %v6478, %v7126
        %v7128 = vrcp.pop %v7055
        %v7129 = vmul.f32 %v6479, %v7128
        %v7130 = vrcp.pop %v7056
        %v7131 = vmul.f32 %v6480, %v7130
        %v7132 = vrcp.pop %v7057
        %v7133 = vmul.f32 %v6481, %v7132
        %v7134 = vrcp.pop %v7058
        %v7135 = vmul.f32 %v6482, %v7134
        %v7136 = vrcp.pop %v7059
        %v7137 = vmul.f32 %v6483, %v7136
        %v7138 = vrcp.pop %v7060
        %v7139 = vmul.f32 %v6484, %v7138
        %v7140 = vrcp.pop %v7061
        %v7141 = vmul.f32 %v6485, %v7140
        %v7142 = vrcp.pop %v7062
        %v7143 = vmul.f32 %v6486, %v7142
        %v7144 = vrcp.pop %v7063
        %v7145 = vmul.f32 %v6487, %v7144
        %v7146 = vrcp.pop %v7064
        %v7147 = vmul.f32 %v6488, %v7146
        %v7148 = vrcp.pop %v7065
        %v7149 = vmul.f32 %v6489, %v7148
        %v7150 = vrcp.pop %v7066
        %v7151 = vmul.f32 %v6490, %v7150
        %v7152 = vrcp.pop %v7067
        %v7153 = vmul.f32 %v6491, %v7152
        %v7154 = vrcp.pop %v7068
        %v7155 = vmul.f32 %v6492, %v7154
        %v7156 = vrcp.pop %v7069
        %v7157 = vmul.f32 %v6493, %v7156
        %v7158 = vrcp.pop %v7070
        %v7159 = vmul.f32 %v6494, %v7158
        %v7160 = vrcp.pop %v7071
        %v7161 = vmul.f32 %v6495, %v7160
        %v7162 = vrcp.pop %v7072
        %v7163 = vmul.f32 %v6496, %v7162
        %v7164 = vrcp.pop %v7073
        %v7165 = vmul.f32 %v6497, %v7164
        %v7166 = vrcp.pop %v7074
        %v7167 = vmul.f32 %v6498, %v7166
        %v7168 = vrcp.pop %v7075
        %v7169 = vmul.f32 %v6499, %v7168
        %v7170 = vrcp.pop %v7076
        %v7171 = vmul.f32 %v6500, %v7170
        %v7172 = vrcp.pop %v7077
        %v7173 = vmul.f32 %v6501, %v7172
        %v7174 = vrcp.pop %v7078
        %v7175 = vmul.f32 %v6502, %v7174
        %v7176 = vrcp.pop %v7079
        %v7177 = vmul.f32 %v6503, %v7176
        %v7178 = vrcp.pop %v7080
        %v7179 = vmul.f32 %v6504, %v7178
        %v7180 = vrcp.pop %v7081
        %v7181 = vmul.f32 %v6505, %v7180
        %v7182 = vrcp.pop %v7082
        %v7183 = vmul.f32 %v6506, %v7182
        %v7184 = vrcp.pop %v7083
        %v7185 = vmul.f32 %v6507, %v7184
        %v7186 = vrcp.pop %v7084
        %v7187 = vmul.f32 %v6508, %v7186
        %v7188 = vrcp.pop %v7085
        %v7189 = vmul.f32 %v6509, %v7188
        %v7190 = vrcp.pop %v7086
        %v7191 = vmul.f32 %v6510, %v7190
        %v7192 = vrcp.pop %v7087
        %v7193 = vmul.f32 %v6511, %v7192
        %v7194 = vrcp.pop %v7088
        %v7195 = vmul.f32 %v6512, %v7194
        %v7196 = vrcp.pop %v7089
        %v7197 = vmul.f32 %v6513, %v7196
        %v7198 = vrcp.pop %v7090
        %v7199 = vmul.f32 %v6514, %v7198
        %v7200 = vrcp.pop %v7091
        %v7201 = vmul.f32 %v6515, %v7200
        %v7202 = vrcp.pop %v7092
        %v7203 = vmul.f32 %v6516, %v7202
        %v7204 = vrcp.pop %v7093
        %v7205 = vmul.f32 %v6517, %v7204
        %v7206 = vrcp.pop %v7094
        %v7207 = vmul.f32 %v6518, %v7206
        %v7208 = vrcp.pop %v7095
        %v7209 = vmul.f32 %v6519, %v7208
        %v7210 = vrcp.pop %v7096
        %v7211 = vmul.f32 %v6520, %v7210
        %v7212 = vrcp.pop %v7097
        %v7213 = vmul.f32 %v6521, %v7212
        %v7214 = vrcp.pop %v7098
        %v7215 = vmul.f32 %v6522, %v7214
        %v7216 = vrcp.pop %v7099
        %v7217 = vmul.f32 %v6523, %v7216
        %v7218 = vrcp.pop %v7100
        %v7219 = vmul.f32 %v6524, %v7218
        %v7220 = vrcp.pop %v7101
        %v7221 = vmul.f32 %v6525, %v7220
        %v7222 = vrcp.pop %v7102
        %v7223 = vmul.f32 %v6526, %v7222
        %v7224 = vrcp.pop %v7103
        %v7225 = vmul.f32 %v6527, %v7224
        %v7226 = vrcp.pop %v7104
        %v7227 = vmul.f32 %v6528, %v7226
        %v7228 = vrcp.pop %v7105
        %v7229 = vmul.f32 %v6529, %v7228
        %v7230 = vrcp.pop %v7106
        %v7231 = vmul.f32 %v6530, %v7230
        %v7232 = vrcp.pop %v7107
        %v7233 = vmul.f32 %v6531, %v7232
        %v7234 = vrcp.pop %v7108
        %v7235 = vmul.f32 %v6532, %v7234
        %v7236 = vrcp.pop %v7109
        %v7237 = vmul.f32 %v6533, %v7236
        %v7238 = vmin.f32 %v7111, 0.0
        %v7239 = vmin.f32 %v7113, 0.0
        %v7240 = vmin.f32 %v7115, 0.0
        %v7241 = vmin.f32 %v7117, 0.0
        %v7242 = vmin.f32 %v7119, 0.0
        %v7243 = vmin.f32 %v7121, 0.0
        %v7244 = vmin.f32 %v7123, 0.0
        %v7245 = vmin.f32 %v7125, 0.0
        %v7246 = vmin.f32 %v7127, 0.0
        %v7247 = vmin.f32 %v7129, 0.0
        %v7248 = vmin.f32 %v7131, 0.0
        %v7249 = vmin.f32 %v7133, 0.0
        %v7250 = vmin.f32 %v7135, 0.0
        %v7251 = vmin.f32 %v7137, 0.0
        %v7252 = vmin.f32 %v7139, 0.0
        %v7253 = vmin.f32 %v7141, 0.0
        %v7254 = vmin.f32 %v7143, 0.0
        %v7255 = vmin.f32 %v7145, 0.0
        %v7256 = vmin.f32 %v7147, 0.0
        %v7257 = vmin.f32 %v7149, 0.0
        %v7258 = vmin.f32 %v7151, 0.0
        %v7259 = vmin.f32 %v7153, 0.0
        %v7260 = vmin.f32 %v7155, 0.0
        %v7261 = vmin.f32 %v7157, 0.0
        %v7262 = vmin.f32 %v7159, 0.0
        %v7263 = vmin.f32 %v7161, 0.0
        %v7264 = vmin.f32 %v7163, 0.0
        %v7265 = vmin.f32 %v7165, 0.0
        %v7266 = vmin.f32 %v7167, 0.0
        %v7267 = vmin.f32 %v7169, 0.0
        %v7268 = vmin.f32 %v7171, 0.0
        %v7269 = vmin.f32 %v7173, 0.0
        %v7270 = vmin.f32 %v7175, 0.0
        %v7271 = vmin.f32 %v7177, 0.0
        %v7272 = vmin.f32 %v7179, 0.0
        %v7273 = vmin.f32 %v7181, 0.0
        %v7274 = vmin.f32 %v7183, 0.0
        %v7275 = vmin.f32 %v7185, 0.0
        %v7276 = vmin.f32 %v7187, 0.0
        %v7277 = vmin.f32 %v7189, 0.0
        %v7278 = vmin.f32 %v7191, 0.0
        %v7279 = vmin.f32 %v7193, 0.0
        %v7280 = vmin.f32 %v7195, 0.0
        %v7281 = vmin.f32 %v7197, 0.0
        %v7282 = vmin.f32 %v7199, 0.0
        %v7283 = vmin.f32 %v7201, 0.0
        %v7284 = vmin.f32 %v7203, 0.0
        %v7285 = vmin.f32 %v7205, 0.0
        %v7286 = vmin.f32 %v7207, 0.0
        %v7287 = vmin.f32 %v7209, 0.0
        %v7288 = vmin.f32 %v7211, 0.0
        %v7289 = vmin.f32 %v7213, 0.0
        %v7290 = vmin.f32 %v7215, 0.0
        %v7291 = vmin.f32 %v7217, 0.0
        %v7292 = vmin.f32 %v7219, 0.0
        %v7293 = vmin.f32 %v7221, 0.0
        %v7294 = vmin.f32 %v7223, 0.0
        %v7295 = vmin.f32 %v7225, 0.0
        %v7296 = vmin.f32 %v7227, 0.0
        %v7297 = vmin.f32 %v7229, 0.0
        %v7298 = vmin.f32 %v7231, 0.0
        %v7299 = vmin.f32 %v7233, 0.0
        %v7300 = vmin.f32 %v7235, 0.0
        %v7301 = vmin.f32 %v7237, 0.0
        %v7302 = vpack.c.bf16 %v7242, %v7238
        %v7303 = vpack.c.bf16 %v7243, %v7239
        %v7304 = vpack.c.bf16 %v7244, %v7240
        %v7305 = vpack.c.bf16 %v7245, %v7241
        %v7306 = vpack.c.bf16 %v7250, %v7246
        %v7307 = vpack.c.bf16 %v7251, %v7247
        %v7308 = vpack.c.bf16 %v7252, %v7248
        %v7309 = vpack.c.bf16 %v7253, %v7249
        %v7310 = vpack.c.bf16 %v7258, %v7254
        %v7311 = vpack.c.bf16 %v7259, %v7255
        %v7312 = vpack.c.bf16 %v7260, %v7256
        %v7313 = vpack.c.bf16 %v7261, %v7257
        %v7314 = vpack.c.bf16 %v7266, %v7262
        %v7315 = vpack.c.bf16 %v7267, %v7263
        %v7316 = vpack.c.bf16 %v7268, %v7264
        %v7317 = vpack.c.bf16 %v7269, %v7265
        %v7318 = vpack.c.bf16 %v7274, %v7270
        %v7319 = vpack.c.bf16 %v7275, %v7271
        %v7320 = vpack.c.bf16 %v7276, %v7272
        %v7321 = vpack.c.bf16 %v7277, %v7273
        %v7322 = vpack.c.bf16 %v7282, %v7278
        %v7323 = vpack.c.bf16 %v7283, %v7279
        %v7324 = vpack.c.bf16 %v7284, %v7280
        %v7325 = vpack.c.bf16 %v7285, %v7281
        %v7326 = vpack.c.bf16 %v7290, %v7286
        %v7327 = vpack.c.bf16 %v7291, %v7287
        %v7328 = vpack.c.bf16 %v7292, %v7288
        %v7329 = vpack.c.bf16 %v7293, %v7289
        %v7330 = vpack.c.bf16 %v7298, %v7294
        %v7331 = vpack.c.bf16 %v7299, %v7295
        %v7332 = vpack.c.bf16 %v7300, %v7296
        %v7333 = vpack.c.bf16 %v7301, %v7297
        %v7334 = vmul.bf16 %v7302, %v5926
        %v7335 = vmul.bf16 %v7303, %v5927
        %v7336 = vmul.bf16 %v7304, %v5928
        %v7337 = vmul.bf16 %v7305, %v5929
        %v7338 = vmul.bf16 %v7306, %v5930
        %v7339 = vmul.bf16 %v7307, %v5931
        %v7340 = vmul.bf16 %v7308, %v5932
        %v7341 = vmul.bf16 %v7309, %v5933
        %v7342 = vmul.bf16 %v7310, %v5934
        %v7343 = vmul.bf16 %v7311, %v5935
        %v7344 = vmul.bf16 %v7312, %v5936
        %v7345 = vmul.bf16 %v7313, %v5937
        %v7346 = vmul.bf16 %v7314, %v5938
        %v7347 = vmul.bf16 %v7315, %v5939
        %v7348 = vmul.bf16 %v7316, %v5940
        %v7349 = vmul.bf16 %v7317, %v5941
        %v7350 = vmul.bf16 %v7318, %v5942
        %v7351 = vmul.bf16 %v7319, %v5943
        %v7352 = vmul.bf16 %v7320, %v5944
        %v7353 = vmul.bf16 %v7321, %v5945
        %v7354 = vmul.bf16 %v7322, %v5946
        %v7355 = vmul.bf16 %v7323, %v5947
        %v7356 = vmul.bf16 %v7324, %v5948
        %v7357 = vmul.bf16 %v7325, %v5949
        %v7358 = vmul.bf16 %v7326, %v5950
        %v7359 = vmul.bf16 %v7327, %v5951
        %v7360 = vmul.bf16 %v7328, %v5952
        %v7361 = vmul.bf16 %v7329, %v5953
        %v7362 = vmul.bf16 %v7330, %v5954
        %v7363 = vmul.bf16 %v7331, %v5955
        %v7364 = vmul.bf16 %v7332, %v5956
        %v7365 = vmul.bf16 %v7333, %v5957
        %v7366 = vmul.bf16 %v7302, %v5958
        %v7367 = vmul.bf16 %v7303, %v5959
        %v7368 = vmul.bf16 %v7304, %v5960
        %v7369 = vmul.bf16 %v7305, %v5961
        %v7370 = vmul.bf16 %v7306, %v5962
        %v7371 = vmul.bf16 %v7307, %v5963
        %v7372 = vmul.bf16 %v7308, %v5964
        %v7373 = vmul.bf16 %v7309, %v5965
        %v7374 = vmul.bf16 %v7310, %v5966
        %v7375 = vmul.bf16 %v7311, %v5967
        %v7376 = vmul.bf16 %v7312, %v5968
        %v7377 = vmul.bf16 %v7313, %v5969
        %v7378 = vmul.bf16 %v7314, %v5970
        %v7379 = vmul.bf16 %v7315, %v5971
        %v7380 = vmul.bf16 %v7316, %v5972
        %v7381 = vmul.bf16 %v7317, %v5973
        %v7382 = vmul.bf16 %v7318, %v5974
        %v7383 = vmul.bf16 %v7319, %v5975
        %v7384 = vmul.bf16 %v7320, %v5976
        %v7385 = vmul.bf16 %v7321, %v5977
        %v7386 = vmul.bf16 %v7322, %v5978
        %v7387 = vmul.bf16 %v7323, %v5979
        %v7388 = vmul.bf16 %v7324, %v5980
        %v7389 = vmul.bf16 %v7325, %v5981
        %v7390 = vmul.bf16 %v7326, %v5982
        %v7391 = vmul.bf16 %v7327, %v5983
        %v7392 = vmul.bf16 %v7328, %v5984
        %v7393 = vmul.bf16 %v7329, %v5985
        %v7394 = vmul.bf16 %v7330, %v5986
        %v7395 = vmul.bf16 %v7331, %v5987
        %v7396 = vmul.bf16 %v7332, %v5988
        %v7397 = vmul.bf16 %v7333, %v5989
        %v7398 = vmul.bf16 %v7302, %v5990
        %v7399 = vmul.bf16 %v7303, %v5991
        %v7400 = vmul.bf16 %v7304, %v5992
        %v7401 = vmul.bf16 %v7305, %v5993
        %v7402 = vmul.bf16 %v7306, %v5994
        %v7403 = vmul.bf16 %v7307, %v5995
        %v7404 = vmul.bf16 %v7308, %v5996
        %v7405 = vmul.bf16 %v7309, %v5997
        %v7406 = vmul.bf16 %v7310, %v5998
        %v7407 = vmul.bf16 %v7311, %v5999
        %v7408 = vmul.bf16 %v7312, %v6000
        %v7409 = vmul.bf16 %v7313, %v6001
        %v7410 = vmul.bf16 %v7314, %v6002
        %v7411 = vmul.bf16 %v7315, %v6003
        %v7412 = vmul.bf16 %v7316, %v6004
        %v7413 = vmul.bf16 %v7317, %v6005
        %v7414 = vmul.bf16 %v7318, %v6006
        %v7415 = vmul.bf16 %v7319, %v6007
        %v7416 = vmul.bf16 %v7320, %v6008
        %v7417 = vmul.bf16 %v7321, %v6009
        %v7418 = vmul.bf16 %v7322, %v6010
        %v7419 = vmul.bf16 %v7323, %v6011
        %v7420 = vmul.bf16 %v7324, %v6012
        %v7421 = vmul.bf16 %v7325, %v6013
        %v7422 = vmul.bf16 %v7326, %v6014
        %v7423 = vmul.bf16 %v7327, %v6015
        %v7424 = vmul.bf16 %v7328, %v6016
        %v7425 = vmul.bf16 %v7329, %v6017
        %v7426 = vmul.bf16 %v7330, %v6018
        %v7427 = vmul.bf16 %v7331, %v6019
        %v7428 = vmul.bf16 %v7332, %v6020
        %v7429 = vmul.bf16 %v7333, %v6021
        %v7430 = vsub.bf16 %v5830, %v7334
        %v7431 = vsub.bf16 %v5831, %v7335
        %v7432 = vsub.bf16 %v5832, %v7336
        %v7433 = vsub.bf16 %v5833, %v7337
        %v7434 = vsub.bf16 %v5834, %v7338
        %v7435 = vsub.bf16 %v5835, %v7339
        %v7436 = vsub.bf16 %v5836, %v7340
        %v7437 = vsub.bf16 %v5837, %v7341
        %v7438 = vsub.bf16 %v5838, %v7342
        %v7439 = vsub.bf16 %v5839, %v7343
        %v7440 = vsub.bf16 %v5840, %v7344
        %v7441 = vsub.bf16 %v5841, %v7345
        %v7442 = vsub.bf16 %v5842, %v7346
        %v7443 = vsub.bf16 %v5843, %v7347
        %v7444 = vsub.bf16 %v5844, %v7348
        %v7445 = vsub.bf16 %v5845, %v7349
        %v7446 = vsub.bf16 %v5846, %v7350
        %v7447 = vsub.bf16 %v5847, %v7351
        %v7448 = vsub.bf16 %v5848, %v7352
        %v7449 = vsub.bf16 %v5849, %v7353
        %v7450 = vsub.bf16 %v5850, %v7354
        %v7451 = vsub.bf16 %v5851, %v7355
        %v7452 = vsub.bf16 %v5852, %v7356
        %v7453 = vsub.bf16 %v5853, %v7357
        %v7454 = vsub.bf16 %v5854, %v7358
        %v7455 = vsub.bf16 %v5855, %v7359
        %v7456 = vsub.bf16 %v5856, %v7360
        %v7457 = vsub.bf16 %v5857, %v7361
        %v7458 = vsub.bf16 %v5858, %v7362
        %v7459 = vsub.bf16 %v5859, %v7363
        %v7460 = vsub.bf16 %v5860, %v7364
        %v7461 = vsub.bf16 %v5861, %v7365
        %v7462 = vsub.bf16 %v5862, %v7366
        %v7463 = vsub.bf16 %v5863, %v7367
        %v7464 = vsub.bf16 %v5864, %v7368
        %v7465 = vsub.bf16 %v5865, %v7369
        %v7466 = vsub.bf16 %v5866, %v7370
        %v7467 = vsub.bf16 %v5867, %v7371
        %v7468 = vsub.bf16 %v5868, %v7372
        %v7469 = vsub.bf16 %v5869, %v7373
        %v7470 = vsub.bf16 %v5870, %v7374
        %v7471 = vsub.bf16 %v5871, %v7375
        %v7472 = vsub.bf16 %v5872, %v7376
        %v7473 = vsub.bf16 %v5873, %v7377
        %v7474 = vsub.bf16 %v5874, %v7378
        %v7475 = vsub.bf16 %v5875, %v7379
        %v7476 = vsub.bf16 %v5876, %v7380
        %v7477 = vsub.bf16 %v5877, %v7381
        %v7478 = vsub.bf16 %v5878, %v7382
        %v7479 = vsub.bf16 %v5879, %v7383
        %v7480 = vsub.bf16 %v5880, %v7384
        %v7481 = vsub.bf16 %v5881, %v7385
        %v7482 = vsub.bf16 %v5882, %v7386
        %v7483 = vsub.bf16 %v5883, %v7387
        %v7484 = vsub.bf16 %v5884, %v7388
        %v7485 = vsub.bf16 %v5885, %v7389
        %v7486 = vsub.bf16 %v5886, %v7390
        %v7487 = vsub.bf16 %v5887, %v7391
        %v7488 = vsub.bf16 %v5888, %v7392
        %v7489 = vsub.bf16 %v5889, %v7393
        %v7490 = vsub.bf16 %v5890, %v7394
        %v7491 = vsub.bf16 %v5891, %v7395
        %v7492 = vsub.bf16 %v5892, %v7396
        %v7493 = vsub.bf16 %v5893, %v7397
        %v7494 = vsub.bf16 %v5894, %v7398
        %v7495 = vsub.bf16 %v5895, %v7399
        %v7496 = vsub.bf16 %v5896, %v7400
        %v7497 = vsub.bf16 %v5897, %v7401
        %v7498 = vsub.bf16 %v5898, %v7402
        %v7499 = vsub.bf16 %v5899, %v7403
        %v7500 = vsub.bf16 %v5900, %v7404
        %v7501 = vsub.bf16 %v5901, %v7405
        %v7502 = vsub.bf16 %v5902, %v7406
        %v7503 = vsub.bf16 %v5903, %v7407
        %v7504 = vsub.bf16 %v5904, %v7408
        %v7505 = vsub.bf16 %v5905, %v7409
        %v7506 = vsub.bf16 %v5906, %v7410
        %v7507 = vsub.bf16 %v5907, %v7411
        %v7508 = vsub.bf16 %v5908, %v7412
        %v7509 = vsub.bf16 %v5909, %v7413
        %v7510 = vsub.bf16 %v5910, %v7414
        %v7511 = vsub.bf16 %v5911, %v7415
        %v7512 = vsub.bf16 %v5912, %v7416
        %v7513 = vsub.bf16 %v5913, %v7417
        %v7514 = vsub.bf16 %v5914, %v7418
        %v7515 = vsub.bf16 %v5915, %v7419
        %v7516 = vsub.bf16 %v5916, %v7420
        %v7517 = vsub.bf16 %v5917, %v7421
        %v7518 = vsub.bf16 %v5918, %v7422
        %v7519 = vsub.bf16 %v5919, %v7423
        %v7520 = vsub.bf16 %v5920, %v7424
        %v7521 = vsub.bf16 %v5921, %v7425
        %v7522 = vsub.bf16 %v5922, %v7426
        %v7523 = vsub.bf16 %v5923, %v7427
        %v7524 = vsub.bf16 %v5924, %v7428
        %v7525 = vsub.bf16 %v5925, %v7429
        %v7526 = vunpack.c.l.bf16 %v7430
        %v7527 = vunpack.c.l.bf16 %v7431
        %v7528 = vunpack.c.l.bf16 %v7432
        %v7529 = vunpack.c.l.bf16 %v7433
        %v7530 = vunpack.c.h.bf16 %v7430
        %v7531 = vunpack.c.h.bf16 %v7431
        %v7532 = vunpack.c.h.bf16 %v7432
        %v7533 = vunpack.c.h.bf16 %v7433
        %v7534 = vunpack.c.l.bf16 %v7434
        %v7535 = vunpack.c.l.bf16 %v7435
        %v7536 = vunpack.c.l.bf16 %v7436
        %v7537 = vunpack.c.l.bf16 %v7437
        %v7538 = vunpack.c.h.bf16 %v7434
        %v7539 = vunpack.c.h.bf16 %v7435
        %v7540 = vunpack.c.h.bf16 %v7436
        %v7541 = vunpack.c.h.bf16 %v7437
        %v7542 = vunpack.c.l.bf16 %v7438
        %v7543 = vunpack.c.l.bf16 %v7439
        %v7544 = vunpack.c.l.bf16 %v7440
        %v7545 = vunpack.c.l.bf16 %v7441
        %v7546 = vunpack.c.h.bf16 %v7438
        %v7547 = vunpack.c.h.bf16 %v7439
        %v7548 = vunpack.c.h.bf16 %v7440
        %v7549 = vunpack.c.h.bf16 %v7441
        %v7550 = vunpack.c.l.bf16 %v7442
        %v7551 = vunpack.c.l.bf16 %v7443
        %v7552 = vunpack.c.l.bf16 %v7444
        %v7553 = vunpack.c.l.bf16 %v7445
        %v7554 = vunpack.c.h.bf16 %v7442
        %v7555 = vunpack.c.h.bf16 %v7443
        %v7556 = vunpack.c.h.bf16 %v7444
        %v7557 = vunpack.c.h.bf16 %v7445
        %v7558 = vunpack.c.l.bf16 %v7446
        %v7559 = vunpack.c.l.bf16 %v7447
        %v7560 = vunpack.c.l.bf16 %v7448
        %v7561 = vunpack.c.l.bf16 %v7449
        %v7562 = vunpack.c.h.bf16 %v7446
        %v7563 = vunpack.c.h.bf16 %v7447
        %v7564 = vunpack.c.h.bf16 %v7448
        %v7565 = vunpack.c.h.bf16 %v7449
        %v7566 = vunpack.c.l.bf16 %v7450
        %v7567 = vunpack.c.l.bf16 %v7451
        %v7568 = vunpack.c.l.bf16 %v7452
        %v7569 = vunpack.c.l.bf16 %v7453
        %v7570 = vunpack.c.h.bf16 %v7450
        %v7571 = vunpack.c.h.bf16 %v7451
        %v7572 = vunpack.c.h.bf16 %v7452
        %v7573 = vunpack.c.h.bf16 %v7453
        %v7574 = vunpack.c.l.bf16 %v7454
        %v7575 = vunpack.c.l.bf16 %v7455
        %v7576 = vunpack.c.l.bf16 %v7456
        %v7577 = vunpack.c.l.bf16 %v7457
        %v7578 = vunpack.c.h.bf16 %v7454
        %v7579 = vunpack.c.h.bf16 %v7455
        %v7580 = vunpack.c.h.bf16 %v7456
        %v7581 = vunpack.c.h.bf16 %v7457
        %v7582 = vunpack.c.l.bf16 %v7458
        %v7583 = vunpack.c.l.bf16 %v7459
        %v7584 = vunpack.c.l.bf16 %v7460
        %v7585 = vunpack.c.l.bf16 %v7461
        %v7586 = vunpack.c.h.bf16 %v7458
        %v7587 = vunpack.c.h.bf16 %v7459
        %v7588 = vunpack.c.h.bf16 %v7460
        %v7589 = vunpack.c.h.bf16 %v7461
        %v7590 = vunpack.c.l.bf16 %v7462
        %v7591 = vunpack.c.l.bf16 %v7463
        %v7592 = vunpack.c.l.bf16 %v7464
        %v7593 = vunpack.c.l.bf16 %v7465
        %v7594 = vunpack.c.h.bf16 %v7462
        %v7595 = vunpack.c.h.bf16 %v7463
        %v7596 = vunpack.c.h.bf16 %v7464
        %v7597 = vunpack.c.h.bf16 %v7465
        %v7598 = vunpack.c.l.bf16 %v7466
        %v7599 = vunpack.c.l.bf16 %v7467
        %v7600 = vunpack.c.l.bf16 %v7468
        %v7601 = vunpack.c.l.bf16 %v7469
        %v7602 = vunpack.c.h.bf16 %v7466
        %v7603 = vunpack.c.h.bf16 %v7467
        %v7604 = vunpack.c.h.bf16 %v7468
        %v7605 = vunpack.c.h.bf16 %v7469
        %v7606 = vunpack.c.l.bf16 %v7470
        %v7607 = vunpack.c.l.bf16 %v7471
        %v7608 = vunpack.c.l.bf16 %v7472
        %v7609 = vunpack.c.l.bf16 %v7473
        %v7610 = vunpack.c.h.bf16 %v7470
        %v7611 = vunpack.c.h.bf16 %v7471
        %v7612 = vunpack.c.h.bf16 %v7472
        %v7613 = vunpack.c.h.bf16 %v7473
        %v7614 = vunpack.c.l.bf16 %v7474
        %v7615 = vunpack.c.l.bf16 %v7475
        %v7616 = vunpack.c.l.bf16 %v7476
        %v7617 = vunpack.c.l.bf16 %v7477
        %v7618 = vunpack.c.h.bf16 %v7474
        %v7619 = vunpack.c.h.bf16 %v7475
        %v7620 = vunpack.c.h.bf16 %v7476
        %v7621 = vunpack.c.h.bf16 %v7477
        %v7622 = vunpack.c.l.bf16 %v7478
        %v7623 = vunpack.c.l.bf16 %v7479
        %v7624 = vunpack.c.l.bf16 %v7480
        %v7625 = vunpack.c.l.bf16 %v7481
        %v7626 = vunpack.c.h.bf16 %v7478
        %v7627 = vunpack.c.h.bf16 %v7479
        %v7628 = vunpack.c.h.bf16 %v7480
        %v7629 = vunpack.c.h.bf16 %v7481
        %v7630 = vunpack.c.l.bf16 %v7482
        %v7631 = vunpack.c.l.bf16 %v7483
        %v7632 = vunpack.c.l.bf16 %v7484
        %v7633 = vunpack.c.l.bf16 %v7485
        %v7634 = vunpack.c.h.bf16 %v7482
        %v7635 = vunpack.c.h.bf16 %v7483
        %v7636 = vunpack.c.h.bf16 %v7484
        %v7637 = vunpack.c.h.bf16 %v7485
        %v7638 = vunpack.c.l.bf16 %v7486
        %v7639 = vunpack.c.l.bf16 %v7487
        %v7640 = vunpack.c.l.bf16 %v7488
        %v7641 = vunpack.c.l.bf16 %v7489
        %v7642 = vunpack.c.h.bf16 %v7486
        %v7643 = vunpack.c.h.bf16 %v7487
        %v7644 = vunpack.c.h.bf16 %v7488
        %v7645 = vunpack.c.h.bf16 %v7489
        %v7646 = vunpack.c.l.bf16 %v7490
        %v7647 = vunpack.c.l.bf16 %v7491
        %v7648 = vunpack.c.l.bf16 %v7492
        %v7649 = vunpack.c.l.bf16 %v7493
        %v7650 = vunpack.c.h.bf16 %v7490
        %v7651 = vunpack.c.h.bf16 %v7491
        %v7652 = vunpack.c.h.bf16 %v7492
        %v7653 = vunpack.c.h.bf16 %v7493
        %v7654 = vunpack.c.l.bf16 %v7494
        %v7655 = vunpack.c.l.bf16 %v7495
        %v7656 = vunpack.c.l.bf16 %v7496
        %v7657 = vunpack.c.l.bf16 %v7497
        %v7658 = vunpack.c.h.bf16 %v7494
        %v7659 = vunpack.c.h.bf16 %v7495
        %v7660 = vunpack.c.h.bf16 %v7496
        %v7661 = vunpack.c.h.bf16 %v7497
        %v7662 = vunpack.c.l.bf16 %v7498
        %v7663 = vunpack.c.l.bf16 %v7499
        %v7664 = vunpack.c.l.bf16 %v7500
        %v7665 = vunpack.c.l.bf16 %v7501
        %v7666 = vunpack.c.h.bf16 %v7498
        %v7667 = vunpack.c.h.bf16 %v7499
        %v7668 = vunpack.c.h.bf16 %v7500
        %v7669 = vunpack.c.h.bf16 %v7501
        %v7670 = vunpack.c.l.bf16 %v7502
        %v7671 = vunpack.c.l.bf16 %v7503
        %v7672 = vunpack.c.l.bf16 %v7504
        %v7673 = vunpack.c.l.bf16 %v7505
        %v7674 = vunpack.c.h.bf16 %v7502
        %v7675 = vunpack.c.h.bf16 %v7503
        %v7676 = vunpack.c.h.bf16 %v7504
        %v7677 = vunpack.c.h.bf16 %v7505
        %v7678 = vunpack.c.l.bf16 %v7506
        %v7679 = vunpack.c.l.bf16 %v7507
        %v7680 = vunpack.c.l.bf16 %v7508
        %v7681 = vunpack.c.l.bf16 %v7509
        %v7682 = vunpack.c.h.bf16 %v7506
        %v7683 = vunpack.c.h.bf16 %v7507
        %v7684 = vunpack.c.h.bf16 %v7508
        %v7685 = vunpack.c.h.bf16 %v7509
        %v7686 = vunpack.c.l.bf16 %v7510
        %v7687 = vunpack.c.l.bf16 %v7511
        %v7688 = vunpack.c.l.bf16 %v7512
        %v7689 = vunpack.c.l.bf16 %v7513
        %v7690 = vunpack.c.h.bf16 %v7510
        %v7691 = vunpack.c.h.bf16 %v7511
        %v7692 = vunpack.c.h.bf16 %v7512
        %v7693 = vunpack.c.h.bf16 %v7513
        %v7694 = vunpack.c.l.bf16 %v7514
        %v7695 = vunpack.c.l.bf16 %v7515
        %v7696 = vunpack.c.l.bf16 %v7516
        %v7697 = vunpack.c.l.bf16 %v7517
        %v7698 = vunpack.c.h.bf16 %v7514
        %v7699 = vunpack.c.h.bf16 %v7515
        %v7700 = vunpack.c.h.bf16 %v7516
        %v7701 = vunpack.c.h.bf16 %v7517
        %v7702 = vunpack.c.l.bf16 %v7518
        %v7703 = vunpack.c.l.bf16 %v7519
        %v7704 = vunpack.c.l.bf16 %v7520
        %v7705 = vunpack.c.l.bf16 %v7521
        %v7706 = vunpack.c.h.bf16 %v7518
        %v7707 = vunpack.c.h.bf16 %v7519
        %v7708 = vunpack.c.h.bf16 %v7520
        %v7709 = vunpack.c.h.bf16 %v7521
        %v7710 = vunpack.c.l.bf16 %v7522
        %v7711 = vunpack.c.l.bf16 %v7523
        %v7712 = vunpack.c.l.bf16 %v7524
        %v7713 = vunpack.c.l.bf16 %v7525
        %v7714 = vunpack.c.h.bf16 %v7522
        %v7715 = vunpack.c.h.bf16 %v7523
        %v7716 = vunpack.c.h.bf16 %v7524
        %v7717 = vunpack.c.h.bf16 %v7525
        %s7718 = sadd.s32 %s37, %s38
        %s7719 = smul.u32 %s7718, 128
        %v7720 = vlaneseq
        %v7721 = vshrl.u32 %v7720, 7
        %v7722 = vadd.s32 %v7721, 8
        %v7723 = vadd.s32 %v7721, 16
        %v7724 = vadd.s32 %v7721, 24
        %v7725 = vadd.s32 %v7721, 32
        %v7726 = vadd.s32 %v7721, 40
        %v7727 = vadd.s32 %v7721, 48
        %v7728 = vadd.s32 %v7721, 56
        %v7729 = vadd.s32 %v7721, 64
        %v7730 = vadd.s32 %v7721, 72
        %v7731 = vadd.s32 %v7721, 80
        %v7732 = vadd.s32 %v7721, 88
        %v7733 = vadd.s32 %v7721, 96
        %v7734 = vadd.s32 %v7721, 104
        %v7735 = vadd.s32 %v7721, 112
        %v7736 = vadd.s32 %v7721, 120
        %v7737 = vstv %s7719
        %v7738 = vadd.s32 %v7737, %v7721
        %v7739 = vadd.s32 %v7737, %v7722
        %v7740 = vadd.s32 %v7737, %v7723
        %v7741 = vadd.s32 %v7737, %v7724
        %v7742 = vadd.s32 %v7737, %v7725
        %v7743 = vadd.s32 %v7737, %v7726
        %v7744 = vadd.s32 %v7737, %v7727
        %v7745 = vadd.s32 %v7737, %v7728
        %v7746 = vadd.s32 %v7737, %v7729
        %v7747 = vadd.s32 %v7737, %v7730
        %v7748 = vadd.s32 %v7737, %v7731
        %v7749 = vadd.s32 %v7737, %v7732
        %v7750 = vadd.s32 %v7737, %v7733
        %v7751 = vadd.s32 %v7737, %v7734
        %v7752 = vadd.s32 %v7737, %v7735
        %v7753 = vadd.s32 %v7737, %v7736
        %vm7754 = vcmp.lt.s32.totalorder %v7738, 8
        %vm7755 = vcmp.lt.s32.totalorder %v7739, 8
        %vm7756 = vcmp.lt.s32.totalorder %v7740, 8
        %vm7757 = vcmp.lt.s32.totalorder %v7741, 8
        %vm7758 = vcmp.lt.s32.totalorder %v7742, 8
        %vm7759 = vcmp.lt.s32.totalorder %v7743, 8
        %vm7760 = vcmp.lt.s32.totalorder %v7744, 8
        %vm7761 = vcmp.lt.s32.totalorder %v7745, 8
        %vm7762 = vcmp.lt.s32.totalorder %v7746, 8
        %vm7763 = vcmp.lt.s32.totalorder %v7747, 8
        %vm7764 = vcmp.lt.s32.totalorder %v7748, 8
        %vm7765 = vcmp.lt.s32.totalorder %v7749, 8
        %vm7766 = vcmp.lt.s32.totalorder %v7750, 8
        %vm7767 = vcmp.lt.s32.totalorder %v7751, 8
        %vm7768 = vcmp.lt.s32.totalorder %v7752, 8
        %vm7769 = vcmp.lt.s32.totalorder %v7753, 8
        %v7770 = vsel %vm7754, 1, 0
        %v7771 = vsel %vm7755, 1, 0
        %v7772 = vsel %vm7756, 1, 0
        %v7773 = vsel %vm7757, 1, 0
        %v7774 = vsel %vm7758, 1, 0
        %v7775 = vsel %vm7759, 1, 0
        %v7776 = vsel %vm7760, 1, 0
        %v7777 = vsel %vm7761, 1, 0
        %v7778 = vsel %vm7762, 1, 0
        %v7779 = vsel %vm7763, 1, 0
        %v7780 = vsel %vm7764, 1, 0
        %v7781 = vsel %vm7765, 1, 0
        %v7782 = vsel %vm7766, 1, 0
        %v7783 = vsel %vm7767, 1, 0
        %v7784 = vsel %vm7768, 1, 0
        %v7785 = vsel %vm7769, 1, 0
        %vm7786 = vcmp.eq.s32.totalorder %v7770, 1
        %vm7787 = vcmp.eq.s32.totalorder %v7771, 1
        %vm7788 = vcmp.eq.s32.totalorder %v7772, 1
        %vm7789 = vcmp.eq.s32.totalorder %v7773, 1
        %vm7790 = vcmp.eq.s32.totalorder %v7774, 1
        %vm7791 = vcmp.eq.s32.totalorder %v7775, 1
        %vm7792 = vcmp.eq.s32.totalorder %v7776, 1
        %vm7793 = vcmp.eq.s32.totalorder %v7777, 1
        %vm7794 = vcmp.eq.s32.totalorder %v7778, 1
        %vm7795 = vcmp.eq.s32.totalorder %v7779, 1
        %vm7796 = vcmp.eq.s32.totalorder %v7780, 1
        %vm7797 = vcmp.eq.s32.totalorder %v7781, 1
        %vm7798 = vcmp.eq.s32.totalorder %v7782, 1
        %vm7799 = vcmp.eq.s32.totalorder %v7783, 1
        %vm7800 = vcmp.eq.s32.totalorder %v7784, 1
        %vm7801 = vcmp.eq.s32.totalorder %v7785, 1
        %v7802 = vsel %vm7786, %v7526, -inf
        %v7803 = vsel %vm7786, %v7527, -inf
        %v7804 = vsel %vm7786, %v7528, -inf
        %v7805 = vsel %vm7786, %v7529, -inf
        %v7806 = vsel %vm7787, %v7530, -inf
        %v7807 = vsel %vm7787, %v7531, -inf
        %v7808 = vsel %vm7787, %v7532, -inf
        %v7809 = vsel %vm7787, %v7533, -inf
        %v7810 = vsel %vm7788, %v7534, -inf
        %v7811 = vsel %vm7788, %v7535, -inf
        %v7812 = vsel %vm7788, %v7536, -inf
        %v7813 = vsel %vm7788, %v7537, -inf
        %v7814 = vsel %vm7789, %v7538, -inf
        %v7815 = vsel %vm7789, %v7539, -inf
        %v7816 = vsel %vm7789, %v7540, -inf
        %v7817 = vsel %vm7789, %v7541, -inf
        %v7818 = vsel %vm7790, %v7542, -inf
        %v7819 = vsel %vm7790, %v7543, -inf
        %v7820 = vsel %vm7790, %v7544, -inf
        %v7821 = vsel %vm7790, %v7545, -inf
        %v7822 = vsel %vm7791, %v7546, -inf
        %v7823 = vsel %vm7791, %v7547, -inf
        %v7824 = vsel %vm7791, %v7548, -inf
        %v7825 = vsel %vm7791, %v7549, -inf
        %v7826 = vsel %vm7792, %v7550, -inf
        %v7827 = vsel %vm7792, %v7551, -inf
        %v7828 = vsel %vm7792, %v7552, -inf
        %v7829 = vsel %vm7792, %v7553, -inf
        %v7830 = vsel %vm7793, %v7554, -inf
        %v7831 = vsel %vm7793, %v7555, -inf
        %v7832 = vsel %vm7793, %v7556, -inf
        %v7833 = vsel %vm7793, %v7557, -inf
        %v7834 = vsel %vm7794, %v7558, -inf
        %v7835 = vsel %vm7794, %v7559, -inf
        %v7836 = vsel %vm7794, %v7560, -inf
        %v7837 = vsel %vm7794, %v7561, -inf
        %v7838 = vsel %vm7795, %v7562, -inf
        %v7839 = vsel %vm7795, %v7563, -inf
        %v7840 = vsel %vm7795, %v7564, -inf
        %v7841 = vsel %vm7795, %v7565, -inf
        %v7842 = vsel %vm7796, %v7566, -inf
        %v7843 = vsel %vm7796, %v7567, -inf
        %v7844 = vsel %vm7796, %v7568, -inf
        %v7845 = vsel %vm7796, %v7569, -inf
        %v7846 = vsel %vm7797, %v7570, -inf
        %v7847 = vsel %vm7797, %v7571, -inf
        %v7848 = vsel %vm7797, %v7572, -inf
        %v7849 = vsel %vm7797, %v7573, -inf
        %v7850 = vsel %vm7798, %v7574, -inf
        %v7851 = vsel %vm7798, %v7575, -inf
        %v7852 = vsel %vm7798, %v7576, -inf
        %v7853 = vsel %vm7798, %v7577, -inf
        %v7854 = vsel %vm7799, %v7578, -inf
        %v7855 = vsel %vm7799, %v7579, -inf
        %v7856 = vsel %vm7799, %v7580, -inf
        %v7857 = vsel %vm7799, %v7581, -inf
        %v7858 = vsel %vm7800, %v7582, -inf
        %v7859 = vsel %vm7800, %v7583, -inf
        %v7860 = vsel %vm7800, %v7584, -inf
        %v7861 = vsel %vm7800, %v7585, -inf
        %v7862 = vsel %vm7801, %v7586, -inf
        %v7863 = vsel %vm7801, %v7587, -inf
        %v7864 = vsel %vm7801, %v7588, -inf
        %v7865 = vsel %vm7801, %v7589, -inf
        %v7866 = vsel %vm7786, %v7590, -inf
        %v7867 = vsel %vm7786, %v7591, -inf
        %v7868 = vsel %vm7786, %v7592, -inf
        %v7869 = vsel %vm7786, %v7593, -inf
        %v7870 = vsel %vm7787, %v7594, -inf
        %v7871 = vsel %vm7787, %v7595, -inf
        %v7872 = vsel %vm7787, %v7596, -inf
        %v7873 = vsel %vm7787, %v7597, -inf
        %v7874 = vsel %vm7788, %v7598, -inf
        %v7875 = vsel %vm7788, %v7599, -inf
        %v7876 = vsel %vm7788, %v7600, -inf
        %v7877 = vsel %vm7788, %v7601, -inf
        %v7878 = vsel %vm7789, %v7602, -inf
        %v7879 = vsel %vm7789, %v7603, -inf
        %v7880 = vsel %vm7789, %v7604, -inf
        %v7881 = vsel %vm7789, %v7605, -inf
        %v7882 = vsel %vm7790, %v7606, -inf
        %v7883 = vsel %vm7790, %v7607, -inf
        %v7884 = vsel %vm7790, %v7608, -inf
        %v7885 = vsel %vm7790, %v7609, -inf
        %v7886 = vsel %vm7791, %v7610, -inf
        %v7887 = vsel %vm7791, %v7611, -inf
        %v7888 = vsel %vm7791, %v7612, -inf
        %v7889 = vsel %vm7791, %v7613, -inf
        %v7890 = vsel %vm7792, %v7614, -inf
        %v7891 = vsel %vm7792, %v7615, -inf
        %v7892 = vsel %vm7792, %v7616, -inf
        %v7893 = vsel %vm7792, %v7617, -inf
        %v7894 = vsel %vm7793, %v7618, -inf
        %v7895 = vsel %vm7793, %v7619, -inf
        %v7896 = vsel %vm7793, %v7620, -inf
        %v7897 = vsel %vm7793, %v7621, -inf
        %v7898 = vsel %vm7794, %v7622, -inf
        %v7899 = vsel %vm7794, %v7623, -inf
        %v7900 = vsel %vm7794, %v7624, -inf
        %v7901 = vsel %vm7794, %v7625, -inf
        %v7902 = vsel %vm7795, %v7626, -inf
        %v7903 = vsel %vm7795, %v7627, -inf
        %v7904 = vsel %vm7795, %v7628, -inf
        %v7905 = vsel %vm7795, %v7629, -inf
        %v7906 = vsel %vm7796, %v7630, -inf
        %v7907 = vsel %vm7796, %v7631, -inf
        %v7908 = vsel %vm7796, %v7632, -inf
        %v7909 = vsel %vm7796, %v7633, -inf
        %v7910 = vsel %vm7797, %v7634, -inf
        %v7911 = vsel %vm7797, %v7635, -inf
        %v7912 = vsel %vm7797, %v7636, -inf
        %v7913 = vsel %vm7797, %v7637, -inf
        %v7914 = vsel %vm7798, %v7638, -inf
        %v7915 = vsel %vm7798, %v7639, -inf
        %v7916 = vsel %vm7798, %v7640, -inf
        %v7917 = vsel %vm7798, %v7641, -inf
        %v7918 = vsel %vm7799, %v7642, -inf
        %v7919 = vsel %vm7799, %v7643, -inf
        %v7920 = vsel %vm7799, %v7644, -inf
        %v7921 = vsel %vm7799, %v7645, -inf
        %v7922 = vsel %vm7800, %v7646, -inf
        %v7923 = vsel %vm7800, %v7647, -inf
        %v7924 = vsel %vm7800, %v7648, -inf
        %v7925 = vsel %vm7800, %v7649, -inf
        %v7926 = vsel %vm7801, %v7650, -inf
        %v7927 = vsel %vm7801, %v7651, -inf
        %v7928 = vsel %vm7801, %v7652, -inf
        %v7929 = vsel %vm7801, %v7653, -inf
        %v7930 = vsel %vm7786, %v7654, -inf
        %v7931 = vsel %vm7786, %v7655, -inf
        %v7932 = vsel %vm7786, %v7656, -inf
        %v7933 = vsel %vm7786, %v7657, -inf
        %v7934 = vsel %vm7787, %v7658, -inf
        %v7935 = vsel %vm7787, %v7659, -inf
        %v7936 = vsel %vm7787, %v7660, -inf
        %v7937 = vsel %vm7787, %v7661, -inf
        %v7938 = vsel %vm7788, %v7662, -inf
        %v7939 = vsel %vm7788, %v7663, -inf
        %v7940 = vsel %vm7788, %v7664, -inf
        %v7941 = vsel %vm7788, %v7665, -inf
        %v7942 = vsel %vm7789, %v7666, -inf
        %v7943 = vsel %vm7789, %v7667, -inf
        %v7944 = vsel %vm7789, %v7668, -inf
        %v7945 = vsel %vm7789, %v7669, -inf
        %v7946 = vsel %vm7790, %v7670, -inf
        %v7947 = vsel %vm7790, %v7671, -inf
        %v7948 = vsel %vm7790, %v7672, -inf
        %v7949 = vsel %vm7790, %v7673, -inf
        %v7950 = vsel %vm7791, %v7674, -inf
        %v7951 = vsel %vm7791, %v7675, -inf
        %v7952 = vsel %vm7791, %v7676, -inf
        %v7953 = vsel %vm7791, %v7677, -inf
        %v7954 = vsel %vm7792, %v7678, -inf
        %v7955 = vsel %vm7792, %v7679, -inf
        %v7956 = vsel %vm7792, %v7680, -inf
        %v7957 = vsel %vm7792, %v7681, -inf
        %v7958 = vsel %vm7793, %v7682, -inf
        %v7959 = vsel %vm7793, %v7683, -inf
        %v7960 = vsel %vm7793, %v7684, -inf
        %v7961 = vsel %vm7793, %v7685, -inf
        %v7962 = vsel %vm7794, %v7686, -inf
        %v7963 = vsel %vm7794, %v7687, -inf
        %v7964 = vsel %vm7794, %v7688, -inf
        %v7965 = vsel %vm7794, %v7689, -inf
        %v7966 = vsel %vm7795, %v7690, -inf
        %v7967 = vsel %vm7795, %v7691, -inf
        %v7968 = vsel %vm7795, %v7692, -inf
        %v7969 = vsel %vm7795, %v7693, -inf
        %v7970 = vsel %vm7796, %v7694, -inf
        %v7971 = vsel %vm7796, %v7695, -inf
        %v7972 = vsel %vm7796, %v7696, -inf
        %v7973 = vsel %vm7796, %v7697, -inf
        %v7974 = vsel %vm7797, %v7698, -inf
        %v7975 = vsel %vm7797, %v7699, -inf
        %v7976 = vsel %vm7797, %v7700, -inf
        %v7977 = vsel %vm7797, %v7701, -inf
        %v7978 = vsel %vm7798, %v7702, -inf
        %v7979 = vsel %vm7798, %v7703, -inf
        %v7980 = vsel %vm7798, %v7704, -inf
        %v7981 = vsel %vm7798, %v7705, -inf
        %v7982 = vsel %vm7799, %v7706, -inf
        %v7983 = vsel %vm7799, %v7707, -inf
        %v7984 = vsel %vm7799, %v7708, -inf
        %v7985 = vsel %vm7799, %v7709, -inf
        %v7986 = vsel %vm7800, %v7710, -inf
        %v7987 = vsel %vm7800, %v7711, -inf
        %v7988 = vsel %vm7800, %v7712, -inf
        %v7989 = vsel %vm7800, %v7713, -inf
        %v7990 = vsel %vm7801, %v7714, -inf
        %v7991 = vsel %vm7801, %v7715, -inf
        %v7992 = vsel %vm7801, %v7716, -inf
        %v7993 = vsel %vm7801, %v7717, -inf
        %v7994 = vmax.f32 %v7802, %v7806
        %v7995 = vmax.f32 %v7994, %v7810
        %v7996 = vmax.f32 %v7995, %v7814
        %v7997 = vmax.f32 %v7996, %v7818
        %v7998 = vmax.f32 %v7997, %v7822
        %v7999 = vmax.f32 %v7998, %v7826
        %v8000 = vmax.f32 %v7999, %v7830
        %v8001 = vmax.f32 %v8000, %v7834
        %v8002 = vmax.f32 %v8001, %v7838
        %v8003 = vmax.f32 %v8002, %v7842
        %v8004 = vmax.f32 %v8003, %v7846
        %v8005 = vmax.f32 %v8004, %v7850
        %v8006 = vmax.f32 %v8005, %v7854
        %v8007 = vmax.f32 %v8006, %v7858
        %v8008 = vmax.f32 %v8007, %v7862
        %v8009 = vrot.slane %v8008, 4
        %v8010 = vmax.f32 %v8008, %v8009
        %v8011 = vrot.slane %v8010, 2
        %v8012 = vmax.f32 %v8010, %v8011
        %v8013 = vrot.slane %v8012, 1
        %v8014 = vmax.f32 %v8012, %v8013
        %v8015 = vmax.f32 %v7803, %v7807
        %v8016 = vmax.f32 %v8015, %v7811
        %v8017 = vmax.f32 %v8016, %v7815
        %v8018 = vmax.f32 %v8017, %v7819
        %v8019 = vmax.f32 %v8018, %v7823
        %v8020 = vmax.f32 %v8019, %v7827
        %v8021 = vmax.f32 %v8020, %v7831
        %v8022 = vmax.f32 %v8021, %v7835
        %v8023 = vmax.f32 %v8022, %v7839
        %v8024 = vmax.f32 %v8023, %v7843
        %v8025 = vmax.f32 %v8024, %v7847
        %v8026 = vmax.f32 %v8025, %v7851
        %v8027 = vmax.f32 %v8026, %v7855
        %v8028 = vmax.f32 %v8027, %v7859
        %v8029 = vmax.f32 %v8028, %v7863
        %v8030 = vrot.slane %v8029, 4
        %v8031 = vmax.f32 %v8029, %v8030
        %v8032 = vrot.slane %v8031, 2
        %v8033 = vmax.f32 %v8031, %v8032
        %v8034 = vrot.slane %v8033, 1
        %v8035 = vmax.f32 %v8033, %v8034
        %v8036 = vmax.f32 %v7804, %v7808
        %v8037 = vmax.f32 %v8036, %v7812
        %v8038 = vmax.f32 %v8037, %v7816
        %v8039 = vmax.f32 %v8038, %v7820
        %v8040 = vmax.f32 %v8039, %v7824
        %v8041 = vmax.f32 %v8040, %v7828
        %v8042 = vmax.f32 %v8041, %v7832
        %v8043 = vmax.f32 %v8042, %v7836
        %v8044 = vmax.f32 %v8043, %v7840
        %v8045 = vmax.f32 %v8044, %v7844
        %v8046 = vmax.f32 %v8045, %v7848
        %v8047 = vmax.f32 %v8046, %v7852
        %v8048 = vmax.f32 %v8047, %v7856
        %v8049 = vmax.f32 %v8048, %v7860
        %v8050 = vmax.f32 %v8049, %v7864
        %v8051 = vrot.slane %v8050, 4
        %v8052 = vmax.f32 %v8050, %v8051
        %v8053 = vrot.slane %v8052, 2
        %v8054 = vmax.f32 %v8052, %v8053
        %v8055 = vrot.slane %v8054, 1
        %v8056 = vmax.f32 %v8054, %v8055
        %v8057 = vmax.f32 %v7805, %v7809
        %v8058 = vmax.f32 %v8057, %v7813
        %v8059 = vmax.f32 %v8058, %v7817
        %v8060 = vmax.f32 %v8059, %v7821
        %v8061 = vmax.f32 %v8060, %v7825
        %v8062 = vmax.f32 %v8061, %v7829
        %v8063 = vmax.f32 %v8062, %v7833
        %v8064 = vmax.f32 %v8063, %v7837
        %v8065 = vmax.f32 %v8064, %v7841
        %v8066 = vmax.f32 %v8065, %v7845
        %v8067 = vmax.f32 %v8066, %v7849
        %v8068 = vmax.f32 %v8067, %v7853
        %v8069 = vmax.f32 %v8068, %v7857
        %v8070 = vmax.f32 %v8069, %v7861
        %v8071 = vmax.f32 %v8070, %v7865
        %v8072 = vrot.slane %v8071, 4
        %v8073 = vmax.f32 %v8071, %v8072
        %v8074 = vrot.slane %v8073, 2
        %v8075 = vmax.f32 %v8073, %v8074
        %v8076 = vrot.slane %v8075, 1
        %v8077 = vmax.f32 %v8075, %v8076
        %v8078 = vmax.f32 %v7866, %v7870
        %v8079 = vmax.f32 %v8078, %v7874
        %v8080 = vmax.f32 %v8079, %v7878
        %v8081 = vmax.f32 %v8080, %v7882
        %v8082 = vmax.f32 %v8081, %v7886
        %v8083 = vmax.f32 %v8082, %v7890
        %v8084 = vmax.f32 %v8083, %v7894
        %v8085 = vmax.f32 %v8084, %v7898
        %v8086 = vmax.f32 %v8085, %v7902
        %v8087 = vmax.f32 %v8086, %v7906
        %v8088 = vmax.f32 %v8087, %v7910
        %v8089 = vmax.f32 %v8088, %v7914
        %v8090 = vmax.f32 %v8089, %v7918
        %v8091 = vmax.f32 %v8090, %v7922
        %v8092 = vmax.f32 %v8091, %v7926
        %v8093 = vrot.slane %v8092, 4
        %v8094 = vmax.f32 %v8092, %v8093
        %v8095 = vrot.slane %v8094, 2
        %v8096 = vmax.f32 %v8094, %v8095
        %v8097 = vrot.slane %v8096, 1
        %v8098 = vmax.f32 %v8096, %v8097
        %v8099 = vmax.f32 %v7867, %v7871
        %v8100 = vmax.f32 %v8099, %v7875
        %v8101 = vmax.f32 %v8100, %v7879
        %v8102 = vmax.f32 %v8101, %v7883
        %v8103 = vmax.f32 %v8102, %v7887
        %v8104 = vmax.f32 %v8103, %v7891
        %v8105 = vmax.f32 %v8104, %v7895
        %v8106 = vmax.f32 %v8105, %v7899
        %v8107 = vmax.f32 %v8106, %v7903
        %v8108 = vmax.f32 %v8107, %v7907
        %v8109 = vmax.f32 %v8108, %v7911
        %v8110 = vmax.f32 %v8109, %v7915
        %v8111 = vmax.f32 %v8110, %v7919
        %v8112 = vmax.f32 %v8111, %v7923
        %v8113 = vmax.f32 %v8112, %v7927
        %v8114 = vrot.slane %v8113, 4
        %v8115 = vmax.f32 %v8113, %v8114
        %v8116 = vrot.slane %v8115, 2
        %v8117 = vmax.f32 %v8115, %v8116
        %v8118 = vrot.slane %v8117, 1
        %v8119 = vmax.f32 %v8117, %v8118
        %v8120 = vmax.f32 %v7868, %v7872
        %v8121 = vmax.f32 %v8120, %v7876
        %v8122 = vmax.f32 %v8121, %v7880
        %v8123 = vmax.f32 %v8122, %v7884
        %v8124 = vmax.f32 %v8123, %v7888
        %v8125 = vmax.f32 %v8124, %v7892
        %v8126 = vmax.f32 %v8125, %v7896
        %v8127 = vmax.f32 %v8126, %v7900
        %v8128 = vmax.f32 %v8127, %v7904
        %v8129 = vmax.f32 %v8128, %v7908
        %v8130 = vmax.f32 %v8129, %v7912
        %v8131 = vmax.f32 %v8130, %v7916
        %v8132 = vmax.f32 %v8131, %v7920
        %v8133 = vmax.f32 %v8132, %v7924
        %v8134 = vmax.f32 %v8133, %v7928
        %v8135 = vrot.slane %v8134, 4
        %v8136 = vmax.f32 %v8134, %v8135
        %v8137 = vrot.slane %v8136, 2
        %v8138 = vmax.f32 %v8136, %v8137
        %v8139 = vrot.slane %v8138, 1
        %v8140 = vmax.f32 %v8138, %v8139
        %v8141 = vmax.f32 %v7869, %v7873
        %v8142 = vmax.f32 %v8141, %v7877
        %v8143 = vmax.f32 %v8142, %v7881
        %v8144 = vmax.f32 %v8143, %v7885
        %v8145 = vmax.f32 %v8144, %v7889
        %v8146 = vmax.f32 %v8145, %v7893
        %v8147 = vmax.f32 %v8146, %v7897
        %v8148 = vmax.f32 %v8147, %v7901
        %v8149 = vmax.f32 %v8148, %v7905
        %v8150 = vmax.f32 %v8149, %v7909
        %v8151 = vmax.f32 %v8150, %v7913
        %v8152 = vmax.f32 %v8151, %v7917
        %v8153 = vmax.f32 %v8152, %v7921
        %v8154 = vmax.f32 %v8153, %v7925
        %v8155 = vmax.f32 %v8154, %v7929
        %v8156 = vrot.slane %v8155, 4
        %v8157 = vmax.f32 %v8155, %v8156
        %v8158 = vrot.slane %v8157, 2
        %v8159 = vmax.f32 %v8157, %v8158
        %v8160 = vrot.slane %v8159, 1
        %v8161 = vmax.f32 %v8159, %v8160
        %v8162 = vmax.f32 %v7930, %v7934
        %v8163 = vmax.f32 %v8162, %v7938
        %v8164 = vmax.f32 %v8163, %v7942
        %v8165 = vmax.f32 %v8164, %v7946
        %v8166 = vmax.f32 %v8165, %v7950
        %v8167 = vmax.f32 %v8166, %v7954
        %v8168 = vmax.f32 %v8167, %v7958
        %v8169 = vmax.f32 %v8168, %v7962
        %v8170 = vmax.f32 %v8169, %v7966
        %v8171 = vmax.f32 %v8170, %v7970
        %v8172 = vmax.f32 %v8171, %v7974
        %v8173 = vmax.f32 %v8172, %v7978
        %v8174 = vmax.f32 %v8173, %v7982
        %v8175 = vmax.f32 %v8174, %v7986
        %v8176 = vmax.f32 %v8175, %v7990
        %v8177 = vrot.slane %v8176, 4
        %v8178 = vmax.f32 %v8176, %v8177
        %v8179 = vrot.slane %v8178, 2
        %v8180 = vmax.f32 %v8178, %v8179
        %v8181 = vrot.slane %v8180, 1
        %v8182 = vmax.f32 %v8180, %v8181
        %v8183 = vmax.f32 %v7931, %v7935
        %v8184 = vmax.f32 %v8183, %v7939
        %v8185 = vmax.f32 %v8184, %v7943
        %v8186 = vmax.f32 %v8185, %v7947
        %v8187 = vmax.f32 %v8186, %v7951
        %v8188 = vmax.f32 %v8187, %v7955
        %v8189 = vmax.f32 %v8188, %v7959
        %v8190 = vmax.f32 %v8189, %v7963
        %v8191 = vmax.f32 %v8190, %v7967
        %v8192 = vmax.f32 %v8191, %v7971
        %v8193 = vmax.f32 %v8192, %v7975
        %v8194 = vmax.f32 %v8193, %v7979
        %v8195 = vmax.f32 %v8194, %v7983
        %v8196 = vmax.f32 %v8195, %v7987
        %v8197 = vmax.f32 %v8196, %v7991
        %v8198 = vrot.slane %v8197, 4
        %v8199 = vmax.f32 %v8197, %v8198
        %v8200 = vrot.slane %v8199, 2
        %v8201 = vmax.f32 %v8199, %v8200
        %v8202 = vrot.slane %v8201, 1
        %v8203 = vmax.f32 %v8201, %v8202
        %v8204 = vmax.f32 %v7932, %v7936
        %v8205 = vmax.f32 %v8204, %v7940
        %v8206 = vmax.f32 %v8205, %v7944
        %v8207 = vmax.f32 %v8206, %v7948
        %v8208 = vmax.f32 %v8207, %v7952
        %v8209 = vmax.f32 %v8208, %v7956
        %v8210 = vmax.f32 %v8209, %v7960
        %v8211 = vmax.f32 %v8210, %v7964
        %v8212 = vmax.f32 %v8211, %v7968
        %v8213 = vmax.f32 %v8212, %v7972
        %v8214 = vmax.f32 %v8213, %v7976
        %v8215 = vmax.f32 %v8214, %v7980
        %v8216 = vmax.f32 %v8215, %v7984
        %v8217 = vmax.f32 %v8216, %v7988
        %v8218 = vmax.f32 %v8217, %v7992
        %v8219 = vrot.slane %v8218, 4
        %v8220 = vmax.f32 %v8218, %v8219
        %v8221 = vrot.slane %v8220, 2
        %v8222 = vmax.f32 %v8220, %v8221
        %v8223 = vrot.slane %v8222, 1
        %v8224 = vmax.f32 %v8222, %v8223
        %v8225 = vmax.f32 %v7933, %v7937
        %v8226 = vmax.f32 %v8225, %v7941
        %v8227 = vmax.f32 %v8226, %v7945
        %v8228 = vmax.f32 %v8227, %v7949
        %v8229 = vmax.f32 %v8228, %v7953
        %v8230 = vmax.f32 %v8229, %v7957
        %v8231 = vmax.f32 %v8230, %v7961
        %v8232 = vmax.f32 %v8231, %v7965
        %v8233 = vmax.f32 %v8232, %v7969
        %v8234 = vmax.f32 %v8233, %v7973
        %v8235 = vmax.f32 %v8234, %v7977
        %v8236 = vmax.f32 %v8235, %v7981
        %v8237 = vmax.f32 %v8236, %v7985
        %v8238 = vmax.f32 %v8237, %v7989
        %v8239 = vmax.f32 %v8238, %v7993
        %v8240 = vrot.slane %v8239, 4
        %v8241 = vmax.f32 %v8239, %v8240
        %v8242 = vrot.slane %v8241, 2
        %v8243 = vmax.f32 %v8241, %v8242
        %v8244 = vrot.slane %v8243, 1
        %v8245 = vmax.f32 %v8243, %v8244
        %p8246 = scmp.eq.s32.totalorder %s38, 0
        %v8247 = vld [vmem:[%s406] sm:$0x77]
        %v8248 = vld [vmem:[%s406 + $0x8] sm:$0x77]
        %s8249 = scalar_select %p8246, 1, 0
        %v8250 = vstv %s8249
        %vm8251 = vcmp.eq.s32.totalorder %v8250, 1
        %v8252 = vsel %vm8251, -inf, %v8247
        %v8253 = vsel %vm8251, -inf, %v8248
        %v8256 = vcombine.high %v8252, %v8252
        %v8257 = vcombine.high %v8253, %v8253
        %v8258 = vrot.slane %v8252, 1
        %v8259 = vrot.slane %v8256, 1
        %v8260 = vrot.slane %v8253, 1
        %v8261 = vrot.slane %v8257, 1
        %v8262 = vrot.slane %v8252, 2
        %v8263 = vrot.slane %v8256, 2
        %v8264 = vrot.slane %v8253, 2
        %v8265 = vrot.slane %v8257, 2
        %v8278 = vmax.f32 %v8014, %v8252
        %v8279 = vmax.f32 %v8035, %v8256
        %v8280 = vmax.f32 %v8056, %v8253
        %v8281 = vmax.f32 %v8077, %v8257
        %v8282 = vmax.f32 %v8098, %v8258
        %v8283 = vmax.f32 %v8119, %v8259
        %v8284 = vmax.f32 %v8140, %v8260
        %v8285 = vmax.f32 %v8161, %v8261
        %v8286 = vmax.f32 %v8182, %v8262
        %v8287 = vmax.f32 %v8203, %v8263
        %v8288 = vmax.f32 %v8224, %v8264
        %v8289 = vmax.f32 %v8245, %v8265
        %v8302 = vcombine.low %v8278, %v8279
        %v8303 = vcombine.low %v8280, %v8281
        %v8304 = vcombine.low %v8282, %v8283
        %v8305 = vcombine.low %v8284, %v8285
        %v8306 = vcombine.low %v8286, %v8287
        %v8307 = vcombine.low %v8288, %v8289
        %v8308 = vrot.slane %v8304, 7
        %vm8309 = vcmask 1041409
        %v8310 = vsel %vm8309, %v8308, %v8302
        %vm8311 = vcmask 1045509
        %v8312 = vsel %vm8311, %v8308, %v8310
        %v8313 = vrot.slane %v8306, 6
        %vm8314 = vcmask 1042434
        %v8315 = vsel %vm8314, %v8313, %v8312
        %vm8316 = vcmask 1046534
        %v8317 = vsel %vm8316, %v8313, %v8315
        %v8318 = vrot.slane %v8305, 7
        %v8319 = vsel %vm8309, %v8318, %v8303
        %v8320 = vsel %vm8311, %v8318, %v8319
        %v8321 = vrot.slane %v8307, 6
        %v8322 = vsel %vm8314, %v8321, %v8320
        %v8323 = vsel %vm8316, %v8321, %v8322
        %8326 = vst [vmem:[%s406] sm:$0x77] %v8317
        %8327 = vst [vmem:[%s406 + $0x8] sm:$0x77] %v8323
        %s8328 = sand.u32 %s197, 1
        %s8329 = scalar_lea.sflag [#allocation4], %s8328
        %s8330 = sand.u32 %s197, 1
        %s8331 = smul.addr %s8330, 96
        %s8332 = scalar_lea.vmem [#allocation13], %s8331
        %s8333 = sand.u32 %s225, 1
        %s8334 = scalar_lea.sflag [#allocation15], %s8333
        %s8335 = sand.u32 %s225, 1
        %s8336 = smul.addr %s8335, 16
        %s8337 = scalar_lea.vmem [#allocation14], %s8336
        // Predicated region
        $region69: #{tpu_custom_call.1} parent=43 // pred_check
          %p8338 = pneg %p207
        $region70: #{tpu_custom_call.1} parent=43 // pred_check_branch
          %8340 = sbr.rel (%p8338) target = $region72
        $region71: #{tpu_custom_call.1} parent=43 // pred_region
          %s8341 = sadd.s32 %s37, %s38
          %s8343 = ssub.s32 1536, 1536
          %8344 = vsyncadd %s8329, %s8343
          %s8345 = smul.addr %s36, 24
          %s8346 = sadd.s32 %s8341, %s8345
          %s8347 = smul.addr %s8346, 64
          %s8348 = scalar_lea.hbm %s6, %s8347
          %s8349 = sshll.u32 %s8332, 4
          %s8350 = int_to_ptr.vmem [resolvable:$true] %s8349
          %8355 = dma.vmem_to_hbm [thread:$0]  %s8350, 1536, %s8348, %s8329, 64, 64, 4
        $region72: #{tpu_custom_call.1} parent=43 // pred_fallthru
          _
        // Predicated region
        $region73: #{tpu_custom_call.1} parent=43 // pred_check
          %p8356 = pneg %p235
        $region74: #{tpu_custom_call.1} parent=43 // pred_check_branch
          %8358 = sbr.rel (%p8356) target = $region76
        $region75: #{tpu_custom_call.1} parent=43 // pred_region
          %s8360 = ssub.s32 256, 256
          %8361 = vsyncadd %s8334, %s8360
          %s8362 = smul.addr %s37, 4
          %s8363 = smul.addr %s36, 4
          %s8364 = sadd.s32 %s8362, %s8363
          %s8365 = smul.addr %s8364, 64
          %s8366 = scalar_lea.hbm %s7, %s8365
          %s8368 = sshll.u32 %s8337, 4
          %s8369 = int_to_ptr.vmem [resolvable:$true] %s8368
          %8371 = dma.vmem_to_hbm [thread:$0]  %s8369, 256, %s8366, %s8334
        $region76: #{tpu_custom_call.1} parent=43 // pred_fallthru
          _
      $region44: #{tpu_custom_call.1} parent=5 // pred_fallthru
        _
      %p8372 = scmp.le.s32.totalorder 2, %s26
      // Predicated region
      $region77: #{tpu_custom_call.1} parent=5 // pred_check
        %p8373 = pneg %p8372
      $region78: #{tpu_custom_call.1} parent=5 // pred_check_branch
        %8375 = sbr.rel (%p8373) target = $region80
      $region79: #{tpu_custom_call.1} parent=5 // pred_region
        %s8376 = ssub.s32 %s26, 2
        // Predicated region
        $region81: #{tpu_custom_call.1} parent=79 // pred_check
          %p8377 = pneg %p213
        $region82: #{tpu_custom_call.1} parent=79 // pred_check_branch
          %8379 = sbr.rel (%p8377) target = $region84
        $region83: #{tpu_custom_call.1} parent=79 // pred_region
          %s8380 = sand.u32 %s198, 1
          %s8381 = scalar_lea.sflag [#allocation4], %s8380
          %s8382 = sand.u32 %s198, 1
          %s8383 = smul.addr %s8382, 96
          %s8384 = scalar_lea.vmem [#allocation13], %s8383
          %8385 = dma.done %s8381, 1536
        $region84: #{tpu_custom_call.1} parent=79 // pred_fallthru
          _
        // Predicated region
        $region85: #{tpu_custom_call.1} parent=79 // pred_check
          %p8386 = pneg %p241
        $region86: #{tpu_custom_call.1} parent=79 // pred_check_branch
          %8388 = sbr.rel (%p8386) target = $region88
        $region87: #{tpu_custom_call.1} parent=79 // pred_region
          %s8389 = sand.u32 %s226, 1
          %s8390 = scalar_lea.sflag [#allocation15], %s8389
          %s8391 = sand.u32 %s226, 1
          %s8392 = smul.addr %s8391, 16
          %s8393 = scalar_lea.vmem [#allocation14], %s8392
          %8394 = dma.done %s8390, 256
        $region88: #{tpu_custom_call.1} parent=79 // pred_fallthru
          _
      $region80: #{tpu_custom_call.1} parent=5 // pred_fallthru
        _
    $region6: #{tpu_custom_call.1} parent=1 // loop_footer
      %s30 = sadd.s32 1, %s26
    $region7: #{tpu_custom_call.1} parent=1 // loop_footer_branch
      %25 = sbr.rel target = $region3
    $region8: #{tpu_custom_call.1} parent=1 // loop_exit
      _
    %8395 = vsyncpa [#allocation3], 1
    %s8396 = scalar_lea.sflag [#allocation3], 1
    %8397 = vsyncpa %s8396, 1
    %8398 = vsyncpa [#allocation6], 1
    %8399 = vsyncpa [#allocation9], 1
    %8400 = vsyncpa [#allocation12], 1
    %8401 = vsyncpa [#allocation4], 1
    %s8402 = scalar_lea.sflag [#allocation4], 1
    %8403 = vsyncpa %s8402, 1
    %8404 = vsyncpa [#allocation15], 1
    %s8405 = scalar_lea.sflag [#allocation15], 1
    %8406 = vsyncpa %s8405, 1

</llo_original>
